<compile_context>
chip_gen: v7x
topology: tpu7x:2x2x1
jax: 0.10.0
libtpu: 0.0.40
codegen_flags: <defaults>
</compile_context>

<pallas_src>
import functools

import jax
import jax.numpy as jnp
from jax.experimental import pallas as pl
from jax.experimental.pallas import tpu as pltpu

# ---------------------------------------------------------------------------
# Static network geometry (6x10 input makes layer4's Linear(1536, 625) valid).
# ---------------------------------------------------------------------------
H_IN, W_IN = 6, 10
H1, W1 = H_IN + 1, W_IN + 1          # conv1 (k=2, p=1) output: 7 x 11
P1H, P1W = H1 // 2, W1 // 2          # pool1 (2,2 floor):       3 x 5
H2, W2 = P1H, P1W                    # conv2 (k=3, p=1) output: 3 x 5
H3, W3 = H2 + 1, W2 + 1              # conv3 (k=2, p=1) output: 4 x 6
P3H, P3W = H3 // 2, W3 // 2          # pool3:                   2 x 3
PH, PW = H2 + 2, W2 + 2              # padded staging grid for conv2/conv3 inputs: 5 x 7
C1, C2, C3 = 32, 128, 256
FEAT = C3 * P3H * P3W                # 1536
FC_HID = 625
FC_PAD = 640                         # 5 * 128 lanes (zero-padded)
N_CLASSES = 24


# ---------------------------------------------------------------------------
# The single fused kernel
# ---------------------------------------------------------------------------
def _fused_cnn_kernel(N,
                      cols1_ref, c1w_ref, c1b_ref,
                      c2w_ref, c2b_ref, c3w_ref, c3b_ref,
                      b1_ref, b2_ref, b3_ref, b4_ref,
                      w1_hbm, w2_hbm, w3_hbm, w4_hbm,
                      out_ref,
                      a1_ref, c2in_ref, c2im_ref, c3in_ref, c3im_ref, feat_ref,
                      w1_v, w2_v, w3_v, w4_v, dma_sems):
    f32 = jnp.float32
    bf16 = jnp.bfloat16

    # --- Kick off the fc-weight HBM->VMEM DMAs; they overlap the conv phase.
    cp1 = pltpu.make_async_copy(w1_hbm, w1_v, dma_sems.at[0]); cp1.start()
    cp2 = pltpu.make_async_copy(w2_hbm, w2_v, dma_sems.at[1]); cp2.start()
    cp3 = pltpu.make_async_copy(w3_hbm, w3_v, dma_sems.at[2]); cp3.start()
    cp4 = pltpu.make_async_copy(w4_hbm, w4_v, dma_sems.at[3]); cp4.start()

    # Zero the padded-input staging grids (their borders ARE the conv padding).
    c2in_ref[...] = jnp.zeros_like(c2in_ref)
    c3in_ref[...] = jnp.zeros_like(c3in_ref)

    # ---------------- layer1: Conv(1->32, k=2, p=1) + ReLU on the VPU -------
    # cols1: (N*7*11, 4) im2col of the padded input; column k = di*2 + dj.
    cols1 = cols1_ref[...]
    w1c = c1w_ref[...]                                    # (4, 32) f32
    a1 = cols1[:, 0:1] * w1c[0:1, :]
    for k in range(1, 4):
        a1 = a1 + cols1[:, k:k + 1] * w1c[k:k + 1, :]
    a1_ref[...] = jnp.maximum(a1 + c1b_ref[...], 0.0)     # (N*77, 32)

    # ---------------- MaxPool(2,2) -> conv2 padded-input staging ------------
    # a1 rows: n*77 + i*11 + j.   c2in rows: n*35 + h*7 + w (5x7 padded grid).
    for n in range(N):
        for oi in range(P1H):
            r0 = n * (H1 * W1) + (2 * oi) * W1
            ra = a1_ref[pl.ds(r0, 2 * P1W), :]             # conv row 2oi,   j=0..9
            rb = a1_ref[pl.ds(r0 + W1, 2 * P1W), :]        # conv row 2oi+1, j=0..9
            m = jnp.maximum(ra, rb)                        # (10, 32)
            for oj in range(P1W):
                p = jnp.maximum(m[2 * oj:2 * oj + 1, :], m[2 * oj + 1:2 * oj + 2, :])
                dst = n * (PH * PW) + (oi + 1) * PW + (oj + 1)
                c2in_ref[pl.ds(dst, 1), :] = p

    # ---------------- layer2: Conv(32->128, k=3, p=1) + ReLU on the MXU -----
    # Assemble im2col (N*3*5, 9*32) by slab copies, then one GEMM.
    for n in range(N):
        for i in range(H2):
            dst_r = (n * H2 + i) * W2
            for di in range(3):
                for dj in range(3):
                    src_r = n * (PH * PW) + (i + di) * PW + dj
                    col = (di * 3 + dj) * C1
                    c2im_ref[pl.ds(dst_r, W2), pl.ds(col, C1)] = \
                        c2in_ref[pl.ds(src_r, W2), :]
    a2 = jnp.dot(c2im_ref[...].astype(bf16), c2w_ref[...],
                 preferred_element_type=f32)               # (N*15, 128)
    a2 = jnp.maximum(a2 + c2b_ref[...], 0.0)

    # ---------------- scatter conv2 output into conv3's padded staging ------
    for n in range(N):
        for i in range(H2):
            src = (n * H2 + i) * W2
            dst = n * (PH * PW) + (i + 1) * PW + 1
            c3in_ref[pl.ds(dst, W2), :] = a2[src:src + W2, :]

    # ---------------- layer3: Conv(128->256, k=2, p=1) + ReLU on the MXU ----
    for n in range(N):
        for i in range(H3):
            dst_r = (n * H3 + i) * W3
            for di in range(2):
                for dj in range(2):
                    src_r = n * (PH * PW) + (i + di) * PW + dj
                    col = (di * 2 + dj) * C2
                    c3im_ref[pl.ds(dst_r, W3), pl.ds(col, C2)] = \
                        c3in_ref[pl.ds(src_r, W3), :]
    a3 = jnp.dot(c3im_ref[...].astype(bf16), c3w_ref[...],
                 preferred_element_type=f32)               # (N*24, 256)
    a3 = jnp.maximum(a3 + c3b_ref[...], 0.0)

    # ---------------- MaxPool(2,2) -> flattened NHWC feature rows -----------
    for n in range(N):
        for oi in range(P3H):
            r0 = n * (H3 * W3) + (2 * oi) * W3
            m = jnp.maximum(a3[r0:r0 + W3, :], a3[r0 + W3:r0 + 2 * W3, :])   # (6, 256)
            for oj in range(P3W):
                p = jnp.maximum(m[2 * oj:2 * oj + 1, :], m[2 * oj + 1:2 * oj + 2, :])
                feat_ref[pl.ds(n, 1), pl.ds((oi * P3W + oj) * C3, C3)] = p

    # ---------------- layer4 + fc2: fused FC chain (weights just landed) ----
    cp1.wait()
    h = jnp.dot(feat_ref[...].astype(bf16), w1_v[...], preferred_element_type=f32)
    h = jnp.maximum(h + b1_ref[...], 0.0)
    cp2.wait()
    h = jnp.dot(h.astype(bf16), w2_v[...], preferred_element_type=f32)
    h = jnp.maximum(h + b2_ref[...], 0.0)
    cp3.wait()
    h = jnp.dot(h.astype(bf16), w3_v[...], preferred_element_type=f32)
    h = jnp.maximum(h + b3_ref[...], 0.0)
    cp4.wait()
    h = jnp.dot(h.astype(bf16), w4_v[...], preferred_element_type=f32)
    out_ref[...] = (h + b4_ref[...]).astype(out_ref.dtype)


def _full_spec(shape):
    return pl.BlockSpec(shape, lambda i: (0,) * len(shape))


# ---------------------------------------------------------------------------
# Forward pass (matches CNN.forward; dropout = identity / eval mode)
# ---------------------------------------------------------------------------
def cnn_forward(pp, x):
    """x: (N, 1, 6, 10) f32 NCHW -> logits (N, 24) f32."""
    N, cin, h, w = x.shape
    assert (cin, h, w) == (1, H_IN, W_IN), "layer4 Linear(1536,.) requires a 1x6x10 input"

    # conv1 im2col is a pure function of the network INPUT (no kernel-result
    # dependency), so a couple of tiny XLA ops here; everything else is fused.
    xp = jnp.pad(x[:, 0, :, :], ((0, 0), (1, 1), (1, 1)))                    # (N, 8, 12)
    patches = [xp[:, di:di + H1, dj:dj + W1] for di in range(2) for dj in range(2)]
    cols1 = jnp.stack(patches, axis=-1).reshape(N * H1 * W1, 4)              # (N*77, 4)

    ins = [cols1,
           pp["c1_w"], pp["c1_b"], pp["c2_w"], pp["c2_b"], pp["c3_w"], pp["c3_b"],
           pp["fc1_b"], pp["fc2_b"], pp["fc3_b"], pp["fc4_b"],
           pp["fc1_w"], pp["fc2_w"], pp["fc3_w"], pp["fc4_w"]]

    in_specs = ([_full_spec(a.shape) for a in ins[:11]]
                + [pl.BlockSpec(memory_space=pl.ANY)] * 4)                   # fc weights

    scratch = [
        pltpu.VMEM((N * H1 * W1, C1), jnp.float32),         # a1   (conv1 activation)
        pltpu.VMEM((N * PH * PW, C1), jnp.float32),         # c2in (padded 5x7 grid)
        pltpu.VMEM((N * H2 * W2, 9 * C1), jnp.float32),     # c2im (im2col)
        pltpu.VMEM((N * PH * PW, C2), jnp.float32),         # c3in (padded 5x7 grid)
        pltpu.VMEM((N * H3 * W3, 4 * C2), jnp.float32),     # c3im (im2col)
        pltpu.VMEM((N, FEAT), jnp.float32),                 # flattened features
        pltpu.VMEM((FEAT, FC_PAD), jnp.bfloat16),           # fc1 weight (async DMA dst)
        pltpu.VMEM((FC_PAD, FC_PAD), jnp.bfloat16),         # fc2 weight
        pltpu.VMEM((FC_PAD, FC_PAD), jnp.bfloat16),         # fc3 weight
        pltpu.VMEM((FC_PAD, N_CLASSES), jnp.bfloat16),      # fc_out weight
        pltpu.SemaphoreType.DMA((4,)),
    ]

    return pl.pallas_call(
        functools.partial(_fused_cnn_kernel, N),
        out_shape=jax.ShapeDtypeStruct((N, N_CLASSES), jnp.float32),
        grid=(1,),
        in_specs=in_specs,
        out_specs=_full_spec((N, N_CLASSES)),
        scratch_shapes=scratch,
        compiler_params=pltpu.CompilerParams(
            dimension_semantics=("arbitrary",)),
    )(*ins)


# ---------------------------------------------------------------------------
# Parameters: PyTorch-layout init + one-time prep into kernel-friendly layout
# ---------------------------------------------------------------------------
def init_params(key):
    ks = jax.random.split(key, 12)

    def w_init(k, shape, scale=0.05):
        return (scale * jax.random.normal(k, shape)).astype(jnp.float32)

    return {
        "conv1_w": w_init(ks[0], (32, 1, 2, 2)),       # PyTorch (Cout,Cin,kh,kw)
        "conv1_b": w_init(ks[1], (32,)),
        "conv2_w": w_init(ks[2], (128, 32, 3, 3)),
        "conv2_b": w_init(ks[3], (128,)),
        "conv3_w": w_init(ks[4], (256, 128, 2, 2)),
        "conv3_b": w_init(ks[5], (256,)),
        "fc1_w": w_init(ks[6], (625, 1536), 0.02),     # PyTorch Linear: (out,in)
        "fc1_b": w_init(ks[7], (625,)),
        "fc2_w": w_init(ks[8], (625, 625), 0.02),
        "fc2_b": w_init(ks[9], (625,)),
        "fc3_w": w_init(ks[10], (625, 625), 0.02),
        "fc3_b": w_init(ks[11], (625,)),
        "fc_out_w": w_init(jax.random.fold_in(key, 99), (24, 625), 0.05),
        "fc_out_b": jnp.zeros((24,), jnp.float32),
    }


def prepare_params(p):
    """One-time transform to GEMM-ready layouts (outside the jitted forward)."""
    def conv_w(w, dtype=jnp.bfloat16):     # (Cout,Cin,kh,kw) -> (kh*kw*Cin, Cout)
        cout, cin, kh, kw = w.shape
        return jnp.transpose(w, (2, 3, 1, 0)).reshape(kh * kw * cin, cout).astype(dtype)

    def row(b, pad_to=None):
        b = b.reshape(1, -1).astype(jnp.float32)
        if pad_to is not None:
            b = jnp.pad(b, ((0, 0), (0, pad_to - b.shape[1])))
        return b

    def fc_w(w_out_in, pad_rows, pad_cols):  # (out,in) -> zero-padded (in,out) bf16
        wt = jnp.transpose(w_out_in).astype(jnp.float32)
        r, c = wt.shape
        wt = jnp.pad(wt, ((0, pad_rows - r), (0, pad_cols - c)))
        return wt.astype(jnp.bfloat16)

    # fc1 columns are stored for PyTorch's NCHW flatten of the (256, 2, 3)
    # feature map; permute them once to match the kernel's NHWC flatten.
    fc1_nhwc = (p["fc1_w"].reshape(FC_HID, C3, P3H, P3W)
                .transpose(0, 2, 3, 1).reshape(FC_HID, FEAT))

    return {
        "c1_w": conv_w(p["conv1_w"], jnp.float32),   # conv1 runs on the VPU in f32
        "c1_b": row(p["conv1_b"]),
        "c2_w": conv_w(p["conv2_w"]), "c2_b": row(p["conv2_b"]),
        "c3_w": conv_w(p["conv3_w"]), "c3_b": row(p["conv3_b"]),
        "fc1_w": fc_w(fc1_nhwc, FEAT, FC_PAD),            "fc1_b": row(p["fc1_b"], FC_PAD),
        "fc2_w": fc_w(p["fc2_w"], FC_PAD, FC_PAD),        "fc2_b": row(p["fc2_b"], FC_PAD),
        "fc3_w": fc_w(p["fc3_w"], FC_PAD, FC_PAD),        "fc3_b": row(p["fc3_b"], FC_PAD),
        "fc4_w": fc_w(p["fc_out_w"], FC_PAD, N_CLASSES),  "fc4_b": row(p["fc_out_b"]),
    }


# ---------------------------------------------------------------------------
# Pure-JAX f32 reference of the exact PyTorch forward (for a tolerance check)
# ---------------------------------------------------------------------------
def cnn_reference(p, x):
    def conv2d(x, w, b, pad):
        out = jax.lax.conv_general_dilated(
            x, w, window_strides=(1, 1), padding=[(pad, pad), (pad, pad)],
            dimension_numbers=("NCHW", "OIHW", "NCHW"))
        return out + b.reshape(1, -1, 1, 1)

    def maxpool2(x):
        n, c, h, w = x.shape
        ho, wo = h // 2, w // 2
        return x[:, :, :ho * 2, :wo * 2].reshape(n, c, ho, 2, wo, 2).max(axis=(3, 5))

    o = jnp.maximum(conv2d(x, p["conv1_w"], p["conv1_b"], 1), 0.0)
    o = maxpool2(o)
    o = jnp.maximum(conv2d(o, p["conv2_w"], p["conv2_b"], 1), 0.0)
    o = jnp.maximum(conv2d(o, p["conv3_w"], p["conv3_b"], 1), 0.0)
    o = maxpool2(o)
    o = o.reshape(o.shape[0], -1)                               # NCHW flatten
    o = jnp.maximum(o @ p["fc1_w"].T + p["fc1_b"], 0.0)
    o = jnp.maximum(o @ p["fc2_w"].T + p["fc2_b"], 0.0)
    o = jnp.maximum(o @ p["fc3_w"].T + p["fc3_b"], 0.0)
    return o @ p["fc_out_w"].T + p["fc_out_b"]


if __name__ == "__main__":
    key = jax.random.PRNGKey(0)
    pkey, xkey = jax.random.split(key)
    params = init_params(pkey)
    prepped = prepare_params(params)

    # Input (N=2, C=1, H=6, W=10): chosen so the flattened feature size is
    # exactly 1536 (= 256 * 2 * 3), as required by Linear(1536, 625).
    x = jax.random.normal(xkey, (2, 1, H_IN, W_IN), dtype=jnp.float32)

    y = jax.jit(cnn_forward)(prepped, x)
    y = jax.block_until_ready(y)
    assert y.shape == (2, N_CLASSES), y.shape
    assert bool(jnp.all(jnp.isfinite(y)))

    # Tolerance check against an f32 reference (kernel uses bf16 MXU feeds,
    # so a generous absolute/relative tolerance is applied).
    with jax.default_matmul_precision("highest"):
        y_ref = cnn_reference(params, x)
    err = float(jnp.max(jnp.abs(y - y_ref)))
    scale = float(jnp.max(jnp.abs(y_ref)))
    assert err <= 2e-2 + 2e-2 * scale, (err, scale)

    print("KERNEL_OK")
</pallas_src>

<mosaic_0001>
module attributes {stable_mosaic.version = 11 : i64} {
  func.func @_fused_cnn_kernel(%arg0: i32, %arg1: memref<154x4xf32, #tpu.memory_space<vmem>>, %arg2: memref<4x32xf32, #tpu.memory_space<vmem>>, %arg3: memref<1x32xf32, #tpu.memory_space<vmem>>, %arg4: memref<288x128xbf16, #tpu.memory_space<vmem>>, %arg5: memref<1x128xf32, #tpu.memory_space<vmem>>, %arg6: memref<512x256xbf16, #tpu.memory_space<vmem>>, %arg7: memref<1x256xf32, #tpu.memory_space<vmem>>, %arg8: memref<1x640xf32, #tpu.memory_space<vmem>>, %arg9: memref<1x640xf32, #tpu.memory_space<vmem>>, %arg10: memref<1x640xf32, #tpu.memory_space<vmem>>, %arg11: memref<1x24xf32, #tpu.memory_space<vmem>>, %arg12: memref<1536x640xbf16, #tpu.memory_space<any>>, %arg13: memref<640x640xbf16, #tpu.memory_space<any>>, %arg14: memref<640x640xbf16, #tpu.memory_space<any>>, %arg15: memref<640x24xbf16, #tpu.memory_space<any>>, %arg16: memref<2x24xf32, #tpu.memory_space<vmem>>, %arg17: memref<154x32xf32, #tpu.memory_space<vmem>>, %arg18: memref<70x32xf32, #tpu.memory_space<vmem>>, %arg19: memref<30x288xf32, #tpu.memory_space<vmem>>, %arg20: memref<70x128xf32, #tpu.memory_space<vmem>>, %arg21: memref<48x512xf32, #tpu.memory_space<vmem>>, %arg22: memref<2x1536xf32, #tpu.memory_space<vmem>>, %arg23: memref<1536x640xbf16, #tpu.memory_space<vmem>>, %arg24: memref<640x640xbf16, #tpu.memory_space<vmem>>, %arg25: memref<640x640xbf16, #tpu.memory_space<vmem>>, %arg26: memref<640x24xbf16, #tpu.memory_space<vmem>>, %arg27: memref<4x!tpu.dma_semaphore, #tpu.memory_space<semaphore_mem>>) attributes {dimension_semantics = [#tpu.dimension_semantics<arbitrary>], iteration_bounds = array<i64: 1>, scalar_prefetch = 0 : i64, scratch_operands = 11 : i64, tpu.core_type = #tpu.core_type<tc>, window_params = [{pipeline_mode = #tpu.pipeline_mode<synchronous>, transform_indices = @transform_0, window_bounds = array<i64: 154, 4>}, {pipeline_mode = #tpu.pipeline_mode<synchronous>, transform_indices = @transform_1, window_bounds = array<i64: 4, 32>}, {pipeline_mode = #tpu.pipeline_mode<synchronous>, transform_indices = @transform_2, window_bounds = array<i64: 1, 32>}, {pipeline_mode = #tpu.pipeline_mode<synchronous>, transform_indices = @transform_3, window_bounds = array<i64: 288, 128>}, {pipeline_mode = #tpu.pipeline_mode<synchronous>, transform_indices = @transform_4, window_bounds = array<i64: 1, 128>}, {pipeline_mode = #tpu.pipeline_mode<synchronous>, transform_indices = @transform_5, window_bounds = array<i64: 512, 256>}, {pipeline_mode = #tpu.pipeline_mode<synchronous>, transform_indices = @transform_6, window_bounds = array<i64: 1, 256>}, {pipeline_mode = #tpu.pipeline_mode<synchronous>, transform_indices = @transform_7, window_bounds = array<i64: 1, 640>}, {pipeline_mode = #tpu.pipeline_mode<synchronous>, transform_indices = @transform_8, window_bounds = array<i64: 1, 640>}, {pipeline_mode = #tpu.pipeline_mode<synchronous>, transform_indices = @transform_9, window_bounds = array<i64: 1, 640>}, {pipeline_mode = #tpu.pipeline_mode<synchronous>, transform_indices = @transform_10, window_bounds = array<i64: 1, 24>}, {}, {}, {}, {}, {pipeline_mode = #tpu.pipeline_mode<synchronous>, transform_indices = @transform_15, window_bounds = array<i64: 2, 24>}]} {
    %c0_i32 = arith.constant 0 : i32
    %0 = tpu.memref_slice %arg27[%c0_i32] : memref<4x!tpu.dma_semaphore, #tpu.memory_space<semaphore_mem>> -> memref<1x!tpu.dma_semaphore, #tpu.memory_space<semaphore_mem>>
    %1 = tpu.memref_squeeze %0 : memref<1x!tpu.dma_semaphore, #tpu.memory_space<semaphore_mem>> -> memref<!tpu.dma_semaphore, #tpu.memory_space<semaphore_mem>>
    tpu.enqueue_dma source(%arg12 : memref<1536x640xbf16, #tpu.memory_space<any>>) target(%arg23 : memref<1536x640xbf16, #tpu.memory_space<vmem>>) target_semaphore(%1 : memref<!tpu.dma_semaphore, #tpu.memory_space<semaphore_mem>>)
    %c1_i32 = arith.constant 1 : i32
    %2 = tpu.memref_slice %arg27[%c1_i32] : memref<4x!tpu.dma_semaphore, #tpu.memory_space<semaphore_mem>> -> memref<1x!tpu.dma_semaphore, #tpu.memory_space<semaphore_mem>>
    %3 = tpu.memref_squeeze %2 : memref<1x!tpu.dma_semaphore, #tpu.memory_space<semaphore_mem>> -> memref<!tpu.dma_semaphore, #tpu.memory_space<semaphore_mem>>
    tpu.enqueue_dma source(%arg13 : memref<640x640xbf16, #tpu.memory_space<any>>) target(%arg24 : memref<640x640xbf16, #tpu.memory_space<vmem>>) target_semaphore(%3 : memref<!tpu.dma_semaphore, #tpu.memory_space<semaphore_mem>>)
    %c2_i32 = arith.constant 2 : i32
    %4 = tpu.memref_slice %arg27[%c2_i32] : memref<4x!tpu.dma_semaphore, #tpu.memory_space<semaphore_mem>> -> memref<1x!tpu.dma_semaphore, #tpu.memory_space<semaphore_mem>>
    %5 = tpu.memref_squeeze %4 : memref<1x!tpu.dma_semaphore, #tpu.memory_space<semaphore_mem>> -> memref<!tpu.dma_semaphore, #tpu.memory_space<semaphore_mem>>
    tpu.enqueue_dma source(%arg14 : memref<640x640xbf16, #tpu.memory_space<any>>) target(%arg25 : memref<640x640xbf16, #tpu.memory_space<vmem>>) target_semaphore(%5 : memref<!tpu.dma_semaphore, #tpu.memory_space<semaphore_mem>>)
    %c3_i32 = arith.constant 3 : i32
    %6 = tpu.memref_slice %arg27[%c3_i32] : memref<4x!tpu.dma_semaphore, #tpu.memory_space<semaphore_mem>> -> memref<1x!tpu.dma_semaphore, #tpu.memory_space<semaphore_mem>>
    %7 = tpu.memref_squeeze %6 : memref<1x!tpu.dma_semaphore, #tpu.memory_space<semaphore_mem>> -> memref<!tpu.dma_semaphore, #tpu.memory_space<semaphore_mem>>
    tpu.enqueue_dma source(%arg15 : memref<640x24xbf16, #tpu.memory_space<any>>) target(%arg26 : memref<640x24xbf16, #tpu.memory_space<vmem>>) target_semaphore(%7 : memref<!tpu.dma_semaphore, #tpu.memory_space<semaphore_mem>>)
    %cst = arith.constant 0.000000e+00 : f32
    %8 = vector.broadcast %cst : f32 to vector<70x32xf32>
    %c0 = arith.constant 0 : index
    %c0_0 = arith.constant 0 : index
    %9 = vector.load %arg18[%c0, %c0_0] : memref<70x32xf32, #tpu.memory_space<vmem>>, vector<70x32xf32>
    tpu.vector_store %arg18[%c0, %c0_0], %8 {strides = array<i32>} : memref<70x32xf32, #tpu.memory_space<vmem>>, vector<70x32xf32>,
    %cst_1 = arith.constant 0.000000e+00 : f32
    %10 = vector.broadcast %cst_1 : f32 to vector<70x128xf32>
    %c0_2 = arith.constant 0 : index
    %c0_3 = arith.constant 0 : index
    %11 = vector.load %arg20[%c0_2, %c0_3] : memref<70x128xf32, #tpu.memory_space<vmem>>, vector<70x128xf32>
    tpu.vector_store %arg20[%c0_2, %c0_3], %10 {strides = array<i32>} : memref<70x128xf32, #tpu.memory_space<vmem>>, vector<70x128xf32>,
    %c0_4 = arith.constant 0 : index
    %c0_5 = arith.constant 0 : index
    %12 = vector.load %arg1[%c0_4, %c0_5] : memref<154x4xf32, #tpu.memory_space<vmem>>, vector<154x4xf32>
    %c0_6 = arith.constant 0 : index
    %c0_7 = arith.constant 0 : index
    %13 = vector.load %arg2[%c0_6, %c0_7] : memref<4x32xf32, #tpu.memory_space<vmem>>, vector<4x32xf32>
    %14 = vector.extract_strided_slice %12 {offsets = [0, 0], sizes = [154, 1], strides = [1, 1]} : vector<154x4xf32> to vector<154x1xf32>
    %15 = vector.extract_strided_slice %13 {offsets = [0, 0], sizes = [1, 32], strides = [1, 1]} : vector<4x32xf32> to vector<1x32xf32>
    %16 = vector.broadcast %14 : vector<154x1xf32> to vector<154x32xf32>
    %17 = vector.broadcast %15 : vector<1x32xf32> to vector<154x32xf32>
    %18 = arith.mulf %16, %17 : vector<154x32xf32>
    %19 = vector.extract_strided_slice %12 {offsets = [0, 1], sizes = [154, 1], strides = [1, 1]} : vector<154x4xf32> to vector<154x1xf32>
    %20 = vector.extract_strided_slice %13 {offsets = [1, 0], sizes = [1, 32], strides = [1, 1]} : vector<4x32xf32> to vector<1x32xf32>
    %21 = vector.broadcast %19 : vector<154x1xf32> to vector<154x32xf32>
    %22 = vector.broadcast %20 : vector<1x32xf32> to vector<154x32xf32>
    %23 = arith.mulf %21, %22 : vector<154x32xf32>
    %24 = arith.addf %18, %23 : vector<154x32xf32>
    %25 = vector.extract_strided_slice %12 {offsets = [0, 2], sizes = [154, 1], strides = [1, 1]} : vector<154x4xf32> to vector<154x1xf32>
    %26 = vector.extract_strided_slice %13 {offsets = [2, 0], sizes = [1, 32], strides = [1, 1]} : vector<4x32xf32> to vector<1x32xf32>
    %27 = vector.broadcast %25 : vector<154x1xf32> to vector<154x32xf32>
    %28 = vector.broadcast %26 : vector<1x32xf32> to vector<154x32xf32>
    %29 = arith.mulf %27, %28 : vector<154x32xf32>
    %30 = arith.addf %24, %29 : vector<154x32xf32>
    %31 = vector.extract_strided_slice %12 {offsets = [0, 3], sizes = [154, 1], strides = [1, 1]} : vector<154x4xf32> to vector<154x1xf32>
    %32 = vector.extract_strided_slice %13 {offsets = [3, 0], sizes = [1, 32], strides = [1, 1]} : vector<4x32xf32> to vector<1x32xf32>
    %33 = vector.broadcast %31 : vector<154x1xf32> to vector<154x32xf32>
    %34 = vector.broadcast %32 : vector<1x32xf32> to vector<154x32xf32>
    %35 = arith.mulf %33, %34 : vector<154x32xf32>
    %36 = arith.addf %30, %35 : vector<154x32xf32>
    %c0_8 = arith.constant 0 : index
    %c0_9 = arith.constant 0 : index
    %37 = vector.load %arg3[%c0_8, %c0_9] : memref<1x32xf32, #tpu.memory_space<vmem>>, vector<1x32xf32>
    %38 = vector.broadcast %37 : vector<1x32xf32> to vector<154x32xf32>
    %39 = arith.addf %36, %38 : vector<154x32xf32>
    %cst_10 = arith.constant 0.000000e+00 : f32
    %40 = vector.broadcast %cst_10 : f32 to vector<154x32xf32>
    %41 = arith.maximumf %39, %40 : vector<154x32xf32>
    %c0_11 = arith.constant 0 : index
    %c0_12 = arith.constant 0 : index
    %42 = vector.load %arg17[%c0_11, %c0_12] : memref<154x32xf32, #tpu.memory_space<vmem>>, vector<154x32xf32>
    tpu.vector_store %arg17[%c0_11, %c0_12], %41 {strides = array<i32>} : memref<154x32xf32, #tpu.memory_space<vmem>>, vector<154x32xf32>,
    %c0_13 = arith.constant 0 : index
    %c0_14 = arith.constant 0 : index
    %43 = vector.load %arg17[%c0_13, %c0_14] : memref<154x32xf32, #tpu.memory_space<vmem>>, vector<10x32xf32>
    %c11 = arith.constant 11 : index
    %c0_15 = arith.constant 0 : index
    %44 = vector.load %arg17[%c11, %c0_15] : memref<154x32xf32, #tpu.memory_space<vmem>>, vector<10x32xf32>
    %45 = arith.maximumf %43, %44 : vector<10x32xf32>
    %46 = vector.extract_strided_slice %45 {offsets = [0, 0], sizes = [1, 32], strides = [1, 1]} : vector<10x32xf32> to vector<1x32xf32>
    %47 = vector.extract_strided_slice %45 {offsets = [1, 0], sizes = [1, 32], strides = [1, 1]} : vector<10x32xf32> to vector<1x32xf32>
    %48 = arith.maximumf %46, %47 : vector<1x32xf32>
    %c8 = arith.constant 8 : index
    %c0_16 = arith.constant 0 : index
    %49 = vector.load %arg18[%c8, %c0_16] : memref<70x32xf32, #tpu.memory_space<vmem>>, vector<1x32xf32>
    tpu.vector_store %arg18[%c8, %c0_16], %48 {strides = array<i32>} : memref<70x32xf32, #tpu.memory_space<vmem>>, vector<1x32xf32>,
    %50 = vector.extract_strided_slice %45 {offsets = [2, 0], sizes = [1, 32], strides = [1, 1]} : vector<10x32xf32> to vector<1x32xf32>
    %51 = vector.extract_strided_slice %45 {offsets = [3, 0], sizes = [1, 32], strides = [1, 1]} : vector<10x32xf32> to vector<1x32xf32>
    %52 = arith.maximumf %50, %51 : vector<1x32xf32>
    %c9 = arith.constant 9 : index
    %c0_17 = arith.constant 0 : index
    %53 = vector.load %arg18[%c9, %c0_17] : memref<70x32xf32, #tpu.memory_space<vmem>>, vector<1x32xf32>
    tpu.vector_store %arg18[%c9, %c0_17], %52 {strides = array<i32>} : memref<70x32xf32, #tpu.memory_space<vmem>>, vector<1x32xf32>,
    %54 = vector.extract_strided_slice %45 {offsets = [4, 0], sizes = [1, 32], strides = [1, 1]} : vector<10x32xf32> to vector<1x32xf32>
    %55 = vector.extract_strided_slice %45 {offsets = [5, 0], sizes = [1, 32], strides = [1, 1]} : vector<10x32xf32> to vector<1x32xf32>
    %56 = arith.maximumf %54, %55 : vector<1x32xf32>
    %c10 = arith.constant 10 : index
    %c0_18 = arith.constant 0 : index
    %57 = vector.load %arg18[%c10, %c0_18] : memref<70x32xf32, #tpu.memory_space<vmem>>, vector<1x32xf32>
    tpu.vector_store %arg18[%c10, %c0_18], %56 {strides = array<i32>} : memref<70x32xf32, #tpu.memory_space<vmem>>, vector<1x32xf32>,
    %58 = vector.extract_strided_slice %45 {offsets = [6, 0], sizes = [1, 32], strides = [1, 1]} : vector<10x32xf32> to vector<1x32xf32>
    %59 = vector.extract_strided_slice %45 {offsets = [7, 0], sizes = [1, 32], strides = [1, 1]} : vector<10x32xf32> to vector<1x32xf32>
    %60 = arith.maximumf %58, %59 : vector<1x32xf32>
    %c11_19 = arith.constant 11 : index
    %c0_20 = arith.constant 0 : index
    %61 = vector.load %arg18[%c11_19, %c0_20] : memref<70x32xf32, #tpu.memory_space<vmem>>, vector<1x32xf32>
    tpu.vector_store %arg18[%c11_19, %c0_20], %60 {strides = array<i32>} : memref<70x32xf32, #tpu.memory_space<vmem>>, vector<1x32xf32>,
    %62 = vector.extract_strided_slice %45 {offsets = [8, 0], sizes = [1, 32], strides = [1, 1]} : vector<10x32xf32> to vector<1x32xf32>
    %63 = vector.extract_strided_slice %45 {offsets = [9, 0], sizes = [1, 32], strides = [1, 1]} : vector<10x32xf32> to vector<1x32xf32>
    %64 = arith.maximumf %62, %63 : vector<1x32xf32>
    %c12 = arith.constant 12 : index
    %c0_21 = arith.constant 0 : index
    %65 = vector.load %arg18[%c12, %c0_21] : memref<70x32xf32, #tpu.memory_space<vmem>>, vector<1x32xf32>
    tpu.vector_store %arg18[%c12, %c0_21], %64 {strides = array<i32>} : memref<70x32xf32, #tpu.memory_space<vmem>>, vector<1x32xf32>,
    %c22 = arith.constant 22 : index
    %c0_22 = arith.constant 0 : index
    %66 = vector.load %arg17[%c22, %c0_22] : memref<154x32xf32, #tpu.memory_space<vmem>>, vector<10x32xf32>
    %c33 = arith.constant 33 : index
    %c0_23 = arith.constant 0 : index
    %67 = vector.load %arg17[%c33, %c0_23] : memref<154x32xf32, #tpu.memory_space<vmem>>, vector<10x32xf32>
    %68 = arith.maximumf %66, %67 : vector<10x32xf32>
    %69 = vector.extract_strided_slice %68 {offsets = [0, 0], sizes = [1, 32], strides = [1, 1]} : vector<10x32xf32> to vector<1x32xf32>
    %70 = vector.extract_strided_slice %68 {offsets = [1, 0], sizes = [1, 32], strides = [1, 1]} : vector<10x32xf32> to vector<1x32xf32>
    %71 = arith.maximumf %69, %70 : vector<1x32xf32>
    %c15 = arith.constant 15 : index
    %c0_24 = arith.constant 0 : index
    %72 = vector.load %arg18[%c15, %c0_24] : memref<70x32xf32, #tpu.memory_space<vmem>>, vector<1x32xf32>
    tpu.vector_store %arg18[%c15, %c0_24], %71 {strides = array<i32>} : memref<70x32xf32, #tpu.memory_space<vmem>>, vector<1x32xf32>,
    %73 = vector.extract_strided_slice %68 {offsets = [2, 0], sizes = [1, 32], strides = [1, 1]} : vector<10x32xf32> to vector<1x32xf32>
    %74 = vector.extract_strided_slice %68 {offsets = [3, 0], sizes = [1, 32], strides = [1, 1]} : vector<10x32xf32> to vector<1x32xf32>
    %75 = arith.maximumf %73, %74 : vector<1x32xf32>
    %c16 = arith.constant 16 : index
    %c0_25 = arith.constant 0 : index
    %76 = vector.load %arg18[%c16, %c0_25] : memref<70x32xf32, #tpu.memory_space<vmem>>, vector<1x32xf32>
    tpu.vector_store %arg18[%c16, %c0_25], %75 {strides = array<i32>} : memref<70x32xf32, #tpu.memory_space<vmem>>, vector<1x32xf32>,
    %77 = vector.extract_strided_slice %68 {offsets = [4, 0], sizes = [1, 32], strides = [1, 1]} : vector<10x32xf32> to vector<1x32xf32>
    %78 = vector.extract_strided_slice %68 {offsets = [5, 0], sizes = [1, 32], strides = [1, 1]} : vector<10x32xf32> to vector<1x32xf32>
    %79 = arith.maximumf %77, %78 : vector<1x32xf32>
    %c17 = arith.constant 17 : index
    %c0_26 = arith.constant 0 : index
    %80 = vector.load %arg18[%c17, %c0_26] : memref<70x32xf32, #tpu.memory_space<vmem>>, vector<1x32xf32>
    tpu.vector_store %arg18[%c17, %c0_26], %79 {strides = array<i32>} : memref<70x32xf32, #tpu.memory_space<vmem>>, vector<1x32xf32>,
    %81 = vector.extract_strided_slice %68 {offsets = [6, 0], sizes = [1, 32], strides = [1, 1]} : vector<10x32xf32> to vector<1x32xf32>
    %82 = vector.extract_strided_slice %68 {offsets = [7, 0], sizes = [1, 32], strides = [1, 1]} : vector<10x32xf32> to vector<1x32xf32>
    %83 = arith.maximumf %81, %82 : vector<1x32xf32>
    %c18 = arith.constant 18 : index
    %c0_27 = arith.constant 0 : index
    %84 = vector.load %arg18[%c18, %c0_27] : memref<70x32xf32, #tpu.memory_space<vmem>>, vector<1x32xf32>
    tpu.vector_store %arg18[%c18, %c0_27], %83 {strides = array<i32>} : memref<70x32xf32, #tpu.memory_space<vmem>>, vector<1x32xf32>,
    %85 = vector.extract_strided_slice %68 {offsets = [8, 0], sizes = [1, 32], strides = [1, 1]} : vector<10x32xf32> to vector<1x32xf32>
    %86 = vector.extract_strided_slice %68 {offsets = [9, 0], sizes = [1, 32], strides = [1, 1]} : vector<10x32xf32> to vector<1x32xf32>
    %87 = arith.maximumf %85, %86 : vector<1x32xf32>
    %c19 = arith.constant 19 : index
    %c0_28 = arith.constant 0 : index
    %88 = vector.load %arg18[%c19, %c0_28] : memref<70x32xf32, #tpu.memory_space<vmem>>, vector<1x32xf32>
    tpu.vector_store %arg18[%c19, %c0_28], %87 {strides = array<i32>} : memref<70x32xf32, #tpu.memory_space<vmem>>, vector<1x32xf32>,
    %c44 = arith.constant 44 : index
    %c0_29 = arith.constant 0 : index
    %89 = vector.load %arg17[%c44, %c0_29] : memref<154x32xf32, #tpu.memory_space<vmem>>, vector<10x32xf32>
    %c55 = arith.constant 55 : index
    %c0_30 = arith.constant 0 : index
    %90 = vector.load %arg17[%c55, %c0_30] : memref<154x32xf32, #tpu.memory_space<vmem>>, vector<10x32xf32>
    %91 = arith.maximumf %89, %90 : vector<10x32xf32>
    %92 = vector.extract_strided_slice %91 {offsets = [0, 0], sizes = [1, 32], strides = [1, 1]} : vector<10x32xf32> to vector<1x32xf32>
    %93 = vector.extract_strided_slice %91 {offsets = [1, 0], sizes = [1, 32], strides = [1, 1]} : vector<10x32xf32> to vector<1x32xf32>
    %94 = arith.maximumf %92, %93 : vector<1x32xf32>
    %c22_31 = arith.constant 22 : index
    %c0_32 = arith.constant 0 : index
    %95 = vector.load %arg18[%c22_31, %c0_32] : memref<70x32xf32, #tpu.memory_space<vmem>>, vector<1x32xf32>
    tpu.vector_store %arg18[%c22_31, %c0_32], %94 {strides = array<i32>} : memref<70x32xf32, #tpu.memory_space<vmem>>, vector<1x32xf32>,
    %96 = vector.extract_strided_slice %91 {offsets = [2, 0], sizes = [1, 32], strides = [1, 1]} : vector<10x32xf32> to vector<1x32xf32>
    %97 = vector.extract_strided_slice %91 {offsets = [3, 0], sizes = [1, 32], strides = [1, 1]} : vector<10x32xf32> to vector<1x32xf32>
    %98 = arith.maximumf %96, %97 : vector<1x32xf32>
    %c23 = arith.constant 23 : index
    %c0_33 = arith.constant 0 : index
    %99 = vector.load %arg18[%c23, %c0_33] : memref<70x32xf32, #tpu.memory_space<vmem>>, vector<1x32xf32>
    tpu.vector_store %arg18[%c23, %c0_33], %98 {strides = array<i32>} : memref<70x32xf32, #tpu.memory_space<vmem>>, vector<1x32xf32>,
    %100 = vector.extract_strided_slice %91 {offsets = [4, 0], sizes = [1, 32], strides = [1, 1]} : vector<10x32xf32> to vector<1x32xf32>
    %101 = vector.extract_strided_slice %91 {offsets = [5, 0], sizes = [1, 32], strides = [1, 1]} : vector<10x32xf32> to vector<1x32xf32>
    %102 = arith.maximumf %100, %101 : vector<1x32xf32>
    %c24 = arith.constant 24 : index
    %c0_34 = arith.constant 0 : index
    %103 = vector.load %arg18[%c24, %c0_34] : memref<70x32xf32, #tpu.memory_space<vmem>>, vector<1x32xf32>
    tpu.vector_store %arg18[%c24, %c0_34], %102 {strides = array<i32>} : memref<70x32xf32, #tpu.memory_space<vmem>>, vector<1x32xf32>,
    %104 = vector.extract_strided_slice %91 {offsets = [6, 0], sizes = [1, 32], strides = [1, 1]} : vector<10x32xf32> to vector<1x32xf32>
    %105 = vector.extract_strided_slice %91 {offsets = [7, 0], sizes = [1, 32], strides = [1, 1]} : vector<10x32xf32> to vector<1x32xf32>
    %106 = arith.maximumf %104, %105 : vector<1x32xf32>
    %c25 = arith.constant 25 : index
    %c0_35 = arith.constant 0 : index
    %107 = vector.load %arg18[%c25, %c0_35] : memref<70x32xf32, #tpu.memory_space<vmem>>, vector<1x32xf32>
    tpu.vector_store %arg18[%c25, %c0_35], %106 {strides = array<i32>} : memref<70x32xf32, #tpu.memory_space<vmem>>, vector<1x32xf32>,
    %108 = vector.extract_strided_slice %91 {offsets = [8, 0], sizes = [1, 32], strides = [1, 1]} : vector<10x32xf32> to vector<1x32xf32>
    %109 = vector.extract_strided_slice %91 {offsets = [9, 0], sizes = [1, 32], strides = [1, 1]} : vector<10x32xf32> to vector<1x32xf32>
    %110 = arith.maximumf %108, %109 : vector<1x32xf32>
    %c26 = arith.constant 26 : index
    %c0_36 = arith.constant 0 : index
    %111 = vector.load %arg18[%c26, %c0_36] : memref<70x32xf32, #tpu.memory_space<vmem>>, vector<1x32xf32>
    tpu.vector_store %arg18[%c26, %c0_36], %110 {strides = array<i32>} : memref<70x32xf32, #tpu.memory_space<vmem>>, vector<1x32xf32>,
    %c77 = arith.constant 77 : index
    %c0_37 = arith.constant 0 : index
    %112 = vector.load %arg17[%c77, %c0_37] : memref<154x32xf32, #tpu.memory_space<vmem>>, vector<10x32xf32>
    %c88 = arith.constant 88 : index
    %c0_38 = arith.constant 0 : index
    %113 = vector.load %arg17[%c88, %c0_38] : memref<154x32xf32, #tpu.memory_space<vmem>>, vector<10x32xf32>
    %114 = arith.maximumf %112, %113 : vector<10x32xf32>
    %115 = vector.extract_strided_slice %114 {offsets = [0, 0], sizes = [1, 32], strides = [1, 1]} : vector<10x32xf32> to vector<1x32xf32>
    %116 = vector.extract_strided_slice %114 {offsets = [1, 0], sizes = [1, 32], strides = [1, 1]} : vector<10x32xf32> to vector<1x32xf32>
    %117 = arith.maximumf %115, %116 : vector<1x32xf32>
    %c43 = arith.constant 43 : index
    %c0_39 = arith.constant 0 : index
    %118 = vector.load %arg18[%c43, %c0_39] : memref<70x32xf32, #tpu.memory_space<vmem>>, vector<1x32xf32>
    tpu.vector_store %arg18[%c43, %c0_39], %117 {strides = array<i32>} : memref<70x32xf32, #tpu.memory_space<vmem>>, vector<1x32xf32>,
    %119 = vector.extract_strided_slice %114 {offsets = [2, 0], sizes = [1, 32], strides = [1, 1]} : vector<10x32xf32> to vector<1x32xf32>
    %120 = vector.extract_strided_slice %114 {offsets = [3, 0], sizes = [1, 32], strides = [1, 1]} : vector<10x32xf32> to vector<1x32xf32>
    %121 = arith.maximumf %119, %120 : vector<1x32xf32>
    %c44_40 = arith.constant 44 : index
    %c0_41 = arith.constant 0 : index
    %122 = vector.load %arg18[%c44_40, %c0_41] : memref<70x32xf32, #tpu.memory_space<vmem>>, vector<1x32xf32>
    tpu.vector_store %arg18[%c44_40, %c0_41], %121 {strides = array<i32>} : memref<70x32xf32, #tpu.memory_space<vmem>>, vector<1x32xf32>,
    %123 = vector.extract_strided_slice %114 {offsets = [4, 0], sizes = [1, 32], strides = [1, 1]} : vector<10x32xf32> to vector<1x32xf32>
    %124 = vector.extract_strided_slice %114 {offsets = [5, 0], sizes = [1, 32], strides = [1, 1]} : vector<10x32xf32> to vector<1x32xf32>
    %125 = arith.maximumf %123, %124 : vector<1x32xf32>
    %c45 = arith.constant 45 : index
    %c0_42 = arith.constant 0 : index
    %126 = vector.load %arg18[%c45, %c0_42] : memref<70x32xf32, #tpu.memory_space<vmem>>, vector<1x32xf32>
    tpu.vector_store %arg18[%c45, %c0_42], %125 {strides = array<i32>} : memref<70x32xf32, #tpu.memory_space<vmem>>, vector<1x32xf32>,
    %127 = vector.extract_strided_slice %114 {offsets = [6, 0], sizes = [1, 32], strides = [1, 1]} : vector<10x32xf32> to vector<1x32xf32>
    %128 = vector.extract_strided_slice %114 {offsets = [7, 0], sizes = [1, 32], strides = [1, 1]} : vector<10x32xf32> to vector<1x32xf32>
    %129 = arith.maximumf %127, %128 : vector<1x32xf32>
    %c46 = arith.constant 46 : index
    %c0_43 = arith.constant 0 : index
    %130 = vector.load %arg18[%c46, %c0_43] : memref<70x32xf32, #tpu.memory_space<vmem>>, vector<1x32xf32>
    tpu.vector_store %arg18[%c46, %c0_43], %129 {strides = array<i32>} : memref<70x32xf32, #tpu.memory_space<vmem>>, vector<1x32xf32>,
    %131 = vector.extract_strided_slice %114 {offsets = [8, 0], sizes = [1, 32], strides = [1, 1]} : vector<10x32xf32> to vector<1x32xf32>
    %132 = vector.extract_strided_slice %114 {offsets = [9, 0], sizes = [1, 32], strides = [1, 1]} : vector<10x32xf32> to vector<1x32xf32>
    %133 = arith.maximumf %131, %132 : vector<1x32xf32>
    %c47 = arith.constant 47 : index
    %c0_44 = arith.constant 0 : index
    %134 = vector.load %arg18[%c47, %c0_44] : memref<70x32xf32, #tpu.memory_space<vmem>>, vector<1x32xf32>
    tpu.vector_store %arg18[%c47, %c0_44], %133 {strides = array<i32>} : memref<70x32xf32, #tpu.memory_space<vmem>>, vector<1x32xf32>,
    %c99 = arith.constant 99 : index
    %c0_45 = arith.constant 0 : index
    %135 = vector.load %arg17[%c99, %c0_45] : memref<154x32xf32, #tpu.memory_space<vmem>>, vector<10x32xf32>
    %c110 = arith.constant 110 : index
    %c0_46 = arith.constant 0 : index
    %136 = vector.load %arg17[%c110, %c0_46] : memref<154x32xf32, #tpu.memory_space<vmem>>, vector<10x32xf32>
    %137 = arith.maximumf %135, %136 : vector<10x32xf32>
    %138 = vector.extract_strided_slice %137 {offsets = [0, 0], sizes = [1, 32], strides = [1, 1]} : vector<10x32xf32> to vector<1x32xf32>
    %139 = vector.extract_strided_slice %137 {offsets = [1, 0], sizes = [1, 32], strides = [1, 1]} : vector<10x32xf32> to vector<1x32xf32>
    %140 = arith.maximumf %138, %139 : vector<1x32xf32>
    %c50 = arith.constant 50 : index
    %c0_47 = arith.constant 0 : index
    %141 = vector.load %arg18[%c50, %c0_47] : memref<70x32xf32, #tpu.memory_space<vmem>>, vector<1x32xf32>
    tpu.vector_store %arg18[%c50, %c0_47], %140 {strides = array<i32>} : memref<70x32xf32, #tpu.memory_space<vmem>>, vector<1x32xf32>,
    %142 = vector.extract_strided_slice %137 {offsets = [2, 0], sizes = [1, 32], strides = [1, 1]} : vector<10x32xf32> to vector<1x32xf32>
    %143 = vector.extract_strided_slice %137 {offsets = [3, 0], sizes = [1, 32], strides = [1, 1]} : vector<10x32xf32> to vector<1x32xf32>
    %144 = arith.maximumf %142, %143 : vector<1x32xf32>
    %c51 = arith.constant 51 : index
    %c0_48 = arith.constant 0 : index
    %145 = vector.load %arg18[%c51, %c0_48] : memref<70x32xf32, #tpu.memory_space<vmem>>, vector<1x32xf32>
    tpu.vector_store %arg18[%c51, %c0_48], %144 {strides = array<i32>} : memref<70x32xf32, #tpu.memory_space<vmem>>, vector<1x32xf32>,
    %146 = vector.extract_strided_slice %137 {offsets = [4, 0], sizes = [1, 32], strides = [1, 1]} : vector<10x32xf32> to vector<1x32xf32>
    %147 = vector.extract_strided_slice %137 {offsets = [5, 0], sizes = [1, 32], strides = [1, 1]} : vector<10x32xf32> to vector<1x32xf32>
    %148 = arith.maximumf %146, %147 : vector<1x32xf32>
    %c52 = arith.constant 52 : index
    %c0_49 = arith.constant 0 : index
    %149 = vector.load %arg18[%c52, %c0_49] : memref<70x32xf32, #tpu.memory_space<vmem>>, vector<1x32xf32>
    tpu.vector_store %arg18[%c52, %c0_49], %148 {strides = array<i32>} : memref<70x32xf32, #tpu.memory_space<vmem>>, vector<1x32xf32>,
    %150 = vector.extract_strided_slice %137 {offsets = [6, 0], sizes = [1, 32], strides = [1, 1]} : vector<10x32xf32> to vector<1x32xf32>
    %151 = vector.extract_strided_slice %137 {offsets = [7, 0], sizes = [1, 32], strides = [1, 1]} : vector<10x32xf32> to vector<1x32xf32>
    %152 = arith.maximumf %150, %151 : vector<1x32xf32>
    %c53 = arith.constant 53 : index
    %c0_50 = arith.constant 0 : index
    %153 = vector.load %arg18[%c53, %c0_50] : memref<70x32xf32, #tpu.memory_space<vmem>>, vector<1x32xf32>
    tpu.vector_store %arg18[%c53, %c0_50], %152 {strides = array<i32>} : memref<70x32xf32, #tpu.memory_space<vmem>>, vector<1x32xf32>,
    %154 = vector.extract_strided_slice %137 {offsets = [8, 0], sizes = [1, 32], strides = [1, 1]} : vector<10x32xf32> to vector<1x32xf32>
    %155 = vector.extract_strided_slice %137 {offsets = [9, 0], sizes = [1, 32], strides = [1, 1]} : vector<10x32xf32> to vector<1x32xf32>
    %156 = arith.maximumf %154, %155 : vector<1x32xf32>
    %c54 = arith.constant 54 : index
    %c0_51 = arith.constant 0 : index
    %157 = vector.load %arg18[%c54, %c0_51] : memref<70x32xf32, #tpu.memory_space<vmem>>, vector<1x32xf32>
    tpu.vector_store %arg18[%c54, %c0_51], %156 {strides = array<i32>} : memref<70x32xf32, #tpu.memory_space<vmem>>, vector<1x32xf32>,
    %c121 = arith.constant 121 : index
    %c0_52 = arith.constant 0 : index
    %158 = vector.load %arg17[%c121, %c0_52] : memref<154x32xf32, #tpu.memory_space<vmem>>, vector<10x32xf32>
    %c132 = arith.constant 132 : index
    %c0_53 = arith.constant 0 : index
    %159 = vector.load %arg17[%c132, %c0_53] : memref<154x32xf32, #tpu.memory_space<vmem>>, vector<10x32xf32>
    %160 = arith.maximumf %158, %159 : vector<10x32xf32>
    %161 = vector.extract_strided_slice %160 {offsets = [0, 0], sizes = [1, 32], strides = [1, 1]} : vector<10x32xf32> to vector<1x32xf32>
    %162 = vector.extract_strided_slice %160 {offsets = [1, 0], sizes = [1, 32], strides = [1, 1]} : vector<10x32xf32> to vector<1x32xf32>
    %163 = arith.maximumf %161, %162 : vector<1x32xf32>
    %c57 = arith.constant 57 : index
    %c0_54 = arith.constant 0 : index
    %164 = vector.load %arg18[%c57, %c0_54] : memref<70x32xf32, #tpu.memory_space<vmem>>, vector<1x32xf32>
    tpu.vector_store %arg18[%c57, %c0_54], %163 {strides = array<i32>} : memref<70x32xf32, #tpu.memory_space<vmem>>, vector<1x32xf32>,
    %165 = vector.extract_strided_slice %160 {offsets = [2, 0], sizes = [1, 32], strides = [1, 1]} : vector<10x32xf32> to vector<1x32xf32>
    %166 = vector.extract_strided_slice %160 {offsets = [3, 0], sizes = [1, 32], strides = [1, 1]} : vector<10x32xf32> to vector<1x32xf32>
    %167 = arith.maximumf %165, %166 : vector<1x32xf32>
    %c58 = arith.constant 58 : index
    %c0_55 = arith.constant 0 : index
    %168 = vector.load %arg18[%c58, %c0_55] : memref<70x32xf32, #tpu.memory_space<vmem>>, vector<1x32xf32>
    tpu.vector_store %arg18[%c58, %c0_55], %167 {strides = array<i32>} : memref<70x32xf32, #tpu.memory_space<vmem>>, vector<1x32xf32>,
    %169 = vector.extract_strided_slice %160 {offsets = [4, 0], sizes = [1, 32], strides = [1, 1]} : vector<10x32xf32> to vector<1x32xf32>
    %170 = vector.extract_strided_slice %160 {offsets = [5, 0], sizes = [1, 32], strides = [1, 1]} : vector<10x32xf32> to vector<1x32xf32>
    %171 = arith.maximumf %169, %170 : vector<1x32xf32>
    %c59 = arith.constant 59 : index
    %c0_56 = arith.constant 0 : index
    %172 = vector.load %arg18[%c59, %c0_56] : memref<70x32xf32, #tpu.memory_space<vmem>>, vector<1x32xf32>
    tpu.vector_store %arg18[%c59, %c0_56], %171 {strides = array<i32>} : memref<70x32xf32, #tpu.memory_space<vmem>>, vector<1x32xf32>,
    %173 = vector.extract_strided_slice %160 {offsets = [6, 0], sizes = [1, 32], strides = [1, 1]} : vector<10x32xf32> to vector<1x32xf32>
    %174 = vector.extract_strided_slice %160 {offsets = [7, 0], sizes = [1, 32], strides = [1, 1]} : vector<10x32xf32> to vector<1x32xf32>
    %175 = arith.maximumf %173, %174 : vector<1x32xf32>
    %c60 = arith.constant 60 : index
    %c0_57 = arith.constant 0 : index
    %176 = vector.load %arg18[%c60, %c0_57] : memref<70x32xf32, #tpu.memory_space<vmem>>, vector<1x32xf32>
    tpu.vector_store %arg18[%c60, %c0_57], %175 {strides = array<i32>} : memref<70x32xf32, #tpu.memory_space<vmem>>, vector<1x32xf32>,
    %177 = vector.extract_strided_slice %160 {offsets = [8, 0], sizes = [1, 32], strides = [1, 1]} : vector<10x32xf32> to vector<1x32xf32>
    %178 = vector.extract_strided_slice %160 {offsets = [9, 0], sizes = [1, 32], strides = [1, 1]} : vector<10x32xf32> to vector<1x32xf32>
    %179 = arith.maximumf %177, %178 : vector<1x32xf32>
    %c61 = arith.constant 61 : index
    %c0_58 = arith.constant 0 : index
    %180 = vector.load %arg18[%c61, %c0_58] : memref<70x32xf32, #tpu.memory_space<vmem>>, vector<1x32xf32>
    tpu.vector_store %arg18[%c61, %c0_58], %179 {strides = array<i32>} : memref<70x32xf32, #tpu.memory_space<vmem>>, vector<1x32xf32>,
    %c0_59 = arith.constant 0 : index
    %c0_60 = arith.constant 0 : index
    %181 = vector.load %arg18[%c0_59, %c0_60] : memref<70x32xf32, #tpu.memory_space<vmem>>, vector<5x32xf32>
    %c0_61 = arith.constant 0 : index
    %c0_62 = arith.constant 0 : index
    %182 = vector.load %arg19[%c0_61, %c0_62] : memref<30x288xf32, #tpu.memory_space<vmem>>, vector<5x32xf32>
    tpu.vector_store %arg19[%c0_61, %c0_62], %181 {strides = array<i32>} : memref<30x288xf32, #tpu.memory_space<vmem>>, vector<5x32xf32>,
    %c1 = arith.constant 1 : index
    %c0_63 = arith.constant 0 : index
    %183 = vector.load %arg18[%c1, %c0_63] : memref<70x32xf32, #tpu.memory_space<vmem>>, vector<5x32xf32>
    %c0_64 = arith.constant 0 : index
    %c32 = arith.constant 32 : index
    %184 = vector.load %arg19[%c0_64, %c32] : memref<30x288xf32, #tpu.memory_space<vmem>>, vector<5x32xf32>
    tpu.vector_store %arg19[%c0_64, %c32], %183 {strides = array<i32>} : memref<30x288xf32, #tpu.memory_space<vmem>>, vector<5x32xf32>,
    %c2 = arith.constant 2 : index
    %c0_65 = arith.constant 0 : index
    %185 = vector.load %arg18[%c2, %c0_65] : memref<70x32xf32, #tpu.memory_space<vmem>>, vector<5x32xf32>
    %c0_66 = arith.constant 0 : index
    %c64 = arith.constant 64 : index
    %186 = vector.load %arg19[%c0_66, %c64] : memref<30x288xf32, #tpu.memory_space<vmem>>, vector<5x32xf32>
    tpu.vector_store %arg19[%c0_66, %c64], %185 {strides = array<i32>} : memref<30x288xf32, #tpu.memory_space<vmem>>, vector<5x32xf32>,
    %c7 = arith.constant 7 : index
    %c0_67 = arith.constant 0 : index
    %187 = vector.load %arg18[%c7, %c0_67] : memref<70x32xf32, #tpu.memory_space<vmem>>, vector<5x32xf32>
    %c0_68 = arith.constant 0 : index
    %c96 = arith.constant 96 : index
    %188 = vector.load %arg19[%c0_68, %c96] : memref<30x288xf32, #tpu.memory_space<vmem>>, vector<5x32xf32>
    tpu.vector_store %arg19[%c0_68, %c96], %187 {strides = array<i32>} : memref<30x288xf32, #tpu.memory_space<vmem>>, vector<5x32xf32>,
    %c8_69 = arith.constant 8 : index
    %c0_70 = arith.constant 0 : index
    %189 = vector.load %arg18[%c8_69, %c0_70] : memref<70x32xf32, #tpu.memory_space<vmem>>, vector<5x32xf32>
    %c0_71 = arith.constant 0 : index
    %c128 = arith.constant 128 : index
    %190 = vector.load %arg19[%c0_71, %c128] : memref<30x288xf32, #tpu.memory_space<vmem>>, vector<5x32xf32>
    tpu.vector_store %arg19[%c0_71, %c128], %189 {strides = array<i32>} : memref<30x288xf32, #tpu.memory_space<vmem>>, vector<5x32xf32>,
    %c9_72 = arith.constant 9 : index
    %c0_73 = arith.constant 0 : index
    %191 = vector.load %arg18[%c9_72, %c0_73] : memref<70x32xf32, #tpu.memory_space<vmem>>, vector<5x32xf32>
    %c0_74 = arith.constant 0 : index
    %c160 = arith.constant 160 : index
    %192 = vector.load %arg19[%c0_74, %c160] : memref<30x288xf32, #tpu.memory_space<vmem>>, vector<5x32xf32>
    tpu.vector_store %arg19[%c0_74, %c160], %191 {strides = array<i32>} : memref<30x288xf32, #tpu.memory_space<vmem>>, vector<5x32xf32>,
    %c14 = arith.constant 14 : index
    %c0_75 = arith.constant 0 : index
    %193 = vector.load %arg18[%c14, %c0_75] : memref<70x32xf32, #tpu.memory_space<vmem>>, vector<5x32xf32>
    %c0_76 = arith.constant 0 : index
    %c192 = arith.constant 192 : index
    %194 = vector.load %arg19[%c0_76, %c192] : memref<30x288xf32, #tpu.memory_space<vmem>>, vector<5x32xf32>
    tpu.vector_store %arg19[%c0_76, %c192], %193 {strides = array<i32>} : memref<30x288xf32, #tpu.memory_space<vmem>>, vector<5x32xf32>,
    %c15_77 = arith.constant 15 : index
    %c0_78 = arith.constant 0 : index
    %195 = vector.load %arg18[%c15_77, %c0_78] : memref<70x32xf32, #tpu.memory_space<vmem>>, vector<5x32xf32>
    %c0_79 = arith.constant 0 : index
    %c224 = arith.constant 224 : index
    %196 = vector.load %arg19[%c0_79, %c224] : memref<30x288xf32, #tpu.memory_space<vmem>>, vector<5x32xf32>
    tpu.vector_store %arg19[%c0_79, %c224], %195 {strides = array<i32>} : memref<30x288xf32, #tpu.memory_space<vmem>>, vector<5x32xf32>,
    %c16_80 = arith.constant 16 : index
    %c0_81 = arith.constant 0 : index
    %197 = vector.load %arg18[%c16_80, %c0_81] : memref<70x32xf32, #tpu.memory_space<vmem>>, vector<5x32xf32>
    %c0_82 = arith.constant 0 : index
    %c256 = arith.constant 256 : index
    %198 = vector.load %arg19[%c0_82, %c256] : memref<30x288xf32, #tpu.memory_space<vmem>>, vector<5x32xf32>
    tpu.vector_store %arg19[%c0_82, %c256], %197 {strides = array<i32>} : memref<30x288xf32, #tpu.memory_space<vmem>>, vector<5x32xf32>,
    %c7_83 = arith.constant 7 : index
    %c0_84 = arith.constant 0 : index
    %199 = vector.load %arg18[%c7_83, %c0_84] : memref<70x32xf32, #tpu.memory_space<vmem>>, vector<5x32xf32>
    %c5 = arith.constant 5 : index
    %c0_85 = arith.constant 0 : index
    %200 = vector.load %arg19[%c5, %c0_85] : memref<30x288xf32, #tpu.memory_space<vmem>>, vector<5x32xf32>
    tpu.vector_store %arg19[%c5, %c0_85], %199 {strides = array<i32>} : memref<30x288xf32, #tpu.memory_space<vmem>>, vector<5x32xf32>,
    %c8_86 = arith.constant 8 : index
    %c0_87 = arith.constant 0 : index
    %201 = vector.load %arg18[%c8_86, %c0_87] : memref<70x32xf32, #tpu.memory_space<vmem>>, vector<5x32xf32>
    %c5_88 = arith.constant 5 : index
    %c32_89 = arith.constant 32 : index
    %202 = vector.load %arg19[%c5_88, %c32_89] : memref<30x288xf32, #tpu.memory_space<vmem>>, vector<5x32xf32>
    tpu.vector_store %arg19[%c5_88, %c32_89], %201 {strides = array<i32>} : memref<30x288xf32, #tpu.memory_space<vmem>>, vector<5x32xf32>,
    %c9_90 = arith.constant 9 : index
    %c0_91 = arith.constant 0 : index
    %203 = vector.load %arg18[%c9_90, %c0_91] : memref<70x32xf32, #tpu.memory_space<vmem>>, vector<5x32xf32>
    %c5_92 = arith.constant 5 : index
    %c64_93 = arith.constant 64 : index
    %204 = vector.load %arg19[%c5_92, %c64_93] : memref<30x288xf32, #tpu.memory_space<vmem>>, vector<5x32xf32>
    tpu.vector_store %arg19[%c5_92, %c64_93], %203 {strides = array<i32>} : memref<30x288xf32, #tpu.memory_space<vmem>>, vector<5x32xf32>,
    %c14_94 = arith.constant 14 : index
    %c0_95 = arith.constant 0 : index
    %205 = vector.load %arg18[%c14_94, %c0_95] : memref<70x32xf32, #tpu.memory_space<vmem>>, vector<5x32xf32>
    %c5_96 = arith.constant 5 : index
    %c96_97 = arith.constant 96 : index
    %206 = vector.load %arg19[%c5_96, %c96_97] : memref<30x288xf32, #tpu.memory_space<vmem>>, vector<5x32xf32>
    tpu.vector_store %arg19[%c5_96, %c96_97], %205 {strides = array<i32>} : memref<30x288xf32, #tpu.memory_space<vmem>>, vector<5x32xf32>,
    %c15_98 = arith.constant 15 : index
    %c0_99 = arith.constant 0 : index
    %207 = vector.load %arg18[%c15_98, %c0_99] : memref<70x32xf32, #tpu.memory_space<vmem>>, vector<5x32xf32>
    %c5_100 = arith.constant 5 : index
    %c128_101 = arith.constant 128 : index
    %208 = vector.load %arg19[%c5_100, %c128_101] : memref<30x288xf32, #tpu.memory_space<vmem>>, vector<5x32xf32>
    tpu.vector_store %arg19[%c5_100, %c128_101], %207 {strides = array<i32>} : memref<30x288xf32, #tpu.memory_space<vmem>>, vector<5x32xf32>,
    %c16_102 = arith.constant 16 : index
    %c0_103 = arith.constant 0 : index
    %209 = vector.load %arg18[%c16_102, %c0_103] : memref<70x32xf32, #tpu.memory_space<vmem>>, vector<5x32xf32>
    %c5_104 = arith.constant 5 : index
    %c160_105 = arith.constant 160 : index
    %210 = vector.load %arg19[%c5_104, %c160_105] : memref<30x288xf32, #tpu.memory_space<vmem>>, vector<5x32xf32>
    tpu.vector_store %arg19[%c5_104, %c160_105], %209 {strides = array<i32>} : memref<30x288xf32, #tpu.memory_space<vmem>>, vector<5x32xf32>,
    %c21 = arith.constant 21 : index
    %c0_106 = arith.constant 0 : index
    %211 = vector.load %arg18[%c21, %c0_106] : memref<70x32xf32, #tpu.memory_space<vmem>>, vector<5x32xf32>
    %c5_107 = arith.constant 5 : index
    %c192_108 = arith.constant 192 : index
    %212 = vector.load %arg19[%c5_107, %c192_108] : memref<30x288xf32, #tpu.memory_space<vmem>>, vector<5x32xf32>
    tpu.vector_store %arg19[%c5_107, %c192_108], %211 {strides = array<i32>} : memref<30x288xf32, #tpu.memory_space<vmem>>, vector<5x32xf32>,
    %c22_109 = arith.constant 22 : index
    %c0_110 = arith.constant 0 : index
    %213 = vector.load %arg18[%c22_109, %c0_110] : memref<70x32xf32, #tpu.memory_space<vmem>>, vector<5x32xf32>
    %c5_111 = arith.constant 5 : index
    %c224_112 = arith.constant 224 : index
    %214 = vector.load %arg19[%c5_111, %c224_112] : memref<30x288xf32, #tpu.memory_space<vmem>>, vector<5x32xf32>
    tpu.vector_store %arg19[%c5_111, %c224_112], %213 {strides = array<i32>} : memref<30x288xf32, #tpu.memory_space<vmem>>, vector<5x32xf32>,
    %c23_113 = arith.constant 23 : index
    %c0_114 = arith.constant 0 : index
    %215 = vector.load %arg18[%c23_113, %c0_114] : memref<70x32xf32, #tpu.memory_space<vmem>>, vector<5x32xf32>
    %c5_115 = arith.constant 5 : index
    %c256_116 = arith.constant 256 : index
    %216 = vector.load %arg19[%c5_115, %c256_116] : memref<30x288xf32, #tpu.memory_space<vmem>>, vector<5x32xf32>
    tpu.vector_store %arg19[%c5_115, %c256_116], %215 {strides = array<i32>} : memref<30x288xf32, #tpu.memory_space<vmem>>, vector<5x32xf32>,
    %c14_117 = arith.constant 14 : index
    %c0_118 = arith.constant 0 : index
    %217 = vector.load %arg18[%c14_117, %c0_118] : memref<70x32xf32, #tpu.memory_space<vmem>>, vector<5x32xf32>
    %c10_119 = arith.constant 10 : index
    %c0_120 = arith.constant 0 : index
    %218 = vector.load %arg19[%c10_119, %c0_120] : memref<30x288xf32, #tpu.memory_space<vmem>>, vector<5x32xf32>
    tpu.vector_store %arg19[%c10_119, %c0_120], %217 {strides = array<i32>} : memref<30x288xf32, #tpu.memory_space<vmem>>, vector<5x32xf32>,
    %c15_121 = arith.constant 15 : index
    %c0_122 = arith.constant 0 : index
    %219 = vector.load %arg18[%c15_121, %c0_122] : memref<70x32xf32, #tpu.memory_space<vmem>>, vector<5x32xf32>
    %c10_123 = arith.constant 10 : index
    %c32_124 = arith.constant 32 : index
    %220 = vector.load %arg19[%c10_123, %c32_124] : memref<30x288xf32, #tpu.memory_space<vmem>>, vector<5x32xf32>
    tpu.vector_store %arg19[%c10_123, %c32_124], %219 {strides = array<i32>} : memref<30x288xf32, #tpu.memory_space<vmem>>, vector<5x32xf32>,
    %c16_125 = arith.constant 16 : index
    %c0_126 = arith.constant 0 : index
    %221 = vector.load %arg18[%c16_125, %c0_126] : memref<70x32xf32, #tpu.memory_space<vmem>>, vector<5x32xf32>
    %c10_127 = arith.constant 10 : index
    %c64_128 = arith.constant 64 : index
    %222 = vector.load %arg19[%c10_127, %c64_128] : memref<30x288xf32, #tpu.memory_space<vmem>>, vector<5x32xf32>
    tpu.vector_store %arg19[%c10_127, %c64_128], %221 {strides = array<i32>} : memref<30x288xf32, #tpu.memory_space<vmem>>, vector<5x32xf32>,
    %c21_129 = arith.constant 21 : index
    %c0_130 = arith.constant 0 : index
    %223 = vector.load %arg18[%c21_129, %c0_130] : memref<70x32xf32, #tpu.memory_space<vmem>>, vector<5x32xf32>
    %c10_131 = arith.constant 10 : index
    %c96_132 = arith.constant 96 : index
    %224 = vector.load %arg19[%c10_131, %c96_132] : memref<30x288xf32, #tpu.memory_space<vmem>>, vector<5x32xf32>
    tpu.vector_store %arg19[%c10_131, %c96_132], %223 {strides = array<i32>} : memref<30x288xf32, #tpu.memory_space<vmem>>, vector<5x32xf32>,
    %c22_133 = arith.constant 22 : index
    %c0_134 = arith.constant 0 : index
    %225 = vector.load %arg18[%c22_133, %c0_134] : memref<70x32xf32, #tpu.memory_space<vmem>>, vector<5x32xf32>
    %c10_135 = arith.constant 10 : index
    %c128_136 = arith.constant 128 : index
    %226 = vector.load %arg19[%c10_135, %c128_136] : memref<30x288xf32, #tpu.memory_space<vmem>>, vector<5x32xf32>
    tpu.vector_store %arg19[%c10_135, %c128_136], %225 {strides = array<i32>} : memref<30x288xf32, #tpu.memory_space<vmem>>, vector<5x32xf32>,
    %c23_137 = arith.constant 23 : index
    %c0_138 = arith.constant 0 : index
    %227 = vector.load %arg18[%c23_137, %c0_138] : memref<70x32xf32, #tpu.memory_space<vmem>>, vector<5x32xf32>
    %c10_139 = arith.constant 10 : index
    %c160_140 = arith.constant 160 : index
    %228 = vector.load %arg19[%c10_139, %c160_140] : memref<30x288xf32, #tpu.memory_space<vmem>>, vector<5x32xf32>
    tpu.vector_store %arg19[%c10_139, %c160_140], %227 {strides = array<i32>} : memref<30x288xf32, #tpu.memory_space<vmem>>, vector<5x32xf32>,
    %c28 = arith.constant 28 : index
    %c0_141 = arith.constant 0 : index
    %229 = vector.load %arg18[%c28, %c0_141] : memref<70x32xf32, #tpu.memory_space<vmem>>, vector<5x32xf32>
    %c10_142 = arith.constant 10 : index
    %c192_143 = arith.constant 192 : index
    %230 = vector.load %arg19[%c10_142, %c192_143] : memref<30x288xf32, #tpu.memory_space<vmem>>, vector<5x32xf32>
    tpu.vector_store %arg19[%c10_142, %c192_143], %229 {strides = array<i32>} : memref<30x288xf32, #tpu.memory_space<vmem>>, vector<5x32xf32>,
    %c29 = arith.constant 29 : index
    %c0_144 = arith.constant 0 : index
    %231 = vector.load %arg18[%c29, %c0_144] : memref<70x32xf32, #tpu.memory_space<vmem>>, vector<5x32xf32>
    %c10_145 = arith.constant 10 : index
    %c224_146 = arith.constant 224 : index
    %232 = vector.load %arg19[%c10_145, %c224_146] : memref<30x288xf32, #tpu.memory_space<vmem>>, vector<5x32xf32>
    tpu.vector_store %arg19[%c10_145, %c224_146], %231 {strides = array<i32>} : memref<30x288xf32, #tpu.memory_space<vmem>>, vector<5x32xf32>,
    %c30 = arith.constant 30 : index
    %c0_147 = arith.constant 0 : index
    %233 = vector.load %arg18[%c30, %c0_147] : memref<70x32xf32, #tpu.memory_space<vmem>>, vector<5x32xf32>
    %c10_148 = arith.constant 10 : index
    %c256_149 = arith.constant 256 : index
    %234 = vector.load %arg19[%c10_148, %c256_149] : memref<30x288xf32, #tpu.memory_space<vmem>>, vector<5x32xf32>
    tpu.vector_store %arg19[%c10_148, %c256_149], %233 {strides = array<i32>} : memref<30x288xf32, #tpu.memory_space<vmem>>, vector<5x32xf32>,
    %c35 = arith.constant 35 : index
    %c0_150 = arith.constant 0 : index
    %235 = vector.load %arg18[%c35, %c0_150] : memref<70x32xf32, #tpu.memory_space<vmem>>, vector<5x32xf32>
    %c15_151 = arith.constant 15 : index
    %c0_152 = arith.constant 0 : index
    %236 = vector.load %arg19[%c15_151, %c0_152] : memref<30x288xf32, #tpu.memory_space<vmem>>, vector<5x32xf32>
    tpu.vector_store %arg19[%c15_151, %c0_152], %235 {strides = array<i32>} : memref<30x288xf32, #tpu.memory_space<vmem>>, vector<5x32xf32>,
    %c36 = arith.constant 36 : index
    %c0_153 = arith.constant 0 : index
    %237 = vector.load %arg18[%c36, %c0_153] : memref<70x32xf32, #tpu.memory_space<vmem>>, vector<5x32xf32>
    %c15_154 = arith.constant 15 : index
    %c32_155 = arith.constant 32 : index
    %238 = vector.load %arg19[%c15_154, %c32_155] : memref<30x288xf32, #tpu.memory_space<vmem>>, vector<5x32xf32>
    tpu.vector_store %arg19[%c15_154, %c32_155], %237 {strides = array<i32>} : memref<30x288xf32, #tpu.memory_space<vmem>>, vector<5x32xf32>,
    %c37 = arith.constant 37 : index
    %c0_156 = arith.constant 0 : index
    %239 = vector.load %arg18[%c37, %c0_156] : memref<70x32xf32, #tpu.memory_space<vmem>>, vector<5x32xf32>
    %c15_157 = arith.constant 15 : index
    %c64_158 = arith.constant 64 : index
    %240 = vector.load %arg19[%c15_157, %c64_158] : memref<30x288xf32, #tpu.memory_space<vmem>>, vector<5x32xf32>
    tpu.vector_store %arg19[%c15_157, %c64_158], %239 {strides = array<i32>} : memref<30x288xf32, #tpu.memory_space<vmem>>, vector<5x32xf32>,
    %c42 = arith.constant 42 : index
    %c0_159 = arith.constant 0 : index
    %241 = vector.load %arg18[%c42, %c0_159] : memref<70x32xf32, #tpu.memory_space<vmem>>, vector<5x32xf32>
    %c15_160 = arith.constant 15 : index
    %c96_161 = arith.constant 96 : index
    %242 = vector.load %arg19[%c15_160, %c96_161] : memref<30x288xf32, #tpu.memory_space<vmem>>, vector<5x32xf32>
    tpu.vector_store %arg19[%c15_160, %c96_161], %241 {strides = array<i32>} : memref<30x288xf32, #tpu.memory_space<vmem>>, vector<5x32xf32>,
    %c43_162 = arith.constant 43 : index
    %c0_163 = arith.constant 0 : index
    %243 = vector.load %arg18[%c43_162, %c0_163] : memref<70x32xf32, #tpu.memory_space<vmem>>, vector<5x32xf32>
    %c15_164 = arith.constant 15 : index
    %c128_165 = arith.constant 128 : index
    %244 = vector.load %arg19[%c15_164, %c128_165] : memref<30x288xf32, #tpu.memory_space<vmem>>, vector<5x32xf32>
    tpu.vector_store %arg19[%c15_164, %c128_165], %243 {strides = array<i32>} : memref<30x288xf32, #tpu.memory_space<vmem>>, vector<5x32xf32>,
    %c44_166 = arith.constant 44 : index
    %c0_167 = arith.constant 0 : index
    %245 = vector.load %arg18[%c44_166, %c0_167] : memref<70x32xf32, #tpu.memory_space<vmem>>, vector<5x32xf32>
    %c15_168 = arith.constant 15 : index
    %c160_169 = arith.constant 160 : index
    %246 = vector.load %arg19[%c15_168, %c160_169] : memref<30x288xf32, #tpu.memory_space<vmem>>, vector<5x32xf32>
    tpu.vector_store %arg19[%c15_168, %c160_169], %245 {strides = array<i32>} : memref<30x288xf32, #tpu.memory_space<vmem>>, vector<5x32xf32>,
    %c49 = arith.constant 49 : index
    %c0_170 = arith.constant 0 : index
    %247 = vector.load %arg18[%c49, %c0_170] : memref<70x32xf32, #tpu.memory_space<vmem>>, vector<5x32xf32>
    %c15_171 = arith.constant 15 : index
    %c192_172 = arith.constant 192 : index
    %248 = vector.load %arg19[%c15_171, %c192_172] : memref<30x288xf32, #tpu.memory_space<vmem>>, vector<5x32xf32>
    tpu.vector_store %arg19[%c15_171, %c192_172], %247 {strides = array<i32>} : memref<30x288xf32, #tpu.memory_space<vmem>>, vector<5x32xf32>,
    %c50_173 = arith.constant 50 : index
    %c0_174 = arith.constant 0 : index
    %249 = vector.load %arg18[%c50_173, %c0_174] : memref<70x32xf32, #tpu.memory_space<vmem>>, vector<5x32xf32>
    %c15_175 = arith.constant 15 : index
    %c224_176 = arith.constant 224 : index
    %250 = vector.load %arg19[%c15_175, %c224_176] : memref<30x288xf32, #tpu.memory_space<vmem>>, vector<5x32xf32>
    tpu.vector_store %arg19[%c15_175, %c224_176], %249 {strides = array<i32>} : memref<30x288xf32, #tpu.memory_space<vmem>>, vector<5x32xf32>,
    %c51_177 = arith.constant 51 : index
    %c0_178 = arith.constant 0 : index
    %251 = vector.load %arg18[%c51_177, %c0_178] : memref<70x32xf32, #tpu.memory_space<vmem>>, vector<5x32xf32>
    %c15_179 = arith.constant 15 : index
    %c256_180 = arith.constant 256 : index
    %252 = vector.load %arg19[%c15_179, %c256_180] : memref<30x288xf32, #tpu.memory_space<vmem>>, vector<5x32xf32>
    tpu.vector_store %arg19[%c15_179, %c256_180], %251 {strides = array<i32>} : memref<30x288xf32, #tpu.memory_space<vmem>>, vector<5x32xf32>,
    %c42_181 = arith.constant 42 : index
    %c0_182 = arith.constant 0 : index
    %253 = vector.load %arg18[%c42_181, %c0_182] : memref<70x32xf32, #tpu.memory_space<vmem>>, vector<5x32xf32>
    %c20 = arith.constant 20 : index
    %c0_183 = arith.constant 0 : index
    %254 = vector.load %arg19[%c20, %c0_183] : memref<30x288xf32, #tpu.memory_space<vmem>>, vector<5x32xf32>
    tpu.vector_store %arg19[%c20, %c0_183], %253 {strides = array<i32>} : memref<30x288xf32, #tpu.memory_space<vmem>>, vector<5x32xf32>,
    %c43_184 = arith.constant 43 : index
    %c0_185 = arith.constant 0 : index
    %255 = vector.load %arg18[%c43_184, %c0_185] : memref<70x32xf32, #tpu.memory_space<vmem>>, vector<5x32xf32>
    %c20_186 = arith.constant 20 : index
    %c32_187 = arith.constant 32 : index
    %256 = vector.load %arg19[%c20_186, %c32_187] : memref<30x288xf32, #tpu.memory_space<vmem>>, vector<5x32xf32>
    tpu.vector_store %arg19[%c20_186, %c32_187], %255 {strides = array<i32>} : memref<30x288xf32, #tpu.memory_space<vmem>>, vector<5x32xf32>,
    %c44_188 = arith.constant 44 : index
    %c0_189 = arith.constant 0 : index
    %257 = vector.load %arg18[%c44_188, %c0_189] : memref<70x32xf32, #tpu.memory_space<vmem>>, vector<5x32xf32>
    %c20_190 = arith.constant 20 : index
    %c64_191 = arith.constant 64 : index
    %258 = vector.load %arg19[%c20_190, %c64_191] : memref<30x288xf32, #tpu.memory_space<vmem>>, vector<5x32xf32>
    tpu.vector_store %arg19[%c20_190, %c64_191], %257 {strides = array<i32>} : memref<30x288xf32, #tpu.memory_space<vmem>>, vector<5x32xf32>,
    %c49_192 = arith.constant 49 : index
    %c0_193 = arith.constant 0 : index
    %259 = vector.load %arg18[%c49_192, %c0_193] : memref<70x32xf32, #tpu.memory_space<vmem>>, vector<5x32xf32>
    %c20_194 = arith.constant 20 : index
    %c96_195 = arith.constant 96 : index
    %260 = vector.load %arg19[%c20_194, %c96_195] : memref<30x288xf32, #tpu.memory_space<vmem>>, vector<5x32xf32>
    tpu.vector_store %arg19[%c20_194, %c96_195], %259 {strides = array<i32>} : memref<30x288xf32, #tpu.memory_space<vmem>>, vector<5x32xf32>,
    %c50_196 = arith.constant 50 : index
    %c0_197 = arith.constant 0 : index
    %261 = vector.load %arg18[%c50_196, %c0_197] : memref<70x32xf32, #tpu.memory_space<vmem>>, vector<5x32xf32>
    %c20_198 = arith.constant 20 : index
    %c128_199 = arith.constant 128 : index
    %262 = vector.load %arg19[%c20_198, %c128_199] : memref<30x288xf32, #tpu.memory_space<vmem>>, vector<5x32xf32>
    tpu.vector_store %arg19[%c20_198, %c128_199], %261 {strides = array<i32>} : memref<30x288xf32, #tpu.memory_space<vmem>>, vector<5x32xf32>,
    %c51_200 = arith.constant 51 : index
    %c0_201 = arith.constant 0 : index
    %263 = vector.load %arg18[%c51_200, %c0_201] : memref<70x32xf32, #tpu.memory_space<vmem>>, vector<5x32xf32>
    %c20_202 = arith.constant 20 : index
    %c160_203 = arith.constant 160 : index
    %264 = vector.load %arg19[%c20_202, %c160_203] : memref<30x288xf32, #tpu.memory_space<vmem>>, vector<5x32xf32>
    tpu.vector_store %arg19[%c20_202, %c160_203], %263 {strides = array<i32>} : memref<30x288xf32, #tpu.memory_space<vmem>>, vector<5x32xf32>,
    %c56 = arith.constant 56 : index
    %c0_204 = arith.constant 0 : index
    %265 = vector.load %arg18[%c56, %c0_204] : memref<70x32xf32, #tpu.memory_space<vmem>>, vector<5x32xf32>
    %c20_205 = arith.constant 20 : index
    %c192_206 = arith.constant 192 : index
    %266 = vector.load %arg19[%c20_205, %c192_206] : memref<30x288xf32, #tpu.memory_space<vmem>>, vector<5x32xf32>
    tpu.vector_store %arg19[%c20_205, %c192_206], %265 {strides = array<i32>} : memref<30x288xf32, #tpu.memory_space<vmem>>, vector<5x32xf32>,
    %c57_207 = arith.constant 57 : index
    %c0_208 = arith.constant 0 : index
    %267 = vector.load %arg18[%c57_207, %c0_208] : memref<70x32xf32, #tpu.memory_space<vmem>>, vector<5x32xf32>
    %c20_209 = arith.constant 20 : index
    %c224_210 = arith.constant 224 : index
    %268 = vector.load %arg19[%c20_209, %c224_210] : memref<30x288xf32, #tpu.memory_space<vmem>>, vector<5x32xf32>
    tpu.vector_store %arg19[%c20_209, %c224_210], %267 {strides = array<i32>} : memref<30x288xf32, #tpu.memory_space<vmem>>, vector<5x32xf32>,
    %c58_211 = arith.constant 58 : index
    %c0_212 = arith.constant 0 : index
    %269 = vector.load %arg18[%c58_211, %c0_212] : memref<70x32xf32, #tpu.memory_space<vmem>>, vector<5x32xf32>
    %c20_213 = arith.constant 20 : index
    %c256_214 = arith.constant 256 : index
    %270 = vector.load %arg19[%c20_213, %c256_214] : memref<30x288xf32, #tpu.memory_space<vmem>>, vector<5x32xf32>
    tpu.vector_store %arg19[%c20_213, %c256_214], %269 {strides = array<i32>} : memref<30x288xf32, #tpu.memory_space<vmem>>, vector<5x32xf32>,
    %c49_215 = arith.constant 49 : index
    %c0_216 = arith.constant 0 : index
    %271 = vector.load %arg18[%c49_215, %c0_216] : memref<70x32xf32, #tpu.memory_space<vmem>>, vector<5x32xf32>
    %c25_217 = arith.constant 25 : index
    %c0_218 = arith.constant 0 : index
    %272 = vector.load %arg19[%c25_217, %c0_218] : memref<30x288xf32, #tpu.memory_space<vmem>>, vector<5x32xf32>
    tpu.vector_store %arg19[%c25_217, %c0_218], %271 {strides = array<i32>} : memref<30x288xf32, #tpu.memory_space<vmem>>, vector<5x32xf32>,
    %c50_219 = arith.constant 50 : index
    %c0_220 = arith.constant 0 : index
    %273 = vector.load %arg18[%c50_219, %c0_220] : memref<70x32xf32, #tpu.memory_space<vmem>>, vector<5x32xf32>
    %c25_221 = arith.constant 25 : index
    %c32_222 = arith.constant 32 : index
    %274 = vector.load %arg19[%c25_221, %c32_222] : memref<30x288xf32, #tpu.memory_space<vmem>>, vector<5x32xf32>
    tpu.vector_store %arg19[%c25_221, %c32_222], %273 {strides = array<i32>} : memref<30x288xf32, #tpu.memory_space<vmem>>, vector<5x32xf32>,
    %c51_223 = arith.constant 51 : index
    %c0_224 = arith.constant 0 : index
    %275 = vector.load %arg18[%c51_223, %c0_224] : memref<70x32xf32, #tpu.memory_space<vmem>>, vector<5x32xf32>
    %c25_225 = arith.constant 25 : index
    %c64_226 = arith.constant 64 : index
    %276 = vector.load %arg19[%c25_225, %c64_226] : memref<30x288xf32, #tpu.memory_space<vmem>>, vector<5x32xf32>
    tpu.vector_store %arg19[%c25_225, %c64_226], %275 {strides = array<i32>} : memref<30x288xf32, #tpu.memory_space<vmem>>, vector<5x32xf32>,
    %c56_227 = arith.constant 56 : index
    %c0_228 = arith.constant 0 : index
    %277 = vector.load %arg18[%c56_227, %c0_228] : memref<70x32xf32, #tpu.memory_space<vmem>>, vector<5x32xf32>
    %c25_229 = arith.constant 25 : index
    %c96_230 = arith.constant 96 : index
    %278 = vector.load %arg19[%c25_229, %c96_230] : memref<30x288xf32, #tpu.memory_space<vmem>>, vector<5x32xf32>
    tpu.vector_store %arg19[%c25_229, %c96_230], %277 {strides = array<i32>} : memref<30x288xf32, #tpu.memory_space<vmem>>, vector<5x32xf32>,
    %c57_231 = arith.constant 57 : index
    %c0_232 = arith.constant 0 : index
    %279 = vector.load %arg18[%c57_231, %c0_232] : memref<70x32xf32, #tpu.memory_space<vmem>>, vector<5x32xf32>
    %c25_233 = arith.constant 25 : index
    %c128_234 = arith.constant 128 : index
    %280 = vector.load %arg19[%c25_233, %c128_234] : memref<30x288xf32, #tpu.memory_space<vmem>>, vector<5x32xf32>
    tpu.vector_store %arg19[%c25_233, %c128_234], %279 {strides = array<i32>} : memref<30x288xf32, #tpu.memory_space<vmem>>, vector<5x32xf32>,
    %c58_235 = arith.constant 58 : index
    %c0_236 = arith.constant 0 : index
    %281 = vector.load %arg18[%c58_235, %c0_236] : memref<70x32xf32, #tpu.memory_space<vmem>>, vector<5x32xf32>
    %c25_237 = arith.constant 25 : index
    %c160_238 = arith.constant 160 : index
    %282 = vector.load %arg19[%c25_237, %c160_238] : memref<30x288xf32, #tpu.memory_space<vmem>>, vector<5x32xf32>
    tpu.vector_store %arg19[%c25_237, %c160_238], %281 {strides = array<i32>} : memref<30x288xf32, #tpu.memory_space<vmem>>, vector<5x32xf32>,
    %c63 = arith.constant 63 : index
    %c0_239 = arith.constant 0 : index
    %283 = vector.load %arg18[%c63, %c0_239] : memref<70x32xf32, #tpu.memory_space<vmem>>, vector<5x32xf32>
    %c25_240 = arith.constant 25 : index
    %c192_241 = arith.constant 192 : index
    %284 = vector.load %arg19[%c25_240, %c192_241] : memref<30x288xf32, #tpu.memory_space<vmem>>, vector<5x32xf32>
    tpu.vector_store %arg19[%c25_240, %c192_241], %283 {strides = array<i32>} : memref<30x288xf32, #tpu.memory_space<vmem>>, vector<5x32xf32>,
    %c64_242 = arith.constant 64 : index
    %c0_243 = arith.constant 0 : index
    %285 = vector.load %arg18[%c64_242, %c0_243] : memref<70x32xf32, #tpu.memory_space<vmem>>, vector<5x32xf32>
    %c25_244 = arith.constant 25 : index
    %c224_245 = arith.constant 224 : index
    %286 = vector.load %arg19[%c25_244, %c224_245] : memref<30x288xf32, #tpu.memory_space<vmem>>, vector<5x32xf32>
    tpu.vector_store %arg19[%c25_244, %c224_245], %285 {strides = array<i32>} : memref<30x288xf32, #tpu.memory_space<vmem>>, vector<5x32xf32>,
    %c65 = arith.constant 65 : index
    %c0_246 = arith.constant 0 : index
    %287 = vector.load %arg18[%c65, %c0_246] : memref<70x32xf32, #tpu.memory_space<vmem>>, vector<5x32xf32>
    %c25_247 = arith.constant 25 : index
    %c256_248 = arith.constant 256 : index
    %288 = vector.load %arg19[%c25_247, %c256_248] : memref<30x288xf32, #tpu.memory_space<vmem>>, vector<5x32xf32>
    tpu.vector_store %arg19[%c25_247, %c256_248], %287 {strides = array<i32>} : memref<30x288xf32, #tpu.memory_space<vmem>>, vector<5x32xf32>,
    %c0_249 = arith.constant 0 : index
    %c0_250 = arith.constant 0 : index
    %289 = vector.load %arg19[%c0_249, %c0_250] : memref<30x288xf32, #tpu.memory_space<vmem>>, vector<30x288xf32>
    %290 = arith.truncf %289 : vector<30x288xf32> to vector<30x288xbf16>
    %c0_251 = arith.constant 0 : index
    %c0_252 = arith.constant 0 : index
    %291 = vector.load %arg4[%c0_251, %c0_252] : memref<288x128xbf16, #tpu.memory_space<vmem>>, vector<288x128xbf16>
    %cst_253 = arith.constant dense<0.000000e+00> : vector<30x128xf32>
    %292 = tpu.matmul %290, %291, %cst_253 {dimension_numbers = #tpu.dot_dimension_numbers<[1], [0], [0], [1], [0, 0, 1, 1], [], []>} : vector<30x288xbf16>, vector<288x128xbf16>, vector<30x128xf32> -> vector<30x128xf32>
    %c0_254 = arith.constant 0 : index
    %c0_255 = arith.constant 0 : index
    %293 = vector.load %arg5[%c0_254, %c0_255] : memref<1x128xf32, #tpu.memory_space<vmem>>, vector<1x128xf32>
    %294 = vector.broadcast %293 : vector<1x128xf32> to vector<30x128xf32>
    %295 = arith.addf %292, %294 : vector<30x128xf32>
    %cst_256 = arith.constant 0.000000e+00 : f32
    %296 = vector.broadcast %cst_256 : f32 to vector<30x128xf32>
    %297 = arith.maximumf %295, %296 : vector<30x128xf32>
    %298 = vector.extract_strided_slice %297 {offsets = [0, 0], sizes = [5, 128], strides = [1, 1]} : vector<30x128xf32> to vector<5x128xf32>
    %c8_257 = arith.constant 8 : index
    %c0_258 = arith.constant 0 : index
    %299 = vector.load %arg20[%c8_257, %c0_258] : memref<70x128xf32, #tpu.memory_space<vmem>>, vector<5x128xf32>
    tpu.vector_store %arg20[%c8_257, %c0_258], %298 {strides = array<i32>} : memref<70x128xf32, #tpu.memory_space<vmem>>, vector<5x128xf32>,
    %300 = vector.extract_strided_slice %297 {offsets = [5, 0], sizes = [5, 128], strides = [1, 1]} : vector<30x128xf32> to vector<5x128xf32>
    %c15_259 = arith.constant 15 : index
    %c0_260 = arith.constant 0 : index
    %301 = vector.load %arg20[%c15_259, %c0_260] : memref<70x128xf32, #tpu.memory_space<vmem>>, vector<5x128xf32>
    tpu.vector_store %arg20[%c15_259, %c0_260], %300 {strides = array<i32>} : memref<70x128xf32, #tpu.memory_space<vmem>>, vector<5x128xf32>,
    %302 = vector.extract_strided_slice %297 {offsets = [10, 0], sizes = [5, 128], strides = [1, 1]} : vector<30x128xf32> to vector<5x128xf32>
    %c22_261 = arith.constant 22 : index
    %c0_262 = arith.constant 0 : index
    %303 = vector.load %arg20[%c22_261, %c0_262] : memref<70x128xf32, #tpu.memory_space<vmem>>, vector<5x128xf32>
    tpu.vector_store %arg20[%c22_261, %c0_262], %302 {strides = array<i32>} : memref<70x128xf32, #tpu.memory_space<vmem>>, vector<5x128xf32>,
    %304 = vector.extract_strided_slice %297 {offsets = [15, 0], sizes = [5, 128], strides = [1, 1]} : vector<30x128xf32> to vector<5x128xf32>
    %c43_263 = arith.constant 43 : index
    %c0_264 = arith.constant 0 : index
    %305 = vector.load %arg20[%c43_263, %c0_264] : memref<70x128xf32, #tpu.memory_space<vmem>>, vector<5x128xf32>
    tpu.vector_store %arg20[%c43_263, %c0_264], %304 {strides = array<i32>} : memref<70x128xf32, #tpu.memory_space<vmem>>, vector<5x128xf32>,
    %306 = vector.extract_strided_slice %297 {offsets = [20, 0], sizes = [5, 128], strides = [1, 1]} : vector<30x128xf32> to vector<5x128xf32>
    %c50_265 = arith.constant 50 : index
    %c0_266 = arith.constant 0 : index
    %307 = vector.load %arg20[%c50_265, %c0_266] : memref<70x128xf32, #tpu.memory_space<vmem>>, vector<5x128xf32>
    tpu.vector_store %arg20[%c50_265, %c0_266], %306 {strides = array<i32>} : memref<70x128xf32, #tpu.memory_space<vmem>>, vector<5x128xf32>,
    %308 = vector.extract_strided_slice %297 {offsets = [25, 0], sizes = [5, 128], strides = [1, 1]} : vector<30x128xf32> to vector<5x128xf32>
    %c57_267 = arith.constant 57 : index
    %c0_268 = arith.constant 0 : index
    %309 = vector.load %arg20[%c57_267, %c0_268] : memref<70x128xf32, #tpu.memory_space<vmem>>, vector<5x128xf32>
    tpu.vector_store %arg20[%c57_267, %c0_268], %308 {strides = array<i32>} : memref<70x128xf32, #tpu.memory_space<vmem>>, vector<5x128xf32>,
    %c0_269 = arith.constant 0 : index
    %c0_270 = arith.constant 0 : index
    %310 = vector.load %arg20[%c0_269, %c0_270] : memref<70x128xf32, #tpu.memory_space<vmem>>, vector<6x128xf32>
    %c0_271 = arith.constant 0 : index
    %c0_272 = arith.constant 0 : index
    %311 = vector.load %arg21[%c0_271, %c0_272] : memref<48x512xf32, #tpu.memory_space<vmem>>, vector<6x128xf32>
    tpu.vector_store %arg21[%c0_271, %c0_272], %310 {strides = array<i32>} : memref<48x512xf32, #tpu.memory_space<vmem>>, vector<6x128xf32>,
    %c1_273 = arith.constant 1 : index
    %c0_274 = arith.constant 0 : index
    %312 = vector.load %arg20[%c1_273, %c0_274] : memref<70x128xf32, #tpu.memory_space<vmem>>, vector<6x128xf32>
    %c0_275 = arith.constant 0 : index
    %c128_276 = arith.constant 128 : index
    %313 = vector.load %arg21[%c0_275, %c128_276] : memref<48x512xf32, #tpu.memory_space<vmem>>, vector<6x128xf32>
    tpu.vector_store %arg21[%c0_275, %c128_276], %312 {strides = array<i32>} : memref<48x512xf32, #tpu.memory_space<vmem>>, vector<6x128xf32>,
    %c7_277 = arith.constant 7 : index
    %c0_278 = arith.constant 0 : index
    %314 = vector.load %arg20[%c7_277, %c0_278] : memref<70x128xf32, #tpu.memory_space<vmem>>, vector<6x128xf32>
    %c0_279 = arith.constant 0 : index
    %c256_280 = arith.constant 256 : index
    %315 = vector.load %arg21[%c0_279, %c256_280] : memref<48x512xf32, #tpu.memory_space<vmem>>, vector<6x128xf32>
    tpu.vector_store %arg21[%c0_279, %c256_280], %314 {strides = array<i32>} : memref<48x512xf32, #tpu.memory_space<vmem>>, vector<6x128xf32>,
    %c8_281 = arith.constant 8 : index
    %c0_282 = arith.constant 0 : index
    %316 = vector.load %arg20[%c8_281, %c0_282] : memref<70x128xf32, #tpu.memory_space<vmem>>, vector<6x128xf32>
    %c0_283 = arith.constant 0 : index
    %c384 = arith.constant 384 : index
    %317 = vector.load %arg21[%c0_283, %c384] : memref<48x512xf32, #tpu.memory_space<vmem>>, vector<6x128xf32>
    tpu.vector_store %arg21[%c0_283, %c384], %316 {strides = array<i32>} : memref<48x512xf32, #tpu.memory_space<vmem>>, vector<6x128xf32>,
    %c7_284 = arith.constant 7 : index
    %c0_285 = arith.constant 0 : index
    %318 = vector.load %arg20[%c7_284, %c0_285] : memref<70x128xf32, #tpu.memory_space<vmem>>, vector<6x128xf32>
    %c6 = arith.constant 6 : index
    %c0_286 = arith.constant 0 : index
    %319 = vector.load %arg21[%c6, %c0_286] : memref<48x512xf32, #tpu.memory_space<vmem>>, vector<6x128xf32>
    tpu.vector_store %arg21[%c6, %c0_286], %318 {strides = array<i32>} : memref<48x512xf32, #tpu.memory_space<vmem>>, vector<6x128xf32>,
    %c8_287 = arith.constant 8 : index
    %c0_288 = arith.constant 0 : index
    %320 = vector.load %arg20[%c8_287, %c0_288] : memref<70x128xf32, #tpu.memory_space<vmem>>, vector<6x128xf32>
    %c6_289 = arith.constant 6 : index
    %c128_290 = arith.constant 128 : index
    %321 = vector.load %arg21[%c6_289, %c128_290] : memref<48x512xf32, #tpu.memory_space<vmem>>, vector<6x128xf32>
    tpu.vector_store %arg21[%c6_289, %c128_290], %320 {strides = array<i32>} : memref<48x512xf32, #tpu.memory_space<vmem>>, vector<6x128xf32>,
    %c14_291 = arith.constant 14 : index
    %c0_292 = arith.constant 0 : index
    %322 = vector.load %arg20[%c14_291, %c0_292] : memref<70x128xf32, #tpu.memory_space<vmem>>, vector<6x128xf32>
    %c6_293 = arith.constant 6 : index
    %c256_294 = arith.constant 256 : index
    %323 = vector.load %arg21[%c6_293, %c256_294] : memref<48x512xf32, #tpu.memory_space<vmem>>, vector<6x128xf32>
    tpu.vector_store %arg21[%c6_293, %c256_294], %322 {strides = array<i32>} : memref<48x512xf32, #tpu.memory_space<vmem>>, vector<6x128xf32>,
    %c15_295 = arith.constant 15 : index
    %c0_296 = arith.constant 0 : index
    %324 = vector.load %arg20[%c15_295, %c0_296] : memref<70x128xf32, #tpu.memory_space<vmem>>, vector<6x128xf32>
    %c6_297 = arith.constant 6 : index
    %c384_298 = arith.constant 384 : index
    %325 = vector.load %arg21[%c6_297, %c384_298] : memref<48x512xf32, #tpu.memory_space<vmem>>, vector<6x128xf32>
    tpu.vector_store %arg21[%c6_297, %c384_298], %324 {strides = array<i32>} : memref<48x512xf32, #tpu.memory_space<vmem>>, vector<6x128xf32>,
    %c14_299 = arith.constant 14 : index
    %c0_300 = arith.constant 0 : index
    %326 = vector.load %arg20[%c14_299, %c0_300] : memref<70x128xf32, #tpu.memory_space<vmem>>, vector<6x128xf32>
    %c12_301 = arith.constant 12 : index
    %c0_302 = arith.constant 0 : index
    %327 = vector.load %arg21[%c12_301, %c0_302] : memref<48x512xf32, #tpu.memory_space<vmem>>, vector<6x128xf32>
    tpu.vector_store %arg21[%c12_301, %c0_302], %326 {strides = array<i32>} : memref<48x512xf32, #tpu.memory_space<vmem>>, vector<6x128xf32>,
    %c15_303 = arith.constant 15 : index
    %c0_304 = arith.constant 0 : index
    %328 = vector.load %arg20[%c15_303, %c0_304] : memref<70x128xf32, #tpu.memory_space<vmem>>, vector<6x128xf32>
    %c12_305 = arith.constant 12 : index
    %c128_306 = arith.constant 128 : index
    %329 = vector.load %arg21[%c12_305, %c128_306] : memref<48x512xf32, #tpu.memory_space<vmem>>, vector<6x128xf32>
    tpu.vector_store %arg21[%c12_305, %c128_306], %328 {strides = array<i32>} : memref<48x512xf32, #tpu.memory_space<vmem>>, vector<6x128xf32>,
    %c21_307 = arith.constant 21 : index
    %c0_308 = arith.constant 0 : index
    %330 = vector.load %arg20[%c21_307, %c0_308] : memref<70x128xf32, #tpu.memory_space<vmem>>, vector<6x128xf32>
    %c12_309 = arith.constant 12 : index
    %c256_310 = arith.constant 256 : index
    %331 = vector.load %arg21[%c12_309, %c256_310] : memref<48x512xf32, #tpu.memory_space<vmem>>, vector<6x128xf32>
    tpu.vector_store %arg21[%c12_309, %c256_310], %330 {strides = array<i32>} : memref<48x512xf32, #tpu.memory_space<vmem>>, vector<6x128xf32>,
    %c22_311 = arith.constant 22 : index
    %c0_312 = arith.constant 0 : index
    %332 = vector.load %arg20[%c22_311, %c0_312] : memref<70x128xf32, #tpu.memory_space<vmem>>, vector<6x128xf32>
    %c12_313 = arith.constant 12 : index
    %c384_314 = arith.constant 384 : index
    %333 = vector.load %arg21[%c12_313, %c384_314] : memref<48x512xf32, #tpu.memory_space<vmem>>, vector<6x128xf32>
    tpu.vector_store %arg21[%c12_313, %c384_314], %332 {strides = array<i32>} : memref<48x512xf32, #tpu.memory_space<vmem>>, vector<6x128xf32>,
    %c21_315 = arith.constant 21 : index
    %c0_316 = arith.constant 0 : index
    %334 = vector.load %arg20[%c21_315, %c0_316] : memref<70x128xf32, #tpu.memory_space<vmem>>, vector<6x128xf32>
    %c18_317 = arith.constant 18 : index
    %c0_318 = arith.constant 0 : index
    %335 = vector.load %arg21[%c18_317, %c0_318] : memref<48x512xf32, #tpu.memory_space<vmem>>, vector<6x128xf32>
    tpu.vector_store %arg21[%c18_317, %c0_318], %334 {strides = array<i32>} : memref<48x512xf32, #tpu.memory_space<vmem>>, vector<6x128xf32>,
    %c22_319 = arith.constant 22 : index
    %c0_320 = arith.constant 0 : index
    %336 = vector.load %arg20[%c22_319, %c0_320] : memref<70x128xf32, #tpu.memory_space<vmem>>, vector<6x128xf32>
    %c18_321 = arith.constant 18 : index
    %c128_322 = arith.constant 128 : index
    %337 = vector.load %arg21[%c18_321, %c128_322] : memref<48x512xf32, #tpu.memory_space<vmem>>, vector<6x128xf32>
    tpu.vector_store %arg21[%c18_321, %c128_322], %336 {strides = array<i32>} : memref<48x512xf32, #tpu.memory_space<vmem>>, vector<6x128xf32>,
    %c28_323 = arith.constant 28 : index
    %c0_324 = arith.constant 0 : index
    %338 = vector.load %arg20[%c28_323, %c0_324] : memref<70x128xf32, #tpu.memory_space<vmem>>, vector<6x128xf32>
    %c18_325 = arith.constant 18 : index
    %c256_326 = arith.constant 256 : index
    %339 = vector.load %arg21[%c18_325, %c256_326] : memref<48x512xf32, #tpu.memory_space<vmem>>, vector<6x128xf32>
    tpu.vector_store %arg21[%c18_325, %c256_326], %338 {strides = array<i32>} : memref<48x512xf32, #tpu.memory_space<vmem>>, vector<6x128xf32>,
    %c29_327 = arith.constant 29 : index
    %c0_328 = arith.constant 0 : index
    %340 = vector.load %arg20[%c29_327, %c0_328] : memref<70x128xf32, #tpu.memory_space<vmem>>, vector<6x128xf32>
    %c18_329 = arith.constant 18 : index
    %c384_330 = arith.constant 384 : index
    %341 = vector.load %arg21[%c18_329, %c384_330] : memref<48x512xf32, #tpu.memory_space<vmem>>, vector<6x128xf32>
    tpu.vector_store %arg21[%c18_329, %c384_330], %340 {strides = array<i32>} : memref<48x512xf32, #tpu.memory_space<vmem>>, vector<6x128xf32>,
    %c35_331 = arith.constant 35 : index
    %c0_332 = arith.constant 0 : index
    %342 = vector.load %arg20[%c35_331, %c0_332] : memref<70x128xf32, #tpu.memory_space<vmem>>, vector<6x128xf32>
    %c24_333 = arith.constant 24 : index
    %c0_334 = arith.constant 0 : index
    %343 = vector.load %arg21[%c24_333, %c0_334] : memref<48x512xf32, #tpu.memory_space<vmem>>, vector<6x128xf32>
    tpu.vector_store %arg21[%c24_333, %c0_334], %342 {strides = array<i32>} : memref<48x512xf32, #tpu.memory_space<vmem>>, vector<6x128xf32>,
    %c36_335 = arith.constant 36 : index
    %c0_336 = arith.constant 0 : index
    %344 = vector.load %arg20[%c36_335, %c0_336] : memref<70x128xf32, #tpu.memory_space<vmem>>, vector<6x128xf32>
    %c24_337 = arith.constant 24 : index
    %c128_338 = arith.constant 128 : index
    %345 = vector.load %arg21[%c24_337, %c128_338] : memref<48x512xf32, #tpu.memory_space<vmem>>, vector<6x128xf32>
    tpu.vector_store %arg21[%c24_337, %c128_338], %344 {strides = array<i32>} : memref<48x512xf32, #tpu.memory_space<vmem>>, vector<6x128xf32>,
    %c42_339 = arith.constant 42 : index
    %c0_340 = arith.constant 0 : index
    %346 = vector.load %arg20[%c42_339, %c0_340] : memref<70x128xf32, #tpu.memory_space<vmem>>, vector<6x128xf32>
    %c24_341 = arith.constant 24 : index
    %c256_342 = arith.constant 256 : index
    %347 = vector.load %arg21[%c24_341, %c256_342] : memref<48x512xf32, #tpu.memory_space<vmem>>, vector<6x128xf32>
    tpu.vector_store %arg21[%c24_341, %c256_342], %346 {strides = array<i32>} : memref<48x512xf32, #tpu.memory_space<vmem>>, vector<6x128xf32>,
    %c43_343 = arith.constant 43 : index
    %c0_344 = arith.constant 0 : index
    %348 = vector.load %arg20[%c43_343, %c0_344] : memref<70x128xf32, #tpu.memory_space<vmem>>, vector<6x128xf32>
    %c24_345 = arith.constant 24 : index
    %c384_346 = arith.constant 384 : index
    %349 = vector.load %arg21[%c24_345, %c384_346] : memref<48x512xf32, #tpu.memory_space<vmem>>, vector<6x128xf32>
    tpu.vector_store %arg21[%c24_345, %c384_346], %348 {strides = array<i32>} : memref<48x512xf32, #tpu.memory_space<vmem>>, vector<6x128xf32>,
    %c42_347 = arith.constant 42 : index
    %c0_348 = arith.constant 0 : index
    %350 = vector.load %arg20[%c42_347, %c0_348] : memref<70x128xf32, #tpu.memory_space<vmem>>, vector<6x128xf32>
    %c30_349 = arith.constant 30 : index
    %c0_350 = arith.constant 0 : index
    %351 = vector.load %arg21[%c30_349, %c0_350] : memref<48x512xf32, #tpu.memory_space<vmem>>, vector<6x128xf32>
    tpu.vector_store %arg21[%c30_349, %c0_350], %350 {strides = array<i32>} : memref<48x512xf32, #tpu.memory_space<vmem>>, vector<6x128xf32>,
    %c43_351 = arith.constant 43 : index
    %c0_352 = arith.constant 0 : index
    %352 = vector.load %arg20[%c43_351, %c0_352] : memref<70x128xf32, #tpu.memory_space<vmem>>, vector<6x128xf32>
    %c30_353 = arith.constant 30 : index
    %c128_354 = arith.constant 128 : index
    %353 = vector.load %arg21[%c30_353, %c128_354] : memref<48x512xf32, #tpu.memory_space<vmem>>, vector<6x128xf32>
    tpu.vector_store %arg21[%c30_353, %c128_354], %352 {strides = array<i32>} : memref<48x512xf32, #tpu.memory_space<vmem>>, vector<6x128xf32>,
    %c49_355 = arith.constant 49 : index
    %c0_356 = arith.constant 0 : index
    %354 = vector.load %arg20[%c49_355, %c0_356] : memref<70x128xf32, #tpu.memory_space<vmem>>, vector<6x128xf32>
    %c30_357 = arith.constant 30 : index
    %c256_358 = arith.constant 256 : index
    %355 = vector.load %arg21[%c30_357, %c256_358] : memref<48x512xf32, #tpu.memory_space<vmem>>, vector<6x128xf32>
    tpu.vector_store %arg21[%c30_357, %c256_358], %354 {strides = array<i32>} : memref<48x512xf32, #tpu.memory_space<vmem>>, vector<6x128xf32>,
    %c50_359 = arith.constant 50 : index
    %c0_360 = arith.constant 0 : index
    %356 = vector.load %arg20[%c50_359, %c0_360] : memref<70x128xf32, #tpu.memory_space<vmem>>, vector<6x128xf32>
    %c30_361 = arith.constant 30 : index
    %c384_362 = arith.constant 384 : index
    %357 = vector.load %arg21[%c30_361, %c384_362] : memref<48x512xf32, #tpu.memory_space<vmem>>, vector<6x128xf32>
    tpu.vector_store %arg21[%c30_361, %c384_362], %356 {strides = array<i32>} : memref<48x512xf32, #tpu.memory_space<vmem>>, vector<6x128xf32>,
    %c49_363 = arith.constant 49 : index
    %c0_364 = arith.constant 0 : index
    %358 = vector.load %arg20[%c49_363, %c0_364] : memref<70x128xf32, #tpu.memory_space<vmem>>, vector<6x128xf32>
    %c36_365 = arith.constant 36 : index
    %c0_366 = arith.constant 0 : index
    %359 = vector.load %arg21[%c36_365, %c0_366] : memref<48x512xf32, #tpu.memory_space<vmem>>, vector<6x128xf32>
    tpu.vector_store %arg21[%c36_365, %c0_366], %358 {strides = array<i32>} : memref<48x512xf32, #tpu.memory_space<vmem>>, vector<6x128xf32>,
    %c50_367 = arith.constant 50 : index
    %c0_368 = arith.constant 0 : index
    %360 = vector.load %arg20[%c50_367, %c0_368] : memref<70x128xf32, #tpu.memory_space<vmem>>, vector<6x128xf32>
    %c36_369 = arith.constant 36 : index
    %c128_370 = arith.constant 128 : index
    %361 = vector.load %arg21[%c36_369, %c128_370] : memref<48x512xf32, #tpu.memory_space<vmem>>, vector<6x128xf32>
    tpu.vector_store %arg21[%c36_369, %c128_370], %360 {strides = array<i32>} : memref<48x512xf32, #tpu.memory_space<vmem>>, vector<6x128xf32>,
    %c56_371 = arith.constant 56 : index
    %c0_372 = arith.constant 0 : index
    %362 = vector.load %arg20[%c56_371, %c0_372] : memref<70x128xf32, #tpu.memory_space<vmem>>, vector<6x128xf32>
    %c36_373 = arith.constant 36 : index
    %c256_374 = arith.constant 256 : index
    %363 = vector.load %arg21[%c36_373, %c256_374] : memref<48x512xf32, #tpu.memory_space<vmem>>, vector<6x128xf32>
    tpu.vector_store %arg21[%c36_373, %c256_374], %362 {strides = array<i32>} : memref<48x512xf32, #tpu.memory_space<vmem>>, vector<6x128xf32>,
    %c57_375 = arith.constant 57 : index
    %c0_376 = arith.constant 0 : index
    %364 = vector.load %arg20[%c57_375, %c0_376] : memref<70x128xf32, #tpu.memory_space<vmem>>, vector<6x128xf32>
    %c36_377 = arith.constant 36 : index
    %c384_378 = arith.constant 384 : index
    %365 = vector.load %arg21[%c36_377, %c384_378] : memref<48x512xf32, #tpu.memory_space<vmem>>, vector<6x128xf32>
    tpu.vector_store %arg21[%c36_377, %c384_378], %364 {strides = array<i32>} : memref<48x512xf32, #tpu.memory_space<vmem>>, vector<6x128xf32>,
    %c56_379 = arith.constant 56 : index
    %c0_380 = arith.constant 0 : index
    %366 = vector.load %arg20[%c56_379, %c0_380] : memref<70x128xf32, #tpu.memory_space<vmem>>, vector<6x128xf32>
    %c42_381 = arith.constant 42 : index
    %c0_382 = arith.constant 0 : index
    %367 = vector.load %arg21[%c42_381, %c0_382] : memref<48x512xf32, #tpu.memory_space<vmem>>, vector<6x128xf32>
    tpu.vector_store %arg21[%c42_381, %c0_382], %366 {strides = array<i32>} : memref<48x512xf32, #tpu.memory_space<vmem>>, vector<6x128xf32>,
    %c57_383 = arith.constant 57 : index
    %c0_384 = arith.constant 0 : index
    %368 = vector.load %arg20[%c57_383, %c0_384] : memref<70x128xf32, #tpu.memory_space<vmem>>, vector<6x128xf32>
    %c42_385 = arith.constant 42 : index
    %c128_386 = arith.constant 128 : index
    %369 = vector.load %arg21[%c42_385, %c128_386] : memref<48x512xf32, #tpu.memory_space<vmem>>, vector<6x128xf32>
    tpu.vector_store %arg21[%c42_385, %c128_386], %368 {strides = array<i32>} : memref<48x512xf32, #tpu.memory_space<vmem>>, vector<6x128xf32>,
    %c63_387 = arith.constant 63 : index
    %c0_388 = arith.constant 0 : index
    %370 = vector.load %arg20[%c63_387, %c0_388] : memref<70x128xf32, #tpu.memory_space<vmem>>, vector<6x128xf32>
    %c42_389 = arith.constant 42 : index
    %c256_390 = arith.constant 256 : index
    %371 = vector.load %arg21[%c42_389, %c256_390] : memref<48x512xf32, #tpu.memory_space<vmem>>, vector<6x128xf32>
    tpu.vector_store %arg21[%c42_389, %c256_390], %370 {strides = array<i32>} : memref<48x512xf32, #tpu.memory_space<vmem>>, vector<6x128xf32>,
    %c64_391 = arith.constant 64 : index
    %c0_392 = arith.constant 0 : index
    %372 = vector.load %arg20[%c64_391, %c0_392] : memref<70x128xf32, #tpu.memory_space<vmem>>, vector<6x128xf32>
    %c42_393 = arith.constant 42 : index
    %c384_394 = arith.constant 384 : index
    %373 = vector.load %arg21[%c42_393, %c384_394] : memref<48x512xf32, #tpu.memory_space<vmem>>, vector<6x128xf32>
    tpu.vector_store %arg21[%c42_393, %c384_394], %372 {strides = array<i32>} : memref<48x512xf32, #tpu.memory_space<vmem>>, vector<6x128xf32>,
    %c0_395 = arith.constant 0 : index
    %c0_396 = arith.constant 0 : index
    %374 = vector.load %arg21[%c0_395, %c0_396] : memref<48x512xf32, #tpu.memory_space<vmem>>, vector<48x512xf32>
    %375 = arith.truncf %374 : vector<48x512xf32> to vector<48x512xbf16>
    %c0_397 = arith.constant 0 : index
    %c0_398 = arith.constant 0 : index
    %376 = vector.load %arg6[%c0_397, %c0_398] : memref<512x256xbf16, #tpu.memory_space<vmem>>, vector<512x256xbf16>
    %cst_399 = arith.constant dense<0.000000e+00> : vector<48x256xf32>
    %377 = tpu.matmul %375, %376, %cst_399 {dimension_numbers = #tpu.dot_dimension_numbers<[1], [0], [0], [1], [0, 0, 1, 1], [], []>} : vector<48x512xbf16>, vector<512x256xbf16>, vector<48x256xf32> -> vector<48x256xf32>
    %c0_400 = arith.constant 0 : index
    %c0_401 = arith.constant 0 : index
    %378 = vector.load %arg7[%c0_400, %c0_401] : memref<1x256xf32, #tpu.memory_space<vmem>>, vector<1x256xf32>
    %379 = vector.broadcast %378 : vector<1x256xf32> to vector<48x256xf32>
    %380 = arith.addf %377, %379 : vector<48x256xf32>
    %cst_402 = arith.constant 0.000000e+00 : f32
    %381 = vector.broadcast %cst_402 : f32 to vector<48x256xf32>
    %382 = arith.maximumf %380, %381 : vector<48x256xf32>
    %383 = vector.extract_strided_slice %382 {offsets = [0, 0], sizes = [6, 256], strides = [1, 1]} : vector<48x256xf32> to vector<6x256xf32>
    %384 = vector.extract_strided_slice %382 {offsets = [6, 0], sizes = [6, 256], strides = [1, 1]} : vector<48x256xf32> to vector<6x256xf32>
    %385 = arith.maximumf %383, %384 : vector<6x256xf32>
    %386 = vector.extract_strided_slice %385 {offsets = [0, 0], sizes = [1, 256], strides = [1, 1]} : vector<6x256xf32> to vector<1x256xf32>
    %387 = vector.extract_strided_slice %385 {offsets = [1, 0], sizes = [1, 256], strides = [1, 1]} : vector<6x256xf32> to vector<1x256xf32>
    %388 = arith.maximumf %386, %387 : vector<1x256xf32>
    %c0_403 = arith.constant 0 : index
    %c0_404 = arith.constant 0 : index
    %389 = vector.load %arg22[%c0_403, %c0_404] : memref<2x1536xf32, #tpu.memory_space<vmem>>, vector<1x256xf32>
    tpu.vector_store %arg22[%c0_403, %c0_404], %388 {strides = array<i32>} : memref<2x1536xf32, #tpu.memory_space<vmem>>, vector<1x256xf32>,
    %390 = vector.extract_strided_slice %385 {offsets = [2, 0], sizes = [1, 256], strides = [1, 1]} : vector<6x256xf32> to vector<1x256xf32>
    %391 = vector.extract_strided_slice %385 {offsets = [3, 0], sizes = [1, 256], strides = [1, 1]} : vector<6x256xf32> to vector<1x256xf32>
    %392 = arith.maximumf %390, %391 : vector<1x256xf32>
    %c0_405 = arith.constant 0 : index
    %c256_406 = arith.constant 256 : index
    %393 = vector.load %arg22[%c0_405, %c256_406] : memref<2x1536xf32, #tpu.memory_space<vmem>>, vector<1x256xf32>
    tpu.vector_store %arg22[%c0_405, %c256_406], %392 {strides = array<i32>} : memref<2x1536xf32, #tpu.memory_space<vmem>>, vector<1x256xf32>,
    %394 = vector.extract_strided_slice %385 {offsets = [4, 0], sizes = [1, 256], strides = [1, 1]} : vector<6x256xf32> to vector<1x256xf32>
    %395 = vector.extract_strided_slice %385 {offsets = [5, 0], sizes = [1, 256], strides = [1, 1]} : vector<6x256xf32> to vector<1x256xf32>
    %396 = arith.maximumf %394, %395 : vector<1x256xf32>
    %c0_407 = arith.constant 0 : index
    %c512 = arith.constant 512 : index
    %397 = vector.load %arg22[%c0_407, %c512] : memref<2x1536xf32, #tpu.memory_space<vmem>>, vector<1x256xf32>
    tpu.vector_store %arg22[%c0_407, %c512], %396 {strides = array<i32>} : memref<2x1536xf32, #tpu.memory_space<vmem>>, vector<1x256xf32>,
    %398 = vector.extract_strided_slice %382 {offsets = [12, 0], sizes = [6, 256], strides = [1, 1]} : vector<48x256xf32> to vector<6x256xf32>
    %399 = vector.extract_strided_slice %382 {offsets = [18, 0], sizes = [6, 256], strides = [1, 1]} : vector<48x256xf32> to vector<6x256xf32>
    %400 = arith.maximumf %398, %399 : vector<6x256xf32>
    %401 = vector.extract_strided_slice %400 {offsets = [0, 0], sizes = [1, 256], strides = [1, 1]} : vector<6x256xf32> to vector<1x256xf32>
    %402 = vector.extract_strided_slice %400 {offsets = [1, 0], sizes = [1, 256], strides = [1, 1]} : vector<6x256xf32> to vector<1x256xf32>
    %403 = arith.maximumf %401, %402 : vector<1x256xf32>
    %c0_408 = arith.constant 0 : index
    %c768 = arith.constant 768 : index
    %404 = vector.load %arg22[%c0_408, %c768] : memref<2x1536xf32, #tpu.memory_space<vmem>>, vector<1x256xf32>
    tpu.vector_store %arg22[%c0_408, %c768], %403 {strides = array<i32>} : memref<2x1536xf32, #tpu.memory_space<vmem>>, vector<1x256xf32>,
    %405 = vector.extract_strided_slice %400 {offsets = [2, 0], sizes = [1, 256], strides = [1, 1]} : vector<6x256xf32> to vector<1x256xf32>
    %406 = vector.extract_strided_slice %400 {offsets = [3, 0], sizes = [1, 256], strides = [1, 1]} : vector<6x256xf32> to vector<1x256xf32>
    %407 = arith.maximumf %405, %406 : vector<1x256xf32>
    %c0_409 = arith.constant 0 : index
    %c1024 = arith.constant 1024 : index
    %408 = vector.load %arg22[%c0_409, %c1024] : memref<2x1536xf32, #tpu.memory_space<vmem>>, vector<1x256xf32>
    tpu.vector_store %arg22[%c0_409, %c1024], %407 {strides = array<i32>} : memref<2x1536xf32, #tpu.memory_space<vmem>>, vector<1x256xf32>,
    %409 = vector.extract_strided_slice %400 {offsets = [4, 0], sizes = [1, 256], strides = [1, 1]} : vector<6x256xf32> to vector<1x256xf32>
    %410 = vector.extract_strided_slice %400 {offsets = [5, 0], sizes = [1, 256], strides = [1, 1]} : vector<6x256xf32> to vector<1x256xf32>
    %411 = arith.maximumf %409, %410 : vector<1x256xf32>
    %c0_410 = arith.constant 0 : index
    %c1280 = arith.constant 1280 : index
    %412 = vector.load %arg22[%c0_410, %c1280] : memref<2x1536xf32, #tpu.memory_space<vmem>>, vector<1x256xf32>
    tpu.vector_store %arg22[%c0_410, %c1280], %411 {strides = array<i32>} : memref<2x1536xf32, #tpu.memory_space<vmem>>, vector<1x256xf32>,
    %413 = vector.extract_strided_slice %382 {offsets = [24, 0], sizes = [6, 256], strides = [1, 1]} : vector<48x256xf32> to vector<6x256xf32>
    %414 = vector.extract_strided_slice %382 {offsets = [30, 0], sizes = [6, 256], strides = [1, 1]} : vector<48x256xf32> to vector<6x256xf32>
    %415 = arith.maximumf %413, %414 : vector<6x256xf32>
    %416 = vector.extract_strided_slice %415 {offsets = [0, 0], sizes = [1, 256], strides = [1, 1]} : vector<6x256xf32> to vector<1x256xf32>
    %417 = vector.extract_strided_slice %415 {offsets = [1, 0], sizes = [1, 256], strides = [1, 1]} : vector<6x256xf32> to vector<1x256xf32>
    %418 = arith.maximumf %416, %417 : vector<1x256xf32>
    %c1_411 = arith.constant 1 : index
    %c0_412 = arith.constant 0 : index
    %419 = vector.load %arg22[%c1_411, %c0_412] : memref<2x1536xf32, #tpu.memory_space<vmem>>, vector<1x256xf32>
    tpu.vector_store %arg22[%c1_411, %c0_412], %418 {strides = array<i32>} : memref<2x1536xf32, #tpu.memory_space<vmem>>, vector<1x256xf32>,
    %420 = vector.extract_strided_slice %415 {offsets = [2, 0], sizes = [1, 256], strides = [1, 1]} : vector<6x256xf32> to vector<1x256xf32>
    %421 = vector.extract_strided_slice %415 {offsets = [3, 0], sizes = [1, 256], strides = [1, 1]} : vector<6x256xf32> to vector<1x256xf32>
    %422 = arith.maximumf %420, %421 : vector<1x256xf32>
    %c1_413 = arith.constant 1 : index
    %c256_414 = arith.constant 256 : index
    %423 = vector.load %arg22[%c1_413, %c256_414] : memref<2x1536xf32, #tpu.memory_space<vmem>>, vector<1x256xf32>
    tpu.vector_store %arg22[%c1_413, %c256_414], %422 {strides = array<i32>} : memref<2x1536xf32, #tpu.memory_space<vmem>>, vector<1x256xf32>,
    %424 = vector.extract_strided_slice %415 {offsets = [4, 0], sizes = [1, 256], strides = [1, 1]} : vector<6x256xf32> to vector<1x256xf32>
    %425 = vector.extract_strided_slice %415 {offsets = [5, 0], sizes = [1, 256], strides = [1, 1]} : vector<6x256xf32> to vector<1x256xf32>
    %426 = arith.maximumf %424, %425 : vector<1x256xf32>
    %c1_415 = arith.constant 1 : index
    %c512_416 = arith.constant 512 : index
    %427 = vector.load %arg22[%c1_415, %c512_416] : memref<2x1536xf32, #tpu.memory_space<vmem>>, vector<1x256xf32>
    tpu.vector_store %arg22[%c1_415, %c512_416], %426 {strides = array<i32>} : memref<2x1536xf32, #tpu.memory_space<vmem>>, vector<1x256xf32>,
    %428 = vector.extract_strided_slice %382 {offsets = [36, 0], sizes = [6, 256], strides = [1, 1]} : vector<48x256xf32> to vector<6x256xf32>
    %429 = vector.extract_strided_slice %382 {offsets = [42, 0], sizes = [6, 256], strides = [1, 1]} : vector<48x256xf32> to vector<6x256xf32>
    %430 = arith.maximumf %428, %429 : vector<6x256xf32>
    %431 = vector.extract_strided_slice %430 {offsets = [0, 0], sizes = [1, 256], strides = [1, 1]} : vector<6x256xf32> to vector<1x256xf32>
    %432 = vector.extract_strided_slice %430 {offsets = [1, 0], sizes = [1, 256], strides = [1, 1]} : vector<6x256xf32> to vector<1x256xf32>
    %433 = arith.maximumf %431, %432 : vector<1x256xf32>
    %c1_417 = arith.constant 1 : index
    %c768_418 = arith.constant 768 : index
    %434 = vector.load %arg22[%c1_417, %c768_418] : memref<2x1536xf32, #tpu.memory_space<vmem>>, vector<1x256xf32>
    tpu.vector_store %arg22[%c1_417, %c768_418], %433 {strides = array<i32>} : memref<2x1536xf32, #tpu.memory_space<vmem>>, vector<1x256xf32>,
    %435 = vector.extract_strided_slice %430 {offsets = [2, 0], sizes = [1, 256], strides = [1, 1]} : vector<6x256xf32> to vector<1x256xf32>
    %436 = vector.extract_strided_slice %430 {offsets = [3, 0], sizes = [1, 256], strides = [1, 1]} : vector<6x256xf32> to vector<1x256xf32>
    %437 = arith.maximumf %435, %436 : vector<1x256xf32>
    %c1_419 = arith.constant 1 : index
    %c1024_420 = arith.constant 1024 : index
    %438 = vector.load %arg22[%c1_419, %c1024_420] : memref<2x1536xf32, #tpu.memory_space<vmem>>, vector<1x256xf32>
    tpu.vector_store %arg22[%c1_419, %c1024_420], %437 {strides = array<i32>} : memref<2x1536xf32, #tpu.memory_space<vmem>>, vector<1x256xf32>,
    %439 = vector.extract_strided_slice %430 {offsets = [4, 0], sizes = [1, 256], strides = [1, 1]} : vector<6x256xf32> to vector<1x256xf32>
    %440 = vector.extract_strided_slice %430 {offsets = [5, 0], sizes = [1, 256], strides = [1, 1]} : vector<6x256xf32> to vector<1x256xf32>
    %441 = arith.maximumf %439, %440 : vector<1x256xf32>
    %c1_421 = arith.constant 1 : index
    %c1280_422 = arith.constant 1280 : index
    %442 = vector.load %arg22[%c1_421, %c1280_422] : memref<2x1536xf32, #tpu.memory_space<vmem>>, vector<1x256xf32>
    tpu.vector_store %arg22[%c1_421, %c1280_422], %441 {strides = array<i32>} : memref<2x1536xf32, #tpu.memory_space<vmem>>, vector<1x256xf32>,
    %c0_i32_423 = arith.constant 0 : i32
    %443 = tpu.memref_slice %arg27[%c0_i32_423] : memref<4x!tpu.dma_semaphore, #tpu.memory_space<semaphore_mem>> -> memref<1x!tpu.dma_semaphore, #tpu.memory_space<semaphore_mem>>
    %444 = tpu.memref_squeeze %443 : memref<1x!tpu.dma_semaphore, #tpu.memory_space<semaphore_mem>> -> memref<!tpu.dma_semaphore, #tpu.memory_space<semaphore_mem>>
    tpu.wait_dma2 semaphore(%444 : memref<!tpu.dma_semaphore, #tpu.memory_space<semaphore_mem>>) src(%arg12 : memref<1536x640xbf16, #tpu.memory_space<any>>) dst(%arg23 : memref<1536x640xbf16, #tpu.memory_space<vmem>>)
    %c0_424 = arith.constant 0 : index
    %c0_425 = arith.constant 0 : index
    %445 = vector.load %arg22[%c0_424, %c0_425] : memref<2x1536xf32, #tpu.memory_space<vmem>>, vector<2x1536xf32>
    %446 = arith.truncf %445 : vector<2x1536xf32> to vector<2x1536xbf16>
    %c0_426 = arith.constant 0 : index
    %c0_427 = arith.constant 0 : index
    %447 = vector.load %arg23[%c0_426, %c0_427] : memref<1536x640xbf16, #tpu.memory_space<vmem>>, vector<1536x640xbf16>
    %cst_428 = arith.constant dense<0.000000e+00> : vector<2x640xf32>
    %448 = tpu.matmul %446, %447, %cst_428 {dimension_numbers = #tpu.dot_dimension_numbers<[1], [0], [0], [1], [0, 0, 1, 1], [], []>} : vector<2x1536xbf16>, vector<1536x640xbf16>, vector<2x640xf32> -> vector<2x640xf32>
    %c0_429 = arith.constant 0 : index
    %c0_430 = arith.constant 0 : index
    %449 = vector.load %arg8[%c0_429, %c0_430] : memref<1x640xf32, #tpu.memory_space<vmem>>, vector<1x640xf32>
    %450 = vector.broadcast %449 : vector<1x640xf32> to vector<2x640xf32>
    %451 = arith.addf %448, %450 : vector<2x640xf32>
    %cst_431 = arith.constant 0.000000e+00 : f32
    %452 = vector.broadcast %cst_431 : f32 to vector<2x640xf32>
    %453 = arith.maximumf %451, %452 : vector<2x640xf32>
    %c1_i32_432 = arith.constant 1 : i32
    %454 = tpu.memref_slice %arg27[%c1_i32_432] : memref<4x!tpu.dma_semaphore, #tpu.memory_space<semaphore_mem>> -> memref<1x!tpu.dma_semaphore, #tpu.memory_space<semaphore_mem>>
    %455 = tpu.memref_squeeze %454 : memref<1x!tpu.dma_semaphore, #tpu.memory_space<semaphore_mem>> -> memref<!tpu.dma_semaphore, #tpu.memory_space<semaphore_mem>>
    tpu.wait_dma2 semaphore(%455 : memref<!tpu.dma_semaphore, #tpu.memory_space<semaphore_mem>>) src(%arg13 : memref<640x640xbf16, #tpu.memory_space<any>>) dst(%arg24 : memref<640x640xbf16, #tpu.memory_space<vmem>>)
    %456 = arith.truncf %453 : vector<2x640xf32> to vector<2x640xbf16>
    %c0_433 = arith.constant 0 : index
    %c0_434 = arith.constant 0 : index
    %457 = vector.load %arg24[%c0_433, %c0_434] : memref<640x640xbf16, #tpu.memory_space<vmem>>, vector<640x640xbf16>
    %cst_435 = arith.constant dense<0.000000e+00> : vector<2x640xf32>
    %458 = tpu.matmul %456, %457, %cst_435 {dimension_numbers = #tpu.dot_dimension_numbers<[1], [0], [0], [1], [0, 0, 1, 1], [], []>} : vector<2x640xbf16>, vector<640x640xbf16>, vector<2x640xf32> -> vector<2x640xf32>
    %c0_436 = arith.constant 0 : index
    %c0_437 = arith.constant 0 : index
    %459 = vector.load %arg9[%c0_436, %c0_437] : memref<1x640xf32, #tpu.memory_space<vmem>>, vector<1x640xf32>
    %460 = vector.broadcast %459 : vector<1x640xf32> to vector<2x640xf32>
    %461 = arith.addf %458, %460 : vector<2x640xf32>
    %cst_438 = arith.constant 0.000000e+00 : f32
    %462 = vector.broadcast %cst_438 : f32 to vector<2x640xf32>
    %463 = arith.maximumf %461, %462 : vector<2x640xf32>
    %c2_i32_439 = arith.constant 2 : i32
    %464 = tpu.memref_slice %arg27[%c2_i32_439] : memref<4x!tpu.dma_semaphore, #tpu.memory_space<semaphore_mem>> -> memref<1x!tpu.dma_semaphore, #tpu.memory_space<semaphore_mem>>
    %465 = tpu.memref_squeeze %464 : memref<1x!tpu.dma_semaphore, #tpu.memory_space<semaphore_mem>> -> memref<!tpu.dma_semaphore, #tpu.memory_space<semaphore_mem>>
    tpu.wait_dma2 semaphore(%465 : memref<!tpu.dma_semaphore, #tpu.memory_space<semaphore_mem>>) src(%arg14 : memref<640x640xbf16, #tpu.memory_space<any>>) dst(%arg25 : memref<640x640xbf16, #tpu.memory_space<vmem>>)
    %466 = arith.truncf %463 : vector<2x640xf32> to vector<2x640xbf16>
    %c0_440 = arith.constant 0 : index
    %c0_441 = arith.constant 0 : index
    %467 = vector.load %arg25[%c0_440, %c0_441] : memref<640x640xbf16, #tpu.memory_space<vmem>>, vector<640x640xbf16>
    %cst_442 = arith.constant dense<0.000000e+00> : vector<2x640xf32>
    %468 = tpu.matmul %466, %467, %cst_442 {dimension_numbers = #tpu.dot_dimension_numbers<[1], [0], [0], [1], [0, 0, 1, 1], [], []>} : vector<2x640xbf16>, vector<640x640xbf16>, vector<2x640xf32> -> vector<2x640xf32>
    %c0_443 = arith.constant 0 : index
    %c0_444 = arith.constant 0 : index
    %469 = vector.load %arg10[%c0_443, %c0_444] : memref<1x640xf32, #tpu.memory_space<vmem>>, vector<1x640xf32>
    %470 = vector.broadcast %469 : vector<1x640xf32> to vector<2x640xf32>
    %471 = arith.addf %468, %470 : vector<2x640xf32>
    %cst_445 = arith.constant 0.000000e+00 : f32
    %472 = vector.broadcast %cst_445 : f32 to vector<2x640xf32>
    %473 = arith.maximumf %471, %472 : vector<2x640xf32>
    %c3_i32_446 = arith.constant 3 : i32
    %474 = tpu.memref_slice %arg27[%c3_i32_446] : memref<4x!tpu.dma_semaphore, #tpu.memory_space<semaphore_mem>> -> memref<1x!tpu.dma_semaphore, #tpu.memory_space<semaphore_mem>>
    %475 = tpu.memref_squeeze %474 : memref<1x!tpu.dma_semaphore, #tpu.memory_space<semaphore_mem>> -> memref<!tpu.dma_semaphore, #tpu.memory_space<semaphore_mem>>
    tpu.wait_dma2 semaphore(%475 : memref<!tpu.dma_semaphore, #tpu.memory_space<semaphore_mem>>) src(%arg15 : memref<640x24xbf16, #tpu.memory_space<any>>) dst(%arg26 : memref<640x24xbf16, #tpu.memory_space<vmem>>)
    %476 = arith.truncf %473 : vector<2x640xf32> to vector<2x640xbf16>
    %c0_447 = arith.constant 0 : index
    %c0_448 = arith.constant 0 : index
    %477 = vector.load %arg26[%c0_447, %c0_448] : memref<640x24xbf16, #tpu.memory_space<vmem>>, vector<640x24xbf16>
    %cst_449 = arith.constant dense<0.000000e+00> : vector<2x24xf32>
    %478 = tpu.matmul %476, %477, %cst_449 {dimension_numbers = #tpu.dot_dimension_numbers<[1], [0], [0], [1], [0, 0, 1, 1], [], []>} : vector<2x640xbf16>, vector<640x24xbf16>, vector<2x24xf32> -> vector<2x24xf32>
    %c0_450 = arith.constant 0 : index
    %c0_451 = arith.constant 0 : index
    %479 = vector.load %arg11[%c0_450, %c0_451] : memref<1x24xf32, #tpu.memory_space<vmem>>, vector<1x24xf32>
    %480 = vector.broadcast %479 : vector<1x24xf32> to vector<2x24xf32>
    %481 = arith.addf %478, %480 : vector<2x24xf32>
    %c0_452 = arith.constant 0 : index
    %c0_453 = arith.constant 0 : index
    %482 = vector.load %arg16[%c0_452, %c0_453] : memref<2x24xf32, #tpu.memory_space<vmem>>, vector<2x24xf32>
    tpu.vector_store %arg16[%c0_452, %c0_453], %481 {strides = array<i32>} : memref<2x24xf32, #tpu.memory_space<vmem>>, vector<2x24xf32>,
    return
  }
  func.func @transform_0(%arg0: i32) -> (i32, i32) {
    %c0_i32 = arith.constant 0 : i32
    %c0_i32_0 = arith.constant 0 : i32
    %c0_i32_1 = arith.constant 0 : i32
    return %c0_i32, %c0_i32_0 : i32, i32
  }
  func.func @transform_1(%arg0: i32) -> (i32, i32) {
    %c0_i32 = arith.constant 0 : i32
    %c0_i32_0 = arith.constant 0 : i32
    %c0_i32_1 = arith.constant 0 : i32
    return %c0_i32, %c0_i32_0 : i32, i32
  }
  func.func @transform_2(%arg0: i32) -> (i32, i32) {
    %c0_i32 = arith.constant 0 : i32
    %c0_i32_0 = arith.constant 0 : i32
    %c0_i32_1 = arith.constant 0 : i32
    return %c0_i32, %c0_i32_0 : i32, i32
  }
  func.func @transform_3(%arg0: i32) -> (i32, i32) {
    %c0_i32 = arith.constant 0 : i32
    %c0_i32_0 = arith.constant 0 : i32
    %c0_i32_1 = arith.constant 0 : i32
    return %c0_i32, %c0_i32_0 : i32, i32
  }
  func.func @transform_4(%arg0: i32) -> (i32, i32) {
    %c0_i32 = arith.constant 0 : i32
    %c0_i32_0 = arith.constant 0 : i32
    %c0_i32_1 = arith.constant 0 : i32
    return %c0_i32, %c0_i32_0 : i32, i32
  }
  func.func @transform_5(%arg0: i32) -> (i32, i32) {
    %c0_i32 = arith.constant 0 : i32
    %c0_i32_0 = arith.constant 0 : i32
    %c0_i32_1 = arith.constant 0 : i32
    return %c0_i32, %c0_i32_0 : i32, i32
  }
  func.func @transform_6(%arg0: i32) -> (i32, i32) {
    %c0_i32 = arith.constant 0 : i32
    %c0_i32_0 = arith.constant 0 : i32
    %c0_i32_1 = arith.constant 0 : i32
    return %c0_i32, %c0_i32_0 : i32, i32
  }
  func.func @transform_7(%arg0: i32) -> (i32, i32) {
    %c0_i32 = arith.constant 0 : i32
    %c0_i32_0 = arith.constant 0 : i32
    %c0_i32_1 = arith.constant 0 : i32
    return %c0_i32, %c0_i32_0 : i32, i32
  }
  func.func @transform_8(%arg0: i32) -> (i32, i32) {
    %c0_i32 = arith.constant 0 : i32
    %c0_i32_0 = arith.constant 0 : i32
    %c0_i32_1 = arith.constant 0 : i32
    return %c0_i32, %c0_i32_0 : i32, i32
  }
  func.func @transform_9(%arg0: i32) -> (i32, i32) {
    %c0_i32 = arith.constant 0 : i32
    %c0_i32_0 = arith.constant 0 : i32
    %c0_i32_1 = arith.constant 0 : i32
    return %c0_i32, %c0_i32_0 : i32, i32
  }
  func.func @transform_10(%arg0: i32) -> (i32, i32) {
    %c0_i32 = arith.constant 0 : i32
    %c0_i32_0 = arith.constant 0 : i32
    %c0_i32_1 = arith.constant 0 : i32
    return %c0_i32, %c0_i32_0 : i32, i32
  }
  func.func @transform_15(%arg0: i32) -> (i32, i32) {
    %c0_i32 = arith.constant 0 : i32
    %c0_i32_0 = arith.constant 0 : i32
    %c0_i32_1 = arith.constant 0 : i32
    return %c0_i32, %c0_i32_0 : i32, i32
  }
}

</mosaic_0001>

<llo_original>
// kernel: cnn_forward.1
$region0: #{cnn_forward.1}
  #allocation0 [shape = 'u32[]', space=smem, size = 0x4, offset = 0x4, fixed_abs, tag = 'smem constant byte address 0x4 - core index']
  #allocation1 [shape = 'u32[144,128]{1,0:T(1,128)}', space=vmem, size = 0x12000, scoped, tag = 'internal scratch']
  #allocation2 [shape = 'f32[154,32]{1,0:T(8,128)}', space=vmem, size = 0x14000, scoped, tag = 'scratch operand']
  #allocation3 [shape = 'f32[70,32]{1,0:T(8,128)}', space=vmem, size = 0x9000, scoped, tag = 'scratch operand']
  #allocation4 [shape = 'f32[30,288]{1,0:T(8,128)}', space=vmem, size = 0xc000, scoped, tag = 'scratch operand']
  #allocation5 [shape = 'f32[70,128]{1,0:T(8,128)}', space=vmem, size = 0x9000, scoped, tag = 'scratch operand']
  #allocation6 [shape = 'f32[48,512]{1,0:T(8,128)}', space=vmem, size = 0x18000, scoped, tag = 'scratch operand']
  #allocation7 [shape = 'f32[2,1536]{1,0:T(2,128)}', space=vmem, size = 0x3000, scoped, tag = 'scratch operand']
  #allocation8 [shape = 'bf16[1536,640]{1,0:T(16,128)(2,1)}', space=vmem, size = 0x1e0000, scoped, tag = 'scratch operand']
  #allocation9 [shape = 'bf16[640,640]{1,0:T(16,128)(2,1)}', space=vmem, size = 0xc8000, scoped, tag = 'scratch operand']
  #allocation10 [shape = 'bf16[640,640]{1,0:T(16,128)(2,1)}', space=vmem, size = 0xc8000, scoped, tag = 'scratch operand']
  #allocation11 [shape = 'bf16[640,24]{1,0:T(16,128)(2,1)}', space=vmem, size = 0x28000, scoped, tag = 'scratch operand']
  #allocation12 [shape = 's32[4]{0}', space=sflag, size = 0x10, scoped, tag = 'scratch operand']
  #allocation31 [shape = 's32[]', space=sflag, size = 0x4, offset = 0, fixed_abs, tag = 'sflag constant byte address 0x0 - dummy sync flag']
  #allocation33 [shape = 's32[]', space=sflag, size = 0x4, offset = 0, fixed_abs, tag = 'sflag constant byte address 0x0 - dummy sync flag']
  #allocation35 [shape = 's32[]', space=sflag, size = 0x4, offset = 0, fixed_abs, tag = 'sflag constant byte address 0x0 - dummy sync flag']
  #allocation37 [shape = 's32[]', space=sflag, size = 0x4, offset = 0, fixed_abs, tag = 'sflag constant byte address 0x0 - dummy sync flag']
  %s0 = inlined_call_operand.vmem [shape: f32[154,4], index: 0, kind: input, shape index: {}]
  %s1 = inlined_call_operand.hbm [shape: f32[4,32], index: 1, kind: input, shape index: {}]
  %s2 = inlined_call_operand.hbm [shape: f32[1,32], index: 2, kind: input, shape index: {}]
  %s3 = inlined_call_operand.hbm [shape: bf16[288,128], index: 3, kind: input, shape index: {}]
  %s4 = inlined_call_operand.hbm [shape: f32[1,128], index: 4, kind: input, shape index: {}]
  %s5 = inlined_call_operand.hbm [shape: bf16[512,256], index: 5, kind: input, shape index: {}]
  %s6 = inlined_call_operand.hbm [shape: f32[1,256], index: 6, kind: input, shape index: {}]
  %s7 = inlined_call_operand.hbm [shape: f32[1,640], index: 7, kind: input, shape index: {}]
  %s8 = inlined_call_operand.hbm [shape: f32[1,640], index: 8, kind: input, shape index: {}]
  %s9 = inlined_call_operand.hbm [shape: f32[1,640], index: 9, kind: input, shape index: {}]
  %s10 = inlined_call_operand.hbm [shape: f32[1,24], index: 10, kind: input, shape index: {}]
  %s11 = inlined_call_operand.hbm [shape: bf16[1536,640], index: 11, kind: input, shape index: {}]
  %s12 = inlined_call_operand.hbm [shape: bf16[640,640], index: 12, kind: input, shape index: {}]
  %s13 = inlined_call_operand.hbm [shape: bf16[640,640], index: 13, kind: input, shape index: {}]
  %s14 = inlined_call_operand.vmem [shape: bf16[640,24], index: 14, kind: input, shape index: {}]
  %s15 = inlined_call_operand.hbm [shape: f32[2,24], index: 15, kind: output, shape index: {}]
  %s16 = sld [smem:[#allocation0]]
  $region128: #{cnn_forward.1} parent=0
    _
  %s18 = ssub.s32 1, %s16
  %s19 = scalar_select 0, %s18, %s16
  $region1: #{cnn_forward.1} parent=0
    #allocation13 [shape = 'u8[2048]{0}', space=vmem, size = 0x800, scoped, tag = 'input window, operand 1, single buffered']
    #allocation14 [shape = 's32[1]{0}', space=sflag, size = 0x4, scoped, tag = 'scoped memory for cnn_forward.1']
    #allocation15 [shape = 's32[1]{0}', space=sflag, size = 0x4, scoped, tag = 'scoped memory for cnn_forward.1']
    #allocation16 [shape = 'u8[512]{0}', space=vmem, size = 0x400, scoped, tag = 'input window, operand 2, single buffered']
    #allocation17 [shape = 's32[1]{0}', space=sflag, size = 0x4, scoped, tag = 'scoped memory for cnn_forward.1']
    #allocation18 [shape = 'u8[73728]{0}', space=vmem, size = 0x12000, scoped, tag = 'input window, operand 3, single buffered']
    #allocation19 [shape = 'u8[512]{0}', space=vmem, size = 0x400, scoped, tag = 'input window, operand 4, single buffered']
    #allocation20 [shape = 's32[1]{0}', space=sflag, size = 0x4, scoped, tag = 'scoped memory for cnn_forward.1']
    #allocation21 [shape = 'u8[262144]{0}', space=vmem, size = 0x40000, scoped, tag = 'input window, operand 5, single buffered']
    #allocation22 [shape = 'u8[1024]{0}', space=vmem, size = 0x400, scoped, tag = 'input window, operand 6, single buffered']
    #allocation23 [shape = 's32[1]{0}', space=sflag, size = 0x4, scoped, tag = 'scoped memory for cnn_forward.1']
    #allocation24 [shape = 'u8[2560]{0}', space=vmem, size = 0xc00, scoped, tag = 'input window, operand 7, single buffered']
    #allocation25 [shape = 'u8[2560]{0}', space=vmem, size = 0xc00, scoped, tag = 'input window, operand 8, single buffered']
    #allocation26 [shape = 's32[1]{0}', space=sflag, size = 0x4, scoped, tag = 'scoped memory for cnn_forward.1']
    #allocation27 [shape = 'u8[2560]{0}', space=vmem, size = 0xc00, scoped, tag = 'input window, operand 9, single buffered']
    #allocation28 [shape = 'u8[512]{0}', space=vmem, size = 0x400, scoped, tag = 'input window, operand 10, single buffered']
    #allocation29 [shape = 's32[1]{0}', space=sflag, size = 0x4, scoped, tag = 'scoped memory for cnn_forward.1']
    #allocation30 [shape = 'u8[1024]{0}', space=vmem, size = 0x400, scoped, tag = 'output window, operand 0, single buffered']
    #allocation32 [shape = 'u32[9]{0}', space=smem, size = 0x24, scoped, tag = 'DMA stride descriptor']
    #allocation34 [shape = 'u32[9]{0}', space=smem, size = 0x24, scoped, tag = 'DMA stride descriptor']
    #allocation36 [shape = 'u32[9]{0}', space=smem, size = 0x24, scoped, tag = 'DMA stride descriptor']
    %20 = vsyncpa [#allocation14], 0
    %21 = vsyncpa [#allocation17], 0
    %22 = vsyncpa [#allocation20], 0
    %23 = vsyncpa [#allocation23], 0
    %24 = vsyncpa [#allocation26], 0
    %25 = vsyncpa [#allocation29], 0
    %26 = vsyncpa [#allocation15], 0
    // Predicated region
    $region2: #{cnn_forward.1} parent=1 // pred_check
      _
    $region3: #{cnn_forward.1} parent=1 // pred_check_branch
      %28 = sbr.rel (0) target = $region5
    $region4: #{cnn_forward.1} parent=1 // pred_region
      _
    $region5: #{cnn_forward.1} parent=1 // pred_fallthru
      _
    // Predicated region
    $region6: #{cnn_forward.1} parent=1 // pred_check
      _
    $region7: #{cnn_forward.1} parent=1 // pred_check_branch
      %30 = sbr.rel (0) target = $region9
    $region8: #{cnn_forward.1} parent=1 // pred_region
      %s32 = ssub.s32 64, 64
      %33 = vsyncadd [#allocation14], %s32
      %s35 = sshll.u32 [#allocation13], 4
      %s36 = int_to_ptr.vmem [resolvable:$true] %s35
      %38 = dma.hbm_to_vmem [thread:$0]  %s1, 64, %s36, [#allocation14]
    $region9: #{cnn_forward.1} parent=1 // pred_fallthru
      _
    // Predicated region
    $region10: #{cnn_forward.1} parent=1 // pred_check
      _
    $region11: #{cnn_forward.1} parent=1 // pred_check_branch
      %40 = sbr.rel (0) target = $region13
    $region12: #{cnn_forward.1} parent=1 // pred_region
      %s42 = ssub.s32 16, 16
      %43 = vsyncadd [#allocation17], %s42
      %s45 = sshll.u32 [#allocation16], 4
      %s46 = int_to_ptr.vmem [resolvable:$true] %s45
      %48 = dma.hbm_to_vmem [thread:$0]  %s2, 16, %s46, [#allocation17]
    $region13: #{cnn_forward.1} parent=1 // pred_fallthru
      _
    // Predicated region
    $region14: #{cnn_forward.1} parent=1 // pred_check
      _
    $region15: #{cnn_forward.1} parent=1 // pred_check_branch
      %50 = sbr.rel (0) target = $region17
    $region16: #{cnn_forward.1} parent=1 // pred_region
      %s52 = ssub.s32 2304, 2304
      %53 = vsyncadd [#allocation17], %s52
      %s54 = sshll.u32 [#allocation18], 4
      %s55 = int_to_ptr.vmem [resolvable:$true] %s54
      %60 = dma.hbm_to_vmem [thread:$0]  %s3, 2304, %s55, [#allocation17], 64, 64, 4
    $region17: #{cnn_forward.1} parent=1 // pred_fallthru
      _
    // Predicated region
    $region18: #{cnn_forward.1} parent=1 // pred_check
      _
    $region19: #{cnn_forward.1} parent=1 // pred_check_branch
      %62 = sbr.rel (0) target = $region21
    $region20: #{cnn_forward.1} parent=1 // pred_region
      %s64 = ssub.s32 16, 16
      %65 = vsyncadd [#allocation20], %s64
      %s67 = sshll.u32 [#allocation19], 4
      %s68 = int_to_ptr.vmem [resolvable:$true] %s67
      %70 = dma.hbm_to_vmem [thread:$0]  %s4, 16, %s68, [#allocation20]
    $region21: #{cnn_forward.1} parent=1 // pred_fallthru
      _
    // Predicated region
    $region22: #{cnn_forward.1} parent=1 // pred_check
      _
    $region23: #{cnn_forward.1} parent=1 // pred_check_branch
      %72 = sbr.rel (0) target = $region25
    $region24: #{cnn_forward.1} parent=1 // pred_region
      %s74 = ssub.s32 8192, 8192
      %75 = vsyncadd [#allocation20], %s74
      %s76 = sshll.u32 [#allocation21], 4
      %s77 = int_to_ptr.vmem [resolvable:$true] %s76
      %82 = dma.hbm_to_vmem [thread:$0]  %s5, 8192, %s77, [#allocation20], 128, 128, 8
    $region25: #{cnn_forward.1} parent=1 // pred_fallthru
      _
    // Predicated region
    $region26: #{cnn_forward.1} parent=1 // pred_check
      _
    $region27: #{cnn_forward.1} parent=1 // pred_check_branch
      %84 = sbr.rel (0) target = $region29
    $region28: #{cnn_forward.1} parent=1 // pred_region
      %s86 = ssub.s32 32, 32
      %87 = vsyncadd [#allocation23], %s86
      %s89 = sshll.u32 [#allocation22], 4
      %s90 = int_to_ptr.vmem [resolvable:$true] %s89
      %92 = dma.hbm_to_vmem [thread:$0]  %s6, 32, %s90, [#allocation23]
    $region29: #{cnn_forward.1} parent=1 // pred_fallthru
      _
    // Predicated region
    $region30: #{cnn_forward.1} parent=1 // pred_check
      _
    $region31: #{cnn_forward.1} parent=1 // pred_check_branch
      %94 = sbr.rel (0) target = $region33
    $region32: #{cnn_forward.1} parent=1 // pred_region
      %s96 = ssub.s32 80, 80
      %97 = vsyncadd [#allocation23], %s96
      %s99 = sshll.u32 [#allocation24], 4
      %s100 = int_to_ptr.vmem [resolvable:$true] %s99
      %102 = dma.hbm_to_vmem [thread:$0]  %s7, 80, %s100, [#allocation23]
    $region33: #{cnn_forward.1} parent=1 // pred_fallthru
      _
    // Predicated region
    $region34: #{cnn_forward.1} parent=1 // pred_check
      _
    $region35: #{cnn_forward.1} parent=1 // pred_check_branch
      %104 = sbr.rel (0) target = $region37
    $region36: #{cnn_forward.1} parent=1 // pred_region
      %s106 = ssub.s32 80, 80
      %107 = vsyncadd [#allocation26], %s106
      %s109 = sshll.u32 [#allocation25], 4
      %s110 = int_to_ptr.vmem [resolvable:$true] %s109
      %112 = dma.hbm_to_vmem [thread:$0]  %s8, 80, %s110, [#allocation26]
    $region37: #{cnn_forward.1} parent=1 // pred_fallthru
      _
    // Predicated region
    $region38: #{cnn_forward.1} parent=1 // pred_check
      _
    $region39: #{cnn_forward.1} parent=1 // pred_check_branch
      %114 = sbr.rel (0) target = $region41
    $region40: #{cnn_forward.1} parent=1 // pred_region
      %s116 = ssub.s32 80, 80
      %117 = vsyncadd [#allocation26], %s116
      %s119 = sshll.u32 [#allocation27], 4
      %s120 = int_to_ptr.vmem [resolvable:$true] %s119
      %122 = dma.hbm_to_vmem [thread:$0]  %s9, 80, %s120, [#allocation26]
    $region41: #{cnn_forward.1} parent=1 // pred_fallthru
      _
    // Predicated region
    $region42: #{cnn_forward.1} parent=1 // pred_check
      _
    $region43: #{cnn_forward.1} parent=1 // pred_check_branch
      %124 = sbr.rel (0) target = $region45
    $region44: #{cnn_forward.1} parent=1 // pred_region
      %s126 = ssub.s32 16, 16
      %127 = vsyncadd [#allocation29], %s126
      %s129 = sshll.u32 [#allocation28], 4
      %s130 = int_to_ptr.vmem [resolvable:$true] %s129
      %132 = dma.hbm_to_vmem [thread:$0]  %s10, 16, %s130, [#allocation29]
    $region45: #{cnn_forward.1} parent=1 // pred_fallthru
      _
    // Predicated region
    $region46: #{cnn_forward.1} parent=1 // pred_check
      _
    $region47: #{cnn_forward.1} parent=1 // pred_check_branch
      %134 = sbr.rel (0) target = $region49
    $region48: #{cnn_forward.1} parent=1 // pred_region
      %135 = dma.done [#allocation14], 64
    $region49: #{cnn_forward.1} parent=1 // pred_fallthru
      _
    // Predicated region
    $region50: #{cnn_forward.1} parent=1 // pred_check
      _
    $region51: #{cnn_forward.1} parent=1 // pred_check_branch
      %137 = sbr.rel (0) target = $region53
    $region52: #{cnn_forward.1} parent=1 // pred_region
      %138 = dma.done [#allocation17], 16
    $region53: #{cnn_forward.1} parent=1 // pred_fallthru
      _
    // Predicated region
    $region54: #{cnn_forward.1} parent=1 // pred_check
      _
    $region55: #{cnn_forward.1} parent=1 // pred_check_branch
      %140 = sbr.rel (0) target = $region57
    $region56: #{cnn_forward.1} parent=1 // pred_region
      %141 = dma.done [#allocation17], 2304
    $region57: #{cnn_forward.1} parent=1 // pred_fallthru
      _
    // Predicated region
    $region58: #{cnn_forward.1} parent=1 // pred_check
      _
    $region59: #{cnn_forward.1} parent=1 // pred_check_branch
      %143 = sbr.rel (0) target = $region61
    $region60: #{cnn_forward.1} parent=1 // pred_region
      %144 = dma.done [#allocation20], 16
    $region61: #{cnn_forward.1} parent=1 // pred_fallthru
      _
    // Predicated region
    $region62: #{cnn_forward.1} parent=1 // pred_check
      _
    $region63: #{cnn_forward.1} parent=1 // pred_check_branch
      %146 = sbr.rel (0) target = $region65
    $region64: #{cnn_forward.1} parent=1 // pred_region
      %147 = dma.done [#allocation20], 8192
    $region65: #{cnn_forward.1} parent=1 // pred_fallthru
      _
    // Predicated region
    $region66: #{cnn_forward.1} parent=1 // pred_check
      _
    $region67: #{cnn_forward.1} parent=1 // pred_check_branch
      %149 = sbr.rel (0) target = $region69
    $region68: #{cnn_forward.1} parent=1 // pred_region
      %150 = dma.done [#allocation23], 32
    $region69: #{cnn_forward.1} parent=1 // pred_fallthru
      _
    // Predicated region
    $region70: #{cnn_forward.1} parent=1 // pred_check
      _
    $region71: #{cnn_forward.1} parent=1 // pred_check_branch
      %152 = sbr.rel (0) target = $region73
    $region72: #{cnn_forward.1} parent=1 // pred_region
      %153 = dma.done [#allocation23], 80
    $region73: #{cnn_forward.1} parent=1 // pred_fallthru
      _
    // Predicated region
    $region74: #{cnn_forward.1} parent=1 // pred_check
      _
    $region75: #{cnn_forward.1} parent=1 // pred_check_branch
      %155 = sbr.rel (0) target = $region77
    $region76: #{cnn_forward.1} parent=1 // pred_region
      %156 = dma.done [#allocation26], 80
    $region77: #{cnn_forward.1} parent=1 // pred_fallthru
      _
    // Predicated region
    $region78: #{cnn_forward.1} parent=1 // pred_check
      _
    $region79: #{cnn_forward.1} parent=1 // pred_check_branch
      %158 = sbr.rel (0) target = $region81
    $region80: #{cnn_forward.1} parent=1 // pred_region
      %159 = dma.done [#allocation26], 80
    $region81: #{cnn_forward.1} parent=1 // pred_fallthru
      _
    // Predicated region
    $region82: #{cnn_forward.1} parent=1 // pred_check
      _
    $region83: #{cnn_forward.1} parent=1 // pred_check_branch
      %161 = sbr.rel (0) target = $region85
    $region84: #{cnn_forward.1} parent=1 // pred_region
      %162 = dma.done [#allocation29], 16
    $region85: #{cnn_forward.1} parent=1 // pred_fallthru
      _
    %s165 = sshll.u32 1, 14
    %s166 = sxor.u32 4294967295, %s165
    %s168 = sld [smem:[#allocation0]]
    %s169 = sadd.s32 2, %s168
    %s171 = sshll.u32 7, 26
    %s172 = sxor.u32 4294967295, %s171
    %s173 = sand.u32 0, %s172
    %s174 = sshll.u32 %s169, 26
    %s175 = sor.u32 %s173, %s174
    %s176 = sshll.u32 [#allocation8], 4
    %s177 = int_to_ptr.vmem [resolvable:$true] %s176
    %180 = sst [smem:[#allocation32]] 640
    %s181 = scalar_lea.smem [#allocation32], 1
    %182 = sst [smem:[%s181]] 640
    %s183 = scalar_lea.smem [#allocation32], 2
    %184 = sst [smem:[%s183]] 5
    %s185 = scalar_lea.smem [#allocation32], 3
    %186 = sst [smem:[%s185]] 64
    %s187 = scalar_lea.smem [#allocation32], 4
    %188 = sst [smem:[%s187]] 128
    %s189 = scalar_lea.smem [#allocation32], 5
    %190 = sst [smem:[%s189]] 2
    %s191 = scalar_lea.smem [#allocation32], 6
    %192 = sst [smem:[%s191]] 320
    %s193 = scalar_lea.smem [#allocation32], 7
    %194 = sst [smem:[%s193]] 64
    %s195 = scalar_lea.smem [#allocation32], 8
    %196 = sst [smem:[%s195]] 4
    %198 = dma.general %s11, 61440, %s177, [#allocation12], [#allocation31], [#allocation32], %s175, 0
    %s199 = scalar_lea.sflag [#allocation12], 1
    %s201 = sshll.u32 1, 14
    %s202 = sxor.u32 4294967295, %s201
    %s204 = sadd.s32 2, %s168
    %s206 = sshll.u32 7, 26
    %s207 = sxor.u32 4294967295, %s206
    %s208 = sand.u32 0, %s207
    %s209 = sshll.u32 %s204, 26
    %s210 = sor.u32 %s208, %s209
    %s211 = sshll.u32 [#allocation9], 4
    %s212 = int_to_ptr.vmem [resolvable:$true] %s211
    %215 = sst [smem:[#allocation34]] 640
    %s216 = scalar_lea.smem [#allocation34], 1
    %217 = sst [smem:[%s216]] 640
    %s218 = scalar_lea.smem [#allocation34], 2
    %219 = sst [smem:[%s218]] 5
    %s220 = scalar_lea.smem [#allocation34], 3
    %221 = sst [smem:[%s220]] 64
    %s222 = scalar_lea.smem [#allocation34], 4
    %223 = sst [smem:[%s222]] 128
    %s224 = scalar_lea.smem [#allocation34], 5
    %225 = sst [smem:[%s224]] 2
    %s226 = scalar_lea.smem [#allocation34], 6
    %227 = sst [smem:[%s226]] 320
    %s228 = scalar_lea.smem [#allocation34], 7
    %229 = sst [smem:[%s228]] 64
    %s230 = scalar_lea.smem [#allocation34], 8
    %231 = sst [smem:[%s230]] 4
    %233 = dma.general %s12, 25600, %s212, %s199, [#allocation33], [#allocation34], %s210, 0
    %s234 = scalar_lea.sflag [#allocation12], 2
    %s236 = sshll.u32 1, 14
    %s237 = sxor.u32 4294967295, %s236
    %s239 = sadd.s32 2, %s168
    %s241 = sshll.u32 7, 26
    %s242 = sxor.u32 4294967295, %s241
    %s243 = sand.u32 0, %s242
    %s244 = sshll.u32 %s239, 26
    %s245 = sor.u32 %s243, %s244
    %s246 = sshll.u32 [#allocation10], 4
    %s247 = int_to_ptr.vmem [resolvable:$true] %s246
    %250 = sst [smem:[#allocation36]] 640
    %s251 = scalar_lea.smem [#allocation36], 1
    %252 = sst [smem:[%s251]] 640
    %s253 = scalar_lea.smem [#allocation36], 2
    %254 = sst [smem:[%s253]] 5
    %s255 = scalar_lea.smem [#allocation36], 3
    %256 = sst [smem:[%s255]] 64
    %s257 = scalar_lea.smem [#allocation36], 4
    %258 = sst [smem:[%s257]] 128
    %s259 = scalar_lea.smem [#allocation36], 5
    %260 = sst [smem:[%s259]] 2
    %s261 = scalar_lea.smem [#allocation36], 6
    %262 = sst [smem:[%s261]] 320
    %s263 = scalar_lea.smem [#allocation36], 7
    %264 = sst [smem:[%s263]] 64
    %s265 = scalar_lea.smem [#allocation36], 8
    %266 = sst [smem:[%s265]] 4
    %268 = dma.general %s13, 25600, %s247, %s234, [#allocation35], [#allocation36], %s245, 0
    %s269 = scalar_lea.sflag [#allocation12], 3
    %p271 = scmp.lt.u32.totalorder 320, 8
    %p272 = pneg %p271
    // Predicated region
    $region86: #{cnn_forward.1} parent=1 // pred_check
      _
    $region87: #{cnn_forward.1} parent=1 // pred_check_branch
      %274 = sbr.rel (%p271) target = $region89
    $region88: #{cnn_forward.1} parent=1 // pred_region
      %s289 = sand.u32 320, 7
      %p290 = scmp.eq.s32.totalorder %s289, 0
      // Predicated region
      $region101: #{cnn_forward.1} parent=88 // pred_check
        %p291 = pneg %p290
      $region102: #{cnn_forward.1} parent=88 // pred_check_branch
        %293 = sbr.rel (%p291) target = $region104
      $region103: #{cnn_forward.1} parent=88 // pred_region
        loop: start=0, step=1, limit=1
        $region105: #{cnn_forward.1} parent=103 // loop_pre_header
          _
        $region106: #{cnn_forward.1} parent=103 // loop_header
          %s295 = sphi 0, %s299
          %p296 = scmp.ge.s32.totalorder %s295, 1
          %s300 = sphi %s14, %s14
          %s301 = sphi [#allocation11], [#allocation11]
        $region107: #{cnn_forward.1} parent=103 // loop_header_branch
          %298 = sbr.rel (%p296) target = $region111
        $region108: #{cnn_forward.1} parent=103 // loop_body
          %v302 = vld [vmem:[%s300] sm:$0xff]
          %303 = vst [vmem:[%s301] sm:$0xff] %v302
          %v304 = vld [vmem:[%s300 + $0x8] sm:$0xff]
          %305 = vst [vmem:[%s301 + $0x8] sm:$0xff] %v304
          %v306 = vld [vmem:[%s300 + $0x10] sm:$0xff]
          %307 = vst [vmem:[%s301 + $0x10] sm:$0xff] %v306
          %v308 = vld [vmem:[%s300 + $0x18] sm:$0xff]
          %309 = vst [vmem:[%s301 + $0x18] sm:$0xff] %v308
          %v310 = vld [vmem:[%s300 + $0x20] sm:$0xff]
          %311 = vst [vmem:[%s301 + $0x20] sm:$0xff] %v310
          %v312 = vld [vmem:[%s300 + $0x28] sm:$0xff]
          %313 = vst [vmem:[%s301 + $0x28] sm:$0xff] %v312
          %v314 = vld [vmem:[%s300 + $0x30] sm:$0xff]
          %315 = vst [vmem:[%s301 + $0x30] sm:$0xff] %v314
          %v316 = vld [vmem:[%s300 + $0x38] sm:$0xff]
          %317 = vst [vmem:[%s301 + $0x38] sm:$0xff] %v316
          %v318 = vld [vmem:[%s300 + $0x40] sm:$0xff]
          %319 = vst [vmem:[%s301 + $0x40] sm:$0xff] %v318
          %v320 = vld [vmem:[%s300 + $0x48] sm:$0xff]
          %321 = vst [vmem:[%s301 + $0x48] sm:$0xff] %v320
          %v322 = vld [vmem:[%s300 + $0x50] sm:$0xff]
          %323 = vst [vmem:[%s301 + $0x50] sm:$0xff] %v322
          %v324 = vld [vmem:[%s300 + $0x58] sm:$0xff]
          %325 = vst [vmem:[%s301 + $0x58] sm:$0xff] %v324
          %v326 = vld [vmem:[%s300 + $0x60] sm:$0xff]
          %327 = vst [vmem:[%s301 + $0x60] sm:$0xff] %v326
          %v328 = vld [vmem:[%s300 + $0x68] sm:$0xff]
          %329 = vst [vmem:[%s301 + $0x68] sm:$0xff] %v328
          %v330 = vld [vmem:[%s300 + $0x70] sm:$0xff]
          %331 = vst [vmem:[%s301 + $0x70] sm:$0xff] %v330
          %v332 = vld [vmem:[%s300 + $0x78] sm:$0xff]
          %333 = vst [vmem:[%s301 + $0x78] sm:$0xff] %v332
          %v334 = vld [vmem:[%s300 + $0x80] sm:$0xff]
          %335 = vst [vmem:[%s301 + $0x80] sm:$0xff] %v334
          %v336 = vld [vmem:[%s300 + $0x88] sm:$0xff]
          %337 = vst [vmem:[%s301 + $0x88] sm:$0xff] %v336
          %v338 = vld [vmem:[%s300 + $0x90] sm:$0xff]
          %339 = vst [vmem:[%s301 + $0x90] sm:$0xff] %v338
          %v340 = vld [vmem:[%s300 + $0x98] sm:$0xff]
          %341 = vst [vmem:[%s301 + $0x98] sm:$0xff] %v340
          %v342 = vld [vmem:[%s300 + $0xa0] sm:$0xff]
          %343 = vst [vmem:[%s301 + $0xa0] sm:$0xff] %v342
          %v344 = vld [vmem:[%s300 + $0xa8] sm:$0xff]
          %345 = vst [vmem:[%s301 + $0xa8] sm:$0xff] %v344
          %v346 = vld [vmem:[%s300 + $0xb0] sm:$0xff]
          %347 = vst [vmem:[%s301 + $0xb0] sm:$0xff] %v346
          %v348 = vld [vmem:[%s300 + $0xb8] sm:$0xff]
          %349 = vst [vmem:[%s301 + $0xb8] sm:$0xff] %v348
          %v350 = vld [vmem:[%s300 + $0xc0] sm:$0xff]
          %351 = vst [vmem:[%s301 + $0xc0] sm:$0xff] %v350
          %v352 = vld [vmem:[%s300 + $0xc8] sm:$0xff]
          %353 = vst [vmem:[%s301 + $0xc8] sm:$0xff] %v352
          %v354 = vld [vmem:[%s300 + $0xd0] sm:$0xff]
          %355 = vst [vmem:[%s301 + $0xd0] sm:$0xff] %v354
          %v356 = vld [vmem:[%s300 + $0xd8] sm:$0xff]
          %357 = vst [vmem:[%s301 + $0xd8] sm:$0xff] %v356
          %v358 = vld [vmem:[%s300 + $0xe0] sm:$0xff]
          %359 = vst [vmem:[%s301 + $0xe0] sm:$0xff] %v358
          %v360 = vld [vmem:[%s300 + $0xe8] sm:$0xff]
          %361 = vst [vmem:[%s301 + $0xe8] sm:$0xff] %v360
          %v362 = vld [vmem:[%s300 + $0xf0] sm:$0xff]
          %363 = vst [vmem:[%s301 + $0xf0] sm:$0xff] %v362
          %v364 = vld [vmem:[%s300 + $0xf8] sm:$0xff]
          %365 = vst [vmem:[%s301 + $0xf8] sm:$0xff] %v364
          %v366 = vld [vmem:[%s300 + $0x100] sm:$0xff]
          %367 = vst [vmem:[%s301 + $0x100] sm:$0xff] %v366
          %v368 = vld [vmem:[%s300 + $0x108] sm:$0xff]
          %369 = vst [vmem:[%s301 + $0x108] sm:$0xff] %v368
          %v370 = vld [vmem:[%s300 + $0x110] sm:$0xff]
          %371 = vst [vmem:[%s301 + $0x110] sm:$0xff] %v370
          %v372 = vld [vmem:[%s300 + $0x118] sm:$0xff]
          %373 = vst [vmem:[%s301 + $0x118] sm:$0xff] %v372
          %v374 = vld [vmem:[%s300 + $0x120] sm:$0xff]
          %375 = vst [vmem:[%s301 + $0x120] sm:$0xff] %v374
          %v376 = vld [vmem:[%s300 + $0x128] sm:$0xff]
          %377 = vst [vmem:[%s301 + $0x128] sm:$0xff] %v376
          %v378 = vld [vmem:[%s300 + $0x130] sm:$0xff]
          %379 = vst [vmem:[%s301 + $0x130] sm:$0xff] %v378
          %v380 = vld [vmem:[%s300 + $0x138] sm:$0xff]
          %381 = vst [vmem:[%s301 + $0x138] sm:$0xff] %v380
        $region109: #{cnn_forward.1} parent=103 // loop_footer
          %s299 = sadd.s32 1, %s295
        $region110: #{cnn_forward.1} parent=103 // loop_footer_branch
          %294 = sbr.rel target = $region106
        $region111: #{cnn_forward.1} parent=103 // loop_exit
          _
      $region104: #{cnn_forward.1} parent=88 // pred_fallthru
        _
      %p382 = pneg %p290
      // Predicated region
      $region112: #{cnn_forward.1} parent=88 // pred_check
        _
      $region113: #{cnn_forward.1} parent=88 // pred_check_branch
        %384 = sbr.rel (%p290) target = $region115
      $region114: #{cnn_forward.1} parent=88 // pred_region
        %s385 = sand.u32 320, 7
      $region115: #{cnn_forward.1} parent=88 // pred_fallthru
        _
    $region89: #{cnn_forward.1} parent=1 // pred_fallthru
      _
    // Predicated region
    $region90: #{cnn_forward.1} parent=1 // pred_check
      %p275 = pneg %p271
    $region91: #{cnn_forward.1} parent=1 // pred_check_branch
      %277 = sbr.rel (%p275) target = $region93
    $region92: #{cnn_forward.1} parent=1 // pred_region
      %s278 = sshllo.u32 0, 320
      loop: start=0, step=1, limit=1
      $region94: #{cnn_forward.1} parent=92 // loop_pre_header
        _
      $region95: #{cnn_forward.1} parent=92 // loop_header
        %s280 = sphi 0, %s284
        %p281 = scmp.ge.s32.totalorder %s280, 1
        %s285 = sphi %s14, %s14
        %s286 = sphi [#allocation11], [#allocation11]
      $region96: #{cnn_forward.1} parent=92 // loop_header_branch
        %283 = sbr.rel (%p281) target = $region100
      $region97: #{cnn_forward.1} parent=92 // loop_body
        %v287 = vld [vmem:[%s285] sm:%s278]
        %288 = vst [vmem:[%s286] sm:%s278] %v287
      $region98: #{cnn_forward.1} parent=92 // loop_footer
        %s284 = sadd.s32 1, %s280
      $region99: #{cnn_forward.1} parent=92 // loop_footer_branch
        %279 = sbr.rel target = $region95
      $region100: #{cnn_forward.1} parent=92 // loop_exit
        _
    $region93: #{cnn_forward.1} parent=1 // pred_fallthru
      _
    // Predicated region
    $region116: #{cnn_forward.1} parent=1 // pred_check
      _
    $region117: #{cnn_forward.1} parent=1 // pred_check_branch
      %388 = sbr.rel (0) target = $region119
    $region118: #{cnn_forward.1} parent=1 // pred_region
      %389 = vsyncadd %s269, 5120
    $region119: #{cnn_forward.1} parent=1 // pred_fallthru
      _
    %vm390 = vcmask 261120
    %391 = vst.msk [vmem:[#allocation3] sm:$0xff] %vm390, 0.0
    %392 = vst.msk [vmem:[#allocation3 + $0x8] sm:$0xff] %vm390, 0.0
    %393 = vst.msk [vmem:[#allocation3 + $0x10] sm:$0xff] %vm390, 0.0
    %394 = vst.msk [vmem:[#allocation3 + $0x18] sm:$0xff] %vm390, 0.0
    %395 = vst.msk [vmem:[#allocation3 + $0x20] sm:$0xff] %vm390, 0.0
    %396 = vst.msk [vmem:[#allocation3 + $0x28] sm:$0xff] %vm390, 0.0
    %397 = vst.msk [vmem:[#allocation3 + $0x30] sm:$0xff] %vm390, 0.0
    %398 = vst.msk [vmem:[#allocation3 + $0x38] sm:$0xff] %vm390, 0.0
    %vm399 = vcmask 259072
    %400 = vst.msk [vmem:[#allocation3 + $0x40] sm:$0x3f] %vm399, 0.0
    %401 = vst [vmem:[#allocation5] sm:$0xff] 0.0
    %402 = vst [vmem:[#allocation5 + $0x8] sm:$0xff] 0.0
    %403 = vst [vmem:[#allocation5 + $0x10] sm:$0xff] 0.0
    %404 = vst [vmem:[#allocation5 + $0x18] sm:$0xff] 0.0
    %405 = vst [vmem:[#allocation5 + $0x20] sm:$0xff] 0.0
    %406 = vst [vmem:[#allocation5 + $0x28] sm:$0xff] 0.0
    %407 = vst [vmem:[#allocation5 + $0x30] sm:$0xff] 0.0
    %408 = vst [vmem:[#allocation5 + $0x38] sm:$0xff] 0.0
    %409 = vst [vmem:[#allocation5 + $0x40] sm:$0x3f] 0.0
    %v410 = vld [vmem:[%s0] sm:$0xff]
    %v411 = vld [vmem:[%s0 + $0x8] sm:$0xff]
    %v412 = vld [vmem:[%s0 + $0x10] sm:$0xff]
    %v413 = vld [vmem:[%s0 + $0x18] sm:$0xff]
    %v414 = vld [vmem:[%s0 + $0x20] sm:$0xff]
    %v415 = vld [vmem:[%s0 + $0x28] sm:$0xff]
    %v416 = vld [vmem:[%s0 + $0x30] sm:$0xff]
    %v417 = vld [vmem:[%s0 + $0x38] sm:$0xff]
    %v418 = vld [vmem:[%s0 + $0x40] sm:$0xff]
    %v419 = vld [vmem:[%s0 + $0x48] sm:$0xff]
    %v420 = vld [vmem:[%s0 + $0x50] sm:$0xff]
    %v421 = vld [vmem:[%s0 + $0x58] sm:$0xff]
    %v422 = vld [vmem:[%s0 + $0x60] sm:$0xff]
    %v423 = vld [vmem:[%s0 + $0x68] sm:$0xff]
    %v424 = vld [vmem:[%s0 + $0x70] sm:$0xff]
    %v425 = vld [vmem:[%s0 + $0x78] sm:$0xff]
    %v426 = vld [vmem:[%s0 + $0x80] sm:$0xff]
    %v427 = vld [vmem:[%s0 + $0x88] sm:$0xff]
    %v428 = vld [vmem:[%s0 + $0x90] sm:$0xff]
    %v429 = vld [vmem:[%s0 + $0x98] sm:$0x3]
    %v430 = vld [vmem:[#allocation13] sm:$0xf]
    %432 = vset.pattern.permute.xlu0 0
    %433 = vperm.xlu0 %432, %v410
    %v434 = vpop.permute.xlu0 %433
    %437 = vset.pattern.permute.xlu0 0
    %438 = vperm.xlu0 %437, %v411
    %v439 = vpop.permute.xlu0 %438
    %442 = vset.pattern.permute.xlu0 0
    %443 = vperm.xlu0 %442, %v412
    %v444 = vpop.permute.xlu0 %443
    %447 = vset.pattern.permute.xlu0 0
    %448 = vperm.xlu0 %447, %v413
    %v449 = vpop.permute.xlu0 %448
    %452 = vset.pattern.permute.xlu0 0
    %453 = vperm.xlu0 %452, %v414
    %v454 = vpop.permute.xlu0 %453
    %457 = vset.pattern.permute.xlu0 0
    %458 = vperm.xlu0 %457, %v415
    %v459 = vpop.permute.xlu0 %458
    %462 = vset.pattern.permute.xlu0 0
    %463 = vperm.xlu0 %462, %v416
    %v464 = vpop.permute.xlu0 %463
    %467 = vset.pattern.permute.xlu0 0
    %468 = vperm.xlu0 %467, %v417
    %v469 = vpop.permute.xlu0 %468
    %472 = vset.pattern.permute.xlu0 0
    %473 = vperm.xlu0 %472, %v418
    %v474 = vpop.permute.xlu0 %473
    %477 = vset.pattern.permute.xlu0 0
    %478 = vperm.xlu0 %477, %v419
    %v479 = vpop.permute.xlu0 %478
    %482 = vset.pattern.permute.xlu0 0
    %483 = vperm.xlu0 %482, %v420
    %v484 = vpop.permute.xlu0 %483
    %487 = vset.pattern.permute.xlu0 0
    %488 = vperm.xlu0 %487, %v421
    %v489 = vpop.permute.xlu0 %488
    %492 = vset.pattern.permute.xlu0 0
    %493 = vperm.xlu0 %492, %v422
    %v494 = vpop.permute.xlu0 %493
    %497 = vset.pattern.permute.xlu0 0
    %498 = vperm.xlu0 %497, %v423
    %v499 = vpop.permute.xlu0 %498
    %502 = vset.pattern.permute.xlu0 0
    %503 = vperm.xlu0 %502, %v424
    %v504 = vpop.permute.xlu0 %503
    %507 = vset.pattern.permute.xlu0 0
    %508 = vperm.xlu0 %507, %v425
    %v509 = vpop.permute.xlu0 %508
    %512 = vset.pattern.permute.xlu0 0
    %513 = vperm.xlu0 %512, %v426
    %v514 = vpop.permute.xlu0 %513
    %517 = vset.pattern.permute.xlu0 0
    %518 = vperm.xlu0 %517, %v427
    %v519 = vpop.permute.xlu0 %518
    %522 = vset.pattern.permute.xlu0 0
    %523 = vperm.xlu0 %522, %v428
    %v524 = vpop.permute.xlu0 %523
    %527 = vset.pattern.permute.xlu0 0
    %528 = vperm.xlu0 %527, %v429
    %v529 = vpop.permute.xlu0 %528
    %v531 = vlaneseq
    %v532 = vshrl.u32 %v531, 7
    %v533 = vsub.s32 0, %v532
    %v534 = vrot.slane %v430, %v533
    %v535 = vmul.f32 %v434, %v534
    %v536 = vmul.f32 %v439, %v534
    %v537 = vmul.f32 %v444, %v534
    %v538 = vmul.f32 %v449, %v534
    %v539 = vmul.f32 %v454, %v534
    %v540 = vmul.f32 %v459, %v534
    %v541 = vmul.f32 %v464, %v534
    %v542 = vmul.f32 %v469, %v534
    %v543 = vmul.f32 %v474, %v534
    %v544 = vmul.f32 %v479, %v534
    %v545 = vmul.f32 %v484, %v534
    %v546 = vmul.f32 %v489, %v534
    %v547 = vmul.f32 %v494, %v534
    %v548 = vmul.f32 %v499, %v534
    %v549 = vmul.f32 %v504, %v534
    %v550 = vmul.f32 %v509, %v534
    %v551 = vmul.f32 %v514, %v534
    %v552 = vmul.f32 %v519, %v534
    %v553 = vmul.f32 %v524, %v534
    %v554 = vmul.f32 %v529, %v534
    %555 = vset.pattern.permute.xlu0 1
    %556 = vperm.xlu0 %555, %v410
    %v557 = vpop.permute.xlu0 %556
    %559 = vset.pattern.permute.xlu0 1
    %560 = vperm.xlu0 %559, %v411
    %v561 = vpop.permute.xlu0 %560
    %563 = vset.pattern.permute.xlu0 1
    %564 = vperm.xlu0 %563, %v412
    %v565 = vpop.permute.xlu0 %564
    %567 = vset.pattern.permute.xlu0 1
    %568 = vperm.xlu0 %567, %v413
    %v569 = vpop.permute.xlu0 %568
    %571 = vset.pattern.permute.xlu0 1
    %572 = vperm.xlu0 %571, %v414
    %v573 = vpop.permute.xlu0 %572
    %575 = vset.pattern.permute.xlu0 1
    %576 = vperm.xlu0 %575, %v415
    %v577 = vpop.permute.xlu0 %576
    %579 = vset.pattern.permute.xlu0 1
    %580 = vperm.xlu0 %579, %v416
    %v581 = vpop.permute.xlu0 %580
    %583 = vset.pattern.permute.xlu0 1
    %584 = vperm.xlu0 %583, %v417
    %v585 = vpop.permute.xlu0 %584
    %587 = vset.pattern.permute.xlu0 1
    %588 = vperm.xlu0 %587, %v418
    %v589 = vpop.permute.xlu0 %588
    %591 = vset.pattern.permute.xlu0 1
    %592 = vperm.xlu0 %591, %v419
    %v593 = vpop.permute.xlu0 %592
    %595 = vset.pattern.permute.xlu0 1
    %596 = vperm.xlu0 %595, %v420
    %v597 = vpop.permute.xlu0 %596
    %599 = vset.pattern.permute.xlu0 1
    %600 = vperm.xlu0 %599, %v421
    %v601 = vpop.permute.xlu0 %600
    %603 = vset.pattern.permute.xlu0 1
    %604 = vperm.xlu0 %603, %v422
    %v605 = vpop.permute.xlu0 %604
    %607 = vset.pattern.permute.xlu0 1
    %608 = vperm.xlu0 %607, %v423
    %v609 = vpop.permute.xlu0 %608
    %611 = vset.pattern.permute.xlu0 1
    %612 = vperm.xlu0 %611, %v424
    %v613 = vpop.permute.xlu0 %612
    %615 = vset.pattern.permute.xlu0 1
    %616 = vperm.xlu0 %615, %v425
    %v617 = vpop.permute.xlu0 %616
    %619 = vset.pattern.permute.xlu0 1
    %620 = vperm.xlu0 %619, %v426
    %v621 = vpop.permute.xlu0 %620
    %623 = vset.pattern.permute.xlu0 1
    %624 = vperm.xlu0 %623, %v427
    %v625 = vpop.permute.xlu0 %624
    %627 = vset.pattern.permute.xlu0 1
    %628 = vperm.xlu0 %627, %v428
    %v629 = vpop.permute.xlu0 %628
    %631 = vset.pattern.permute.xlu0 1
    %632 = vperm.xlu0 %631, %v429
    %v633 = vpop.permute.xlu0 %632
    %v635 = vlaneseq
    %v636 = vshrl.u32 %v635, 7
    %v637 = vsub.s32 1, %v636
    %v638 = vrot.slane %v430, %v637
    %v639 = vmul.f32 %v557, %v638
    %v640 = vmul.f32 %v561, %v638
    %v641 = vmul.f32 %v565, %v638
    %v642 = vmul.f32 %v569, %v638
    %v643 = vmul.f32 %v573, %v638
    %v644 = vmul.f32 %v577, %v638
    %v645 = vmul.f32 %v581, %v638
    %v646 = vmul.f32 %v585, %v638
    %v647 = vmul.f32 %v589, %v638
    %v648 = vmul.f32 %v593, %v638
    %v649 = vmul.f32 %v597, %v638
    %v650 = vmul.f32 %v601, %v638
    %v651 = vmul.f32 %v605, %v638
    %v652 = vmul.f32 %v609, %v638
    %v653 = vmul.f32 %v613, %v638
    %v654 = vmul.f32 %v617, %v638
    %v655 = vmul.f32 %v621, %v638
    %v656 = vmul.f32 %v625, %v638
    %v657 = vmul.f32 %v629, %v638
    %v658 = vmul.f32 %v633, %v638
    %v659 = vadd.f32 %v535, %v639
    %v660 = vadd.f32 %v536, %v640
    %v661 = vadd.f32 %v537, %v641
    %v662 = vadd.f32 %v538, %v642
    %v663 = vadd.f32 %v539, %v643
    %v664 = vadd.f32 %v540, %v644
    %v665 = vadd.f32 %v541, %v645
    %v666 = vadd.f32 %v542, %v646
    %v667 = vadd.f32 %v543, %v647
    %v668 = vadd.f32 %v544, %v648
    %v669 = vadd.f32 %v545, %v649
    %v670 = vadd.f32 %v546, %v650
    %v671 = vadd.f32 %v547, %v651
    %v672 = vadd.f32 %v548, %v652
    %v673 = vadd.f32 %v549, %v653
    %v674 = vadd.f32 %v550, %v654
    %v675 = vadd.f32 %v551, %v655
    %v676 = vadd.f32 %v552, %v656
    %v677 = vadd.f32 %v553, %v657
    %v678 = vadd.f32 %v554, %v658
    %679 = vset.pattern.permute.xlu0 2
    %680 = vperm.xlu0 %679, %v410
    %v681 = vpop.permute.xlu0 %680
    %683 = vset.pattern.permute.xlu0 2
    %684 = vperm.xlu0 %683, %v411
    %v685 = vpop.permute.xlu0 %684
    %687 = vset.pattern.permute.xlu0 2
    %688 = vperm.xlu0 %687, %v412
    %v689 = vpop.permute.xlu0 %688
    %691 = vset.pattern.permute.xlu0 2
    %692 = vperm.xlu0 %691, %v413
    %v693 = vpop.permute.xlu0 %692
    %695 = vset.pattern.permute.xlu0 2
    %696 = vperm.xlu0 %695, %v414
    %v697 = vpop.permute.xlu0 %696
    %699 = vset.pattern.permute.xlu0 2
    %700 = vperm.xlu0 %699, %v415
    %v701 = vpop.permute.xlu0 %700
    %703 = vset.pattern.permute.xlu0 2
    %704 = vperm.xlu0 %703, %v416
    %v705 = vpop.permute.xlu0 %704
    %707 = vset.pattern.permute.xlu0 2
    %708 = vperm.xlu0 %707, %v417
    %v709 = vpop.permute.xlu0 %708
    %711 = vset.pattern.permute.xlu0 2
    %712 = vperm.xlu0 %711, %v418
    %v713 = vpop.permute.xlu0 %712
    %715 = vset.pattern.permute.xlu0 2
    %716 = vperm.xlu0 %715, %v419
    %v717 = vpop.permute.xlu0 %716
    %719 = vset.pattern.permute.xlu0 2
    %720 = vperm.xlu0 %719, %v420
    %v721 = vpop.permute.xlu0 %720
    %723 = vset.pattern.permute.xlu0 2
    %724 = vperm.xlu0 %723, %v421
    %v725 = vpop.permute.xlu0 %724
    %727 = vset.pattern.permute.xlu0 2
    %728 = vperm.xlu0 %727, %v422
    %v729 = vpop.permute.xlu0 %728
    %731 = vset.pattern.permute.xlu0 2
    %732 = vperm.xlu0 %731, %v423
    %v733 = vpop.permute.xlu0 %732
    %735 = vset.pattern.permute.xlu0 2
    %736 = vperm.xlu0 %735, %v424
    %v737 = vpop.permute.xlu0 %736
    %739 = vset.pattern.permute.xlu0 2
    %740 = vperm.xlu0 %739, %v425
    %v741 = vpop.permute.xlu0 %740
    %743 = vset.pattern.permute.xlu0 2
    %744 = vperm.xlu0 %743, %v426
    %v745 = vpop.permute.xlu0 %744
    %747 = vset.pattern.permute.xlu0 2
    %748 = vperm.xlu0 %747, %v427
    %v749 = vpop.permute.xlu0 %748
    %751 = vset.pattern.permute.xlu0 2
    %752 = vperm.xlu0 %751, %v428
    %v753 = vpop.permute.xlu0 %752
    %755 = vset.pattern.permute.xlu0 2
    %756 = vperm.xlu0 %755, %v429
    %v757 = vpop.permute.xlu0 %756
    %v759 = vlaneseq
    %v760 = vshrl.u32 %v759, 7
    %v761 = vsub.s32 2, %v760
    %v762 = vrot.slane %v430, %v761
    %v763 = vmul.f32 %v681, %v762
    %v764 = vmul.f32 %v685, %v762
    %v765 = vmul.f32 %v689, %v762
    %v766 = vmul.f32 %v693, %v762
    %v767 = vmul.f32 %v697, %v762
    %v768 = vmul.f32 %v701, %v762
    %v769 = vmul.f32 %v705, %v762
    %v770 = vmul.f32 %v709, %v762
    %v771 = vmul.f32 %v713, %v762
    %v772 = vmul.f32 %v717, %v762
    %v773 = vmul.f32 %v721, %v762
    %v774 = vmul.f32 %v725, %v762
    %v775 = vmul.f32 %v729, %v762
    %v776 = vmul.f32 %v733, %v762
    %v777 = vmul.f32 %v737, %v762
    %v778 = vmul.f32 %v741, %v762
    %v779 = vmul.f32 %v745, %v762
    %v780 = vmul.f32 %v749, %v762
    %v781 = vmul.f32 %v753, %v762
    %v782 = vmul.f32 %v757, %v762
    %v783 = vadd.f32 %v659, %v763
    %v784 = vadd.f32 %v660, %v764
    %v785 = vadd.f32 %v661, %v765
    %v786 = vadd.f32 %v662, %v766
    %v787 = vadd.f32 %v663, %v767
    %v788 = vadd.f32 %v664, %v768
    %v789 = vadd.f32 %v665, %v769
    %v790 = vadd.f32 %v666, %v770
    %v791 = vadd.f32 %v667, %v771
    %v792 = vadd.f32 %v668, %v772
    %v793 = vadd.f32 %v669, %v773
    %v794 = vadd.f32 %v670, %v774
    %v795 = vadd.f32 %v671, %v775
    %v796 = vadd.f32 %v672, %v776
    %v797 = vadd.f32 %v673, %v777
    %v798 = vadd.f32 %v674, %v778
    %v799 = vadd.f32 %v675, %v779
    %v800 = vadd.f32 %v676, %v780
    %v801 = vadd.f32 %v677, %v781
    %v802 = vadd.f32 %v678, %v782
    %803 = vset.pattern.permute.xlu0 3
    %804 = vperm.xlu0 %803, %v410
    %v805 = vpop.permute.xlu0 %804
    %807 = vset.pattern.permute.xlu0 3
    %808 = vperm.xlu0 %807, %v411
    %v809 = vpop.permute.xlu0 %808
    %811 = vset.pattern.permute.xlu0 3
    %812 = vperm.xlu0 %811, %v412
    %v813 = vpop.permute.xlu0 %812
    %815 = vset.pattern.permute.xlu0 3
    %816 = vperm.xlu0 %815, %v413
    %v817 = vpop.permute.xlu0 %816
    %819 = vset.pattern.permute.xlu0 3
    %820 = vperm.xlu0 %819, %v414
    %v821 = vpop.permute.xlu0 %820
    %823 = vset.pattern.permute.xlu0 3
    %824 = vperm.xlu0 %823, %v415
    %v825 = vpop.permute.xlu0 %824
    %827 = vset.pattern.permute.xlu0 3
    %828 = vperm.xlu0 %827, %v416
    %v829 = vpop.permute.xlu0 %828
    %831 = vset.pattern.permute.xlu0 3
    %832 = vperm.xlu0 %831, %v417
    %v833 = vpop.permute.xlu0 %832
    %835 = vset.pattern.permute.xlu0 3
    %836 = vperm.xlu0 %835, %v418
    %v837 = vpop.permute.xlu0 %836
    %839 = vset.pattern.permute.xlu0 3
    %840 = vperm.xlu0 %839, %v419
    %v841 = vpop.permute.xlu0 %840
    %843 = vset.pattern.permute.xlu0 3
    %844 = vperm.xlu0 %843, %v420
    %v845 = vpop.permute.xlu0 %844
    %847 = vset.pattern.permute.xlu0 3
    %848 = vperm.xlu0 %847, %v421
    %v849 = vpop.permute.xlu0 %848
    %851 = vset.pattern.permute.xlu0 3
    %852 = vperm.xlu0 %851, %v422
    %v853 = vpop.permute.xlu0 %852
    %855 = vset.pattern.permute.xlu0 3
    %856 = vperm.xlu0 %855, %v423
    %v857 = vpop.permute.xlu0 %856
    %859 = vset.pattern.permute.xlu0 3
    %860 = vperm.xlu0 %859, %v424
    %v861 = vpop.permute.xlu0 %860
    %863 = vset.pattern.permute.xlu0 3
    %864 = vperm.xlu0 %863, %v425
    %v865 = vpop.permute.xlu0 %864
    %867 = vset.pattern.permute.xlu0 3
    %868 = vperm.xlu0 %867, %v426
    %v869 = vpop.permute.xlu0 %868
    %871 = vset.pattern.permute.xlu0 3
    %872 = vperm.xlu0 %871, %v427
    %v873 = vpop.permute.xlu0 %872
    %875 = vset.pattern.permute.xlu0 3
    %876 = vperm.xlu0 %875, %v428
    %v877 = vpop.permute.xlu0 %876
    %879 = vset.pattern.permute.xlu0 3
    %880 = vperm.xlu0 %879, %v429
    %v881 = vpop.permute.xlu0 %880
    %v883 = vlaneseq
    %v884 = vshrl.u32 %v883, 7
    %v885 = vsub.s32 3, %v884
    %v886 = vrot.slane %v430, %v885
    %v887 = vmul.f32 %v805, %v886
    %v888 = vmul.f32 %v809, %v886
    %v889 = vmul.f32 %v813, %v886
    %v890 = vmul.f32 %v817, %v886
    %v891 = vmul.f32 %v821, %v886
    %v892 = vmul.f32 %v825, %v886
    %v893 = vmul.f32 %v829, %v886
    %v894 = vmul.f32 %v833, %v886
    %v895 = vmul.f32 %v837, %v886
    %v896 = vmul.f32 %v841, %v886
    %v897 = vmul.f32 %v845, %v886
    %v898 = vmul.f32 %v849, %v886
    %v899 = vmul.f32 %v853, %v886
    %v900 = vmul.f32 %v857, %v886
    %v901 = vmul.f32 %v861, %v886
    %v902 = vmul.f32 %v865, %v886
    %v903 = vmul.f32 %v869, %v886
    %v904 = vmul.f32 %v873, %v886
    %v905 = vmul.f32 %v877, %v886
    %v906 = vmul.f32 %v881, %v886
    %v907 = vadd.f32 %v783, %v887
    %v908 = vadd.f32 %v784, %v888
    %v909 = vadd.f32 %v785, %v889
    %v910 = vadd.f32 %v786, %v890
    %v911 = vadd.f32 %v787, %v891
    %v912 = vadd.f32 %v788, %v892
    %v913 = vadd.f32 %v789, %v893
    %v914 = vadd.f32 %v790, %v894
    %v915 = vadd.f32 %v791, %v895
    %v916 = vadd.f32 %v792, %v896
    %v917 = vadd.f32 %v793, %v897
    %v918 = vadd.f32 %v794, %v898
    %v919 = vadd.f32 %v795, %v899
    %v920 = vadd.f32 %v796, %v900
    %v921 = vadd.f32 %v797, %v901
    %v922 = vadd.f32 %v798, %v902
    %v923 = vadd.f32 %v799, %v903
    %v924 = vadd.f32 %v800, %v904
    %v925 = vadd.f32 %v801, %v905
    %v926 = vadd.f32 %v802, %v906
    %v927 = vld [vmem:[#allocation16] sm:$0x1]
    %v929 = vlaneseq
    %v930 = vshrl.u32 %v929, 7
    %v931 = vsub.s32 0, %v930
    %v932 = vrot.slane %v927, %v931
    %v934 = vadd.f32 %v907, %v932
    %v935 = vadd.f32 %v908, %v932
    %v936 = vadd.f32 %v909, %v932
    %v937 = vadd.f32 %v910, %v932
    %v938 = vadd.f32 %v911, %v932
    %v939 = vadd.f32 %v912, %v932
    %v940 = vadd.f32 %v913, %v932
    %v941 = vadd.f32 %v914, %v932
    %v942 = vadd.f32 %v915, %v932
    %v943 = vadd.f32 %v916, %v932
    %v944 = vadd.f32 %v917, %v932
    %v945 = vadd.f32 %v918, %v932
    %v946 = vadd.f32 %v919, %v932
    %v947 = vadd.f32 %v920, %v932
    %v948 = vadd.f32 %v921, %v932
    %v949 = vadd.f32 %v922, %v932
    %v950 = vadd.f32 %v923, %v932
    %v951 = vadd.f32 %v924, %v932
    %v952 = vadd.f32 %v925, %v932
    %v953 = vadd.f32 %v926, %v932
    %v954 = vmax.f32 %v934, 0.0
    %v955 = vmax.f32 %v935, 0.0
    %v956 = vmax.f32 %v936, 0.0
    %v957 = vmax.f32 %v937, 0.0
    %v958 = vmax.f32 %v938, 0.0
    %v959 = vmax.f32 %v939, 0.0
    %v960 = vmax.f32 %v940, 0.0
    %v961 = vmax.f32 %v941, 0.0
    %v962 = vmax.f32 %v942, 0.0
    %v963 = vmax.f32 %v943, 0.0
    %v964 = vmax.f32 %v944, 0.0
    %v965 = vmax.f32 %v945, 0.0
    %v966 = vmax.f32 %v946, 0.0
    %v967 = vmax.f32 %v947, 0.0
    %v968 = vmax.f32 %v948, 0.0
    %v969 = vmax.f32 %v949, 0.0
    %v970 = vmax.f32 %v950, 0.0
    %v971 = vmax.f32 %v951, 0.0
    %v972 = vmax.f32 %v952, 0.0
    %v973 = vmax.f32 %v953, 0.0
    %974 = vst.msk [vmem:[#allocation2] sm:$0xff] %vm390, %v954
    %975 = vst.msk [vmem:[#allocation2 + $0x8] sm:$0xff] %vm390, %v955
    %976 = vst.msk [vmem:[#allocation2 + $0x10] sm:$0xff] %vm390, %v956
    %977 = vst.msk [vmem:[#allocation2 + $0x18] sm:$0xff] %vm390, %v957
    %978 = vst.msk [vmem:[#allocation2 + $0x20] sm:$0xff] %vm390, %v958
    %979 = vst.msk [vmem:[#allocation2 + $0x28] sm:$0xff] %vm390, %v959
    %980 = vst.msk [vmem:[#allocation2 + $0x30] sm:$0xff] %vm390, %v960
    %981 = vst.msk [vmem:[#allocation2 + $0x38] sm:$0xff] %vm390, %v961
    %982 = vst.msk [vmem:[#allocation2 + $0x40] sm:$0xff] %vm390, %v962
    %983 = vst.msk [vmem:[#allocation2 + $0x48] sm:$0xff] %vm390, %v963
    %984 = vst.msk [vmem:[#allocation2 + $0x50] sm:$0xff] %vm390, %v964
    %985 = vst.msk [vmem:[#allocation2 + $0x58] sm:$0xff] %vm390, %v965
    %986 = vst.msk [vmem:[#allocation2 + $0x60] sm:$0xff] %vm390, %v966
    %987 = vst.msk [vmem:[#allocation2 + $0x68] sm:$0xff] %vm390, %v967
    %988 = vst.msk [vmem:[#allocation2 + $0x70] sm:$0xff] %vm390, %v968
    %989 = vst.msk [vmem:[#allocation2 + $0x78] sm:$0xff] %vm390, %v969
    %990 = vst.msk [vmem:[#allocation2 + $0x80] sm:$0xff] %vm390, %v970
    %991 = vst.msk [vmem:[#allocation2 + $0x88] sm:$0xff] %vm390, %v971
    %992 = vst.msk [vmem:[#allocation2 + $0x90] sm:$0xff] %vm390, %v972
    %vm993 = vcmask 254976
    %994 = vst.msk [vmem:[#allocation2 + $0x98] sm:$0x3] %vm993, %v973
    %v995 = vld [vmem:[#allocation2] sm:$0xff]
    %v996 = vld [vmem:[#allocation2 + $0x8] sm:$0x3]
    %v997 = vld [vmem:[#allocation2 + $0xb] sm:$0xff]
    %v998 = vld [vmem:[#allocation2 + $0x13] sm:$0x3]
    %v999 = vmax.f32 %v995, %v997
    %v1000 = vmax.f32 %v996, %v998
    %v1002 = vrot.slane %v999, 1
    %v1004 = vmax.f32 %v999, %v1002
    %vm1005 = vcmask 253952
    %1006 = vst.msk [vmem:[#allocation3 + $0x8] sm:$0x1] %vm1005, %v1004
    %vm1007 = vcmask 256002
    %1008 = vst.msk [vmem:[#allocation3 + $0x7] sm:$0x4] %vm1007, %v1004
    %vm1009 = vcmask 258052
    %1010 = vst.msk [vmem:[#allocation3 + $0x6] sm:$0x10] %vm1009, %v1004
    %vm1011 = vcmask 260102
    %1012 = vst.msk [vmem:[#allocation3 + $0x5] sm:$0x40] %vm1011, %v1004
    %v1014 = vrot.slane %v1000, 1
    %v1016 = vmax.f32 %v1000, %v1014
    %1017 = vst.msk [vmem:[#allocation3 + $0xc] sm:$0x1] %vm1005, %v1016
    %v1018 = vld [vmem:[#allocation2 + $0x16] sm:$0xff]
    %v1019 = vld [vmem:[#allocation2 + $0x1e] sm:$0x3]
    %v1020 = vld [vmem:[#allocation2 + $0x21] sm:$0xff]
    %v1021 = vld [vmem:[#allocation2 + $0x29] sm:$0x3]
    %v1022 = vmax.f32 %v1018, %v1020
    %v1023 = vmax.f32 %v1019, %v1021
    %v1025 = vrot.slane %v1022, 1
    %v1027 = vmax.f32 %v1022, %v1025
    %1028 = vst.msk [vmem:[#allocation3 + $0xf] sm:$0x1] %vm1005, %v1027
    %1029 = vst.msk [vmem:[#allocation3 + $0xe] sm:$0x4] %vm1007, %v1027
    %1030 = vst.msk [vmem:[#allocation3 + $0xd] sm:$0x10] %vm1009, %v1027
    %1031 = vst.msk [vmem:[#allocation3 + $0xc] sm:$0x40] %vm1011, %v1027
    %v1033 = vrot.slane %v1023, 1
    %v1035 = vmax.f32 %v1023, %v1033
    %1036 = vst.msk [vmem:[#allocation3 + $0x13] sm:$0x1] %vm1005, %v1035
    %v1037 = vld [vmem:[#allocation2 + $0x2c] sm:$0xff]
    %v1038 = vld [vmem:[#allocation2 + $0x34] sm:$0x3]
    %v1039 = vld [vmem:[#allocation2 + $0x37] sm:$0xff]
    %v1040 = vld [vmem:[#allocation2 + $0x3f] sm:$0x3]
    %v1041 = vmax.f32 %v1037, %v1039
    %v1042 = vmax.f32 %v1038, %v1040
    %v1044 = vrot.slane %v1041, 1
    %v1046 = vmax.f32 %v1041, %v1044
    %1047 = vst.msk [vmem:[#allocation3 + $0x16] sm:$0x1] %vm1005, %v1046
    %1048 = vst.msk [vmem:[#allocation3 + $0x15] sm:$0x4] %vm1007, %v1046
    %1049 = vst.msk [vmem:[#allocation3 + $0x14] sm:$0x10] %vm1009, %v1046
    %1050 = vst.msk [vmem:[#allocation3 + $0x13] sm:$0x40] %vm1011, %v1046
    %v1052 = vrot.slane %v1042, 1
    %v1054 = vmax.f32 %v1042, %v1052
    %1055 = vst.msk [vmem:[#allocation3 + $0x1a] sm:$0x1] %vm1005, %v1054
    %v1056 = vld [vmem:[#allocation2 + $0x4d] sm:$0xff]
    %v1057 = vld [vmem:[#allocation2 + $0x55] sm:$0x3]
    %v1058 = vld [vmem:[#allocation2 + $0x58] sm:$0xff]
    %v1059 = vld [vmem:[#allocation2 + $0x60] sm:$0x3]
    %v1060 = vmax.f32 %v1056, %v1058
    %v1061 = vmax.f32 %v1057, %v1059
    %v1063 = vrot.slane %v1060, 1
    %v1065 = vmax.f32 %v1060, %v1063
    %1066 = vst.msk [vmem:[#allocation3 + $0x2b] sm:$0x1] %vm1005, %v1065
    %1067 = vst.msk [vmem:[#allocation3 + $0x2a] sm:$0x4] %vm1007, %v1065
    %1068 = vst.msk [vmem:[#allocation3 + $0x29] sm:$0x10] %vm1009, %v1065
    %1069 = vst.msk [vmem:[#allocation3 + $0x28] sm:$0x40] %vm1011, %v1065
    %v1071 = vrot.slane %v1061, 1
    %v1073 = vmax.f32 %v1061, %v1071
    %1074 = vst.msk [vmem:[#allocation3 + $0x2f] sm:$0x1] %vm1005, %v1073
    %v1075 = vld [vmem:[#allocation2 + $0x63] sm:$0xff]
    %v1076 = vld [vmem:[#allocation2 + $0x6b] sm:$0x3]
    %v1077 = vld [vmem:[#allocation2 + $0x6e] sm:$0xff]
    %v1078 = vld [vmem:[#allocation2 + $0x76] sm:$0x3]
    %v1079 = vmax.f32 %v1075, %v1077
    %v1080 = vmax.f32 %v1076, %v1078
    %v1082 = vrot.slane %v1079, 1
    %v1084 = vmax.f32 %v1079, %v1082
    %1085 = vst.msk [vmem:[#allocation3 + $0x32] sm:$0x1] %vm1005, %v1084
    %1086 = vst.msk [vmem:[#allocation3 + $0x31] sm:$0x4] %vm1007, %v1084
    %1087 = vst.msk [vmem:[#allocation3 + $0x30] sm:$0x10] %vm1009, %v1084
    %1088 = vst.msk [vmem:[#allocation3 + $0x2f] sm:$0x40] %vm1011, %v1084
    %v1090 = vrot.slane %v1080, 1
    %v1092 = vmax.f32 %v1080, %v1090
    %1093 = vst.msk [vmem:[#allocation3 + $0x36] sm:$0x1] %vm1005, %v1092
    %v1094 = vld [vmem:[#allocation2 + $0x79] sm:$0xff]
    %v1095 = vld [vmem:[#allocation2 + $0x81] sm:$0x3]
    %v1096 = vld [vmem:[#allocation2 + $0x84] sm:$0xff]
    %v1097 = vld [vmem:[#allocation2 + $0x8c] sm:$0x3]
    %v1098 = vmax.f32 %v1094, %v1096
    %v1099 = vmax.f32 %v1095, %v1097
    %v1101 = vrot.slane %v1098, 1
    %v1103 = vmax.f32 %v1098, %v1101
    %1104 = vst.msk [vmem:[#allocation3 + $0x39] sm:$0x1] %vm1005, %v1103
    %1105 = vst.msk [vmem:[#allocation3 + $0x38] sm:$0x4] %vm1007, %v1103
    %1106 = vst.msk [vmem:[#allocation3 + $0x37] sm:$0x10] %vm1009, %v1103
    %1107 = vst.msk [vmem:[#allocation3 + $0x36] sm:$0x40] %vm1011, %v1103
    %v1109 = vrot.slane %v1099, 1
    %v1111 = vmax.f32 %v1099, %v1109
    %1112 = vst.msk [vmem:[#allocation3 + $0x3d] sm:$0x1] %vm1005, %v1111
    %v1113 = vld [vmem:[#allocation3] sm:$0x1f]
    %vm1114 = vcmask 258048
    %1115 = vst.msk [vmem:[#allocation4] sm:$0x1f] %vm1114, %v1113
    %v1116 = vld [vmem:[#allocation3 + $0x1] sm:$0x1f]
    %1118 = vrot.lane.b32.xlu0 %v1116, 32
    %v1119 = vpop.permute.xlu0 %1118
    %vm1121 = vcmask 520448
    %1122 = vst.msk [vmem:[#allocation4] sm:$0x1f] %vm1121, %v1119
    %v1123 = vld [vmem:[#allocation3 + $0x2] sm:$0x1f]
    %1125 = vrot.lane.b32.xlu0 %v1123, 64
    %v1126 = vpop.permute.xlu0 %1125
    %vm1128 = vcmask 782848
    %1129 = vst.msk [vmem:[#allocation4] sm:$0x1f] %vm1128, %v1126
    %v1130 = vld [vmem:[#allocation3 + $0x7] sm:$0x1f]
    %1132 = vrot.lane.b32.xlu0 %v1130, 96
    %v1133 = vpop.permute.xlu0 %1132
    %vm1135 = vcmask 1045248
    %1136 = vst.msk [vmem:[#allocation4] sm:$0x1f] %vm1135, %v1133
    %v1137 = vld [vmem:[#allocation3 + $0x8] sm:$0x1f]
    %1138 = vst.msk [vmem:[#allocation4 + $0x8] sm:$0x1f] %vm1114, %v1137
    %v1139 = vld [vmem:[#allocation3 + $0x9] sm:$0x1f]
    %1141 = vrot.lane.b32.xlu0 %v1139, 32
    %v1142 = vpop.permute.xlu0 %1141
    %1144 = vst.msk [vmem:[#allocation4 + $0x8] sm:$0x1f] %vm1121, %v1142
    %v1145 = vld [vmem:[#allocation3 + $0xe] sm:$0x1f]
    %1147 = vrot.lane.b32.xlu0 %v1145, 64
    %v1148 = vpop.permute.xlu0 %1147
    %1150 = vst.msk [vmem:[#allocation4 + $0x8] sm:$0x1f] %vm1128, %v1148
    %v1151 = vld [vmem:[#allocation3 + $0xf] sm:$0x1f]
    %1153 = vrot.lane.b32.xlu0 %v1151, 96
    %v1154 = vpop.permute.xlu0 %1153
    %1156 = vst.msk [vmem:[#allocation4 + $0x8] sm:$0x1f] %vm1135, %v1154
    %v1157 = vld [vmem:[#allocation3 + $0x10] sm:$0x1f]
    %1158 = vst.msk [vmem:[#allocation4 + $0x10] sm:$0x1f] %vm1114, %v1157
    %v1159 = vld [vmem:[#allocation3 + $0x7] sm:$0x1f]
    %v1161 = vrot.slane %v1159, 3
    %vm1163 = vcmask 261125
    %1164 = vst.msk [vmem:[#allocation4] sm:$0xe0] %vm1163, %v1161
    %1165 = vst.msk [vmem:[#allocation4 + $0x18] sm:$0x3] %vm993, %v1161
    %v1166 = vld [vmem:[#allocation3 + $0x8] sm:$0x1f]
    %v1168 = vrot.slane %v1166, 3
    %1169 = vrot.lane.b32.xlu0 %v1168, 32
    %v1170 = vpop.permute.xlu0 %1169
    %vm1172 = vcmask 523525
    %1173 = vst.msk [vmem:[#allocation4] sm:$0xe0] %vm1172, %v1170
    %vm1174 = vcmask 517376
    %1175 = vst.msk [vmem:[#allocation4 + $0x18] sm:$0x3] %vm1174, %v1170
    %v1176 = vld [vmem:[#allocation3 + $0x9] sm:$0x1f]
    %v1178 = vrot.slane %v1176, 3
    %1179 = vrot.lane.b32.xlu0 %v1178, 64
    %v1180 = vpop.permute.xlu0 %1179
    %vm1182 = vcmask 785925
    %1183 = vst.msk [vmem:[#allocation4] sm:$0xe0] %vm1182, %v1180
    %vm1184 = vcmask 779776
    %1185 = vst.msk [vmem:[#allocation4 + $0x18] sm:$0x3] %vm1184, %v1180
    %v1186 = vld [vmem:[#allocation3 + $0xe] sm:$0x1f]
    %v1188 = vrot.slane %v1186, 3
    %1189 = vrot.lane.b32.xlu0 %v1188, 96
    %v1190 = vpop.permute.xlu0 %1189
    %vm1192 = vcmask 1048325
    %1193 = vst.msk [vmem:[#allocation4] sm:$0xe0] %vm1192, %v1190
    %vm1194 = vcmask 1042176
    %1195 = vst.msk [vmem:[#allocation4 + $0x18] sm:$0x3] %vm1194, %v1190
    %v1196 = vld [vmem:[#allocation3 + $0xf] sm:$0x1f]
    %v1198 = vrot.slane %v1196, 3
    %1200 = vst.msk [vmem:[#allocation4 + $0x8] sm:$0xe0] %vm1163, %v1198
    %1201 = vst.msk [vmem:[#allocation4 + $0x20] sm:$0x3] %vm993, %v1198
    %v1202 = vld [vmem:[#allocation3 + $0x10] sm:$0x1f]
    %v1204 = vrot.slane %v1202, 3
    %1205 = vrot.lane.b32.xlu0 %v1204, 32
    %v1206 = vpop.permute.xlu0 %1205
    %1208 = vst.msk [vmem:[#allocation4 + $0x8] sm:$0xe0] %vm1172, %v1206
    %1209 = vst.msk [vmem:[#allocation4 + $0x20] sm:$0x3] %vm1174, %v1206
    %v1210 = vld [vmem:[#allocation3 + $0x15] sm:$0x1f]
    %v1212 = vrot.slane %v1210, 3
    %1213 = vrot.lane.b32.xlu0 %v1212, 64
    %v1214 = vpop.permute.xlu0 %1213
    %1216 = vst.msk [vmem:[#allocation4 + $0x8] sm:$0xe0] %vm1182, %v1214
    %1217 = vst.msk [vmem:[#allocation4 + $0x20] sm:$0x3] %vm1184, %v1214
    %v1218 = vld [vmem:[#allocation3 + $0x16] sm:$0x1f]
    %v1220 = vrot.slane %v1218, 3
    %1221 = vrot.lane.b32.xlu0 %v1220, 96
    %v1222 = vpop.permute.xlu0 %1221
    %1224 = vst.msk [vmem:[#allocation4 + $0x8] sm:$0xe0] %vm1192, %v1222
    %1225 = vst.msk [vmem:[#allocation4 + $0x20] sm:$0x3] %vm1194, %v1222
    %v1226 = vld [vmem:[#allocation3 + $0x17] sm:$0x1f]
    %v1228 = vrot.slane %v1226, 3
    %1230 = vst.msk [vmem:[#allocation4 + $0x10] sm:$0xe0] %vm1163, %v1228
    %1231 = vst.msk [vmem:[#allocation4 + $0x28] sm:$0x3] %vm993, %v1228
    %v1232 = vld [vmem:[#allocation3 + $0xe] sm:$0x1f]
    %v1234 = vrot.slane %v1232, 6
    %vm1236 = vcmask 260098
    %1237 = vst.msk [vmem:[#allocation4 + $0x18] sm:$0x7c] %vm1236, %v1234
    %v1238 = vld [vmem:[#allocation3 + $0xf] sm:$0x1f]
    %v1240 = vrot.slane %v1238, 6
    %1241 = vrot.lane.b32.xlu0 %v1240, 32
    %v1242 = vpop.permute.xlu0 %1241
    %vm1244 = vcmask 522498
    %1245 = vst.msk [vmem:[#allocation4 + $0x18] sm:$0x7c] %vm1244, %v1242
    %v1246 = vld [vmem:[#allocation3 + $0x10] sm:$0x1f]
    %v1248 = vrot.slane %v1246, 6
    %1249 = vrot.lane.b32.xlu0 %v1248, 64
    %v1250 = vpop.permute.xlu0 %1249
    %vm1252 = vcmask 784898
    %1253 = vst.msk [vmem:[#allocation4 + $0x18] sm:$0x7c] %vm1252, %v1250
    %v1254 = vld [vmem:[#allocation3 + $0x15] sm:$0x1f]
    %v1256 = vrot.slane %v1254, 6
    %1257 = vrot.lane.b32.xlu0 %v1256, 96
    %v1258 = vpop.permute.xlu0 %1257
    %vm1260 = vcmask 1047298
    %1261 = vst.msk [vmem:[#allocation4 + $0x18] sm:$0x7c] %vm1260, %v1258
    %v1262 = vld [vmem:[#allocation3 + $0x16] sm:$0x1f]
    %v1264 = vrot.slane %v1262, 6
    %1266 = vst.msk [vmem:[#allocation4 + $0x20] sm:$0x7c] %vm1236, %v1264
    %v1267 = vld [vmem:[#allocation3 + $0x17] sm:$0x1f]
    %v1269 = vrot.slane %v1267, 6
    %1270 = vrot.lane.b32.xlu0 %v1269, 32
    %v1271 = vpop.permute.xlu0 %1270
    %1273 = vst.msk [vmem:[#allocation4 + $0x20] sm:$0x7c] %vm1244, %v1271
    %v1274 = vld [vmem:[#allocation3 + $0x1c] sm:$0x1f]
    %v1276 = vrot.slane %v1274, 6
    %1277 = vrot.lane.b32.xlu0 %v1276, 64
    %v1278 = vpop.permute.xlu0 %1277
    %1280 = vst.msk [vmem:[#allocation4 + $0x20] sm:$0x7c] %vm1252, %v1278
    %v1281 = vld [vmem:[#allocation3 + $0x1d] sm:$0x1f]
    %v1283 = vrot.slane %v1281, 6
    %1284 = vrot.lane.b32.xlu0 %v1283, 96
    %v1285 = vpop.permute.xlu0 %1284
    %1287 = vst.msk [vmem:[#allocation4 + $0x20] sm:$0x7c] %vm1260, %v1285
    %v1288 = vld [vmem:[#allocation3 + $0x1e] sm:$0x1f]
    %v1290 = vrot.slane %v1288, 6
    %1292 = vst.msk [vmem:[#allocation4 + $0x28] sm:$0x7c] %vm1236, %v1290
    %v1293 = vld [vmem:[#allocation3 + $0x23] sm:$0x1f]
    %v1295 = vrot.slane %v1293, 1
    %vm1297 = vcmask 261127
    %1298 = vst.msk [vmem:[#allocation4 + $0x18] sm:$0x80] %vm1297, %v1295
    %vm1299 = vcmask 257024
    %1300 = vst.msk [vmem:[#allocation4 + $0x30] sm:$0xf] %vm1299, %v1295
    %v1301 = vld [vmem:[#allocation3 + $0x24] sm:$0x1f]
    %v1303 = vrot.slane %v1301, 1
    %1304 = vrot.lane.b32.xlu0 %v1303, 32
    %v1305 = vpop.permute.xlu0 %1304
    %vm1307 = vcmask 523527
    %1308 = vst.msk [vmem:[#allocation4 + $0x18] sm:$0x80] %vm1307, %v1305
    %vm1309 = vcmask 519424
    %1310 = vst.msk [vmem:[#allocation4 + $0x30] sm:$0xf] %vm1309, %v1305
    %v1311 = vld [vmem:[#allocation3 + $0x25] sm:$0x1f]
    %v1313 = vrot.slane %v1311, 1
    %1314 = vrot.lane.b32.xlu0 %v1313, 64
    %v1315 = vpop.permute.xlu0 %1314
    %vm1317 = vcmask 785927
    %1318 = vst.msk [vmem:[#allocation4 + $0x18] sm:$0x80] %vm1317, %v1315
    %vm1319 = vcmask 781824
    %1320 = vst.msk [vmem:[#allocation4 + $0x30] sm:$0xf] %vm1319, %v1315
    %v1321 = vld [vmem:[#allocation3 + $0x2a] sm:$0x1f]
    %v1323 = vrot.slane %v1321, 1
    %1324 = vrot.lane.b32.xlu0 %v1323, 96
    %v1325 = vpop.permute.xlu0 %1324
    %vm1327 = vcmask 1048327
    %1328 = vst.msk [vmem:[#allocation4 + $0x18] sm:$0x80] %vm1327, %v1325
    %vm1329 = vcmask 1044224
    %1330 = vst.msk [vmem:[#allocation4 + $0x30] sm:$0xf] %vm1329, %v1325
    %v1331 = vld [vmem:[#allocation3 + $0x2b] sm:$0x1f]
    %v1333 = vrot.slane %v1331, 1
    %1335 = vst.msk [vmem:[#allocation4 + $0x20] sm:$0x80] %vm1297, %v1333
    %1336 = vst.msk [vmem:[#allocation4 + $0x38] sm:$0xf] %vm1299, %v1333
    %v1337 = vld [vmem:[#allocation3 + $0x2c] sm:$0x1f]
    %v1339 = vrot.slane %v1337, 1
    %1340 = vrot.lane.b32.xlu0 %v1339, 32
    %v1341 = vpop.permute.xlu0 %1340
    %1343 = vst.msk [vmem:[#allocation4 + $0x20] sm:$0x80] %vm1307, %v1341
    %1344 = vst.msk [vmem:[#allocation4 + $0x38] sm:$0xf] %vm1309, %v1341
    %v1345 = vld [vmem:[#allocation3 + $0x31] sm:$0x1f]
    %v1347 = vrot.slane %v1345, 1
    %1348 = vrot.lane.b32.xlu0 %v1347, 64
    %v1349 = vpop.permute.xlu0 %1348
    %1351 = vst.msk [vmem:[#allocation4 + $0x20] sm:$0x80] %vm1317, %v1349
    %1352 = vst.msk [vmem:[#allocation4 + $0x38] sm:$0xf] %vm1319, %v1349
    %v1353 = vld [vmem:[#allocation3 + $0x32] sm:$0x1f]
    %v1355 = vrot.slane %v1353, 1
    %1356 = vrot.lane.b32.xlu0 %v1355, 96
    %v1357 = vpop.permute.xlu0 %1356
    %1359 = vst.msk [vmem:[#allocation4 + $0x20] sm:$0x80] %vm1327, %v1357
    %1360 = vst.msk [vmem:[#allocation4 + $0x38] sm:$0xf] %vm1329, %v1357
    %v1361 = vld [vmem:[#allocation3 + $0x33] sm:$0x1f]
    %v1363 = vrot.slane %v1361, 1
    %1365 = vst.msk [vmem:[#allocation4 + $0x28] sm:$0x80] %vm1297, %v1363
    %1366 = vst.msk [vmem:[#allocation4 + $0x40] sm:$0xf] %vm1299, %v1363
    %v1367 = vld [vmem:[#allocation3 + $0x2a] sm:$0x1f]
    %v1369 = vrot.slane %v1367, 4
    %vm1371 = vcmask 261124
    %1372 = vst.msk [vmem:[#allocation4 + $0x30] sm:$0xf0] %vm1371, %v1369
    %1373 = vst.msk [vmem:[#allocation4 + $0x48] sm:$0x1] %vm1005, %v1369
    %v1374 = vld [vmem:[#allocation3 + $0x2b] sm:$0x1f]
    %v1376 = vrot.slane %v1374, 4
    %1377 = vrot.lane.b32.xlu0 %v1376, 32
    %v1378 = vpop.permute.xlu0 %1377
    %vm1380 = vcmask 523524
    %1381 = vst.msk [vmem:[#allocation4 + $0x30] sm:$0xf0] %vm1380, %v1378
    %vm1382 = vcmask 516352
    %1383 = vst.msk [vmem:[#allocation4 + $0x48] sm:$0x1] %vm1382, %v1378
    %v1384 = vld [vmem:[#allocation3 + $0x2c] sm:$0x1f]
    %v1386 = vrot.slane %v1384, 4
    %1387 = vrot.lane.b32.xlu0 %v1386, 64
    %v1388 = vpop.permute.xlu0 %1387
    %vm1390 = vcmask 785924
    %1391 = vst.msk [vmem:[#allocation4 + $0x30] sm:$0xf0] %vm1390, %v1388
    %vm1392 = vcmask 778752
    %1393 = vst.msk [vmem:[#allocation4 + $0x48] sm:$0x1] %vm1392, %v1388
    %v1394 = vld [vmem:[#allocation3 + $0x31] sm:$0x1f]
    %v1396 = vrot.slane %v1394, 4
    %1397 = vrot.lane.b32.xlu0 %v1396, 96
    %v1398 = vpop.permute.xlu0 %1397
    %vm1400 = vcmask 1048324
    %1401 = vst.msk [vmem:[#allocation4 + $0x30] sm:$0xf0] %vm1400, %v1398
    %vm1402 = vcmask 1041152
    %1403 = vst.msk [vmem:[#allocation4 + $0x48] sm:$0x1] %vm1402, %v1398
    %v1404 = vld [vmem:[#allocation3 + $0x32] sm:$0x1f]
    %v1406 = vrot.slane %v1404, 4
    %1408 = vst.msk [vmem:[#allocation4 + $0x38] sm:$0xf0] %vm1371, %v1406
    %1409 = vst.msk [vmem:[#allocation4 + $0x50] sm:$0x1] %vm1005, %v1406
    %v1410 = vld [vmem:[#allocation3 + $0x33] sm:$0x1f]
    %v1412 = vrot.slane %v1410, 4
    %1413 = vrot.lane.b32.xlu0 %v1412, 32
    %v1414 = vpop.permute.xlu0 %1413
    %1416 = vst.msk [vmem:[#allocation4 + $0x38] sm:$0xf0] %vm1380, %v1414
    %1417 = vst.msk [vmem:[#allocation4 + $0x50] sm:$0x1] %vm1382, %v1414
    %v1418 = vld [vmem:[#allocation3 + $0x38] sm:$0x1f]
    %v1420 = vrot.slane %v1418, 4
    %1421 = vrot.lane.b32.xlu0 %v1420, 64
    %v1422 = vpop.permute.xlu0 %1421
    %1424 = vst.msk [vmem:[#allocation4 + $0x38] sm:$0xf0] %vm1390, %v1422
    %1425 = vst.msk [vmem:[#allocation4 + $0x50] sm:$0x1] %vm1392, %v1422
    %v1426 = vld [vmem:[#allocation3 + $0x39] sm:$0x1f]
    %v1428 = vrot.slane %v1426, 4
    %1429 = vrot.lane.b32.xlu0 %v1428, 96
    %v1430 = vpop.permute.xlu0 %1429
    %1432 = vst.msk [vmem:[#allocation4 + $0x38] sm:$0xf0] %vm1400, %v1430
    %1433 = vst.msk [vmem:[#allocation4 + $0x50] sm:$0x1] %vm1402, %v1430
    %v1434 = vld [vmem:[#allocation3 + $0x3a] sm:$0x1f]
    %v1436 = vrot.slane %v1434, 4
    %1438 = vst.msk [vmem:[#allocation4 + $0x40] sm:$0xf0] %vm1371, %v1436
    %1439 = vst.msk [vmem:[#allocation4 + $0x58] sm:$0x1] %vm1005, %v1436
    %v1440 = vld [vmem:[#allocation3 + $0x31] sm:$0x1f]
    %v1442 = vrot.slane %v1440, 7
    %vm1444 = vcmask 259073
    %1445 = vst.msk [vmem:[#allocation4 + $0x48] sm:$0x3e] %vm1444, %v1442
    %v1446 = vld [vmem:[#allocation3 + $0x32] sm:$0x1f]
    %v1448 = vrot.slane %v1446, 7
    %1449 = vrot.lane.b32.xlu0 %v1448, 32
    %v1450 = vpop.permute.xlu0 %1449
    %vm1452 = vcmask 521473
    %1453 = vst.msk [vmem:[#allocation4 + $0x48] sm:$0x3e] %vm1452, %v1450
    %v1454 = vld [vmem:[#allocation3 + $0x33] sm:$0x1f]
    %v1456 = vrot.slane %v1454, 7
    %1457 = vrot.lane.b32.xlu0 %v1456, 64
    %v1458 = vpop.permute.xlu0 %1457
    %vm1460 = vcmask 783873
    %1461 = vst.msk [vmem:[#allocation4 + $0x48] sm:$0x3e] %vm1460, %v1458
    %v1462 = vld [vmem:[#allocation3 + $0x38] sm:$0x1f]
    %v1464 = vrot.slane %v1462, 7
    %1465 = vrot.lane.b32.xlu0 %v1464, 96
    %v1466 = vpop.permute.xlu0 %1465
    %vm1468 = vcmask 1046273
    %1469 = vst.msk [vmem:[#allocation4 + $0x48] sm:$0x3e] %vm1468, %v1466
    %v1470 = vld [vmem:[#allocation3 + $0x39] sm:$0x1f]
    %v1472 = vrot.slane %v1470, 7
    %1474 = vst.msk [vmem:[#allocation4 + $0x50] sm:$0x3e] %vm1444, %v1472
    %v1475 = vld [vmem:[#allocation3 + $0x3a] sm:$0x1f]
    %v1477 = vrot.slane %v1475, 7
    %1478 = vrot.lane.b32.xlu0 %v1477, 32
    %v1479 = vpop.permute.xlu0 %1478
    %1481 = vst.msk [vmem:[#allocation4 + $0x50] sm:$0x3e] %vm1452, %v1479
    %v1482 = vld [vmem:[#allocation3 + $0x3f] sm:$0x1f]
    %v1484 = vrot.slane %v1482, 7
    %1485 = vrot.lane.b32.xlu0 %v1484, 64
    %v1486 = vpop.permute.xlu0 %1485
    %1488 = vst.msk [vmem:[#allocation4 + $0x50] sm:$0x3e] %vm1460, %v1486
    %v1489 = vld [vmem:[#allocation3 + $0x40] sm:$0x1f]
    %v1491 = vrot.slane %v1489, 7
    %1492 = vrot.lane.b32.xlu0 %v1491, 96
    %v1493 = vpop.permute.xlu0 %1492
    %1495 = vst.msk [vmem:[#allocation4 + $0x50] sm:$0x3e] %vm1468, %v1493
    %v1496 = vld [vmem:[#allocation3 + $0x41] sm:$0x1f]
    %v1498 = vrot.slane %v1496, 7
    %1500 = vst.msk [vmem:[#allocation4 + $0x58] sm:$0x3e] %vm1444, %v1498
    %v1501 = vld [vmem:[#allocation4] sm:$0xff]
    %v1502 = vld [vmem:[#allocation4 + $0x8] sm:$0xff]
    %v1503 = vld [vmem:[#allocation4 + $0x10] sm:$0xff]
    %v1504 = vld [vmem:[#allocation4 + $0x18] sm:$0xff]
    %v1505 = vld [vmem:[#allocation4 + $0x20] sm:$0xff]
    %v1506 = vld [vmem:[#allocation4 + $0x28] sm:$0xff]
    %v1507 = vld [vmem:[#allocation4 + $0x30] sm:$0xff]
    %v1508 = vld [vmem:[#allocation4 + $0x38] sm:$0xff]
    %v1509 = vld [vmem:[#allocation4 + $0x40] sm:$0xff]
    %v1510 = vld [vmem:[#allocation4 + $0x48] sm:$0x3f]
    %v1511 = vld [vmem:[#allocation4 + $0x50] sm:$0x3f]
    %v1512 = vld [vmem:[#allocation4 + $0x58] sm:$0x3f]
    %v1513 = vpack.c.bf16 %v1504, %v1501
    %v1514 = vpack.c.bf16 %v1505, %v1502
    %v1515 = vpack.c.bf16 %v1506, %v1503
    %v1516 = vpack.c.bf16 %v1510, %v1507
    %v1517 = vpack.c.bf16 %v1511, %v1508
    %v1518 = vpack.c.bf16 %v1512, %v1509
    %v1519 = vld [vmem:[#allocation18] sm:$0xf]
    %v1520 = vld [vmem:[#allocation18 + $0x4] sm:$0xf]
    %v1521 = vld [vmem:[#allocation18 + $0x8] sm:$0xf]
    %v1522 = vld [vmem:[#allocation18 + $0xc] sm:$0xf]
    %v1523 = vld [vmem:[#allocation18 + $0x10] sm:$0xf]
    %v1524 = vld [vmem:[#allocation18 + $0x14] sm:$0xf]
    %v1525 = vld [vmem:[#allocation18 + $0x18] sm:$0xf]
    %v1526 = vld [vmem:[#allocation18 + $0x1c] sm:$0xf]
    %v1527 = vld [vmem:[#allocation18 + $0x20] sm:$0xf]
    %v1528 = vld [vmem:[#allocation18 + $0x24] sm:$0xf]
    %v1529 = vld [vmem:[#allocation18 + $0x28] sm:$0xf]
    %v1530 = vld [vmem:[#allocation18 + $0x2c] sm:$0xf]
    %v1531 = vld [vmem:[#allocation18 + $0x30] sm:$0xf]
    %v1532 = vld [vmem:[#allocation18 + $0x34] sm:$0xf]
    %v1533 = vld [vmem:[#allocation18 + $0x38] sm:$0xf]
    %v1534 = vld [vmem:[#allocation18 + $0x3c] sm:$0xf]
    %v1535 = vld [vmem:[#allocation18 + $0x40] sm:$0xf]
    %v1536 = vld [vmem:[#allocation18 + $0x44] sm:$0xf]
    %v1537 = vld [vmem:[#allocation18 + $0x48] sm:$0xf]
    %v1538 = vld [vmem:[#allocation18 + $0x4c] sm:$0xf]
    %v1539 = vld [vmem:[#allocation18 + $0x50] sm:$0xf]
    %v1540 = vld [vmem:[#allocation18 + $0x54] sm:$0xf]
    %v1541 = vld [vmem:[#allocation18 + $0x58] sm:$0xf]
    %v1542 = vld [vmem:[#allocation18 + $0x5c] sm:$0xf]
    %v1543 = vld [vmem:[#allocation18 + $0x60] sm:$0xf]
    %v1544 = vld [vmem:[#allocation18 + $0x64] sm:$0xf]
    %v1545 = vld [vmem:[#allocation18 + $0x68] sm:$0xf]
    %v1546 = vld [vmem:[#allocation18 + $0x6c] sm:$0xf]
    %v1547 = vld [vmem:[#allocation18 + $0x70] sm:$0xf]
    %v1548 = vld [vmem:[#allocation18 + $0x74] sm:$0xf]
    %v1549 = vld [vmem:[#allocation18 + $0x78] sm:$0xf]
    %v1550 = vld [vmem:[#allocation18 + $0x7c] sm:$0xf]
    %v1551 = vld [vmem:[#allocation18 + $0x80] sm:$0xf]
    %v1552 = vld [vmem:[#allocation18 + $0x84] sm:$0xf]
    %v1553 = vld [vmem:[#allocation18 + $0x88] sm:$0xf]
    %v1554 = vld [vmem:[#allocation18 + $0x8c] sm:$0xf]
    %v1555 = vld [vmem:[#allocation19] sm:$0x1]
    %v1557 = vlaneseq
    %v1558 = vshrl.u32 %v1557, 7
    %v1559 = vsub.s32 0, %v1558
    %v1560 = vrot.slane %v1555, %v1559
    %v1598 = vunpack.c.l.b16 %v1519
    %v1599 = vunpack.c.l.b16 %v1520
    %v1600 = vunpack.c.l.b16 %v1521
    %v1601 = vunpack.c.l.b16 %v1522
    %v1602 = vunpack.c.l.b16 %v1523
    %v1603 = vunpack.c.l.b16 %v1524
    %v1604 = vunpack.c.l.b16 %v1525
    %v1605 = vunpack.c.l.b16 %v1526
    %v1606 = vunpack.c.l.b16 %v1527
    %v1607 = vunpack.c.l.b16 %v1528
    %v1608 = vunpack.c.l.b16 %v1529
    %v1609 = vunpack.c.l.b16 %v1530
    %v1610 = vunpack.c.l.b16 %v1531
    %v1611 = vunpack.c.l.b16 %v1532
    %v1612 = vunpack.c.l.b16 %v1533
    %v1613 = vunpack.c.l.b16 %v1534
    %v1614 = vunpack.c.l.b16 %v1535
    %v1615 = vunpack.c.l.b16 %v1536
    %v1616 = vunpack.c.l.b16 %v1537
    %v1617 = vunpack.c.l.b16 %v1538
    %v1618 = vunpack.c.l.b16 %v1539
    %v1619 = vunpack.c.l.b16 %v1540
    %v1620 = vunpack.c.l.b16 %v1541
    %v1621 = vunpack.c.l.b16 %v1542
    %v1622 = vunpack.c.l.b16 %v1543
    %v1623 = vunpack.c.l.b16 %v1544
    %v1624 = vunpack.c.l.b16 %v1545
    %v1625 = vunpack.c.l.b16 %v1546
    %v1626 = vunpack.c.l.b16 %v1547
    %v1627 = vunpack.c.l.b16 %v1548
    %v1628 = vunpack.c.l.b16 %v1549
    %v1629 = vunpack.c.l.b16 %v1550
    %v1630 = vunpack.c.l.b16 %v1551
    %v1631 = vunpack.c.l.b16 %v1552
    %v1632 = vunpack.c.l.b16 %v1553
    %v1633 = vunpack.c.l.b16 %v1554
    %v1634 = vpack.c.b16 %v1599, %v1598
    %v1635 = vpack.c.b16 %v1601, %v1600
    %v1636 = vpack.c.b16 %v1603, %v1602
    %v1637 = vpack.c.b16 %v1605, %v1604
    %v1638 = vpack.c.b16 %v1607, %v1606
    %v1639 = vpack.c.b16 %v1609, %v1608
    %v1640 = vpack.c.b16 %v1611, %v1610
    %v1641 = vpack.c.b16 %v1613, %v1612
    %v1642 = vpack.c.b16 %v1615, %v1614
    %v1643 = vpack.c.b16 %v1617, %v1616
    %v1644 = vpack.c.b16 %v1619, %v1618
    %v1645 = vpack.c.b16 %v1621, %v1620
    %v1646 = vpack.c.b16 %v1623, %v1622
    %v1647 = vpack.c.b16 %v1625, %v1624
    %v1648 = vpack.c.b16 %v1627, %v1626
    %v1649 = vpack.c.b16 %v1629, %v1628
    %v1650 = vpack.c.b16 %v1631, %v1630
    %v1651 = vpack.c.b16 %v1633, %v1632
    %v1671 = vsel %vm390, %v1515, 0
    %v1674 = vsel %vm390, %v1518, 0
    %1676 = vmatprep.subr.bf16.mxu0 0
    %1677 = vmatpush1.bf16.msra.mxu0 %v1634
    %1678 = vmatprep.subr.bf16.mxu0 0
    %1679 = vmatpush1.bf16.msra.mxu0 %v1635
    %1680 = vmatprep.subr.bf16.mxu0 0
    %1681 = vmatpush1.bf16.msra.mxu0 %v1636
    %1682 = vmatprep.subr.bf16.mxu0 0
    %1683 = vmatpush1.bf16.msra.mxu0 %v1637
    %1684 = vmatprep.subr.bf16.mxu0 0
    %1685 = vmatpush1.bf16.msra.mxu0 %v1638
    %1686 = vmatprep.subr.bf16.mxu0 0
    %1687 = vmatpush1.bf16.msra.mxu0 %v1639
    %1688 = vmatprep.subr.bf16.mxu0 0
    %1689 = vmatpush1.bf16.msra.mxu0 %v1640
    %1690 = vmatprep.subr.bf16.mxu0 0
    %1691 = vmatpush1.bf16.msra.mxu0 %v1641
    %1692 = vmatprep.subr.bf16.mxu0 0
    %1693 = vmatpush1.bf16.msra.mxu0 %v1642
    %1694 = vmatprep.subr.bf16.mxu0 0
    %1695 = vmatpush1.bf16.msra.mxu0 %v1643
    %1696 = vmatprep.subr.bf16.mxu0 0
    %1697 = vmatpush1.bf16.msra.mxu0 %v1644
    %1698 = vmatprep.subr.bf16.mxu0 0
    %1699 = vmatpush1.bf16.msra.mxu0 %v1645
    %1700 = vmatprep.subr.bf16.mxu0 0
    %1701 = vmatpush1.bf16.msra.mxu0 %v1646
    %1702 = vmatprep.subr.bf16.mxu0 0
    %1703 = vmatpush1.bf16.msra.mxu0 %v1647
    %1704 = vmatprep.subr.bf16.mxu0 0
    %1705 = vmatpush1.bf16.msra.mxu0 %v1648
    %1706 = vmatprep.subr.bf16.mxu0 0
    %1707 = vmatpush1.bf16.msra.mxu0 %v1649
    %1708 = vmatprep.mubr.bf16.mxu0 %v1514
    %1709 = vmatmul.mubr.bf16.gmra.mrb[0].mxu0 %v1513
    %v1710 = vpop.f32.mrb[0].mxu0
    %v1711 = vadd.f32 %v1560, %v1710
    %v1712 = vpop.f32.mrb[0].mxu0
    %v1713 = vpop.f32.mrb[0].mxu0
    %v1714 = vadd.f32 %v1560, %v1713
    %v1715 = vpop.f32.mrb[0].mxu0
    %1716 = vmatprep.mubr.bf16.mxu0 %v1517
    %1717 = vmatmul.mubr.bf16.gmra.mrb[0].mxu0 %v1516
    %v1718 = vpop.f32.mrb[0].mxu0
    %v1719 = vadd.f32 %v1560, %v1718
    %v1720 = vpop.f32.mrb[0].mxu0
    %v1721 = vpop.f32.mrb[0].mxu0
    %v1722 = vadd.f32 %v1560, %v1721
    %v1723 = vpop.f32.mrb[0].mxu0
    %1724 = vdwg.mxu0
    %1725 = vmatprep.subr.bf16.mxu0 0
    %1726 = vmatpush1.bf16.msra.mxu0 %v1650
    %1727 = vmatprep.subr.bf16.mxu0 0
    %1728 = vmatpush1.bf16.msra.mxu0 %v1651
    %1729 = vmatprep.subr.bf16.mxu0 0
    %1730 = vmatpush1.bf16.msra.mxu0 0
    %1731 = vmatprep.subr.bf16.mxu0 0
    %1732 = vmatpush1.bf16.msra.mxu0 0
    %1733 = vmatprep.subr.bf16.mxu0 0
    %1734 = vmatpush1.bf16.msra.mxu0 0
    %1735 = vmatprep.subr.bf16.mxu0 0
    %1736 = vmatpush1.bf16.msra.mxu0 0
    %1737 = vmatprep.subr.bf16.mxu0 0
    %1738 = vmatpush1.bf16.msra.mxu0 0
    %1739 = vmatprep.subr.bf16.mxu0 0
    %1740 = vmatpush1.bf16.msra.mxu0 0
    %1741 = vmatprep.subr.bf16.mxu0 0
    %1742 = vmatpush1.bf16.msra.mxu0 0
    %1743 = vmatprep.subr.bf16.mxu0 0
    %1744 = vmatpush1.bf16.msra.mxu0 0
    %1745 = vmatprep.subr.bf16.mxu0 0
    %1746 = vmatpush1.bf16.msra.mxu0 0
    %1747 = vmatprep.subr.bf16.mxu0 0
    %1748 = vmatpush1.bf16.msra.mxu0 0
    %1749 = vmatprep.subr.bf16.mxu0 0
    %1750 = vmatpush1.bf16.msra.mxu0 0
    %1751 = vmatprep.subr.bf16.mxu0 0
    %1752 = vmatpush1.bf16.msra.mxu0 0
    %1753 = vmatprep.subr.bf16.mxu0 0
    %1754 = vmatpush1.bf16.msra.mxu0 0
    %1755 = vmatprep.subr.bf16.mxu0 0
    %1756 = vmatpush1.bf16.msra.mxu0 0
    %1757 = vmatprep.mubr.bf16.mxu0 0
    %1758 = vmatmul.mubr.bf16.gmra.mrb[0].mxu0 %v1671
    %v1759 = vpop.f32.mrb[0].mxu0
    %v1760 = vadd.f32 %v1711, %v1759
    %v1761 = vpop.f32.mrb[0].mxu0
    %v1762 = vpop.f32.mrb[0].mxu0
    %v1763 = vadd.f32 %v1714, %v1762
    %v1764 = vpop.f32.mrb[0].mxu0
    %1765 = vmatprep.mubr.bf16.mxu0 0
    %1766 = vmatmul.mubr.bf16.gmra.mrb[0].mxu0 %v1674
    %v1767 = vpop.f32.mrb[0].mxu0
    %v1768 = vadd.f32 %v1719, %v1767
    %v1769 = vpop.f32.mrb[0].mxu0
    %v1770 = vpop.f32.mrb[0].mxu0
    %v1771 = vadd.f32 %v1722, %v1770
    %v1772 = vpop.f32.mrb[0].mxu0
    %1773 = vdwg.mxu0
    %v1774 = vmax.f32 %v1760, 0.0
    %v1775 = vmax.f32 %v1763, 0.0
    %v1776 = vmax.f32 %v1768, 0.0
    %v1777 = vmax.f32 %v1771, 0.0
    %1778 = vst [vmem:[#allocation5 + $0x8] sm:$0x1f] %v1774
    %1779 = vst [vmem:[#allocation5 + $0xa] sm:$0xe0] %v1774
    %1780 = vst [vmem:[#allocation5 + $0x12] sm:$0x3] %v1775
    %1781 = vst [vmem:[#allocation5 + $0x14] sm:$0x7c] %v1775
    %1782 = vst [vmem:[#allocation5 + $0x24] sm:$0x80] %v1775
    %1783 = vst [vmem:[#allocation5 + $0x2c] sm:$0xf] %v1776
    %1784 = vst [vmem:[#allocation5 + $0x2e] sm:$0xf0] %v1776
    %1785 = vst [vmem:[#allocation5 + $0x36] sm:$0x1] %v1777
    %1786 = vst [vmem:[#allocation5 + $0x38] sm:$0x3e] %v1777
    %v1787 = vld [vmem:[#allocation5] sm:$0x3f]
    %1788 = vst [vmem:[#allocation6] sm:$0x3f] %v1787
    %v1789 = vld [vmem:[#allocation5 + $0x1] sm:$0x3f]
    %1790 = vst [vmem:[#allocation6 + $0x8] sm:$0x3f] %v1789
    %v1791 = vld [vmem:[#allocation5 + $0x7] sm:$0x3f]
    %1792 = vst [vmem:[#allocation6 + $0x10] sm:$0x3f] %v1791
    %v1793 = vld [vmem:[#allocation5 + $0x8] sm:$0x3f]
    %1794 = vst [vmem:[#allocation6 + $0x18] sm:$0x3f] %v1793
    %v1795 = vld [vmem:[#allocation5 + $0x7] sm:$0x3f]
    %v1797 = vrot.slane %v1795, 2
    %1799 = vst [vmem:[#allocation6] sm:$0xc0] %v1797
    %1800 = vst [vmem:[#allocation6 + $0x20] sm:$0xf] %v1797
    %v1801 = vld [vmem:[#allocation5 + $0x8] sm:$0x3f]
    %v1803 = vrot.slane %v1801, 2
    %1805 = vst [vmem:[#allocation6 + $0x8] sm:$0xc0] %v1803
    %1806 = vst [vmem:[#allocation6 + $0x28] sm:$0xf] %v1803
    %v1807 = vld [vmem:[#allocation5 + $0xe] sm:$0x3f]
    %v1809 = vrot.slane %v1807, 2
    %1811 = vst [vmem:[#allocation6 + $0x10] sm:$0xc0] %v1809
    %1812 = vst [vmem:[#allocation6 + $0x30] sm:$0xf] %v1809
    %v1813 = vld [vmem:[#allocation5 + $0xf] sm:$0x3f]
    %v1815 = vrot.slane %v1813, 2
    %1817 = vst [vmem:[#allocation6 + $0x18] sm:$0xc0] %v1815
    %1818 = vst [vmem:[#allocation6 + $0x38] sm:$0xf] %v1815
    %v1819 = vld [vmem:[#allocation5 + $0xe] sm:$0x3f]
    %v1821 = vrot.slane %v1819, 4
    %1823 = vst [vmem:[#allocation6 + $0x20] sm:$0xf0] %v1821
    %1824 = vst [vmem:[#allocation6 + $0x40] sm:$0x3] %v1821
    %v1825 = vld [vmem:[#allocation5 + $0xf] sm:$0x3f]
    %v1827 = vrot.slane %v1825, 4
    %1829 = vst [vmem:[#allocation6 + $0x28] sm:$0xf0] %v1827
    %1830 = vst [vmem:[#allocation6 + $0x48] sm:$0x3] %v1827
    %v1831 = vld [vmem:[#allocation5 + $0x15] sm:$0x3f]
    %v1833 = vrot.slane %v1831, 4
    %1835 = vst [vmem:[#allocation6 + $0x30] sm:$0xf0] %v1833
    %1836 = vst [vmem:[#allocation6 + $0x50] sm:$0x3] %v1833
    %v1837 = vld [vmem:[#allocation5 + $0x16] sm:$0x3f]
    %v1839 = vrot.slane %v1837, 4
    %1841 = vst [vmem:[#allocation6 + $0x38] sm:$0xf0] %v1839
    %1842 = vst [vmem:[#allocation6 + $0x58] sm:$0x3] %v1839
    %v1843 = vld [vmem:[#allocation5 + $0x15] sm:$0x3f]
    %v1845 = vrot.slane %v1843, 6
    %1847 = vst [vmem:[#allocation6 + $0x40] sm:$0xfc] %v1845
    %v1848 = vld [vmem:[#allocation5 + $0x16] sm:$0x3f]
    %v1850 = vrot.slane %v1848, 6
    %1852 = vst [vmem:[#allocation6 + $0x48] sm:$0xfc] %v1850
    %v1853 = vld [vmem:[#allocation5 + $0x1c] sm:$0x3f]
    %v1855 = vrot.slane %v1853, 6
    %1857 = vst [vmem:[#allocation6 + $0x50] sm:$0xfc] %v1855
    %v1858 = vld [vmem:[#allocation5 + $0x1d] sm:$0x3f]
    %v1860 = vrot.slane %v1858, 6
    %1862 = vst [vmem:[#allocation6 + $0x58] sm:$0xfc] %v1860
    %v1863 = vld [vmem:[#allocation5 + $0x23] sm:$0x3f]
    %1864 = vst [vmem:[#allocation6 + $0x60] sm:$0x3f] %v1863
    %v1865 = vld [vmem:[#allocation5 + $0x24] sm:$0x3f]
    %1866 = vst [vmem:[#allocation6 + $0x68] sm:$0x3f] %v1865
    %v1867 = vld [vmem:[#allocation5 + $0x2a] sm:$0x3f]
    %1868 = vst [vmem:[#allocation6 + $0x70] sm:$0x3f] %v1867
    %v1869 = vld [vmem:[#allocation5 + $0x2b] sm:$0x3f]
    %1870 = vst [vmem:[#allocation6 + $0x78] sm:$0x3f] %v1869
    %v1871 = vld [vmem:[#allocation5 + $0x2a] sm:$0x3f]
    %v1873 = vrot.slane %v1871, 2
    %1875 = vst [vmem:[#allocation6 + $0x60] sm:$0xc0] %v1873
    %1876 = vst [vmem:[#allocation6 + $0x80] sm:$0xf] %v1873
    %v1877 = vld [vmem:[#allocation5 + $0x2b] sm:$0x3f]
    %v1879 = vrot.slane %v1877, 2
    %1881 = vst [vmem:[#allocation6 + $0x68] sm:$0xc0] %v1879
    %1882 = vst [vmem:[#allocation6 + $0x88] sm:$0xf] %v1879
    %v1883 = vld [vmem:[#allocation5 + $0x31] sm:$0x3f]
    %v1885 = vrot.slane %v1883, 2
    %1887 = vst [vmem:[#allocation6 + $0x70] sm:$0xc0] %v1885
    %1888 = vst [vmem:[#allocation6 + $0x90] sm:$0xf] %v1885
    %v1889 = vld [vmem:[#allocation5 + $0x32] sm:$0x3f]
    %v1891 = vrot.slane %v1889, 2
    %1893 = vst [vmem:[#allocation6 + $0x78] sm:$0xc0] %v1891
    %1894 = vst [vmem:[#allocation6 + $0x98] sm:$0xf] %v1891
    %v1895 = vld [vmem:[#allocation5 + $0x31] sm:$0x3f]
    %v1897 = vrot.slane %v1895, 4
    %1899 = vst [vmem:[#allocation6 + $0x80] sm:$0xf0] %v1897
    %1900 = vst [vmem:[#allocation6 + $0xa0] sm:$0x3] %v1897
    %v1901 = vld [vmem:[#allocation5 + $0x32] sm:$0x3f]
    %v1903 = vrot.slane %v1901, 4
    %1905 = vst [vmem:[#allocation6 + $0x88] sm:$0xf0] %v1903
    %1906 = vst [vmem:[#allocation6 + $0xa8] sm:$0x3] %v1903
    %v1907 = vld [vmem:[#allocation5 + $0x38] sm:$0x3f]
    %v1909 = vrot.slane %v1907, 4
    %1911 = vst [vmem:[#allocation6 + $0x90] sm:$0xf0] %v1909
    %1912 = vst [vmem:[#allocation6 + $0xb0] sm:$0x3] %v1909
    %v1913 = vld [vmem:[#allocation5 + $0x39] sm:$0x3f]
    %v1915 = vrot.slane %v1913, 4
    %1917 = vst [vmem:[#allocation6 + $0x98] sm:$0xf0] %v1915
    %1918 = vst [vmem:[#allocation6 + $0xb8] sm:$0x3] %v1915
    %v1919 = vld [vmem:[#allocation5 + $0x38] sm:$0x3f]
    %v1921 = vrot.slane %v1919, 6
    %1923 = vst [vmem:[#allocation6 + $0xa0] sm:$0xfc] %v1921
    %v1924 = vld [vmem:[#allocation5 + $0x39] sm:$0x3f]
    %v1926 = vrot.slane %v1924, 6
    %1928 = vst [vmem:[#allocation6 + $0xa8] sm:$0xfc] %v1926
    %v1929 = vld [vmem:[#allocation5 + $0x3f] sm:$0x3f]
    %v1931 = vrot.slane %v1929, 6
    %1933 = vst [vmem:[#allocation6 + $0xb0] sm:$0xfc] %v1931
    %v1934 = vld [vmem:[#allocation5 + $0x40] sm:$0x3f]
    %v1936 = vrot.slane %v1934, 6
    %1938 = vst [vmem:[#allocation6 + $0xb8] sm:$0xfc] %v1936
    %v1939 = vld [vmem:[#allocation6] sm:$0xff]
    %v1940 = vld [vmem:[#allocation6 + $0x8] sm:$0xff]
    %v1941 = vld [vmem:[#allocation6 + $0x10] sm:$0xff]
    %v1942 = vld [vmem:[#allocation6 + $0x18] sm:$0xff]
    %v1943 = vld [vmem:[#allocation6 + $0x20] sm:$0xff]
    %v1944 = vld [vmem:[#allocation6 + $0x28] sm:$0xff]
    %v1945 = vld [vmem:[#allocation6 + $0x30] sm:$0xff]
    %v1946 = vld [vmem:[#allocation6 + $0x38] sm:$0xff]
    %v1947 = vld [vmem:[#allocation6 + $0x40] sm:$0xff]
    %v1948 = vld [vmem:[#allocation6 + $0x48] sm:$0xff]
    %v1949 = vld [vmem:[#allocation6 + $0x50] sm:$0xff]
    %v1950 = vld [vmem:[#allocation6 + $0x58] sm:$0xff]
    %v1951 = vld [vmem:[#allocation6 + $0x60] sm:$0xff]
    %v1952 = vld [vmem:[#allocation6 + $0x68] sm:$0xff]
    %v1953 = vld [vmem:[#allocation6 + $0x70] sm:$0xff]
    %v1954 = vld [vmem:[#allocation6 + $0x78] sm:$0xff]
    %v1955 = vld [vmem:[#allocation6 + $0x80] sm:$0xff]
    %v1956 = vld [vmem:[#allocation6 + $0x88] sm:$0xff]
    %v1957 = vld [vmem:[#allocation6 + $0x90] sm:$0xff]
    %v1958 = vld [vmem:[#allocation6 + $0x98] sm:$0xff]
    %v1959 = vld [vmem:[#allocation6 + $0xa0] sm:$0xff]
    %v1960 = vld [vmem:[#allocation6 + $0xa8] sm:$0xff]
    %v1961 = vld [vmem:[#allocation6 + $0xb0] sm:$0xff]
    %v1962 = vld [vmem:[#allocation6 + $0xb8] sm:$0xff]
    %v1963 = vpack.c.bf16 %v1943, %v1939
    %v1964 = vpack.c.bf16 %v1944, %v1940
    %v1965 = vpack.c.bf16 %v1945, %v1941
    %v1966 = vpack.c.bf16 %v1946, %v1942
    %v1967 = vpack.c.bf16 %v1951, %v1947
    %v1968 = vpack.c.bf16 %v1952, %v1948
    %v1969 = vpack.c.bf16 %v1953, %v1949
    %v1970 = vpack.c.bf16 %v1954, %v1950
    %v1971 = vpack.c.bf16 %v1959, %v1955
    %v1972 = vpack.c.bf16 %v1960, %v1956
    %v1973 = vpack.c.bf16 %v1961, %v1957
    %v1974 = vpack.c.bf16 %v1962, %v1958
    %v1975 = vld [vmem:[#allocation21] sm:$0xff]
    %v1976 = vld [vmem:[#allocation21 + $0x8] sm:$0xff]
    %v1977 = vld [vmem:[#allocation21 + $0x10] sm:$0xff]
    %v1978 = vld [vmem:[#allocation21 + $0x18] sm:$0xff]
    %v1979 = vld [vmem:[#allocation21 + $0x20] sm:$0xff]
    %v1980 = vld [vmem:[#allocation21 + $0x28] sm:$0xff]
    %v1981 = vld [vmem:[#allocation21 + $0x30] sm:$0xff]
    %v1982 = vld [vmem:[#allocation21 + $0x38] sm:$0xff]
    %v1983 = vld [vmem:[#allocation21 + $0x40] sm:$0xff]
    %v1984 = vld [vmem:[#allocation21 + $0x48] sm:$0xff]
    %v1985 = vld [vmem:[#allocation21 + $0x50] sm:$0xff]
    %v1986 = vld [vmem:[#allocation21 + $0x58] sm:$0xff]
    %v1987 = vld [vmem:[#allocation21 + $0x60] sm:$0xff]
    %v1988 = vld [vmem:[#allocation21 + $0x68] sm:$0xff]
    %v1989 = vld [vmem:[#allocation21 + $0x70] sm:$0xff]
    %v1990 = vld [vmem:[#allocation21 + $0x78] sm:$0xff]
    %v1991 = vld [vmem:[#allocation21 + $0x80] sm:$0xff]
    %v1992 = vld [vmem:[#allocation21 + $0x88] sm:$0xff]
    %v1993 = vld [vmem:[#allocation21 + $0x90] sm:$0xff]
    %v1994 = vld [vmem:[#allocation21 + $0x98] sm:$0xff]
    %v1995 = vld [vmem:[#allocation21 + $0xa0] sm:$0xff]
    %v1996 = vld [vmem:[#allocation21 + $0xa8] sm:$0xff]
    %v1997 = vld [vmem:[#allocation21 + $0xb0] sm:$0xff]
    %v1998 = vld [vmem:[#allocation21 + $0xb8] sm:$0xff]
    %v1999 = vld [vmem:[#allocation21 + $0xc0] sm:$0xff]
    %v2000 = vld [vmem:[#allocation21 + $0xc8] sm:$0xff]
    %v2001 = vld [vmem:[#allocation21 + $0xd0] sm:$0xff]
    %v2002 = vld [vmem:[#allocation21 + $0xd8] sm:$0xff]
    %v2003 = vld [vmem:[#allocation21 + $0xe0] sm:$0xff]
    %v2004 = vld [vmem:[#allocation21 + $0xe8] sm:$0xff]
    %v2005 = vld [vmem:[#allocation21 + $0xf0] sm:$0xff]
    %v2006 = vld [vmem:[#allocation21 + $0xf8] sm:$0xff]
    %v2007 = vld [vmem:[#allocation21 + $0x100] sm:$0xff]
    %v2008 = vld [vmem:[#allocation21 + $0x108] sm:$0xff]
    %v2009 = vld [vmem:[#allocation21 + $0x110] sm:$0xff]
    %v2010 = vld [vmem:[#allocation21 + $0x118] sm:$0xff]
    %v2011 = vld [vmem:[#allocation21 + $0x120] sm:$0xff]
    %v2012 = vld [vmem:[#allocation21 + $0x128] sm:$0xff]
    %v2013 = vld [vmem:[#allocation21 + $0x130] sm:$0xff]
    %v2014 = vld [vmem:[#allocation21 + $0x138] sm:$0xff]
    %v2015 = vld [vmem:[#allocation21 + $0x140] sm:$0xff]
    %v2016 = vld [vmem:[#allocation21 + $0x148] sm:$0xff]
    %v2017 = vld [vmem:[#allocation21 + $0x150] sm:$0xff]
    %v2018 = vld [vmem:[#allocation21 + $0x158] sm:$0xff]
    %v2019 = vld [vmem:[#allocation21 + $0x160] sm:$0xff]
    %v2020 = vld [vmem:[#allocation21 + $0x168] sm:$0xff]
    %v2021 = vld [vmem:[#allocation21 + $0x170] sm:$0xff]
    %v2022 = vld [vmem:[#allocation21 + $0x178] sm:$0xff]
    %v2023 = vld [vmem:[#allocation21 + $0x180] sm:$0xff]
    %v2024 = vld [vmem:[#allocation21 + $0x188] sm:$0xff]
    %v2025 = vld [vmem:[#allocation21 + $0x190] sm:$0xff]
    %v2026 = vld [vmem:[#allocation21 + $0x198] sm:$0xff]
    %v2027 = vld [vmem:[#allocation21 + $0x1a0] sm:$0xff]
    %v2028 = vld [vmem:[#allocation21 + $0x1a8] sm:$0xff]
    %v2029 = vld [vmem:[#allocation21 + $0x1b0] sm:$0xff]
    %v2030 = vld [vmem:[#allocation21 + $0x1b8] sm:$0xff]
    %v2031 = vld [vmem:[#allocation21 + $0x1c0] sm:$0xff]
    %v2032 = vld [vmem:[#allocation21 + $0x1c8] sm:$0xff]
    %v2033 = vld [vmem:[#allocation21 + $0x1d0] sm:$0xff]
    %v2034 = vld [vmem:[#allocation21 + $0x1d8] sm:$0xff]
    %v2035 = vld [vmem:[#allocation21 + $0x1e0] sm:$0xff]
    %v2036 = vld [vmem:[#allocation21 + $0x1e8] sm:$0xff]
    %v2037 = vld [vmem:[#allocation21 + $0x1f0] sm:$0xff]
    %v2038 = vld [vmem:[#allocation21 + $0x1f8] sm:$0xff]
    %v2039 = vld [vmem:[#allocation22] sm:$0x3]
    %v2041 = vlaneseq
    %v2042 = vshrl.u32 %v2041, 7
    %v2043 = vsub.s32 0, %v2042
    %v2044 = vrot.slane %v2039, %v2043
    %v2045 = vlaneseq
    %v2046 = vshrl.u32 %v2045, 7
    %v2047 = vsub.s32 1, %v2046
    %v2048 = vrot.slane %v2039, %v2047
    %v2115 = vunpack.c.l.b16 %v1975
    %v2116 = vunpack.c.h.b16 %v1975
    %v2117 = vunpack.c.l.b16 %v1976
    %v2118 = vunpack.c.h.b16 %v1976
    %v2119 = vunpack.c.l.b16 %v1977
    %v2120 = vunpack.c.h.b16 %v1977
    %v2121 = vunpack.c.l.b16 %v1978
    %v2122 = vunpack.c.h.b16 %v1978
    %v2123 = vunpack.c.l.b16 %v1979
    %v2124 = vunpack.c.h.b16 %v1979
    %v2125 = vunpack.c.l.b16 %v1980
    %v2126 = vunpack.c.h.b16 %v1980
    %v2127 = vunpack.c.l.b16 %v1981
    %v2128 = vunpack.c.h.b16 %v1981
    %v2129 = vunpack.c.l.b16 %v1982
    %v2130 = vunpack.c.h.b16 %v1982
    %v2131 = vunpack.c.l.b16 %v1983
    %v2132 = vunpack.c.h.b16 %v1983
    %v2133 = vunpack.c.l.b16 %v1984
    %v2134 = vunpack.c.h.b16 %v1984
    %v2135 = vunpack.c.l.b16 %v1985
    %v2136 = vunpack.c.h.b16 %v1985
    %v2137 = vunpack.c.l.b16 %v1986
    %v2138 = vunpack.c.h.b16 %v1986
    %v2139 = vunpack.c.l.b16 %v1987
    %v2140 = vunpack.c.h.b16 %v1987
    %v2141 = vunpack.c.l.b16 %v1988
    %v2142 = vunpack.c.h.b16 %v1988
    %v2143 = vunpack.c.l.b16 %v1989
    %v2144 = vunpack.c.h.b16 %v1989
    %v2145 = vunpack.c.l.b16 %v1990
    %v2146 = vunpack.c.h.b16 %v1990
    %v2147 = vunpack.c.l.b16 %v1991
    %v2148 = vunpack.c.h.b16 %v1991
    %v2149 = vunpack.c.l.b16 %v1992
    %v2150 = vunpack.c.h.b16 %v1992
    %v2151 = vunpack.c.l.b16 %v1993
    %v2152 = vunpack.c.h.b16 %v1993
    %v2153 = vunpack.c.l.b16 %v1994
    %v2154 = vunpack.c.h.b16 %v1994
    %v2155 = vunpack.c.l.b16 %v1995
    %v2156 = vunpack.c.h.b16 %v1995
    %v2157 = vunpack.c.l.b16 %v1996
    %v2158 = vunpack.c.h.b16 %v1996
    %v2159 = vunpack.c.l.b16 %v1997
    %v2160 = vunpack.c.h.b16 %v1997
    %v2161 = vunpack.c.l.b16 %v1998
    %v2162 = vunpack.c.h.b16 %v1998
    %v2163 = vunpack.c.l.b16 %v1999
    %v2164 = vunpack.c.h.b16 %v1999
    %v2165 = vunpack.c.l.b16 %v2000
    %v2166 = vunpack.c.h.b16 %v2000
    %v2167 = vunpack.c.l.b16 %v2001
    %v2168 = vunpack.c.h.b16 %v2001
    %v2169 = vunpack.c.l.b16 %v2002
    %v2170 = vunpack.c.h.b16 %v2002
    %v2171 = vunpack.c.l.b16 %v2003
    %v2172 = vunpack.c.h.b16 %v2003
    %v2173 = vunpack.c.l.b16 %v2004
    %v2174 = vunpack.c.h.b16 %v2004
    %v2175 = vunpack.c.l.b16 %v2005
    %v2176 = vunpack.c.h.b16 %v2005
    %v2177 = vunpack.c.l.b16 %v2006
    %v2178 = vunpack.c.h.b16 %v2006
    %v2179 = vunpack.c.l.b16 %v2007
    %v2180 = vunpack.c.h.b16 %v2007
    %v2181 = vunpack.c.l.b16 %v2008
    %v2182 = vunpack.c.h.b16 %v2008
    %v2183 = vunpack.c.l.b16 %v2009
    %v2184 = vunpack.c.h.b16 %v2009
    %v2185 = vunpack.c.l.b16 %v2010
    %v2186 = vunpack.c.h.b16 %v2010
    %v2187 = vunpack.c.l.b16 %v2011
    %v2188 = vunpack.c.h.b16 %v2011
    %v2189 = vunpack.c.l.b16 %v2012
    %v2190 = vunpack.c.h.b16 %v2012
    %v2191 = vunpack.c.l.b16 %v2013
    %v2192 = vunpack.c.h.b16 %v2013
    %v2193 = vunpack.c.l.b16 %v2014
    %v2194 = vunpack.c.h.b16 %v2014
    %v2195 = vunpack.c.l.b16 %v2015
    %v2196 = vunpack.c.h.b16 %v2015
    %v2197 = vunpack.c.l.b16 %v2016
    %v2198 = vunpack.c.h.b16 %v2016
    %v2199 = vunpack.c.l.b16 %v2017
    %v2200 = vunpack.c.h.b16 %v2017
    %v2201 = vunpack.c.l.b16 %v2018
    %v2202 = vunpack.c.h.b16 %v2018
    %v2203 = vunpack.c.l.b16 %v2019
    %v2204 = vunpack.c.h.b16 %v2019
    %v2205 = vunpack.c.l.b16 %v2020
    %v2206 = vunpack.c.h.b16 %v2020
    %v2207 = vunpack.c.l.b16 %v2021
    %v2208 = vunpack.c.h.b16 %v2021
    %v2209 = vunpack.c.l.b16 %v2022
    %v2210 = vunpack.c.h.b16 %v2022
    %v2211 = vunpack.c.l.b16 %v2023
    %v2212 = vunpack.c.h.b16 %v2023
    %v2213 = vunpack.c.l.b16 %v2024
    %v2214 = vunpack.c.h.b16 %v2024
    %v2215 = vunpack.c.l.b16 %v2025
    %v2216 = vunpack.c.h.b16 %v2025
    %v2217 = vunpack.c.l.b16 %v2026
    %v2218 = vunpack.c.h.b16 %v2026
    %v2219 = vunpack.c.l.b16 %v2027
    %v2220 = vunpack.c.h.b16 %v2027
    %v2221 = vunpack.c.l.b16 %v2028
    %v2222 = vunpack.c.h.b16 %v2028
    %v2223 = vunpack.c.l.b16 %v2029
    %v2224 = vunpack.c.h.b16 %v2029
    %v2225 = vunpack.c.l.b16 %v2030
    %v2226 = vunpack.c.h.b16 %v2030
    %v2227 = vunpack.c.l.b16 %v2031
    %v2228 = vunpack.c.h.b16 %v2031
    %v2229 = vunpack.c.l.b16 %v2032
    %v2230 = vunpack.c.h.b16 %v2032
    %v2231 = vunpack.c.l.b16 %v2033
    %v2232 = vunpack.c.h.b16 %v2033
    %v2233 = vunpack.c.l.b16 %v2034
    %v2234 = vunpack.c.h.b16 %v2034
    %v2235 = vunpack.c.l.b16 %v2035
    %v2236 = vunpack.c.h.b16 %v2035
    %v2237 = vunpack.c.l.b16 %v2036
    %v2238 = vunpack.c.h.b16 %v2036
    %v2239 = vunpack.c.l.b16 %v2037
    %v2240 = vunpack.c.h.b16 %v2037
    %v2241 = vunpack.c.l.b16 %v2038
    %v2242 = vunpack.c.h.b16 %v2038
    %v2243 = vpack.c.b16 %v2117, %v2115
    %v2244 = vpack.c.b16 %v2118, %v2116
    %v2245 = vpack.c.b16 %v2121, %v2119
    %v2246 = vpack.c.b16 %v2122, %v2120
    %v2247 = vpack.c.b16 %v2125, %v2123
    %v2248 = vpack.c.b16 %v2126, %v2124
    %v2249 = vpack.c.b16 %v2129, %v2127
    %v2250 = vpack.c.b16 %v2130, %v2128
    %v2251 = vpack.c.b16 %v2133, %v2131
    %v2252 = vpack.c.b16 %v2134, %v2132
    %v2253 = vpack.c.b16 %v2137, %v2135
    %v2254 = vpack.c.b16 %v2138, %v2136
    %v2255 = vpack.c.b16 %v2141, %v2139
    %v2256 = vpack.c.b16 %v2142, %v2140
    %v2257 = vpack.c.b16 %v2145, %v2143
    %v2258 = vpack.c.b16 %v2146, %v2144
    %v2259 = vpack.c.b16 %v2149, %v2147
    %v2260 = vpack.c.b16 %v2150, %v2148
    %v2261 = vpack.c.b16 %v2153, %v2151
    %v2262 = vpack.c.b16 %v2154, %v2152
    %v2263 = vpack.c.b16 %v2157, %v2155
    %v2264 = vpack.c.b16 %v2158, %v2156
    %v2265 = vpack.c.b16 %v2161, %v2159
    %v2266 = vpack.c.b16 %v2162, %v2160
    %v2267 = vpack.c.b16 %v2165, %v2163
    %v2268 = vpack.c.b16 %v2166, %v2164
    %v2269 = vpack.c.b16 %v2169, %v2167
    %v2270 = vpack.c.b16 %v2170, %v2168
    %v2271 = vpack.c.b16 %v2173, %v2171
    %v2272 = vpack.c.b16 %v2174, %v2172
    %v2273 = vpack.c.b16 %v2177, %v2175
    %v2274 = vpack.c.b16 %v2178, %v2176
    %v2275 = vpack.c.b16 %v2181, %v2179
    %v2276 = vpack.c.b16 %v2182, %v2180
    %v2277 = vpack.c.b16 %v2185, %v2183
    %v2278 = vpack.c.b16 %v2186, %v2184
    %v2279 = vpack.c.b16 %v2189, %v2187
    %v2280 = vpack.c.b16 %v2190, %v2188
    %v2281 = vpack.c.b16 %v2193, %v2191
    %v2282 = vpack.c.b16 %v2194, %v2192
    %v2283 = vpack.c.b16 %v2197, %v2195
    %v2284 = vpack.c.b16 %v2198, %v2196
    %v2285 = vpack.c.b16 %v2201, %v2199
    %v2286 = vpack.c.b16 %v2202, %v2200
    %v2287 = vpack.c.b16 %v2205, %v2203
    %v2288 = vpack.c.b16 %v2206, %v2204
    %v2289 = vpack.c.b16 %v2209, %v2207
    %v2290 = vpack.c.b16 %v2210, %v2208
    %v2291 = vpack.c.b16 %v2213, %v2211
    %v2292 = vpack.c.b16 %v2214, %v2212
    %v2293 = vpack.c.b16 %v2217, %v2215
    %v2294 = vpack.c.b16 %v2218, %v2216
    %v2295 = vpack.c.b16 %v2221, %v2219
    %v2296 = vpack.c.b16 %v2222, %v2220
    %v2297 = vpack.c.b16 %v2225, %v2223
    %v2298 = vpack.c.b16 %v2226, %v2224
    %v2299 = vpack.c.b16 %v2229, %v2227
    %v2300 = vpack.c.b16 %v2230, %v2228
    %v2301 = vpack.c.b16 %v2233, %v2231
    %v2302 = vpack.c.b16 %v2234, %v2232
    %v2303 = vpack.c.b16 %v2237, %v2235
    %v2304 = vpack.c.b16 %v2238, %v2236
    %v2305 = vpack.c.b16 %v2241, %v2239
    %v2306 = vpack.c.b16 %v2242, %v2240
    %2371 = vmatprep.subr.bf16.mxu0 %v2244
    %2372 = vmatpush1.bf16.msra.mxu0 %v2243
    %2373 = vmatprep.subr.bf16.mxu0 %v2246
    %2374 = vmatpush1.bf16.msra.mxu0 %v2245
    %2375 = vmatprep.subr.bf16.mxu0 %v2248
    %2376 = vmatpush1.bf16.msra.mxu0 %v2247
    %2377 = vmatprep.subr.bf16.mxu0 %v2250
    %2378 = vmatpush1.bf16.msra.mxu0 %v2249
    %2379 = vmatprep.subr.bf16.mxu0 %v2252
    %2380 = vmatpush1.bf16.msra.mxu0 %v2251
    %2381 = vmatprep.subr.bf16.mxu0 %v2254
    %2382 = vmatpush1.bf16.msra.mxu0 %v2253
    %2383 = vmatprep.subr.bf16.mxu0 %v2256
    %2384 = vmatpush1.bf16.msra.mxu0 %v2255
    %2385 = vmatprep.subr.bf16.mxu0 %v2258
    %2386 = vmatpush1.bf16.msra.mxu0 %v2257
    %2387 = vmatprep.subr.bf16.mxu0 %v2260
    %2388 = vmatpush1.bf16.msra.mxu0 %v2259
    %2389 = vmatprep.subr.bf16.mxu0 %v2262
    %2390 = vmatpush1.bf16.msra.mxu0 %v2261
    %2391 = vmatprep.subr.bf16.mxu0 %v2264
    %2392 = vmatpush1.bf16.msra.mxu0 %v2263
    %2393 = vmatprep.subr.bf16.mxu0 %v2266
    %2394 = vmatpush1.bf16.msra.mxu0 %v2265
    %2395 = vmatprep.subr.bf16.mxu0 %v2268
    %2396 = vmatpush1.bf16.msra.mxu0 %v2267
    %2397 = vmatprep.subr.bf16.mxu0 %v2270
    %2398 = vmatpush1.bf16.msra.mxu0 %v2269
    %2399 = vmatprep.subr.bf16.mxu0 %v2272
    %2400 = vmatpush1.bf16.msra.mxu0 %v2271
    %2401 = vmatprep.subr.bf16.mxu0 %v2274
    %2402 = vmatpush1.bf16.msra.mxu0 %v2273
    %2403 = vmatprep.mubr.bf16.mxu0 %v1964
    %2404 = vmatmul.mubr.bf16.gmra.mrb[0].mxu0 %v1963
    %v2405 = vpop.f32.mrb[0].mxu0
    %v2406 = vadd.f32 %v2044, %v2405
    %v2407 = vpop.f32.mrb[0].mxu0
    %v2408 = vadd.f32 %v2048, %v2407
    %v2409 = vpop.f32.mrb[0].mxu0
    %v2410 = vadd.f32 %v2044, %v2409
    %v2411 = vpop.f32.mrb[0].mxu0
    %v2412 = vadd.f32 %v2048, %v2411
    %2413 = vmatprep.mubr.bf16.mxu0 %v1968
    %2414 = vmatmul.mubr.bf16.gmra.mrb[0].mxu0 %v1967
    %v2415 = vpop.f32.mrb[0].mxu0
    %v2416 = vadd.f32 %v2044, %v2415
    %v2417 = vpop.f32.mrb[0].mxu0
    %v2418 = vadd.f32 %v2048, %v2417
    %v2419 = vpop.f32.mrb[0].mxu0
    %v2420 = vadd.f32 %v2044, %v2419
    %v2421 = vpop.f32.mrb[0].mxu0
    %v2422 = vadd.f32 %v2048, %v2421
    %2423 = vmatprep.mubr.bf16.mxu0 %v1972
    %2424 = vmatmul.mubr.bf16.gmra.mrb[0].mxu0 %v1971
    %v2425 = vpop.f32.mrb[0].mxu0
    %v2426 = vadd.f32 %v2044, %v2425
    %v2427 = vpop.f32.mrb[0].mxu0
    %v2428 = vadd.f32 %v2048, %v2427
    %v2429 = vpop.f32.mrb[0].mxu0
    %v2430 = vadd.f32 %v2044, %v2429
    %v2431 = vpop.f32.mrb[0].mxu0
    %v2432 = vadd.f32 %v2048, %v2431
    %2433 = vdwg.mxu0
    %2434 = vmatprep.subr.bf16.mxu0 %v2276
    %2435 = vmatpush1.bf16.msra.mxu0 %v2275
    %2436 = vmatprep.subr.bf16.mxu0 %v2278
    %2437 = vmatpush1.bf16.msra.mxu0 %v2277
    %2438 = vmatprep.subr.bf16.mxu0 %v2280
    %2439 = vmatpush1.bf16.msra.mxu0 %v2279
    %2440 = vmatprep.subr.bf16.mxu0 %v2282
    %2441 = vmatpush1.bf16.msra.mxu0 %v2281
    %2442 = vmatprep.subr.bf16.mxu0 %v2284
    %2443 = vmatpush1.bf16.msra.mxu0 %v2283
    %2444 = vmatprep.subr.bf16.mxu0 %v2286
    %2445 = vmatpush1.bf16.msra.mxu0 %v2285
    %2446 = vmatprep.subr.bf16.mxu0 %v2288
    %2447 = vmatpush1.bf16.msra.mxu0 %v2287
    %2448 = vmatprep.subr.bf16.mxu0 %v2290
    %2449 = vmatpush1.bf16.msra.mxu0 %v2289
    %2450 = vmatprep.subr.bf16.mxu0 %v2292
    %2451 = vmatpush1.bf16.msra.mxu0 %v2291
    %2452 = vmatprep.subr.bf16.mxu0 %v2294
    %2453 = vmatpush1.bf16.msra.mxu0 %v2293
    %2454 = vmatprep.subr.bf16.mxu0 %v2296
    %2455 = vmatpush1.bf16.msra.mxu0 %v2295
    %2456 = vmatprep.subr.bf16.mxu0 %v2298
    %2457 = vmatpush1.bf16.msra.mxu0 %v2297
    %2458 = vmatprep.subr.bf16.mxu0 %v2300
    %2459 = vmatpush1.bf16.msra.mxu0 %v2299
    %2460 = vmatprep.subr.bf16.mxu0 %v2302
    %2461 = vmatpush1.bf16.msra.mxu0 %v2301
    %2462 = vmatprep.subr.bf16.mxu0 %v2304
    %2463 = vmatpush1.bf16.msra.mxu0 %v2303
    %2464 = vmatprep.subr.bf16.mxu0 %v2306
    %2465 = vmatpush1.bf16.msra.mxu0 %v2305
    %2466 = vmatprep.mubr.bf16.mxu0 %v1966
    %2467 = vmatmul.mubr.bf16.gmra.mrb[0].mxu0 %v1965
    %v2468 = vpop.f32.mrb[0].mxu0
    %v2469 = vadd.f32 %v2406, %v2468
    %v2470 = vpop.f32.mrb[0].mxu0
    %v2471 = vadd.f32 %v2408, %v2470
    %v2472 = vpop.f32.mrb[0].mxu0
    %v2473 = vadd.f32 %v2410, %v2472
    %v2474 = vpop.f32.mrb[0].mxu0
    %v2475 = vadd.f32 %v2412, %v2474
    %2476 = vmatprep.mubr.bf16.mxu0 %v1970
    %2477 = vmatmul.mubr.bf16.gmra.mrb[0].mxu0 %v1969
    %v2478 = vpop.f32.mrb[0].mxu0
    %v2479 = vadd.f32 %v2416, %v2478
    %v2480 = vpop.f32.mrb[0].mxu0
    %v2481 = vadd.f32 %v2418, %v2480
    %v2482 = vpop.f32.mrb[0].mxu0
    %v2483 = vadd.f32 %v2420, %v2482
    %v2484 = vpop.f32.mrb[0].mxu0
    %v2485 = vadd.f32 %v2422, %v2484
    %2486 = vmatprep.mubr.bf16.mxu0 %v1974
    %2487 = vmatmul.mubr.bf16.gmra.mrb[0].mxu0 %v1973
    %v2488 = vpop.f32.mrb[0].mxu0
    %v2489 = vadd.f32 %v2426, %v2488
    %v2490 = vpop.f32.mrb[0].mxu0
    %v2491 = vadd.f32 %v2428, %v2490
    %v2492 = vpop.f32.mrb[0].mxu0
    %v2493 = vadd.f32 %v2430, %v2492
    %v2494 = vpop.f32.mrb[0].mxu0
    %v2495 = vadd.f32 %v2432, %v2494
    %2496 = vdwg.mxu0
    %v2497 = vmax.f32 %v2469, 0.0
    %v2498 = vmax.f32 %v2471, 0.0
    %v2499 = vmax.f32 %v2473, 0.0
    %v2500 = vmax.f32 %v2475, 0.0
    %v2501 = vmax.f32 %v2479, 0.0
    %v2502 = vmax.f32 %v2481, 0.0
    %v2503 = vmax.f32 %v2483, 0.0
    %v2504 = vmax.f32 %v2485, 0.0
    %v2505 = vmax.f32 %v2489, 0.0
    %v2506 = vmax.f32 %v2491, 0.0
    %v2507 = vmax.f32 %v2493, 0.0
    %v2508 = vmax.f32 %v2495, 0.0
    %vm2513 = vcmask 1041408
    %v2514 = vrot.slane %v2497, 6
    %v2515 = vrot.slane %v2499, 6
    %v2516 = vsel %vm2513, %v2514, %v2515
    %v2517 = vrot.slane %v2498, 6
    %v2518 = vrot.slane %v2500, 6
    %v2519 = vsel %vm2513, %v2517, %v2518
    %v2522 = vmax.f32 %v2497, %v2516
    %v2523 = vmax.f32 %v2498, %v2519
    %v2526 = vrot.slane %v2522, 1
    %v2527 = vrot.slane %v2523, 1
    %v2530 = vmax.f32 %v2522, %v2526
    %v2531 = vmax.f32 %v2523, %v2527
    %v2534 = vcombine.low %v2530, %v2531
    %v2536 = vunpack.c.l.s4 1966171168
    %v2537 = vunpack.c.0.s8 %v2536
    %v2538 = vlaneseq
    %v2539 = vshrl.u32 %v2538, 7
    %v2540 = vsub.s32 %v2537, %v2539
    %v2541 = vrot.slane %v2534, %v2540
    %v2543 = vunpack.c.l.s4 1966171168
    %v2544 = vunpack.c.0.s8 %v2543
    %v2545 = vlaneseq
    %v2546 = vshrl.u32 %v2545, 7
    %v2547 = vsub.s32 %v2544, %v2546
    %v2548 = vrot.slane %v2541, %v2547
    %v2550 = vlaneseq
    %vm2551 = vcmp.ge.s32.totalorder %v2550, 0
    %vm2552 = vcmp.lt.s32.totalorder %v2550, 256
    %vm2553 = vmand %vm2551, %vm2552
    %2554 = vst.msk [vmem:[#allocation7] ss:$2 sm:$0x3] %vm2553, %v2548
    %v2555 = vcombine.high %v2548, %v2548
    %s2557 = scalar_lea.vmem [#allocation7], 4
    %2558 = vst.msk [vmem:[%s2557] ss:$2 sm:$0x3] %vm2553, %v2555
    %v2559 = vcombine.high %v2530, %v2531
    %v2561 = vunpack.c.l.s4 1966171168
    %v2562 = vunpack.c.0.s8 %v2561
    %v2563 = vlaneseq
    %v2564 = vshrl.u32 %v2563, 7
    %v2565 = vsub.s32 %v2562, %v2564
    %v2566 = vrot.slane %v2559, %v2565
    %v2568 = vunpack.c.l.s4 1966171168
    %v2569 = vunpack.c.0.s8 %v2568
    %v2570 = vlaneseq
    %v2571 = vshrl.u32 %v2570, 7
    %v2572 = vsub.s32 %v2569, %v2571
    %v2573 = vrot.slane %v2566, %v2572
    %s2575 = scalar_lea.vmem [#allocation7], 8
    %2576 = vst.msk [vmem:[%s2575] ss:$2 sm:$0x3] %vm2553, %v2573
    %v2579 = vrot.slane %v2501, 6
    %v2580 = vrot.slane %v2502, 6
    %v2583 = vmax.f32 %v2499, %v2579
    %v2584 = vmax.f32 %v2500, %v2580
    %v2585 = vmax.f32 %v2501, %v2579
    %v2586 = vmax.f32 %v2502, %v2580
    %v2589 = vrot.slane %v2583, 1
    %v2590 = vrot.slane %v2584, 1
    %v2593 = vmax.f32 %v2583, %v2589
    %v2594 = vmax.f32 %v2584, %v2590
    %v2597 = vcombine.high %v2593, %v2594
    %v2599 = vunpack.c.l.s4 1966171168
    %v2600 = vunpack.c.0.s8 %v2599
    %v2601 = vlaneseq
    %v2602 = vshrl.u32 %v2601, 7
    %v2603 = vsub.s32 %v2600, %v2602
    %v2604 = vrot.slane %v2597, %v2603
    %v2606 = vunpack.c.l.s4 1966171168
    %v2607 = vunpack.c.0.s8 %v2606
    %v2608 = vlaneseq
    %v2609 = vshrl.u32 %v2608, 7
    %v2610 = vsub.s32 %v2607, %v2609
    %v2611 = vrot.slane %v2604, %v2610
    %s2613 = scalar_lea.vmem [#allocation7], 12
    %2614 = vst.msk [vmem:[%s2613] ss:$2 sm:$0x3] %vm2553, %v2611
    %v2615 = vcombine.high %v2611, %v2611
    %s2617 = scalar_lea.vmem [#allocation7], 16
    %2618 = vst.msk [vmem:[%s2617] ss:$2 sm:$0x3] %vm2553, %v2615
    %v2621 = vrot.slane %v2585, 1
    %v2622 = vrot.slane %v2586, 1
    %v2625 = vmax.f32 %v2585, %v2621
    %v2626 = vmax.f32 %v2586, %v2622
    %v2629 = vcombine.low %v2625, %v2626
    %v2631 = vunpack.c.l.s4 1966171168
    %v2632 = vunpack.c.0.s8 %v2631
    %v2633 = vlaneseq
    %v2634 = vshrl.u32 %v2633, 7
    %v2635 = vsub.s32 %v2632, %v2634
    %v2636 = vrot.slane %v2629, %v2635
    %v2638 = vunpack.c.l.s4 1966171168
    %v2639 = vunpack.c.0.s8 %v2638
    %v2640 = vlaneseq
    %v2641 = vshrl.u32 %v2640, 7
    %v2642 = vsub.s32 %v2639, %v2641
    %v2643 = vrot.slane %v2636, %v2642
    %s2645 = scalar_lea.vmem [#allocation7], 20
    %2646 = vst.msk [vmem:[%s2645] ss:$2 sm:$0x3] %vm2553, %v2643
    %v2651 = vrot.slane %v2503, 6
    %v2652 = vrot.slane %v2505, 6
    %v2653 = vsel %vm2513, %v2651, %v2652
    %v2654 = vrot.slane %v2504, 6
    %v2655 = vrot.slane %v2506, 6
    %v2656 = vsel %vm2513, %v2654, %v2655
    %v2659 = vmax.f32 %v2503, %v2653
    %v2660 = vmax.f32 %v2504, %v2656
    %v2663 = vrot.slane %v2659, 1
    %v2664 = vrot.slane %v2660, 1
    %v2667 = vmax.f32 %v2659, %v2663
    %v2668 = vmax.f32 %v2660, %v2664
    %v2671 = vcombine.low %v2667, %v2668
    %v2673 = vunpack.c.l.s4 1966171168
    %v2674 = vunpack.c.0.s8 %v2673
    %v2675 = vlaneseq
    %v2676 = vshrl.u32 %v2675, 7
    %v2677 = vsub.s32 %v2674, %v2676
    %v2678 = vrot.slane %v2671, %v2677
    %v2680 = vunpack.c.l.s4 1966171168
    %v2681 = vunpack.c.0.s8 %v2680
    %v2682 = vlaneseq
    %v2683 = vshrl.u32 %v2682, 7
    %v2684 = vsub.s32 %v2681, %v2683
    %v2685 = vrot.slane %v2678, %v2684
    %s2687 = scalar_lea.vmem [#allocation7], 1
    %2688 = vst.msk [vmem:[%s2687] ss:$2 sm:$0x3] %vm2553, %v2685
    %v2689 = vcombine.high %v2685, %v2685
    %s2691 = scalar_lea.vmem [#allocation7], 5
    %2692 = vst.msk [vmem:[%s2691] ss:$2 sm:$0x3] %vm2553, %v2689
    %v2693 = vcombine.high %v2667, %v2668
    %v2695 = vunpack.c.l.s4 1966171168
    %v2696 = vunpack.c.0.s8 %v2695
    %v2697 = vlaneseq
    %v2698 = vshrl.u32 %v2697, 7
    %v2699 = vsub.s32 %v2696, %v2698
    %v2700 = vrot.slane %v2693, %v2699
    %v2702 = vunpack.c.l.s4 1966171168
    %v2703 = vunpack.c.0.s8 %v2702
    %v2704 = vlaneseq
    %v2705 = vshrl.u32 %v2704, 7
    %v2706 = vsub.s32 %v2703, %v2705
    %v2707 = vrot.slane %v2700, %v2706
    %s2709 = scalar_lea.vmem [#allocation7], 9
    %2710 = vst.msk [vmem:[%s2709] ss:$2 sm:$0x3] %vm2553, %v2707
    %v2713 = vrot.slane %v2507, 6
    %v2714 = vrot.slane %v2508, 6
    %v2717 = vmax.f32 %v2505, %v2713
    %v2718 = vmax.f32 %v2506, %v2714
    %v2719 = vmax.f32 %v2507, %v2713
    %v2720 = vmax.f32 %v2508, %v2714
    %v2723 = vrot.slane %v2717, 1
    %v2724 = vrot.slane %v2718, 1
    %v2727 = vmax.f32 %v2717, %v2723
    %v2728 = vmax.f32 %v2718, %v2724
    %v2731 = vcombine.high %v2727, %v2728
    %v2733 = vunpack.c.l.s4 1966171168
    %v2734 = vunpack.c.0.s8 %v2733
    %v2735 = vlaneseq
    %v2736 = vshrl.u32 %v2735, 7
    %v2737 = vsub.s32 %v2734, %v2736
    %v2738 = vrot.slane %v2731, %v2737
    %v2740 = vunpack.c.l.s4 1966171168
    %v2741 = vunpack.c.0.s8 %v2740
    %v2742 = vlaneseq
    %v2743 = vshrl.u32 %v2742, 7
    %v2744 = vsub.s32 %v2741, %v2743
    %v2745 = vrot.slane %v2738, %v2744
    %s2747 = scalar_lea.vmem [#allocation7], 13
    %2748 = vst.msk [vmem:[%s2747] ss:$2 sm:$0x3] %vm2553, %v2745
    %v2749 = vcombine.high %v2745, %v2745
    %s2751 = scalar_lea.vmem [#allocation7], 17
    %2752 = vst.msk [vmem:[%s2751] ss:$2 sm:$0x3] %vm2553, %v2749
    %v2755 = vrot.slane %v2719, 1
    %v2756 = vrot.slane %v2720, 1
    %v2759 = vmax.f32 %v2719, %v2755
    %v2760 = vmax.f32 %v2720, %v2756
    %v2763 = vcombine.low %v2759, %v2760
    %v2765 = vunpack.c.l.s4 1966171168
    %v2766 = vunpack.c.0.s8 %v2765
    %v2767 = vlaneseq
    %v2768 = vshrl.u32 %v2767, 7
    %v2769 = vsub.s32 %v2766, %v2768
    %v2770 = vrot.slane %v2763, %v2769
    %v2772 = vunpack.c.l.s4 1966171168
    %v2773 = vunpack.c.0.s8 %v2772
    %v2774 = vlaneseq
    %v2775 = vshrl.u32 %v2774, 7
    %v2776 = vsub.s32 %v2773, %v2775
    %v2777 = vrot.slane %v2770, %v2776
    %s2779 = scalar_lea.vmem [#allocation7], 21
    %2780 = vst.msk [vmem:[%s2779] ss:$2 sm:$0x3] %vm2553, %v2777
    %s2781 = smul.u32 4, 192
    %s2782 = smul.u32 %s2781, 5
    %s2783 = sshll.u32 %s2782, 4
    %2784 = dma.done [#allocation12], %s2783
    %v2785 = vld [vmem:[#allocation7] sm:$0xff]
    %v2786 = vld [vmem:[#allocation7 + $0x8] sm:$0xff]
    %v2787 = vld [vmem:[#allocation7 + $0x10] sm:$0xff]
    %v2791 = vcombine.high %v2785, %v2785
    %v2793 = vunpack.c.l.s4 1983009808
    %v2794 = vunpack.c.0.s8 %v2793
    %v2795 = vlaneseq
    %v2796 = vshrl.u32 %v2795, 7
    %v2797 = vsub.s32 %v2794, %v2796
    %v2798 = vrot.slane %v2785, %v2797
    %v2800 = vunpack.c.l.s4 1983009808
    %v2801 = vunpack.c.0.s8 %v2800
    %v2802 = vlaneseq
    %v2803 = vshrl.u32 %v2802, 7
    %v2804 = vsub.s32 %v2801, %v2803
    %v2805 = vrot.slane %v2791, %v2804
    %v2806 = vcombine.high %v2798, %v2798
    %v2807 = vcombine.high %v2805, %v2805
    %v2808 = vcombine.high %v2786, %v2786
    %v2810 = vunpack.c.l.s4 1983009808
    %v2811 = vunpack.c.0.s8 %v2810
    %v2812 = vlaneseq
    %v2813 = vshrl.u32 %v2812, 7
    %v2814 = vsub.s32 %v2811, %v2813
    %v2815 = vrot.slane %v2786, %v2814
    %v2817 = vunpack.c.l.s4 1983009808
    %v2818 = vunpack.c.0.s8 %v2817
    %v2819 = vlaneseq
    %v2820 = vshrl.u32 %v2819, 7
    %v2821 = vsub.s32 %v2818, %v2820
    %v2822 = vrot.slane %v2808, %v2821
    %v2823 = vcombine.high %v2815, %v2815
    %v2824 = vcombine.high %v2822, %v2822
    %v2825 = vcombine.high %v2787, %v2787
    %v2827 = vunpack.c.l.s4 1983009808
    %v2828 = vunpack.c.0.s8 %v2827
    %v2829 = vlaneseq
    %v2830 = vshrl.u32 %v2829, 7
    %v2831 = vsub.s32 %v2828, %v2830
    %v2832 = vrot.slane %v2787, %v2831
    %v2834 = vunpack.c.l.s4 1983009808
    %v2835 = vunpack.c.0.s8 %v2834
    %v2836 = vlaneseq
    %v2837 = vshrl.u32 %v2836, 7
    %v2838 = vsub.s32 %v2835, %v2837
    %v2839 = vrot.slane %v2825, %v2838
    %v2840 = vcombine.high %v2832, %v2832
    %v2841 = vcombine.high %v2839, %v2839
    %v2854 = vpack.c.bf16 %v2798, %v2798
    %v2855 = vpack.c.bf16 %v2806, %v2806
    %v2856 = vpack.c.bf16 %v2805, %v2805
    %v2857 = vpack.c.bf16 %v2807, %v2807
    %v2858 = vpack.c.bf16 %v2815, %v2815
    %v2859 = vpack.c.bf16 %v2823, %v2823
    %v2860 = vpack.c.bf16 %v2822, %v2822
    %v2861 = vpack.c.bf16 %v2824, %v2824
    %v2862 = vpack.c.bf16 %v2832, %v2832
    %v2863 = vpack.c.bf16 %v2840, %v2840
    %v2864 = vpack.c.bf16 %v2839, %v2839
    %v2865 = vpack.c.bf16 %v2841, %v2841
    %v2866 = vld [vmem:[#allocation8] sm:$0xff]
    %v2867 = vld [vmem:[#allocation8 + $0x8] sm:$0xff]
    %v2868 = vld [vmem:[#allocation8 + $0x10] sm:$0xff]
    %v2869 = vld [vmem:[#allocation8 + $0x18] sm:$0xff]
    %v2870 = vld [vmem:[#allocation8 + $0x20] sm:$0xff]
    %v2871 = vld [vmem:[#allocation8 + $0x28] sm:$0xff]
    %v2872 = vld [vmem:[#allocation8 + $0x30] sm:$0xff]
    %v2873 = vld [vmem:[#allocation8 + $0x38] sm:$0xff]
    %v2874 = vld [vmem:[#allocation8 + $0x40] sm:$0xff]
    %v2875 = vld [vmem:[#allocation8 + $0x48] sm:$0xff]
    %v2876 = vld [vmem:[#allocation8 + $0x50] sm:$0xff]
    %v2877 = vld [vmem:[#allocation8 + $0x58] sm:$0xff]
    %v2878 = vld [vmem:[#allocation8 + $0x60] sm:$0xff]
    %v2879 = vld [vmem:[#allocation8 + $0x68] sm:$0xff]
    %v2880 = vld [vmem:[#allocation8 + $0x70] sm:$0xff]
    %v2881 = vld [vmem:[#allocation8 + $0x78] sm:$0xff]
    %v2882 = vld [vmem:[#allocation8 + $0x80] sm:$0xff]
    %v2883 = vld [vmem:[#allocation8 + $0x88] sm:$0xff]
    %v2884 = vld [vmem:[#allocation8 + $0x90] sm:$0xff]
    %v2885 = vld [vmem:[#allocation8 + $0x98] sm:$0xff]
    %v2886 = vld [vmem:[#allocation8 + $0xa0] sm:$0xff]
    %v2887 = vld [vmem:[#allocation8 + $0xa8] sm:$0xff]
    %v2888 = vld [vmem:[#allocation8 + $0xb0] sm:$0xff]
    %v2889 = vld [vmem:[#allocation8 + $0xb8] sm:$0xff]
    %v2890 = vld [vmem:[#allocation8 + $0xc0] sm:$0xff]
    %v2891 = vld [vmem:[#allocation8 + $0xc8] sm:$0xff]
    %v2892 = vld [vmem:[#allocation8 + $0xd0] sm:$0xff]
    %v2893 = vld [vmem:[#allocation8 + $0xd8] sm:$0xff]
    %v2894 = vld [vmem:[#allocation8 + $0xe0] sm:$0xff]
    %v2895 = vld [vmem:[#allocation8 + $0xe8] sm:$0xff]
    %v2896 = vld [vmem:[#allocation8 + $0xf0] sm:$0xff]
    %v2897 = vld [vmem:[#allocation8 + $0xf8] sm:$0xff]
    %v2898 = vld [vmem:[#allocation8 + $0x100] sm:$0xff]
    %v2899 = vld [vmem:[#allocation8 + $0x108] sm:$0xff]
    %v2900 = vld [vmem:[#allocation8 + $0x110] sm:$0xff]
    %v2901 = vld [vmem:[#allocation8 + $0x118] sm:$0xff]
    %v2902 = vld [vmem:[#allocation8 + $0x120] sm:$0xff]
    %v2903 = vld [vmem:[#allocation8 + $0x128] sm:$0xff]
    %v2904 = vld [vmem:[#allocation8 + $0x130] sm:$0xff]
    %v2905 = vld [vmem:[#allocation8 + $0x138] sm:$0xff]
    %v2906 = vld [vmem:[#allocation8 + $0x140] sm:$0xff]
    %v2907 = vld [vmem:[#allocation8 + $0x148] sm:$0xff]
    %v2908 = vld [vmem:[#allocation8 + $0x150] sm:$0xff]
    %v2909 = vld [vmem:[#allocation8 + $0x158] sm:$0xff]
    %v2910 = vld [vmem:[#allocation8 + $0x160] sm:$0xff]
    %v2911 = vld [vmem:[#allocation8 + $0x168] sm:$0xff]
    %v2912 = vld [vmem:[#allocation8 + $0x170] sm:$0xff]
    %v2913 = vld [vmem:[#allocation8 + $0x178] sm:$0xff]
    %v2914 = vld [vmem:[#allocation8 + $0x180] sm:$0xff]
    %v2915 = vld [vmem:[#allocation8 + $0x188] sm:$0xff]
    %v2916 = vld [vmem:[#allocation8 + $0x190] sm:$0xff]
    %v2917 = vld [vmem:[#allocation8 + $0x198] sm:$0xff]
    %v2918 = vld [vmem:[#allocation8 + $0x1a0] sm:$0xff]
    %v2919 = vld [vmem:[#allocation8 + $0x1a8] sm:$0xff]
    %v2920 = vld [vmem:[#allocation8 + $0x1b0] sm:$0xff]
    %v2921 = vld [vmem:[#allocation8 + $0x1b8] sm:$0xff]
    %v2922 = vld [vmem:[#allocation8 + $0x1c0] sm:$0xff]
    %v2923 = vld [vmem:[#allocation8 + $0x1c8] sm:$0xff]
    %v2924 = vld [vmem:[#allocation8 + $0x1d0] sm:$0xff]
    %v2925 = vld [vmem:[#allocation8 + $0x1d8] sm:$0xff]
    %v2926 = vld [vmem:[#allocation8 + $0x1e0] sm:$0xff]
    %v2927 = vld [vmem:[#allocation8 + $0x1e8] sm:$0xff]
    %v2928 = vld [vmem:[#allocation8 + $0x1f0] sm:$0xff]
    %v2929 = vld [vmem:[#allocation8 + $0x1f8] sm:$0xff]
    %v2930 = vld [vmem:[#allocation8 + $0x200] sm:$0xff]
    %v2931 = vld [vmem:[#allocation8 + $0x208] sm:$0xff]
    %v2932 = vld [vmem:[#allocation8 + $0x210] sm:$0xff]
    %v2933 = vld [vmem:[#allocation8 + $0x218] sm:$0xff]
    %v2934 = vld [vmem:[#allocation8 + $0x220] sm:$0xff]
    %v2935 = vld [vmem:[#allocation8 + $0x228] sm:$0xff]
    %v2936 = vld [vmem:[#allocation8 + $0x230] sm:$0xff]
    %v2937 = vld [vmem:[#allocation8 + $0x238] sm:$0xff]
    %v2938 = vld [vmem:[#allocation8 + $0x240] sm:$0xff]
    %v2939 = vld [vmem:[#allocation8 + $0x248] sm:$0xff]
    %v2940 = vld [vmem:[#allocation8 + $0x250] sm:$0xff]
    %v2941 = vld [vmem:[#allocation8 + $0x258] sm:$0xff]
    %v2942 = vld [vmem:[#allocation8 + $0x260] sm:$0xff]
    %v2943 = vld [vmem:[#allocation8 + $0x268] sm:$0xff]
    %v2944 = vld [vmem:[#allocation8 + $0x270] sm:$0xff]
    %v2945 = vld [vmem:[#allocation8 + $0x278] sm:$0xff]
    %v2946 = vld [vmem:[#allocation8 + $0x280] sm:$0xff]
    %v2947 = vld [vmem:[#allocation8 + $0x288] sm:$0xff]
    %v2948 = vld [vmem:[#allocation8 + $0x290] sm:$0xff]
    %v2949 = vld [vmem:[#allocation8 + $0x298] sm:$0xff]
    %v2950 = vld [vmem:[#allocation8 + $0x2a0] sm:$0xff]
    %v2951 = vld [vmem:[#allocation8 + $0x2a8] sm:$0xff]
    %v2952 = vld [vmem:[#allocation8 + $0x2b0] sm:$0xff]
    %v2953 = vld [vmem:[#allocation8 + $0x2b8] sm:$0xff]
    %v2954 = vld [vmem:[#allocation8 + $0x2c0] sm:$0xff]
    %v2955 = vld [vmem:[#allocation8 + $0x2c8] sm:$0xff]
    %v2956 = vld [vmem:[#allocation8 + $0x2d0] sm:$0xff]
    %v2957 = vld [vmem:[#allocation8 + $0x2d8] sm:$0xff]
    %v2958 = vld [vmem:[#allocation8 + $0x2e0] sm:$0xff]
    %v2959 = vld [vmem:[#allocation8 + $0x2e8] sm:$0xff]
    %v2960 = vld [vmem:[#allocation8 + $0x2f0] sm:$0xff]
    %v2961 = vld [vmem:[#allocation8 + $0x2f8] sm:$0xff]
    %v2962 = vld [vmem:[#allocation8 + $0x300] sm:$0xff]
    %v2963 = vld [vmem:[#allocation8 + $0x308] sm:$0xff]
    %v2964 = vld [vmem:[#allocation8 + $0x310] sm:$0xff]
    %v2965 = vld [vmem:[#allocation8 + $0x318] sm:$0xff]
    %v2966 = vld [vmem:[#allocation8 + $0x320] sm:$0xff]
    %v2967 = vld [vmem:[#allocation8 + $0x328] sm:$0xff]
    %v2968 = vld [vmem:[#allocation8 + $0x330] sm:$0xff]
    %v2969 = vld [vmem:[#allocation8 + $0x338] sm:$0xff]
    %v2970 = vld [vmem:[#allocation8 + $0x340] sm:$0xff]
    %v2971 = vld [vmem:[#allocation8 + $0x348] sm:$0xff]
    %v2972 = vld [vmem:[#allocation8 + $0x350] sm:$0xff]
    %v2973 = vld [vmem:[#allocation8 + $0x358] sm:$0xff]
    %v2974 = vld [vmem:[#allocation8 + $0x360] sm:$0xff]
    %v2975 = vld [vmem:[#allocation8 + $0x368] sm:$0xff]
    %v2976 = vld [vmem:[#allocation8 + $0x370] sm:$0xff]
    %v2977 = vld [vmem:[#allocation8 + $0x378] sm:$0xff]
    %v2978 = vld [vmem:[#allocation8 + $0x380] sm:$0xff]
    %v2979 = vld [vmem:[#allocation8 + $0x388] sm:$0xff]
    %v2980 = vld [vmem:[#allocation8 + $0x390] sm:$0xff]
    %v2981 = vld [vmem:[#allocation8 + $0x398] sm:$0xff]
    %v2982 = vld [vmem:[#allocation8 + $0x3a0] sm:$0xff]
    %v2983 = vld [vmem:[#allocation8 + $0x3a8] sm:$0xff]
    %v2984 = vld [vmem:[#allocation8 + $0x3b0] sm:$0xff]
    %v2985 = vld [vmem:[#allocation8 + $0x3b8] sm:$0xff]
    %v2986 = vld [vmem:[#allocation8 + $0x3c0] sm:$0xff]
    %v2987 = vld [vmem:[#allocation8 + $0x3c8] sm:$0xff]
    %v2988 = vld [vmem:[#allocation8 + $0x3d0] sm:$0xff]
    %v2989 = vld [vmem:[#allocation8 + $0x3d8] sm:$0xff]
    %v2990 = vld [vmem:[#allocation8 + $0x3e0] sm:$0xff]
    %v2991 = vld [vmem:[#allocation8 + $0x3e8] sm:$0xff]
    %v2992 = vld [vmem:[#allocation8 + $0x3f0] sm:$0xff]
    %v2993 = vld [vmem:[#allocation8 + $0x3f8] sm:$0xff]
    %v2994 = vld [vmem:[#allocation8 + $0x400] sm:$0xff]
    %v2995 = vld [vmem:[#allocation8 + $0x408] sm:$0xff]
    %v2996 = vld [vmem:[#allocation8 + $0x410] sm:$0xff]
    %v2997 = vld [vmem:[#allocation8 + $0x418] sm:$0xff]
    %v2998 = vld [vmem:[#allocation8 + $0x420] sm:$0xff]
    %v2999 = vld [vmem:[#allocation8 + $0x428] sm:$0xff]
    %v3000 = vld [vmem:[#allocation8 + $0x430] sm:$0xff]
    %v3001 = vld [vmem:[#allocation8 + $0x438] sm:$0xff]
    %v3002 = vld [vmem:[#allocation8 + $0x440] sm:$0xff]
    %v3003 = vld [vmem:[#allocation8 + $0x448] sm:$0xff]
    %v3004 = vld [vmem:[#allocation8 + $0x450] sm:$0xff]
    %v3005 = vld [vmem:[#allocation8 + $0x458] sm:$0xff]
    %v3006 = vld [vmem:[#allocation8 + $0x460] sm:$0xff]
    %v3007 = vld [vmem:[#allocation8 + $0x468] sm:$0xff]
    %v3008 = vld [vmem:[#allocation8 + $0x470] sm:$0xff]
    %v3009 = vld [vmem:[#allocation8 + $0x478] sm:$0xff]
    %v3010 = vld [vmem:[#allocation8 + $0x480] sm:$0xff]
    %v3011 = vld [vmem:[#allocation8 + $0x488] sm:$0xff]
    %v3012 = vld [vmem:[#allocation8 + $0x490] sm:$0xff]
    %v3013 = vld [vmem:[#allocation8 + $0x498] sm:$0xff]
    %v3014 = vld [vmem:[#allocation8 + $0x4a0] sm:$0xff]
    %v3015 = vld [vmem:[#allocation8 + $0x4a8] sm:$0xff]
    %v3016 = vld [vmem:[#allocation8 + $0x4b0] sm:$0xff]
    %v3017 = vld [vmem:[#allocation8 + $0x4b8] sm:$0xff]
    %v3018 = vld [vmem:[#allocation8 + $0x4c0] sm:$0xff]
    %v3019 = vld [vmem:[#allocation8 + $0x4c8] sm:$0xff]
    %v3020 = vld [vmem:[#allocation8 + $0x4d0] sm:$0xff]
    %v3021 = vld [vmem:[#allocation8 + $0x4d8] sm:$0xff]
    %v3022 = vld [vmem:[#allocation8 + $0x4e0] sm:$0xff]
    %v3023 = vld [vmem:[#allocation8 + $0x4e8] sm:$0xff]
    %v3024 = vld [vmem:[#allocation8 + $0x4f0] sm:$0xff]
    %v3025 = vld [vmem:[#allocation8 + $0x4f8] sm:$0xff]
    %v3026 = vld [vmem:[#allocation8 + $0x500] sm:$0xff]
    %v3027 = vld [vmem:[#allocation8 + $0x508] sm:$0xff]
    %v3028 = vld [vmem:[#allocation8 + $0x510] sm:$0xff]
    %v3029 = vld [vmem:[#allocation8 + $0x518] sm:$0xff]
    %v3030 = vld [vmem:[#allocation8 + $0x520] sm:$0xff]
    %v3031 = vld [vmem:[#allocation8 + $0x528] sm:$0xff]
    %v3032 = vld [vmem:[#allocation8 + $0x530] sm:$0xff]
    %v3033 = vld [vmem:[#allocation8 + $0x538] sm:$0xff]
    %v3034 = vld [vmem:[#allocation8 + $0x540] sm:$0xff]
    %v3035 = vld [vmem:[#allocation8 + $0x548] sm:$0xff]
    %v3036 = vld [vmem:[#allocation8 + $0x550] sm:$0xff]
    %v3037 = vld [vmem:[#allocation8 + $0x558] sm:$0xff]
    %v3038 = vld [vmem:[#allocation8 + $0x560] sm:$0xff]
    %v3039 = vld [vmem:[#allocation8 + $0x568] sm:$0xff]
    %v3040 = vld [vmem:[#allocation8 + $0x570] sm:$0xff]
    %v3041 = vld [vmem:[#allocation8 + $0x578] sm:$0xff]
    %v3042 = vld [vmem:[#allocation8 + $0x580] sm:$0xff]
    %v3043 = vld [vmem:[#allocation8 + $0x588] sm:$0xff]
    %v3044 = vld [vmem:[#allocation8 + $0x590] sm:$0xff]
    %v3045 = vld [vmem:[#allocation8 + $0x598] sm:$0xff]
    %v3046 = vld [vmem:[#allocation8 + $0x5a0] sm:$0xff]
    %v3047 = vld [vmem:[#allocation8 + $0x5a8] sm:$0xff]
    %v3048 = vld [vmem:[#allocation8 + $0x5b0] sm:$0xff]
    %v3049 = vld [vmem:[#allocation8 + $0x5b8] sm:$0xff]
    %v3050 = vld [vmem:[#allocation8 + $0x5c0] sm:$0xff]
    %v3051 = vld [vmem:[#allocation8 + $0x5c8] sm:$0xff]
    %v3052 = vld [vmem:[#allocation8 + $0x5d0] sm:$0xff]
    %v3053 = vld [vmem:[#allocation8 + $0x5d8] sm:$0xff]
    %v3054 = vld [vmem:[#allocation8 + $0x5e0] sm:$0xff]
    %v3055 = vld [vmem:[#allocation8 + $0x5e8] sm:$0xff]
    %v3056 = vld [vmem:[#allocation8 + $0x5f0] sm:$0xff]
    %v3057 = vld [vmem:[#allocation8 + $0x5f8] sm:$0xff]
    %v3058 = vld [vmem:[#allocation8 + $0x600] sm:$0xff]
    %v3059 = vld [vmem:[#allocation8 + $0x608] sm:$0xff]
    %v3060 = vld [vmem:[#allocation8 + $0x610] sm:$0xff]
    %v3061 = vld [vmem:[#allocation8 + $0x618] sm:$0xff]
    %v3062 = vld [vmem:[#allocation8 + $0x620] sm:$0xff]
    %v3063 = vld [vmem:[#allocation8 + $0x628] sm:$0xff]
    %v3064 = vld [vmem:[#allocation8 + $0x630] sm:$0xff]
    %v3065 = vld [vmem:[#allocation8 + $0x638] sm:$0xff]
    %v3066 = vld [vmem:[#allocation8 + $0x640] sm:$0xff]
    %v3067 = vld [vmem:[#allocation8 + $0x648] sm:$0xff]
    %v3068 = vld [vmem:[#allocation8 + $0x650] sm:$0xff]
    %v3069 = vld [vmem:[#allocation8 + $0x658] sm:$0xff]
    %v3070 = vld [vmem:[#allocation8 + $0x660] sm:$0xff]
    %v3071 = vld [vmem:[#allocation8 + $0x668] sm:$0xff]
    %v3072 = vld [vmem:[#allocation8 + $0x670] sm:$0xff]
    %v3073 = vld [vmem:[#allocation8 + $0x678] sm:$0xff]
    %v3074 = vld [vmem:[#allocation8 + $0x680] sm:$0xff]
    %v3075 = vld [vmem:[#allocation8 + $0x688] sm:$0xff]
    %v3076 = vld [vmem:[#allocation8 + $0x690] sm:$0xff]
    %v3077 = vld [vmem:[#allocation8 + $0x698] sm:$0xff]
    %v3078 = vld [vmem:[#allocation8 + $0x6a0] sm:$0xff]
    %v3079 = vld [vmem:[#allocation8 + $0x6a8] sm:$0xff]
    %v3080 = vld [vmem:[#allocation8 + $0x6b0] sm:$0xff]
    %v3081 = vld [vmem:[#allocation8 + $0x6b8] sm:$0xff]
    %v3082 = vld [vmem:[#allocation8 + $0x6c0] sm:$0xff]
    %v3083 = vld [vmem:[#allocation8 + $0x6c8] sm:$0xff]
    %v3084 = vld [vmem:[#allocation8 + $0x6d0] sm:$0xff]
    %v3085 = vld [vmem:[#allocation8 + $0x6d8] sm:$0xff]
    %v3086 = vld [vmem:[#allocation8 + $0x6e0] sm:$0xff]
    %v3087 = vld [vmem:[#allocation8 + $0x6e8] sm:$0xff]
    %v3088 = vld [vmem:[#allocation8 + $0x6f0] sm:$0xff]
    %v3089 = vld [vmem:[#allocation8 + $0x6f8] sm:$0xff]
    %v3090 = vld [vmem:[#allocation8 + $0x700] sm:$0xff]
    %v3091 = vld [vmem:[#allocation8 + $0x708] sm:$0xff]
    %v3092 = vld [vmem:[#allocation8 + $0x710] sm:$0xff]
    %v3093 = vld [vmem:[#allocation8 + $0x718] sm:$0xff]
    %v3094 = vld [vmem:[#allocation8 + $0x720] sm:$0xff]
    %v3095 = vld [vmem:[#allocation8 + $0x728] sm:$0xff]
    %v3096 = vld [vmem:[#allocation8 + $0x730] sm:$0xff]
    %v3097 = vld [vmem:[#allocation8 + $0x738] sm:$0xff]
    %v3098 = vld [vmem:[#allocation8 + $0x740] sm:$0xff]
    %v3099 = vld [vmem:[#allocation8 + $0x748] sm:$0xff]
    %v3100 = vld [vmem:[#allocation8 + $0x750] sm:$0xff]
    %v3101 = vld [vmem:[#allocation8 + $0x758] sm:$0xff]
    %v3102 = vld [vmem:[#allocation8 + $0x760] sm:$0xff]
    %v3103 = vld [vmem:[#allocation8 + $0x768] sm:$0xff]
    %v3104 = vld [vmem:[#allocation8 + $0x770] sm:$0xff]
    %v3105 = vld [vmem:[#allocation8 + $0x778] sm:$0xff]
    %v3106 = vld [vmem:[#allocation8 + $0x780] sm:$0xff]
    %v3107 = vld [vmem:[#allocation8 + $0x788] sm:$0xff]
    %v3108 = vld [vmem:[#allocation8 + $0x790] sm:$0xff]
    %v3109 = vld [vmem:[#allocation8 + $0x798] sm:$0xff]
    %v3110 = vld [vmem:[#allocation8 + $0x7a0] sm:$0xff]
    %v3111 = vld [vmem:[#allocation8 + $0x7a8] sm:$0xff]
    %v3112 = vld [vmem:[#allocation8 + $0x7b0] sm:$0xff]
    %v3113 = vld [vmem:[#allocation8 + $0x7b8] sm:$0xff]
    %v3114 = vld [vmem:[#allocation8 + $0x7c0] sm:$0xff]
    %v3115 = vld [vmem:[#allocation8 + $0x7c8] sm:$0xff]
    %v3116 = vld [vmem:[#allocation8 + $0x7d0] sm:$0xff]
    %v3117 = vld [vmem:[#allocation8 + $0x7d8] sm:$0xff]
    %v3118 = vld [vmem:[#allocation8 + $0x7e0] sm:$0xff]
    %v3119 = vld [vmem:[#allocation8 + $0x7e8] sm:$0xff]
    %v3120 = vld [vmem:[#allocation8 + $0x7f0] sm:$0xff]
    %v3121 = vld [vmem:[#allocation8 + $0x7f8] sm:$0xff]
    %v3122 = vld [vmem:[#allocation8 + $0x800] sm:$0xff]
    %v3123 = vld [vmem:[#allocation8 + $0x808] sm:$0xff]
    %v3124 = vld [vmem:[#allocation8 + $0x810] sm:$0xff]
    %v3125 = vld [vmem:[#allocation8 + $0x818] sm:$0xff]
    %v3126 = vld [vmem:[#allocation8 + $0x820] sm:$0xff]
    %v3127 = vld [vmem:[#allocation8 + $0x828] sm:$0xff]
    %v3128 = vld [vmem:[#allocation8 + $0x830] sm:$0xff]
    %v3129 = vld [vmem:[#allocation8 + $0x838] sm:$0xff]
    %v3130 = vld [vmem:[#allocation8 + $0x840] sm:$0xff]
    %v3131 = vld [vmem:[#allocation8 + $0x848] sm:$0xff]
    %v3132 = vld [vmem:[#allocation8 + $0x850] sm:$0xff]
    %v3133 = vld [vmem:[#allocation8 + $0x858] sm:$0xff]
    %v3134 = vld [vmem:[#allocation8 + $0x860] sm:$0xff]
    %v3135 = vld [vmem:[#allocation8 + $0x868] sm:$0xff]
    %v3136 = vld [vmem:[#allocation8 + $0x870] sm:$0xff]
    %v3137 = vld [vmem:[#allocation8 + $0x878] sm:$0xff]
    %v3138 = vld [vmem:[#allocation8 + $0x880] sm:$0xff]
    %v3139 = vld [vmem:[#allocation8 + $0x888] sm:$0xff]
    %v3140 = vld [vmem:[#allocation8 + $0x890] sm:$0xff]
    %v3141 = vld [vmem:[#allocation8 + $0x898] sm:$0xff]
    %v3142 = vld [vmem:[#allocation8 + $0x8a0] sm:$0xff]
    %v3143 = vld [vmem:[#allocation8 + $0x8a8] sm:$0xff]
    %v3144 = vld [vmem:[#allocation8 + $0x8b0] sm:$0xff]
    %v3145 = vld [vmem:[#allocation8 + $0x8b8] sm:$0xff]
    %v3146 = vld [vmem:[#allocation8 + $0x8c0] sm:$0xff]
    %v3147 = vld [vmem:[#allocation8 + $0x8c8] sm:$0xff]
    %v3148 = vld [vmem:[#allocation8 + $0x8d0] sm:$0xff]
    %v3149 = vld [vmem:[#allocation8 + $0x8d8] sm:$0xff]
    %v3150 = vld [vmem:[#allocation8 + $0x8e0] sm:$0xff]
    %v3151 = vld [vmem:[#allocation8 + $0x8e8] sm:$0xff]
    %v3152 = vld [vmem:[#allocation8 + $0x8f0] sm:$0xff]
    %v3153 = vld [vmem:[#allocation8 + $0x8f8] sm:$0xff]
    %v3154 = vld [vmem:[#allocation8 + $0x900] sm:$0xff]
    %v3155 = vld [vmem:[#allocation8 + $0x908] sm:$0xff]
    %v3156 = vld [vmem:[#allocation8 + $0x910] sm:$0xff]
    %v3157 = vld [vmem:[#allocation8 + $0x918] sm:$0xff]
    %v3158 = vld [vmem:[#allocation8 + $0x920] sm:$0xff]
    %v3159 = vld [vmem:[#allocation8 + $0x928] sm:$0xff]
    %v3160 = vld [vmem:[#allocation8 + $0x930] sm:$0xff]
    %v3161 = vld [vmem:[#allocation8 + $0x938] sm:$0xff]
    %v3162 = vld [vmem:[#allocation8 + $0x940] sm:$0xff]
    %v3163 = vld [vmem:[#allocation8 + $0x948] sm:$0xff]
    %v3164 = vld [vmem:[#allocation8 + $0x950] sm:$0xff]
    %v3165 = vld [vmem:[#allocation8 + $0x958] sm:$0xff]
    %v3166 = vld [vmem:[#allocation8 + $0x960] sm:$0xff]
    %v3167 = vld [vmem:[#allocation8 + $0x968] sm:$0xff]
    %v3168 = vld [vmem:[#allocation8 + $0x970] sm:$0xff]
    %v3169 = vld [vmem:[#allocation8 + $0x978] sm:$0xff]
    %v3170 = vld [vmem:[#allocation8 + $0x980] sm:$0xff]
    %v3171 = vld [vmem:[#allocation8 + $0x988] sm:$0xff]
    %v3172 = vld [vmem:[#allocation8 + $0x990] sm:$0xff]
    %v3173 = vld [vmem:[#allocation8 + $0x998] sm:$0xff]
    %v3174 = vld [vmem:[#allocation8 + $0x9a0] sm:$0xff]
    %v3175 = vld [vmem:[#allocation8 + $0x9a8] sm:$0xff]
    %v3176 = vld [vmem:[#allocation8 + $0x9b0] sm:$0xff]
    %v3177 = vld [vmem:[#allocation8 + $0x9b8] sm:$0xff]
    %v3178 = vld [vmem:[#allocation8 + $0x9c0] sm:$0xff]
    %v3179 = vld [vmem:[#allocation8 + $0x9c8] sm:$0xff]
    %v3180 = vld [vmem:[#allocation8 + $0x9d0] sm:$0xff]
    %v3181 = vld [vmem:[#allocation8 + $0x9d8] sm:$0xff]
    %v3182 = vld [vmem:[#allocation8 + $0x9e0] sm:$0xff]
    %v3183 = vld [vmem:[#allocation8 + $0x9e8] sm:$0xff]
    %v3184 = vld [vmem:[#allocation8 + $0x9f0] sm:$0xff]
    %v3185 = vld [vmem:[#allocation8 + $0x9f8] sm:$0xff]
    %v3186 = vld [vmem:[#allocation8 + $0xa00] sm:$0xff]
    %v3187 = vld [vmem:[#allocation8 + $0xa08] sm:$0xff]
    %v3188 = vld [vmem:[#allocation8 + $0xa10] sm:$0xff]
    %v3189 = vld [vmem:[#allocation8 + $0xa18] sm:$0xff]
    %v3190 = vld [vmem:[#allocation8 + $0xa20] sm:$0xff]
    %v3191 = vld [vmem:[#allocation8 + $0xa28] sm:$0xff]
    %v3192 = vld [vmem:[#allocation8 + $0xa30] sm:$0xff]
    %v3193 = vld [vmem:[#allocation8 + $0xa38] sm:$0xff]
    %v3194 = vld [vmem:[#allocation8 + $0xa40] sm:$0xff]
    %v3195 = vld [vmem:[#allocation8 + $0xa48] sm:$0xff]
    %v3196 = vld [vmem:[#allocation8 + $0xa50] sm:$0xff]
    %v3197 = vld [vmem:[#allocation8 + $0xa58] sm:$0xff]
    %v3198 = vld [vmem:[#allocation8 + $0xa60] sm:$0xff]
    %v3199 = vld [vmem:[#allocation8 + $0xa68] sm:$0xff]
    %v3200 = vld [vmem:[#allocation8 + $0xa70] sm:$0xff]
    %v3201 = vld [vmem:[#allocation8 + $0xa78] sm:$0xff]
    %v3202 = vld [vmem:[#allocation8 + $0xa80] sm:$0xff]
    %v3203 = vld [vmem:[#allocation8 + $0xa88] sm:$0xff]
    %v3204 = vld [vmem:[#allocation8 + $0xa90] sm:$0xff]
    %v3205 = vld [vmem:[#allocation8 + $0xa98] sm:$0xff]
    %v3206 = vld [vmem:[#allocation8 + $0xaa0] sm:$0xff]
    %v3207 = vld [vmem:[#allocation8 + $0xaa8] sm:$0xff]
    %v3208 = vld [vmem:[#allocation8 + $0xab0] sm:$0xff]
    %v3209 = vld [vmem:[#allocation8 + $0xab8] sm:$0xff]
    %v3210 = vld [vmem:[#allocation8 + $0xac0] sm:$0xff]
    %v3211 = vld [vmem:[#allocation8 + $0xac8] sm:$0xff]
    %v3212 = vld [vmem:[#allocation8 + $0xad0] sm:$0xff]
    %v3213 = vld [vmem:[#allocation8 + $0xad8] sm:$0xff]
    %v3214 = vld [vmem:[#allocation8 + $0xae0] sm:$0xff]
    %v3215 = vld [vmem:[#allocation8 + $0xae8] sm:$0xff]
    %v3216 = vld [vmem:[#allocation8 + $0xaf0] sm:$0xff]
    %v3217 = vld [vmem:[#allocation8 + $0xaf8] sm:$0xff]
    %v3218 = vld [vmem:[#allocation8 + $0xb00] sm:$0xff]
    %v3219 = vld [vmem:[#allocation8 + $0xb08] sm:$0xff]
    %v3220 = vld [vmem:[#allocation8 + $0xb10] sm:$0xff]
    %v3221 = vld [vmem:[#allocation8 + $0xb18] sm:$0xff]
    %v3222 = vld [vmem:[#allocation8 + $0xb20] sm:$0xff]
    %v3223 = vld [vmem:[#allocation8 + $0xb28] sm:$0xff]
    %v3224 = vld [vmem:[#allocation8 + $0xb30] sm:$0xff]
    %v3225 = vld [vmem:[#allocation8 + $0xb38] sm:$0xff]
    %v3226 = vld [vmem:[#allocation8 + $0xb40] sm:$0xff]
    %v3227 = vld [vmem:[#allocation8 + $0xb48] sm:$0xff]
    %v3228 = vld [vmem:[#allocation8 + $0xb50] sm:$0xff]
    %v3229 = vld [vmem:[#allocation8 + $0xb58] sm:$0xff]
    %v3230 = vld [vmem:[#allocation8 + $0xb60] sm:$0xff]
    %v3231 = vld [vmem:[#allocation8 + $0xb68] sm:$0xff]
    %v3232 = vld [vmem:[#allocation8 + $0xb70] sm:$0xff]
    %v3233 = vld [vmem:[#allocation8 + $0xb78] sm:$0xff]
    %v3234 = vld [vmem:[#allocation8 + $0xb80] sm:$0xff]
    %v3235 = vld [vmem:[#allocation8 + $0xb88] sm:$0xff]
    %v3236 = vld [vmem:[#allocation8 + $0xb90] sm:$0xff]
    %v3237 = vld [vmem:[#allocation8 + $0xb98] sm:$0xff]
    %v3238 = vld [vmem:[#allocation8 + $0xba0] sm:$0xff]
    %v3239 = vld [vmem:[#allocation8 + $0xba8] sm:$0xff]
    %v3240 = vld [vmem:[#allocation8 + $0xbb0] sm:$0xff]
    %v3241 = vld [vmem:[#allocation8 + $0xbb8] sm:$0xff]
    %v3242 = vld [vmem:[#allocation8 + $0xbc0] sm:$0xff]
    %v3243 = vld [vmem:[#allocation8 + $0xbc8] sm:$0xff]
    %v3244 = vld [vmem:[#allocation8 + $0xbd0] sm:$0xff]
    %v3245 = vld [vmem:[#allocation8 + $0xbd8] sm:$0xff]
    %v3246 = vld [vmem:[#allocation8 + $0xbe0] sm:$0xff]
    %v3247 = vld [vmem:[#allocation8 + $0xbe8] sm:$0xff]
    %v3248 = vld [vmem:[#allocation8 + $0xbf0] sm:$0xff]
    %v3249 = vld [vmem:[#allocation8 + $0xbf8] sm:$0xff]
    %v3250 = vld [vmem:[#allocation8 + $0xc00] sm:$0xff]
    %v3251 = vld [vmem:[#allocation8 + $0xc08] sm:$0xff]
    %v3252 = vld [vmem:[#allocation8 + $0xc10] sm:$0xff]
    %v3253 = vld [vmem:[#allocation8 + $0xc18] sm:$0xff]
    %v3254 = vld [vmem:[#allocation8 + $0xc20] sm:$0xff]
    %v3255 = vld [vmem:[#allocation8 + $0xc28] sm:$0xff]
    %v3256 = vld [vmem:[#allocation8 + $0xc30] sm:$0xff]
    %v3257 = vld [vmem:[#allocation8 + $0xc38] sm:$0xff]
    %v3258 = vld [vmem:[#allocation8 + $0xc40] sm:$0xff]
    %v3259 = vld [vmem:[#allocation8 + $0xc48] sm:$0xff]
    %v3260 = vld [vmem:[#allocation8 + $0xc50] sm:$0xff]
    %v3261 = vld [vmem:[#allocation8 + $0xc58] sm:$0xff]
    %v3262 = vld [vmem:[#allocation8 + $0xc60] sm:$0xff]
    %v3263 = vld [vmem:[#allocation8 + $0xc68] sm:$0xff]
    %v3264 = vld [vmem:[#allocation8 + $0xc70] sm:$0xff]
    %v3265 = vld [vmem:[#allocation8 + $0xc78] sm:$0xff]
    %v3266 = vld [vmem:[#allocation8 + $0xc80] sm:$0xff]
    %v3267 = vld [vmem:[#allocation8 + $0xc88] sm:$0xff]
    %v3268 = vld [vmem:[#allocation8 + $0xc90] sm:$0xff]
    %v3269 = vld [vmem:[#allocation8 + $0xc98] sm:$0xff]
    %v3270 = vld [vmem:[#allocation8 + $0xca0] sm:$0xff]
    %v3271 = vld [vmem:[#allocation8 + $0xca8] sm:$0xff]
    %v3272 = vld [vmem:[#allocation8 + $0xcb0] sm:$0xff]
    %v3273 = vld [vmem:[#allocation8 + $0xcb8] sm:$0xff]
    %v3274 = vld [vmem:[#allocation8 + $0xcc0] sm:$0xff]
    %v3275 = vld [vmem:[#allocation8 + $0xcc8] sm:$0xff]
    %v3276 = vld [vmem:[#allocation8 + $0xcd0] sm:$0xff]
    %v3277 = vld [vmem:[#allocation8 + $0xcd8] sm:$0xff]
    %v3278 = vld [vmem:[#allocation8 + $0xce0] sm:$0xff]
    %v3279 = vld [vmem:[#allocation8 + $0xce8] sm:$0xff]
    %v3280 = vld [vmem:[#allocation8 + $0xcf0] sm:$0xff]
    %v3281 = vld [vmem:[#allocation8 + $0xcf8] sm:$0xff]
    %v3282 = vld [vmem:[#allocation8 + $0xd00] sm:$0xff]
    %v3283 = vld [vmem:[#allocation8 + $0xd08] sm:$0xff]
    %v3284 = vld [vmem:[#allocation8 + $0xd10] sm:$0xff]
    %v3285 = vld [vmem:[#allocation8 + $0xd18] sm:$0xff]
    %v3286 = vld [vmem:[#allocation8 + $0xd20] sm:$0xff]
    %v3287 = vld [vmem:[#allocation8 + $0xd28] sm:$0xff]
    %v3288 = vld [vmem:[#allocation8 + $0xd30] sm:$0xff]
    %v3289 = vld [vmem:[#allocation8 + $0xd38] sm:$0xff]
    %v3290 = vld [vmem:[#allocation8 + $0xd40] sm:$0xff]
    %v3291 = vld [vmem:[#allocation8 + $0xd48] sm:$0xff]
    %v3292 = vld [vmem:[#allocation8 + $0xd50] sm:$0xff]
    %v3293 = vld [vmem:[#allocation8 + $0xd58] sm:$0xff]
    %v3294 = vld [vmem:[#allocation8 + $0xd60] sm:$0xff]
    %v3295 = vld [vmem:[#allocation8 + $0xd68] sm:$0xff]
    %v3296 = vld [vmem:[#allocation8 + $0xd70] sm:$0xff]
    %v3297 = vld [vmem:[#allocation8 + $0xd78] sm:$0xff]
    %v3298 = vld [vmem:[#allocation8 + $0xd80] sm:$0xff]
    %v3299 = vld [vmem:[#allocation8 + $0xd88] sm:$0xff]
    %v3300 = vld [vmem:[#allocation8 + $0xd90] sm:$0xff]
    %v3301 = vld [vmem:[#allocation8 + $0xd98] sm:$0xff]
    %v3302 = vld [vmem:[#allocation8 + $0xda0] sm:$0xff]
    %v3303 = vld [vmem:[#allocation8 + $0xda8] sm:$0xff]
    %v3304 = vld [vmem:[#allocation8 + $0xdb0] sm:$0xff]
    %v3305 = vld [vmem:[#allocation8 + $0xdb8] sm:$0xff]
    %v3306 = vld [vmem:[#allocation8 + $0xdc0] sm:$0xff]
    %v3307 = vld [vmem:[#allocation8 + $0xdc8] sm:$0xff]
    %v3308 = vld [vmem:[#allocation8 + $0xdd0] sm:$0xff]
    %v3309 = vld [vmem:[#allocation8 + $0xdd8] sm:$0xff]
    %v3310 = vld [vmem:[#allocation8 + $0xde0] sm:$0xff]
    %v3311 = vld [vmem:[#allocation8 + $0xde8] sm:$0xff]
    %v3312 = vld [vmem:[#allocation8 + $0xdf0] sm:$0xff]
    %v3313 = vld [vmem:[#allocation8 + $0xdf8] sm:$0xff]
    %v3314 = vld [vmem:[#allocation8 + $0xe00] sm:$0xff]
    %v3315 = vld [vmem:[#allocation8 + $0xe08] sm:$0xff]
    %v3316 = vld [vmem:[#allocation8 + $0xe10] sm:$0xff]
    %v3317 = vld [vmem:[#allocation8 + $0xe18] sm:$0xff]
    %v3318 = vld [vmem:[#allocation8 + $0xe20] sm:$0xff]
    %v3319 = vld [vmem:[#allocation8 + $0xe28] sm:$0xff]
    %v3320 = vld [vmem:[#allocation8 + $0xe30] sm:$0xff]
    %v3321 = vld [vmem:[#allocation8 + $0xe38] sm:$0xff]
    %v3322 = vld [vmem:[#allocation8 + $0xe40] sm:$0xff]
    %v3323 = vld [vmem:[#allocation8 + $0xe48] sm:$0xff]
    %v3324 = vld [vmem:[#allocation8 + $0xe50] sm:$0xff]
    %v3325 = vld [vmem:[#allocation8 + $0xe58] sm:$0xff]
    %v3326 = vld [vmem:[#allocation8 + $0xe60] sm:$0xff]
    %v3327 = vld [vmem:[#allocation8 + $0xe68] sm:$0xff]
    %v3328 = vld [vmem:[#allocation8 + $0xe70] sm:$0xff]
    %v3329 = vld [vmem:[#allocation8 + $0xe78] sm:$0xff]
    %v3330 = vld [vmem:[#allocation8 + $0xe80] sm:$0xff]
    %v3331 = vld [vmem:[#allocation8 + $0xe88] sm:$0xff]
    %v3332 = vld [vmem:[#allocation8 + $0xe90] sm:$0xff]
    %v3333 = vld [vmem:[#allocation8 + $0xe98] sm:$0xff]
    %v3334 = vld [vmem:[#allocation8 + $0xea0] sm:$0xff]
    %v3335 = vld [vmem:[#allocation8 + $0xea8] sm:$0xff]
    %v3336 = vld [vmem:[#allocation8 + $0xeb0] sm:$0xff]
    %v3337 = vld [vmem:[#allocation8 + $0xeb8] sm:$0xff]
    %v3338 = vld [vmem:[#allocation8 + $0xec0] sm:$0xff]
    %v3339 = vld [vmem:[#allocation8 + $0xec8] sm:$0xff]
    %v3340 = vld [vmem:[#allocation8 + $0xed0] sm:$0xff]
    %v3341 = vld [vmem:[#allocation8 + $0xed8] sm:$0xff]
    %v3342 = vld [vmem:[#allocation8 + $0xee0] sm:$0xff]
    %v3343 = vld [vmem:[#allocation8 + $0xee8] sm:$0xff]
    %v3344 = vld [vmem:[#allocation8 + $0xef0] sm:$0xff]
    %v3345 = vld [vmem:[#allocation8 + $0xef8] sm:$0xff]
    %v3346 = vld [vmem:[#allocation24] sm:$0x1f]
    %v3348 = vlaneseq
    %v3349 = vshrl.u32 %v3348, 7
    %v3350 = vsub.s32 0, %v3349
    %v3351 = vrot.slane %v3346, %v3350
    %v3352 = vlaneseq
    %v3353 = vshrl.u32 %v3352, 7
    %v3354 = vsub.s32 1, %v3353
    %v3355 = vrot.slane %v3346, %v3354
    %v3356 = vlaneseq
    %v3357 = vshrl.u32 %v3356, 7
    %v3358 = vsub.s32 2, %v3357
    %v3359 = vrot.slane %v3346, %v3358
    %v3360 = vlaneseq
    %v3361 = vshrl.u32 %v3360, 7
    %v3362 = vsub.s32 3, %v3361
    %v3363 = vrot.slane %v3346, %v3362
    %v3364 = vlaneseq
    %v3365 = vshrl.u32 %v3364, 7
    %v3366 = vsub.s32 4, %v3365
    %v3367 = vrot.slane %v3346, %v3366
    %3373 = vmatprep.subr.bf16.mxu0 %v2867
    %3374 = vmatpush1.bf16.msra.mxu0 %v2866
    %3375 = vmatprep.subr.bf16.mxu0 %v2872
    %3376 = vmatpush1.bf16.msra.mxu0 %v2871
    %3377 = vmatprep.subr.bf16.mxu0 %v2877
    %3378 = vmatpush1.bf16.msra.mxu0 %v2876
    %3379 = vmatprep.subr.bf16.mxu0 %v2882
    %3380 = vmatpush1.bf16.msra.mxu0 %v2881
    %3381 = vmatprep.subr.bf16.mxu0 %v2887
    %3382 = vmatpush1.bf16.msra.mxu0 %v2886
    %3383 = vmatprep.subr.bf16.mxu0 %v2892
    %3384 = vmatpush1.bf16.msra.mxu0 %v2891
    %3385 = vmatprep.subr.bf16.mxu0 %v2897
    %3386 = vmatpush1.bf16.msra.mxu0 %v2896
    %3387 = vmatprep.subr.bf16.mxu0 %v2902
    %3388 = vmatpush1.bf16.msra.mxu0 %v2901
    %3389 = vmatprep.subr.bf16.mxu0 %v2907
    %3390 = vmatpush1.bf16.msra.mxu0 %v2906
    %3391 = vmatprep.subr.bf16.mxu0 %v2912
    %3392 = vmatpush1.bf16.msra.mxu0 %v2911
    %3393 = vmatprep.subr.bf16.mxu0 %v2917
    %3394 = vmatpush1.bf16.msra.mxu0 %v2916
    %3395 = vmatprep.subr.bf16.mxu0 %v2922
    %3396 = vmatpush1.bf16.msra.mxu0 %v2921
    %3397 = vmatprep.subr.bf16.mxu0 %v2927
    %3398 = vmatpush1.bf16.msra.mxu0 %v2926
    %3399 = vmatprep.subr.bf16.mxu0 %v2932
    %3400 = vmatpush1.bf16.msra.mxu0 %v2931
    %3401 = vmatprep.subr.bf16.mxu0 %v2937
    %3402 = vmatpush1.bf16.msra.mxu0 %v2936
    %3403 = vmatprep.subr.bf16.mxu0 %v2942
    %3404 = vmatpush1.bf16.msra.mxu0 %v2941
    %3405 = vmatprep.mubr.bf16.mxu0 %v2855
    %3406 = vmatmul.mubr.bf16.gmra.mrb[0].mxu0 %v2854
    %v3407 = vpop.f32.mrb[0].mxu0
    %v3408 = vadd.f32 %v3351, %v3407
    %v3409 = vpop.f32.mrb[0].mxu0
    %v3410 = vadd.f32 %v3355, %v3409
    %v3411 = vpop.f32.mrb[0].mxu0
    %v3412 = vpop.f32.mrb[0].mxu0
    %3413 = vdwg.mxu0
    %3414 = vmatprep.subr.bf16.mxu0 %v2947
    %3415 = vmatpush1.bf16.msra.mxu0 %v2946
    %3416 = vmatprep.subr.bf16.mxu0 %v2952
    %3417 = vmatpush1.bf16.msra.mxu0 %v2951
    %3418 = vmatprep.subr.bf16.mxu0 %v2957
    %3419 = vmatpush1.bf16.msra.mxu0 %v2956
    %3420 = vmatprep.subr.bf16.mxu0 %v2962
    %3421 = vmatpush1.bf16.msra.mxu0 %v2961
    %3422 = vmatprep.subr.bf16.mxu0 %v2967
    %3423 = vmatpush1.bf16.msra.mxu0 %v2966
    %3424 = vmatprep.subr.bf16.mxu0 %v2972
    %3425 = vmatpush1.bf16.msra.mxu0 %v2971
    %3426 = vmatprep.subr.bf16.mxu0 %v2977
    %3427 = vmatpush1.bf16.msra.mxu0 %v2976
    %3428 = vmatprep.subr.bf16.mxu0 %v2982
    %3429 = vmatpush1.bf16.msra.mxu0 %v2981
    %3430 = vmatprep.subr.bf16.mxu0 %v2987
    %3431 = vmatpush1.bf16.msra.mxu0 %v2986
    %3432 = vmatprep.subr.bf16.mxu0 %v2992
    %3433 = vmatpush1.bf16.msra.mxu0 %v2991
    %3434 = vmatprep.subr.bf16.mxu0 %v2997
    %3435 = vmatpush1.bf16.msra.mxu0 %v2996
    %3436 = vmatprep.subr.bf16.mxu0 %v3002
    %3437 = vmatpush1.bf16.msra.mxu0 %v3001
    %3438 = vmatprep.subr.bf16.mxu0 %v3007
    %3439 = vmatpush1.bf16.msra.mxu0 %v3006
    %3440 = vmatprep.subr.bf16.mxu0 %v3012
    %3441 = vmatpush1.bf16.msra.mxu0 %v3011
    %3442 = vmatprep.subr.bf16.mxu0 %v3017
    %3443 = vmatpush1.bf16.msra.mxu0 %v3016
    %3444 = vmatprep.subr.bf16.mxu0 %v3022
    %3445 = vmatpush1.bf16.msra.mxu0 %v3021
    %3446 = vmatprep.mubr.bf16.mxu0 %v2857
    %3447 = vmatmul.mubr.bf16.gmra.mrb[0].mxu0 %v2856
    %v3448 = vpop.f32.mrb[0].mxu0
    %v3449 = vadd.f32 %v3408, %v3448
    %v3450 = vpop.f32.mrb[0].mxu0
    %v3451 = vadd.f32 %v3410, %v3450
    %v3452 = vpop.f32.mrb[0].mxu0
    %v3453 = vpop.f32.mrb[0].mxu0
    %3454 = vdwg.mxu0
    %3455 = vmatprep.subr.bf16.mxu0 %v3027
    %3456 = vmatpush1.bf16.msra.mxu0 %v3026
    %3457 = vmatprep.subr.bf16.mxu0 %v3032
    %3458 = vmatpush1.bf16.msra.mxu0 %v3031
    %3459 = vmatprep.subr.bf16.mxu0 %v3037
    %3460 = vmatpush1.bf16.msra.mxu0 %v3036
    %3461 = vmatprep.subr.bf16.mxu0 %v3042
    %3462 = vmatpush1.bf16.msra.mxu0 %v3041
    %3463 = vmatprep.subr.bf16.mxu0 %v3047
    %3464 = vmatpush1.bf16.msra.mxu0 %v3046
    %3465 = vmatprep.subr.bf16.mxu0 %v3052
    %3466 = vmatpush1.bf16.msra.mxu0 %v3051
    %3467 = vmatprep.subr.bf16.mxu0 %v3057
    %3468 = vmatpush1.bf16.msra.mxu0 %v3056
    %3469 = vmatprep.subr.bf16.mxu0 %v3062
    %3470 = vmatpush1.bf16.msra.mxu0 %v3061
    %3471 = vmatprep.subr.bf16.mxu0 %v3067
    %3472 = vmatpush1.bf16.msra.mxu0 %v3066
    %3473 = vmatprep.subr.bf16.mxu0 %v3072
    %3474 = vmatpush1.bf16.msra.mxu0 %v3071
    %3475 = vmatprep.subr.bf16.mxu0 %v3077
    %3476 = vmatpush1.bf16.msra.mxu0 %v3076
    %3477 = vmatprep.subr.bf16.mxu0 %v3082
    %3478 = vmatpush1.bf16.msra.mxu0 %v3081
    %3479 = vmatprep.subr.bf16.mxu0 %v3087
    %3480 = vmatpush1.bf16.msra.mxu0 %v3086
    %3481 = vmatprep.subr.bf16.mxu0 %v3092
    %3482 = vmatpush1.bf16.msra.mxu0 %v3091
    %3483 = vmatprep.subr.bf16.mxu0 %v3097
    %3484 = vmatpush1.bf16.msra.mxu0 %v3096
    %3485 = vmatprep.subr.bf16.mxu0 %v3102
    %3486 = vmatpush1.bf16.msra.mxu0 %v3101
    %3487 = vmatprep.mubr.bf16.mxu0 %v2859
    %3488 = vmatmul.mubr.bf16.gmra.mrb[0].mxu0 %v2858
    %v3489 = vpop.f32.mrb[0].mxu0
    %v3490 = vadd.f32 %v3449, %v3489
    %v3491 = vpop.f32.mrb[0].mxu0
    %v3492 = vadd.f32 %v3451, %v3491
    %v3493 = vpop.f32.mrb[0].mxu0
    %v3494 = vpop.f32.mrb[0].mxu0
    %3495 = vdwg.mxu0
    %3496 = vmatprep.subr.bf16.mxu0 %v3107
    %3497 = vmatpush1.bf16.msra.mxu0 %v3106
    %3498 = vmatprep.subr.bf16.mxu0 %v3112
    %3499 = vmatpush1.bf16.msra.mxu0 %v3111
    %3500 = vmatprep.subr.bf16.mxu0 %v3117
    %3501 = vmatpush1.bf16.msra.mxu0 %v3116
    %3502 = vmatprep.subr.bf16.mxu0 %v3122
    %3503 = vmatpush1.bf16.msra.mxu0 %v3121
    %3504 = vmatprep.subr.bf16.mxu0 %v3127
    %3505 = vmatpush1.bf16.msra.mxu0 %v3126
    %3506 = vmatprep.subr.bf16.mxu0 %v3132
    %3507 = vmatpush1.bf16.msra.mxu0 %v3131
    %3508 = vmatprep.subr.bf16.mxu0 %v3137
    %3509 = vmatpush1.bf16.msra.mxu0 %v3136
    %3510 = vmatprep.subr.bf16.mxu0 %v3142
    %3511 = vmatpush1.bf16.msra.mxu0 %v3141
    %3512 = vmatprep.subr.bf16.mxu0 %v3147
    %3513 = vmatpush1.bf16.msra.mxu0 %v3146
    %3514 = vmatprep.subr.bf16.mxu0 %v3152
    %3515 = vmatpush1.bf16.msra.mxu0 %v3151
    %3516 = vmatprep.subr.bf16.mxu0 %v3157
    %3517 = vmatpush1.bf16.msra.mxu0 %v3156
    %3518 = vmatprep.subr.bf16.mxu0 %v3162
    %3519 = vmatpush1.bf16.msra.mxu0 %v3161
    %3520 = vmatprep.subr.bf16.mxu0 %v3167
    %3521 = vmatpush1.bf16.msra.mxu0 %v3166
    %3522 = vmatprep.subr.bf16.mxu0 %v3172
    %3523 = vmatpush1.bf16.msra.mxu0 %v3171
    %3524 = vmatprep.subr.bf16.mxu0 %v3177
    %3525 = vmatpush1.bf16.msra.mxu0 %v3176
    %3526 = vmatprep.subr.bf16.mxu0 %v3182
    %3527 = vmatpush1.bf16.msra.mxu0 %v3181
    %3528 = vmatprep.mubr.bf16.mxu0 %v2861
    %3529 = vmatmul.mubr.bf16.gmra.mrb[0].mxu0 %v2860
    %v3530 = vpop.f32.mrb[0].mxu0
    %v3531 = vadd.f32 %v3490, %v3530
    %v3532 = vpop.f32.mrb[0].mxu0
    %v3533 = vadd.f32 %v3492, %v3532
    %v3534 = vpop.f32.mrb[0].mxu0
    %v3535 = vpop.f32.mrb[0].mxu0
    %3536 = vdwg.mxu0
    %3537 = vmatprep.subr.bf16.mxu0 %v3187
    %3538 = vmatpush1.bf16.msra.mxu0 %v3186
    %3539 = vmatprep.subr.bf16.mxu0 %v3192
    %3540 = vmatpush1.bf16.msra.mxu0 %v3191
    %3541 = vmatprep.subr.bf16.mxu0 %v3197
    %3542 = vmatpush1.bf16.msra.mxu0 %v3196
    %3543 = vmatprep.subr.bf16.mxu0 %v3202
    %3544 = vmatpush1.bf16.msra.mxu0 %v3201
    %3545 = vmatprep.subr.bf16.mxu0 %v3207
    %3546 = vmatpush1.bf16.msra.mxu0 %v3206
    %3547 = vmatprep.subr.bf16.mxu0 %v3212
    %3548 = vmatpush1.bf16.msra.mxu0 %v3211
    %3549 = vmatprep.subr.bf16.mxu0 %v3217
    %3550 = vmatpush1.bf16.msra.mxu0 %v3216
    %3551 = vmatprep.subr.bf16.mxu0 %v3222
    %3552 = vmatpush1.bf16.msra.mxu0 %v3221
    %3553 = vmatprep.subr.bf16.mxu0 %v3227
    %3554 = vmatpush1.bf16.msra.mxu0 %v3226
    %3555 = vmatprep.subr.bf16.mxu0 %v3232
    %3556 = vmatpush1.bf16.msra.mxu0 %v3231
    %3557 = vmatprep.subr.bf16.mxu0 %v3237
    %3558 = vmatpush1.bf16.msra.mxu0 %v3236
    %3559 = vmatprep.subr.bf16.mxu0 %v3242
    %3560 = vmatpush1.bf16.msra.mxu0 %v3241
    %3561 = vmatprep.subr.bf16.mxu0 %v3247
    %3562 = vmatpush1.bf16.msra.mxu0 %v3246
    %3563 = vmatprep.subr.bf16.mxu0 %v3252
    %3564 = vmatpush1.bf16.msra.mxu0 %v3251
    %3565 = vmatprep.subr.bf16.mxu0 %v3257
    %3566 = vmatpush1.bf16.msra.mxu0 %v3256
    %3567 = vmatprep.subr.bf16.mxu0 %v3262
    %3568 = vmatpush1.bf16.msra.mxu0 %v3261
    %3569 = vmatprep.mubr.bf16.mxu0 %v2863
    %3570 = vmatmul.mubr.bf16.gmra.mrb[0].mxu0 %v2862
    %v3571 = vpop.f32.mrb[0].mxu0
    %v3572 = vadd.f32 %v3531, %v3571
    %v3573 = vpop.f32.mrb[0].mxu0
    %v3574 = vadd.f32 %v3533, %v3573
    %v3575 = vpop.f32.mrb[0].mxu0
    %v3576 = vpop.f32.mrb[0].mxu0
    %3577 = vdwg.mxu0
    %3578 = vmatprep.subr.bf16.mxu0 %v3267
    %3579 = vmatpush1.bf16.msra.mxu0 %v3266
    %3580 = vmatprep.subr.bf16.mxu0 %v3272
    %3581 = vmatpush1.bf16.msra.mxu0 %v3271
    %3582 = vmatprep.subr.bf16.mxu0 %v3277
    %3583 = vmatpush1.bf16.msra.mxu0 %v3276
    %3584 = vmatprep.subr.bf16.mxu0 %v3282
    %3585 = vmatpush1.bf16.msra.mxu0 %v3281
    %3586 = vmatprep.subr.bf16.mxu0 %v3287
    %3587 = vmatpush1.bf16.msra.mxu0 %v3286
    %3588 = vmatprep.subr.bf16.mxu0 %v3292
    %3589 = vmatpush1.bf16.msra.mxu0 %v3291
    %3590 = vmatprep.subr.bf16.mxu0 %v3297
    %3591 = vmatpush1.bf16.msra.mxu0 %v3296
    %3592 = vmatprep.subr.bf16.mxu0 %v3302
    %3593 = vmatpush1.bf16.msra.mxu0 %v3301
    %3594 = vmatprep.subr.bf16.mxu0 %v3307
    %3595 = vmatpush1.bf16.msra.mxu0 %v3306
    %3596 = vmatprep.subr.bf16.mxu0 %v3312
    %3597 = vmatpush1.bf16.msra.mxu0 %v3311
    %3598 = vmatprep.subr.bf16.mxu0 %v3317
    %3599 = vmatpush1.bf16.msra.mxu0 %v3316
    %3600 = vmatprep.subr.bf16.mxu0 %v3322
    %3601 = vmatpush1.bf16.msra.mxu0 %v3321
    %3602 = vmatprep.subr.bf16.mxu0 %v3327
    %3603 = vmatpush1.bf16.msra.mxu0 %v3326
    %3604 = vmatprep.subr.bf16.mxu0 %v3332
    %3605 = vmatpush1.bf16.msra.mxu0 %v3331
    %3606 = vmatprep.subr.bf16.mxu0 %v3337
    %3607 = vmatpush1.bf16.msra.mxu0 %v3336
    %3608 = vmatprep.subr.bf16.mxu0 %v3342
    %3609 = vmatpush1.bf16.msra.mxu0 %v3341
    %3610 = vmatprep.mubr.bf16.mxu0 %v2865
    %3611 = vmatmul.mubr.bf16.gmra.mrb[0].mxu0 %v2864
    %v3612 = vpop.f32.mrb[0].mxu0
    %v3613 = vadd.f32 %v3572, %v3612
    %v3614 = vpop.f32.mrb[0].mxu0
    %v3615 = vadd.f32 %v3574, %v3614
    %v3616 = vpop.f32.mrb[0].mxu0
    %v3617 = vpop.f32.mrb[0].mxu0
    %3618 = vdwg.mxu0
    %3619 = vmatprep.subr.bf16.mxu0 %v2869
    %3620 = vmatpush1.bf16.msra.mxu0 %v2868
    %3621 = vmatprep.subr.bf16.mxu0 %v2874
    %3622 = vmatpush1.bf16.msra.mxu0 %v2873
    %3623 = vmatprep.subr.bf16.mxu0 %v2879
    %3624 = vmatpush1.bf16.msra.mxu0 %v2878
    %3625 = vmatprep.subr.bf16.mxu0 %v2884
    %3626 = vmatpush1.bf16.msra.mxu0 %v2883
    %3627 = vmatprep.subr.bf16.mxu0 %v2889
    %3628 = vmatpush1.bf16.msra.mxu0 %v2888
    %3629 = vmatprep.subr.bf16.mxu0 %v2894
    %3630 = vmatpush1.bf16.msra.mxu0 %v2893
    %3631 = vmatprep.subr.bf16.mxu0 %v2899
    %3632 = vmatpush1.bf16.msra.mxu0 %v2898
    %3633 = vmatprep.subr.bf16.mxu0 %v2904
    %3634 = vmatpush1.bf16.msra.mxu0 %v2903
    %3635 = vmatprep.subr.bf16.mxu0 %v2909
    %3636 = vmatpush1.bf16.msra.mxu0 %v2908
    %3637 = vmatprep.subr.bf16.mxu0 %v2914
    %3638 = vmatpush1.bf16.msra.mxu0 %v2913
    %3639 = vmatprep.subr.bf16.mxu0 %v2919
    %3640 = vmatpush1.bf16.msra.mxu0 %v2918
    %3641 = vmatprep.subr.bf16.mxu0 %v2924
    %3642 = vmatpush1.bf16.msra.mxu0 %v2923
    %3643 = vmatprep.subr.bf16.mxu0 %v2929
    %3644 = vmatpush1.bf16.msra.mxu0 %v2928
    %3645 = vmatprep.subr.bf16.mxu0 %v2934
    %3646 = vmatpush1.bf16.msra.mxu0 %v2933
    %3647 = vmatprep.subr.bf16.mxu0 %v2939
    %3648 = vmatpush1.bf16.msra.mxu0 %v2938
    %3649 = vmatprep.subr.bf16.mxu0 %v2944
    %3650 = vmatpush1.bf16.msra.mxu0 %v2943
    %3651 = vmatprep.mubr.bf16.mxu0 %v2855
    %3652 = vmatmul.mubr.bf16.gmra.mrb[0].mxu0 %v2854
    %v3653 = vpop.f32.mrb[0].mxu0
    %v3654 = vadd.f32 %v3359, %v3653
    %v3655 = vpop.f32.mrb[0].mxu0
    %v3656 = vadd.f32 %v3363, %v3655
    %v3657 = vpop.f32.mrb[0].mxu0
    %v3658 = vpop.f32.mrb[0].mxu0
    %3659 = vdwg.mxu0
    %3660 = vmatprep.subr.bf16.mxu0 %v2949
    %3661 = vmatpush1.bf16.msra.mxu0 %v2948
    %3662 = vmatprep.subr.bf16.mxu0 %v2954
    %3663 = vmatpush1.bf16.msra.mxu0 %v2953
    %3664 = vmatprep.subr.bf16.mxu0 %v2959
    %3665 = vmatpush1.bf16.msra.mxu0 %v2958
    %3666 = vmatprep.subr.bf16.mxu0 %v2964
    %3667 = vmatpush1.bf16.msra.mxu0 %v2963
    %3668 = vmatprep.subr.bf16.mxu0 %v2969
    %3669 = vmatpush1.bf16.msra.mxu0 %v2968
    %3670 = vmatprep.subr.bf16.mxu0 %v2974
    %3671 = vmatpush1.bf16.msra.mxu0 %v2973
    %3672 = vmatprep.subr.bf16.mxu0 %v2979
    %3673 = vmatpush1.bf16.msra.mxu0 %v2978
    %3674 = vmatprep.subr.bf16.mxu0 %v2984
    %3675 = vmatpush1.bf16.msra.mxu0 %v2983
    %3676 = vmatprep.subr.bf16.mxu0 %v2989
    %3677 = vmatpush1.bf16.msra.mxu0 %v2988
    %3678 = vmatprep.subr.bf16.mxu0 %v2994
    %3679 = vmatpush1.bf16.msra.mxu0 %v2993
    %3680 = vmatprep.subr.bf16.mxu0 %v2999
    %3681 = vmatpush1.bf16.msra.mxu0 %v2998
    %3682 = vmatprep.subr.bf16.mxu0 %v3004
    %3683 = vmatpush1.bf16.msra.mxu0 %v3003
    %3684 = vmatprep.subr.bf16.mxu0 %v3009
    %3685 = vmatpush1.bf16.msra.mxu0 %v3008
    %3686 = vmatprep.subr.bf16.mxu0 %v3014
    %3687 = vmatpush1.bf16.msra.mxu0 %v3013
    %3688 = vmatprep.subr.bf16.mxu0 %v3019
    %3689 = vmatpush1.bf16.msra.mxu0 %v3018
    %3690 = vmatprep.subr.bf16.mxu0 %v3024
    %3691 = vmatpush1.bf16.msra.mxu0 %v3023
    %3692 = vmatprep.mubr.bf16.mxu0 %v2857
    %3693 = vmatmul.mubr.bf16.gmra.mrb[0].mxu0 %v2856
    %v3694 = vpop.f32.mrb[0].mxu0
    %v3695 = vadd.f32 %v3654, %v3694
    %v3696 = vpop.f32.mrb[0].mxu0
    %v3697 = vadd.f32 %v3656, %v3696
    %v3698 = vpop.f32.mrb[0].mxu0
    %v3699 = vpop.f32.mrb[0].mxu0
    %3700 = vdwg.mxu0
    %3701 = vmatprep.subr.bf16.mxu0 %v3029
    %3702 = vmatpush1.bf16.msra.mxu0 %v3028
    %3703 = vmatprep.subr.bf16.mxu0 %v3034
    %3704 = vmatpush1.bf16.msra.mxu0 %v3033
    %3705 = vmatprep.subr.bf16.mxu0 %v3039
    %3706 = vmatpush1.bf16.msra.mxu0 %v3038
    %3707 = vmatprep.subr.bf16.mxu0 %v3044
    %3708 = vmatpush1.bf16.msra.mxu0 %v3043
    %3709 = vmatprep.subr.bf16.mxu0 %v3049
    %3710 = vmatpush1.bf16.msra.mxu0 %v3048
    %3711 = vmatprep.subr.bf16.mxu0 %v3054
    %3712 = vmatpush1.bf16.msra.mxu0 %v3053
    %3713 = vmatprep.subr.bf16.mxu0 %v3059
    %3714 = vmatpush1.bf16.msra.mxu0 %v3058
    %3715 = vmatprep.subr.bf16.mxu0 %v3064
    %3716 = vmatpush1.bf16.msra.mxu0 %v3063
    %3717 = vmatprep.subr.bf16.mxu0 %v3069
    %3718 = vmatpush1.bf16.msra.mxu0 %v3068
    %3719 = vmatprep.subr.bf16.mxu0 %v3074
    %3720 = vmatpush1.bf16.msra.mxu0 %v3073
    %3721 = vmatprep.subr.bf16.mxu0 %v3079
    %3722 = vmatpush1.bf16.msra.mxu0 %v3078
    %3723 = vmatprep.subr.bf16.mxu0 %v3084
    %3724 = vmatpush1.bf16.msra.mxu0 %v3083
    %3725 = vmatprep.subr.bf16.mxu0 %v3089
    %3726 = vmatpush1.bf16.msra.mxu0 %v3088
    %3727 = vmatprep.subr.bf16.mxu0 %v3094
    %3728 = vmatpush1.bf16.msra.mxu0 %v3093
    %3729 = vmatprep.subr.bf16.mxu0 %v3099
    %3730 = vmatpush1.bf16.msra.mxu0 %v3098
    %3731 = vmatprep.subr.bf16.mxu0 %v3104
    %3732 = vmatpush1.bf16.msra.mxu0 %v3103
    %3733 = vmatprep.mubr.bf16.mxu0 %v2859
    %3734 = vmatmul.mubr.bf16.gmra.mrb[0].mxu0 %v2858
    %v3735 = vpop.f32.mrb[0].mxu0
    %v3736 = vadd.f32 %v3695, %v3735
    %v3737 = vpop.f32.mrb[0].mxu0
    %v3738 = vadd.f32 %v3697, %v3737
    %v3739 = vpop.f32.mrb[0].mxu0
    %v3740 = vpop.f32.mrb[0].mxu0
    %3741 = vdwg.mxu0
    %3742 = vmatprep.subr.bf16.mxu0 %v3109
    %3743 = vmatpush1.bf16.msra.mxu0 %v3108
    %3744 = vmatprep.subr.bf16.mxu0 %v3114
    %3745 = vmatpush1.bf16.msra.mxu0 %v3113
    %3746 = vmatprep.subr.bf16.mxu0 %v3119
    %3747 = vmatpush1.bf16.msra.mxu0 %v3118
    %3748 = vmatprep.subr.bf16.mxu0 %v3124
    %3749 = vmatpush1.bf16.msra.mxu0 %v3123
    %3750 = vmatprep.subr.bf16.mxu0 %v3129
    %3751 = vmatpush1.bf16.msra.mxu0 %v3128
    %3752 = vmatprep.subr.bf16.mxu0 %v3134
    %3753 = vmatpush1.bf16.msra.mxu0 %v3133
    %3754 = vmatprep.subr.bf16.mxu0 %v3139
    %3755 = vmatpush1.bf16.msra.mxu0 %v3138
    %3756 = vmatprep.subr.bf16.mxu0 %v3144
    %3757 = vmatpush1.bf16.msra.mxu0 %v3143
    %3758 = vmatprep.subr.bf16.mxu0 %v3149
    %3759 = vmatpush1.bf16.msra.mxu0 %v3148
    %3760 = vmatprep.subr.bf16.mxu0 %v3154
    %3761 = vmatpush1.bf16.msra.mxu0 %v3153
    %3762 = vmatprep.subr.bf16.mxu0 %v3159
    %3763 = vmatpush1.bf16.msra.mxu0 %v3158
    %3764 = vmatprep.subr.bf16.mxu0 %v3164
    %3765 = vmatpush1.bf16.msra.mxu0 %v3163
    %3766 = vmatprep.subr.bf16.mxu0 %v3169
    %3767 = vmatpush1.bf16.msra.mxu0 %v3168
    %3768 = vmatprep.subr.bf16.mxu0 %v3174
    %3769 = vmatpush1.bf16.msra.mxu0 %v3173
    %3770 = vmatprep.subr.bf16.mxu0 %v3179
    %3771 = vmatpush1.bf16.msra.mxu0 %v3178
    %3772 = vmatprep.subr.bf16.mxu0 %v3184
    %3773 = vmatpush1.bf16.msra.mxu0 %v3183
    %3774 = vmatprep.mubr.bf16.mxu0 %v2861
    %3775 = vmatmul.mubr.bf16.gmra.mrb[0].mxu0 %v2860
    %v3776 = vpop.f32.mrb[0].mxu0
    %v3777 = vadd.f32 %v3736, %v3776
    %v3778 = vpop.f32.mrb[0].mxu0
    %v3779 = vadd.f32 %v3738, %v3778
    %v3780 = vpop.f32.mrb[0].mxu0
    %v3781 = vpop.f32.mrb[0].mxu0
    %3782 = vdwg.mxu0
    %3783 = vmatprep.subr.bf16.mxu0 %v3189
    %3784 = vmatpush1.bf16.msra.mxu0 %v3188
    %3785 = vmatprep.subr.bf16.mxu0 %v3194
    %3786 = vmatpush1.bf16.msra.mxu0 %v3193
    %3787 = vmatprep.subr.bf16.mxu0 %v3199
    %3788 = vmatpush1.bf16.msra.mxu0 %v3198
    %3789 = vmatprep.subr.bf16.mxu0 %v3204
    %3790 = vmatpush1.bf16.msra.mxu0 %v3203
    %3791 = vmatprep.subr.bf16.mxu0 %v3209
    %3792 = vmatpush1.bf16.msra.mxu0 %v3208
    %3793 = vmatprep.subr.bf16.mxu0 %v3214
    %3794 = vmatpush1.bf16.msra.mxu0 %v3213
    %3795 = vmatprep.subr.bf16.mxu0 %v3219
    %3796 = vmatpush1.bf16.msra.mxu0 %v3218
    %3797 = vmatprep.subr.bf16.mxu0 %v3224
    %3798 = vmatpush1.bf16.msra.mxu0 %v3223
    %3799 = vmatprep.subr.bf16.mxu0 %v3229
    %3800 = vmatpush1.bf16.msra.mxu0 %v3228
    %3801 = vmatprep.subr.bf16.mxu0 %v3234
    %3802 = vmatpush1.bf16.msra.mxu0 %v3233
    %3803 = vmatprep.subr.bf16.mxu0 %v3239
    %3804 = vmatpush1.bf16.msra.mxu0 %v3238
    %3805 = vmatprep.subr.bf16.mxu0 %v3244
    %3806 = vmatpush1.bf16.msra.mxu0 %v3243
    %3807 = vmatprep.subr.bf16.mxu0 %v3249
    %3808 = vmatpush1.bf16.msra.mxu0 %v3248
    %3809 = vmatprep.subr.bf16.mxu0 %v3254
    %3810 = vmatpush1.bf16.msra.mxu0 %v3253
    %3811 = vmatprep.subr.bf16.mxu0 %v3259
    %3812 = vmatpush1.bf16.msra.mxu0 %v3258
    %3813 = vmatprep.subr.bf16.mxu0 %v3264
    %3814 = vmatpush1.bf16.msra.mxu0 %v3263
    %3815 = vmatprep.mubr.bf16.mxu0 %v2863
    %3816 = vmatmul.mubr.bf16.gmra.mrb[0].mxu0 %v2862
    %v3817 = vpop.f32.mrb[0].mxu0
    %v3818 = vadd.f32 %v3777, %v3817
    %v3819 = vpop.f32.mrb[0].mxu0
    %v3820 = vadd.f32 %v3779, %v3819
    %v3821 = vpop.f32.mrb[0].mxu0
    %v3822 = vpop.f32.mrb[0].mxu0
    %3823 = vdwg.mxu0
    %3824 = vmatprep.subr.bf16.mxu0 %v3269
    %3825 = vmatpush1.bf16.msra.mxu0 %v3268
    %3826 = vmatprep.subr.bf16.mxu0 %v3274
    %3827 = vmatpush1.bf16.msra.mxu0 %v3273
    %3828 = vmatprep.subr.bf16.mxu0 %v3279
    %3829 = vmatpush1.bf16.msra.mxu0 %v3278
    %3830 = vmatprep.subr.bf16.mxu0 %v3284
    %3831 = vmatpush1.bf16.msra.mxu0 %v3283
    %3832 = vmatprep.subr.bf16.mxu0 %v3289
    %3833 = vmatpush1.bf16.msra.mxu0 %v3288
    %3834 = vmatprep.subr.bf16.mxu0 %v3294
    %3835 = vmatpush1.bf16.msra.mxu0 %v3293
    %3836 = vmatprep.subr.bf16.mxu0 %v3299
    %3837 = vmatpush1.bf16.msra.mxu0 %v3298
    %3838 = vmatprep.subr.bf16.mxu0 %v3304
    %3839 = vmatpush1.bf16.msra.mxu0 %v3303
    %3840 = vmatprep.subr.bf16.mxu0 %v3309
    %3841 = vmatpush1.bf16.msra.mxu0 %v3308
    %3842 = vmatprep.subr.bf16.mxu0 %v3314
    %3843 = vmatpush1.bf16.msra.mxu0 %v3313
    %3844 = vmatprep.subr.bf16.mxu0 %v3319
    %3845 = vmatpush1.bf16.msra.mxu0 %v3318
    %3846 = vmatprep.subr.bf16.mxu0 %v3324
    %3847 = vmatpush1.bf16.msra.mxu0 %v3323
    %3848 = vmatprep.subr.bf16.mxu0 %v3329
    %3849 = vmatpush1.bf16.msra.mxu0 %v3328
    %3850 = vmatprep.subr.bf16.mxu0 %v3334
    %3851 = vmatpush1.bf16.msra.mxu0 %v3333
    %3852 = vmatprep.subr.bf16.mxu0 %v3339
    %3853 = vmatpush1.bf16.msra.mxu0 %v3338
    %3854 = vmatprep.subr.bf16.mxu0 %v3344
    %3855 = vmatpush1.bf16.msra.mxu0 %v3343
    %3856 = vmatprep.mubr.bf16.mxu0 %v2865
    %3857 = vmatmul.mubr.bf16.gmra.mrb[0].mxu0 %v2864
    %v3858 = vpop.f32.mrb[0].mxu0
    %v3859 = vadd.f32 %v3818, %v3858
    %v3860 = vpop.f32.mrb[0].mxu0
    %v3861 = vadd.f32 %v3820, %v3860
    %v3862 = vpop.f32.mrb[0].mxu0
    %v3863 = vpop.f32.mrb[0].mxu0
    %3864 = vdwg.mxu0
    %3865 = vmatprep.subr.bf16.mxu0 0
    %3866 = vmatpush1.bf16.msra.mxu0 %v2870
    %3867 = vmatprep.subr.bf16.mxu0 0
    %3868 = vmatpush1.bf16.msra.mxu0 %v2875
    %3869 = vmatprep.subr.bf16.mxu0 0
    %3870 = vmatpush1.bf16.msra.mxu0 %v2880
    %3871 = vmatprep.subr.bf16.mxu0 0
    %3872 = vmatpush1.bf16.msra.mxu0 %v2885
    %3873 = vmatprep.subr.bf16.mxu0 0
    %3874 = vmatpush1.bf16.msra.mxu0 %v2890
    %3875 = vmatprep.subr.bf16.mxu0 0
    %3876 = vmatpush1.bf16.msra.mxu0 %v2895
    %3877 = vmatprep.subr.bf16.mxu0 0
    %3878 = vmatpush1.bf16.msra.mxu0 %v2900
    %3879 = vmatprep.subr.bf16.mxu0 0
    %3880 = vmatpush1.bf16.msra.mxu0 %v2905
    %3881 = vmatprep.subr.bf16.mxu0 0
    %3882 = vmatpush1.bf16.msra.mxu0 %v2910
    %3883 = vmatprep.subr.bf16.mxu0 0
    %3884 = vmatpush1.bf16.msra.mxu0 %v2915
    %3885 = vmatprep.subr.bf16.mxu0 0
    %3886 = vmatpush1.bf16.msra.mxu0 %v2920
    %3887 = vmatprep.subr.bf16.mxu0 0
    %3888 = vmatpush1.bf16.msra.mxu0 %v2925
    %3889 = vmatprep.subr.bf16.mxu0 0
    %3890 = vmatpush1.bf16.msra.mxu0 %v2930
    %3891 = vmatprep.subr.bf16.mxu0 0
    %3892 = vmatpush1.bf16.msra.mxu0 %v2935
    %3893 = vmatprep.subr.bf16.mxu0 0
    %3894 = vmatpush1.bf16.msra.mxu0 %v2940
    %3895 = vmatprep.subr.bf16.mxu0 0
    %3896 = vmatpush1.bf16.msra.mxu0 %v2945
    %3897 = vmatprep.mubr.bf16.mxu0 %v2855
    %3898 = vmatmul.mubr.bf16.gmra.mrb[0].mxu0 %v2854
    %v3899 = vpop.f32.mrb[0].mxu0
    %v3900 = vadd.f32 %v3367, %v3899
    %v3901 = vpop.f32.mrb[0].mxu0
    %v3902 = vpop.f32.mrb[0].mxu0
    %v3903 = vpop.f32.mrb[0].mxu0
    %3904 = vdwg.mxu0
    %3905 = vmatprep.subr.bf16.mxu0 0
    %3906 = vmatpush1.bf16.msra.mxu0 %v2950
    %3907 = vmatprep.subr.bf16.mxu0 0
    %3908 = vmatpush1.bf16.msra.mxu0 %v2955
    %3909 = vmatprep.subr.bf16.mxu0 0
    %3910 = vmatpush1.bf16.msra.mxu0 %v2960
    %3911 = vmatprep.subr.bf16.mxu0 0
    %3912 = vmatpush1.bf16.msra.mxu0 %v2965
    %3913 = vmatprep.subr.bf16.mxu0 0
    %3914 = vmatpush1.bf16.msra.mxu0 %v2970
    %3915 = vmatprep.subr.bf16.mxu0 0
    %3916 = vmatpush1.bf16.msra.mxu0 %v2975
    %3917 = vmatprep.subr.bf16.mxu0 0
    %3918 = vmatpush1.bf16.msra.mxu0 %v2980
    %3919 = vmatprep.subr.bf16.mxu0 0
    %3920 = vmatpush1.bf16.msra.mxu0 %v2985
    %3921 = vmatprep.subr.bf16.mxu0 0
    %3922 = vmatpush1.bf16.msra.mxu0 %v2990
    %3923 = vmatprep.subr.bf16.mxu0 0
    %3924 = vmatpush1.bf16.msra.mxu0 %v2995
    %3925 = vmatprep.subr.bf16.mxu0 0
    %3926 = vmatpush1.bf16.msra.mxu0 %v3000
    %3927 = vmatprep.subr.bf16.mxu0 0
    %3928 = vmatpush1.bf16.msra.mxu0 %v3005
    %3929 = vmatprep.subr.bf16.mxu0 0
    %3930 = vmatpush1.bf16.msra.mxu0 %v3010
    %3931 = vmatprep.subr.bf16.mxu0 0
    %3932 = vmatpush1.bf16.msra.mxu0 %v3015
    %3933 = vmatprep.subr.bf16.mxu0 0
    %3934 = vmatpush1.bf16.msra.mxu0 %v3020
    %3935 = vmatprep.subr.bf16.mxu0 0
    %3936 = vmatpush1.bf16.msra.mxu0 %v3025
    %3937 = vmatprep.mubr.bf16.mxu0 %v2857
    %3938 = vmatmul.mubr.bf16.gmra.mrb[0].mxu0 %v2856
    %v3939 = vpop.f32.mrb[0].mxu0
    %v3940 = vadd.f32 %v3900, %v3939
    %v3941 = vpop.f32.mrb[0].mxu0
    %v3942 = vpop.f32.mrb[0].mxu0
    %v3943 = vpop.f32.mrb[0].mxu0
    %3944 = vdwg.mxu0
    %3945 = vmatprep.subr.bf16.mxu0 0
    %3946 = vmatpush1.bf16.msra.mxu0 %v3030
    %3947 = vmatprep.subr.bf16.mxu0 0
    %3948 = vmatpush1.bf16.msra.mxu0 %v3035
    %3949 = vmatprep.subr.bf16.mxu0 0
    %3950 = vmatpush1.bf16.msra.mxu0 %v3040
    %3951 = vmatprep.subr.bf16.mxu0 0
    %3952 = vmatpush1.bf16.msra.mxu0 %v3045
    %3953 = vmatprep.subr.bf16.mxu0 0
    %3954 = vmatpush1.bf16.msra.mxu0 %v3050
    %3955 = vmatprep.subr.bf16.mxu0 0
    %3956 = vmatpush1.bf16.msra.mxu0 %v3055
    %3957 = vmatprep.subr.bf16.mxu0 0
    %3958 = vmatpush1.bf16.msra.mxu0 %v3060
    %3959 = vmatprep.subr.bf16.mxu0 0
    %3960 = vmatpush1.bf16.msra.mxu0 %v3065
    %3961 = vmatprep.subr.bf16.mxu0 0
    %3962 = vmatpush1.bf16.msra.mxu0 %v3070
    %3963 = vmatprep.subr.bf16.mxu0 0
    %3964 = vmatpush1.bf16.msra.mxu0 %v3075
    %3965 = vmatprep.subr.bf16.mxu0 0
    %3966 = vmatpush1.bf16.msra.mxu0 %v3080
    %3967 = vmatprep.subr.bf16.mxu0 0
    %3968 = vmatpush1.bf16.msra.mxu0 %v3085
    %3969 = vmatprep.subr.bf16.mxu0 0
    %3970 = vmatpush1.bf16.msra.mxu0 %v3090
    %3971 = vmatprep.subr.bf16.mxu0 0
    %3972 = vmatpush1.bf16.msra.mxu0 %v3095
    %3973 = vmatprep.subr.bf16.mxu0 0
    %3974 = vmatpush1.bf16.msra.mxu0 %v3100
    %3975 = vmatprep.subr.bf16.mxu0 0
    %3976 = vmatpush1.bf16.msra.mxu0 %v3105
    %3977 = vmatprep.mubr.bf16.mxu0 %v2859
    %3978 = vmatmul.mubr.bf16.gmra.mrb[0].mxu0 %v2858
    %v3979 = vpop.f32.mrb[0].mxu0
    %v3980 = vadd.f32 %v3940, %v3979
    %v3981 = vpop.f32.mrb[0].mxu0
    %v3982 = vpop.f32.mrb[0].mxu0
    %v3983 = vpop.f32.mrb[0].mxu0
    %3984 = vdwg.mxu0
    %3985 = vmatprep.subr.bf16.mxu0 0
    %3986 = vmatpush1.bf16.msra.mxu0 %v3110
    %3987 = vmatprep.subr.bf16.mxu0 0
    %3988 = vmatpush1.bf16.msra.mxu0 %v3115
    %3989 = vmatprep.subr.bf16.mxu0 0
    %3990 = vmatpush1.bf16.msra.mxu0 %v3120
    %3991 = vmatprep.subr.bf16.mxu0 0
    %3992 = vmatpush1.bf16.msra.mxu0 %v3125
    %3993 = vmatprep.subr.bf16.mxu0 0
    %3994 = vmatpush1.bf16.msra.mxu0 %v3130
    %3995 = vmatprep.subr.bf16.mxu0 0
    %3996 = vmatpush1.bf16.msra.mxu0 %v3135
    %3997 = vmatprep.subr.bf16.mxu0 0
    %3998 = vmatpush1.bf16.msra.mxu0 %v3140
    %3999 = vmatprep.subr.bf16.mxu0 0
    %4000 = vmatpush1.bf16.msra.mxu0 %v3145
    %4001 = vmatprep.subr.bf16.mxu0 0
    %4002 = vmatpush1.bf16.msra.mxu0 %v3150
    %4003 = vmatprep.subr.bf16.mxu0 0
    %4004 = vmatpush1.bf16.msra.mxu0 %v3155
    %4005 = vmatprep.subr.bf16.mxu0 0
    %4006 = vmatpush1.bf16.msra.mxu0 %v3160
    %4007 = vmatprep.subr.bf16.mxu0 0
    %4008 = vmatpush1.bf16.msra.mxu0 %v3165
    %4009 = vmatprep.subr.bf16.mxu0 0
    %4010 = vmatpush1.bf16.msra.mxu0 %v3170
    %4011 = vmatprep.subr.bf16.mxu0 0
    %4012 = vmatpush1.bf16.msra.mxu0 %v3175
    %4013 = vmatprep.subr.bf16.mxu0 0
    %4014 = vmatpush1.bf16.msra.mxu0 %v3180
    %4015 = vmatprep.subr.bf16.mxu0 0
    %4016 = vmatpush1.bf16.msra.mxu0 %v3185
    %4017 = vmatprep.mubr.bf16.mxu0 %v2861
    %4018 = vmatmul.mubr.bf16.gmra.mrb[0].mxu0 %v2860
    %v4019 = vpop.f32.mrb[0].mxu0
    %v4020 = vadd.f32 %v3980, %v4019
    %v4021 = vpop.f32.mrb[0].mxu0
    %v4022 = vpop.f32.mrb[0].mxu0
    %v4023 = vpop.f32.mrb[0].mxu0
    %4024 = vdwg.mxu0
    %4025 = vmatprep.subr.bf16.mxu0 0
    %4026 = vmatpush1.bf16.msra.mxu0 %v3190
    %4027 = vmatprep.subr.bf16.mxu0 0
    %4028 = vmatpush1.bf16.msra.mxu0 %v3195
    %4029 = vmatprep.subr.bf16.mxu0 0
    %4030 = vmatpush1.bf16.msra.mxu0 %v3200
    %4031 = vmatprep.subr.bf16.mxu0 0
    %4032 = vmatpush1.bf16.msra.mxu0 %v3205
    %4033 = vmatprep.subr.bf16.mxu0 0
    %4034 = vmatpush1.bf16.msra.mxu0 %v3210
    %4035 = vmatprep.subr.bf16.mxu0 0
    %4036 = vmatpush1.bf16.msra.mxu0 %v3215
    %4037 = vmatprep.subr.bf16.mxu0 0
    %4038 = vmatpush1.bf16.msra.mxu0 %v3220
    %4039 = vmatprep.subr.bf16.mxu0 0
    %4040 = vmatpush1.bf16.msra.mxu0 %v3225
    %4041 = vmatprep.subr.bf16.mxu0 0
    %4042 = vmatpush1.bf16.msra.mxu0 %v3230
    %4043 = vmatprep.subr.bf16.mxu0 0
    %4044 = vmatpush1.bf16.msra.mxu0 %v3235
    %4045 = vmatprep.subr.bf16.mxu0 0
    %4046 = vmatpush1.bf16.msra.mxu0 %v3240
    %4047 = vmatprep.subr.bf16.mxu0 0
    %4048 = vmatpush1.bf16.msra.mxu0 %v3245
    %4049 = vmatprep.subr.bf16.mxu0 0
    %4050 = vmatpush1.bf16.msra.mxu0 %v3250
    %4051 = vmatprep.subr.bf16.mxu0 0
    %4052 = vmatpush1.bf16.msra.mxu0 %v3255
    %4053 = vmatprep.subr.bf16.mxu0 0
    %4054 = vmatpush1.bf16.msra.mxu0 %v3260
    %4055 = vmatprep.subr.bf16.mxu0 0
    %4056 = vmatpush1.bf16.msra.mxu0 %v3265
    %4057 = vmatprep.mubr.bf16.mxu0 %v2863
    %4058 = vmatmul.mubr.bf16.gmra.mrb[0].mxu0 %v2862
    %v4059 = vpop.f32.mrb[0].mxu0
    %v4060 = vadd.f32 %v4020, %v4059
    %v4061 = vpop.f32.mrb[0].mxu0
    %v4062 = vpop.f32.mrb[0].mxu0
    %v4063 = vpop.f32.mrb[0].mxu0
    %4064 = vdwg.mxu0
    %4065 = vmatprep.subr.bf16.mxu0 0
    %4066 = vmatpush1.bf16.msra.mxu0 %v3270
    %4067 = vmatprep.subr.bf16.mxu0 0
    %4068 = vmatpush1.bf16.msra.mxu0 %v3275
    %4069 = vmatprep.subr.bf16.mxu0 0
    %4070 = vmatpush1.bf16.msra.mxu0 %v3280
    %4071 = vmatprep.subr.bf16.mxu0 0
    %4072 = vmatpush1.bf16.msra.mxu0 %v3285
    %4073 = vmatprep.subr.bf16.mxu0 0
    %4074 = vmatpush1.bf16.msra.mxu0 %v3290
    %4075 = vmatprep.subr.bf16.mxu0 0
    %4076 = vmatpush1.bf16.msra.mxu0 %v3295
    %4077 = vmatprep.subr.bf16.mxu0 0
    %4078 = vmatpush1.bf16.msra.mxu0 %v3300
    %4079 = vmatprep.subr.bf16.mxu0 0
    %4080 = vmatpush1.bf16.msra.mxu0 %v3305
    %4081 = vmatprep.subr.bf16.mxu0 0
    %4082 = vmatpush1.bf16.msra.mxu0 %v3310
    %4083 = vmatprep.subr.bf16.mxu0 0
    %4084 = vmatpush1.bf16.msra.mxu0 %v3315
    %4085 = vmatprep.subr.bf16.mxu0 0
    %4086 = vmatpush1.bf16.msra.mxu0 %v3320
    %4087 = vmatprep.subr.bf16.mxu0 0
    %4088 = vmatpush1.bf16.msra.mxu0 %v3325
    %4089 = vmatprep.subr.bf16.mxu0 0
    %4090 = vmatpush1.bf16.msra.mxu0 %v3330
    %4091 = vmatprep.subr.bf16.mxu0 0
    %4092 = vmatpush1.bf16.msra.mxu0 %v3335
    %4093 = vmatprep.subr.bf16.mxu0 0
    %4094 = vmatpush1.bf16.msra.mxu0 %v3340
    %4095 = vmatprep.subr.bf16.mxu0 0
    %4096 = vmatpush1.bf16.msra.mxu0 %v3345
    %4097 = vmatprep.mubr.bf16.mxu0 %v2865
    %4098 = vmatmul.mubr.bf16.gmra.mrb[0].mxu0 %v2864
    %v4099 = vpop.f32.mrb[0].mxu0
    %v4100 = vadd.f32 %v4060, %v4099
    %v4101 = vpop.f32.mrb[0].mxu0
    %v4102 = vpop.f32.mrb[0].mxu0
    %v4103 = vpop.f32.mrb[0].mxu0
    %4104 = vdwg.mxu0
    %v4105 = vmax.f32 %v3613, 0.0
    %v4106 = vmax.f32 %v3615, 0.0
    %v4107 = vmax.f32 %v3859, 0.0
    %v4108 = vmax.f32 %v3861, 0.0
    %v4109 = vmax.f32 %v4100, 0.0
    %s4110 = smul.u32 4, 80
    %s4111 = smul.u32 %s4110, 5
    %s4112 = sshll.u32 %s4111, 4
    %4113 = dma.done %s199, %s4112
    %v4114 = vpack.c.bf16 %v4105, %v4105
    %v4115 = vpack.c.bf16 %v4106, %v4106
    %v4116 = vpack.c.bf16 %v4107, %v4107
    %v4117 = vpack.c.bf16 %v4108, %v4108
    %v4118 = vpack.c.bf16 %v4109, %v4109
    %v4119 = vld [vmem:[#allocation9] sm:$0xff]
    %v4120 = vld [vmem:[#allocation9 + $0x8] sm:$0xff]
    %v4121 = vld [vmem:[#allocation9 + $0x10] sm:$0xff]
    %v4122 = vld [vmem:[#allocation9 + $0x18] sm:$0xff]
    %v4123 = vld [vmem:[#allocation9 + $0x20] sm:$0xff]
    %v4124 = vld [vmem:[#allocation9 + $0x28] sm:$0xff]
    %v4125 = vld [vmem:[#allocation9 + $0x30] sm:$0xff]
    %v4126 = vld [vmem:[#allocation9 + $0x38] sm:$0xff]
    %v4127 = vld [vmem:[#allocation9 + $0x40] sm:$0xff]
    %v4128 = vld [vmem:[#allocation9 + $0x48] sm:$0xff]
    %v4129 = vld [vmem:[#allocation9 + $0x50] sm:$0xff]
    %v4130 = vld [vmem:[#allocation9 + $0x58] sm:$0xff]
    %v4131 = vld [vmem:[#allocation9 + $0x60] sm:$0xff]
    %v4132 = vld [vmem:[#allocation9 + $0x68] sm:$0xff]
    %v4133 = vld [vmem:[#allocation9 + $0x70] sm:$0xff]
    %v4134 = vld [vmem:[#allocation9 + $0x78] sm:$0xff]
    %v4135 = vld [vmem:[#allocation9 + $0x80] sm:$0xff]
    %v4136 = vld [vmem:[#allocation9 + $0x88] sm:$0xff]
    %v4137 = vld [vmem:[#allocation9 + $0x90] sm:$0xff]
    %v4138 = vld [vmem:[#allocation9 + $0x98] sm:$0xff]
    %v4139 = vld [vmem:[#allocation9 + $0xa0] sm:$0xff]
    %v4140 = vld [vmem:[#allocation9 + $0xa8] sm:$0xff]
    %v4141 = vld [vmem:[#allocation9 + $0xb0] sm:$0xff]
    %v4142 = vld [vmem:[#allocation9 + $0xb8] sm:$0xff]
    %v4143 = vld [vmem:[#allocation9 + $0xc0] sm:$0xff]
    %v4144 = vld [vmem:[#allocation9 + $0xc8] sm:$0xff]
    %v4145 = vld [vmem:[#allocation9 + $0xd0] sm:$0xff]
    %v4146 = vld [vmem:[#allocation9 + $0xd8] sm:$0xff]
    %v4147 = vld [vmem:[#allocation9 + $0xe0] sm:$0xff]
    %v4148 = vld [vmem:[#allocation9 + $0xe8] sm:$0xff]
    %v4149 = vld [vmem:[#allocation9 + $0xf0] sm:$0xff]
    %v4150 = vld [vmem:[#allocation9 + $0xf8] sm:$0xff]
    %v4151 = vld [vmem:[#allocation9 + $0x100] sm:$0xff]
    %v4152 = vld [vmem:[#allocation9 + $0x108] sm:$0xff]
    %v4153 = vld [vmem:[#allocation9 + $0x110] sm:$0xff]
    %v4154 = vld [vmem:[#allocation9 + $0x118] sm:$0xff]
    %v4155 = vld [vmem:[#allocation9 + $0x120] sm:$0xff]
    %v4156 = vld [vmem:[#allocation9 + $0x128] sm:$0xff]
    %v4157 = vld [vmem:[#allocation9 + $0x130] sm:$0xff]
    %v4158 = vld [vmem:[#allocation9 + $0x138] sm:$0xff]
    %v4159 = vld [vmem:[#allocation9 + $0x140] sm:$0xff]
    %v4160 = vld [vmem:[#allocation9 + $0x148] sm:$0xff]
    %v4161 = vld [vmem:[#allocation9 + $0x150] sm:$0xff]
    %v4162 = vld [vmem:[#allocation9 + $0x158] sm:$0xff]
    %v4163 = vld [vmem:[#allocation9 + $0x160] sm:$0xff]
    %v4164 = vld [vmem:[#allocation9 + $0x168] sm:$0xff]
    %v4165 = vld [vmem:[#allocation9 + $0x170] sm:$0xff]
    %v4166 = vld [vmem:[#allocation9 + $0x178] sm:$0xff]
    %v4167 = vld [vmem:[#allocation9 + $0x180] sm:$0xff]
    %v4168 = vld [vmem:[#allocation9 + $0x188] sm:$0xff]
    %v4169 = vld [vmem:[#allocation9 + $0x190] sm:$0xff]
    %v4170 = vld [vmem:[#allocation9 + $0x198] sm:$0xff]
    %v4171 = vld [vmem:[#allocation9 + $0x1a0] sm:$0xff]
    %v4172 = vld [vmem:[#allocation9 + $0x1a8] sm:$0xff]
    %v4173 = vld [vmem:[#allocation9 + $0x1b0] sm:$0xff]
    %v4174 = vld [vmem:[#allocation9 + $0x1b8] sm:$0xff]
    %v4175 = vld [vmem:[#allocation9 + $0x1c0] sm:$0xff]
    %v4176 = vld [vmem:[#allocation9 + $0x1c8] sm:$0xff]
    %v4177 = vld [vmem:[#allocation9 + $0x1d0] sm:$0xff]
    %v4178 = vld [vmem:[#allocation9 + $0x1d8] sm:$0xff]
    %v4179 = vld [vmem:[#allocation9 + $0x1e0] sm:$0xff]
    %v4180 = vld [vmem:[#allocation9 + $0x1e8] sm:$0xff]
    %v4181 = vld [vmem:[#allocation9 + $0x1f0] sm:$0xff]
    %v4182 = vld [vmem:[#allocation9 + $0x1f8] sm:$0xff]
    %v4183 = vld [vmem:[#allocation9 + $0x200] sm:$0xff]
    %v4184 = vld [vmem:[#allocation9 + $0x208] sm:$0xff]
    %v4185 = vld [vmem:[#allocation9 + $0x210] sm:$0xff]
    %v4186 = vld [vmem:[#allocation9 + $0x218] sm:$0xff]
    %v4187 = vld [vmem:[#allocation9 + $0x220] sm:$0xff]
    %v4188 = vld [vmem:[#allocation9 + $0x228] sm:$0xff]
    %v4189 = vld [vmem:[#allocation9 + $0x230] sm:$0xff]
    %v4190 = vld [vmem:[#allocation9 + $0x238] sm:$0xff]
    %v4191 = vld [vmem:[#allocation9 + $0x240] sm:$0xff]
    %v4192 = vld [vmem:[#allocation9 + $0x248] sm:$0xff]
    %v4193 = vld [vmem:[#allocation9 + $0x250] sm:$0xff]
    %v4194 = vld [vmem:[#allocation9 + $0x258] sm:$0xff]
    %v4195 = vld [vmem:[#allocation9 + $0x260] sm:$0xff]
    %v4196 = vld [vmem:[#allocation9 + $0x268] sm:$0xff]
    %v4197 = vld [vmem:[#allocation9 + $0x270] sm:$0xff]
    %v4198 = vld [vmem:[#allocation9 + $0x278] sm:$0xff]
    %v4199 = vld [vmem:[#allocation9 + $0x280] sm:$0xff]
    %v4200 = vld [vmem:[#allocation9 + $0x288] sm:$0xff]
    %v4201 = vld [vmem:[#allocation9 + $0x290] sm:$0xff]
    %v4202 = vld [vmem:[#allocation9 + $0x298] sm:$0xff]
    %v4203 = vld [vmem:[#allocation9 + $0x2a0] sm:$0xff]
    %v4204 = vld [vmem:[#allocation9 + $0x2a8] sm:$0xff]
    %v4205 = vld [vmem:[#allocation9 + $0x2b0] sm:$0xff]
    %v4206 = vld [vmem:[#allocation9 + $0x2b8] sm:$0xff]
    %v4207 = vld [vmem:[#allocation9 + $0x2c0] sm:$0xff]
    %v4208 = vld [vmem:[#allocation9 + $0x2c8] sm:$0xff]
    %v4209 = vld [vmem:[#allocation9 + $0x2d0] sm:$0xff]
    %v4210 = vld [vmem:[#allocation9 + $0x2d8] sm:$0xff]
    %v4211 = vld [vmem:[#allocation9 + $0x2e0] sm:$0xff]
    %v4212 = vld [vmem:[#allocation9 + $0x2e8] sm:$0xff]
    %v4213 = vld [vmem:[#allocation9 + $0x2f0] sm:$0xff]
    %v4214 = vld [vmem:[#allocation9 + $0x2f8] sm:$0xff]
    %v4215 = vld [vmem:[#allocation9 + $0x300] sm:$0xff]
    %v4216 = vld [vmem:[#allocation9 + $0x308] sm:$0xff]
    %v4217 = vld [vmem:[#allocation9 + $0x310] sm:$0xff]
    %v4218 = vld [vmem:[#allocation9 + $0x318] sm:$0xff]
    %v4219 = vld [vmem:[#allocation9 + $0x320] sm:$0xff]
    %v4220 = vld [vmem:[#allocation9 + $0x328] sm:$0xff]
    %v4221 = vld [vmem:[#allocation9 + $0x330] sm:$0xff]
    %v4222 = vld [vmem:[#allocation9 + $0x338] sm:$0xff]
    %v4223 = vld [vmem:[#allocation9 + $0x340] sm:$0xff]
    %v4224 = vld [vmem:[#allocation9 + $0x348] sm:$0xff]
    %v4225 = vld [vmem:[#allocation9 + $0x350] sm:$0xff]
    %v4226 = vld [vmem:[#allocation9 + $0x358] sm:$0xff]
    %v4227 = vld [vmem:[#allocation9 + $0x360] sm:$0xff]
    %v4228 = vld [vmem:[#allocation9 + $0x368] sm:$0xff]
    %v4229 = vld [vmem:[#allocation9 + $0x370] sm:$0xff]
    %v4230 = vld [vmem:[#allocation9 + $0x378] sm:$0xff]
    %v4231 = vld [vmem:[#allocation9 + $0x380] sm:$0xff]
    %v4232 = vld [vmem:[#allocation9 + $0x388] sm:$0xff]
    %v4233 = vld [vmem:[#allocation9 + $0x390] sm:$0xff]
    %v4234 = vld [vmem:[#allocation9 + $0x398] sm:$0xff]
    %v4235 = vld [vmem:[#allocation9 + $0x3a0] sm:$0xff]
    %v4236 = vld [vmem:[#allocation9 + $0x3a8] sm:$0xff]
    %v4237 = vld [vmem:[#allocation9 + $0x3b0] sm:$0xff]
    %v4238 = vld [vmem:[#allocation9 + $0x3b8] sm:$0xff]
    %v4239 = vld [vmem:[#allocation9 + $0x3c0] sm:$0xff]
    %v4240 = vld [vmem:[#allocation9 + $0x3c8] sm:$0xff]
    %v4241 = vld [vmem:[#allocation9 + $0x3d0] sm:$0xff]
    %v4242 = vld [vmem:[#allocation9 + $0x3d8] sm:$0xff]
    %v4243 = vld [vmem:[#allocation9 + $0x3e0] sm:$0xff]
    %v4244 = vld [vmem:[#allocation9 + $0x3e8] sm:$0xff]
    %v4245 = vld [vmem:[#allocation9 + $0x3f0] sm:$0xff]
    %v4246 = vld [vmem:[#allocation9 + $0x3f8] sm:$0xff]
    %v4247 = vld [vmem:[#allocation9 + $0x400] sm:$0xff]
    %v4248 = vld [vmem:[#allocation9 + $0x408] sm:$0xff]
    %v4249 = vld [vmem:[#allocation9 + $0x410] sm:$0xff]
    %v4250 = vld [vmem:[#allocation9 + $0x418] sm:$0xff]
    %v4251 = vld [vmem:[#allocation9 + $0x420] sm:$0xff]
    %v4252 = vld [vmem:[#allocation9 + $0x428] sm:$0xff]
    %v4253 = vld [vmem:[#allocation9 + $0x430] sm:$0xff]
    %v4254 = vld [vmem:[#allocation9 + $0x438] sm:$0xff]
    %v4255 = vld [vmem:[#allocation9 + $0x440] sm:$0xff]
    %v4256 = vld [vmem:[#allocation9 + $0x448] sm:$0xff]
    %v4257 = vld [vmem:[#allocation9 + $0x450] sm:$0xff]
    %v4258 = vld [vmem:[#allocation9 + $0x458] sm:$0xff]
    %v4259 = vld [vmem:[#allocation9 + $0x460] sm:$0xff]
    %v4260 = vld [vmem:[#allocation9 + $0x468] sm:$0xff]
    %v4261 = vld [vmem:[#allocation9 + $0x470] sm:$0xff]
    %v4262 = vld [vmem:[#allocation9 + $0x478] sm:$0xff]
    %v4263 = vld [vmem:[#allocation9 + $0x480] sm:$0xff]
    %v4264 = vld [vmem:[#allocation9 + $0x488] sm:$0xff]
    %v4265 = vld [vmem:[#allocation9 + $0x490] sm:$0xff]
    %v4266 = vld [vmem:[#allocation9 + $0x498] sm:$0xff]
    %v4267 = vld [vmem:[#allocation9 + $0x4a0] sm:$0xff]
    %v4268 = vld [vmem:[#allocation9 + $0x4a8] sm:$0xff]
    %v4269 = vld [vmem:[#allocation9 + $0x4b0] sm:$0xff]
    %v4270 = vld [vmem:[#allocation9 + $0x4b8] sm:$0xff]
    %v4271 = vld [vmem:[#allocation9 + $0x4c0] sm:$0xff]
    %v4272 = vld [vmem:[#allocation9 + $0x4c8] sm:$0xff]
    %v4273 = vld [vmem:[#allocation9 + $0x4d0] sm:$0xff]
    %v4274 = vld [vmem:[#allocation9 + $0x4d8] sm:$0xff]
    %v4275 = vld [vmem:[#allocation9 + $0x4e0] sm:$0xff]
    %v4276 = vld [vmem:[#allocation9 + $0x4e8] sm:$0xff]
    %v4277 = vld [vmem:[#allocation9 + $0x4f0] sm:$0xff]
    %v4278 = vld [vmem:[#allocation9 + $0x4f8] sm:$0xff]
    %v4279 = vld [vmem:[#allocation9 + $0x500] sm:$0xff]
    %v4280 = vld [vmem:[#allocation9 + $0x508] sm:$0xff]
    %v4281 = vld [vmem:[#allocation9 + $0x510] sm:$0xff]
    %v4282 = vld [vmem:[#allocation9 + $0x518] sm:$0xff]
    %v4283 = vld [vmem:[#allocation9 + $0x520] sm:$0xff]
    %v4284 = vld [vmem:[#allocation9 + $0x528] sm:$0xff]
    %v4285 = vld [vmem:[#allocation9 + $0x530] sm:$0xff]
    %v4286 = vld [vmem:[#allocation9 + $0x538] sm:$0xff]
    %v4287 = vld [vmem:[#allocation9 + $0x540] sm:$0xff]
    %v4288 = vld [vmem:[#allocation9 + $0x548] sm:$0xff]
    %v4289 = vld [vmem:[#allocation9 + $0x550] sm:$0xff]
    %v4290 = vld [vmem:[#allocation9 + $0x558] sm:$0xff]
    %v4291 = vld [vmem:[#allocation9 + $0x560] sm:$0xff]
    %v4292 = vld [vmem:[#allocation9 + $0x568] sm:$0xff]
    %v4293 = vld [vmem:[#allocation9 + $0x570] sm:$0xff]
    %v4294 = vld [vmem:[#allocation9 + $0x578] sm:$0xff]
    %v4295 = vld [vmem:[#allocation9 + $0x580] sm:$0xff]
    %v4296 = vld [vmem:[#allocation9 + $0x588] sm:$0xff]
    %v4297 = vld [vmem:[#allocation9 + $0x590] sm:$0xff]
    %v4298 = vld [vmem:[#allocation9 + $0x598] sm:$0xff]
    %v4299 = vld [vmem:[#allocation9 + $0x5a0] sm:$0xff]
    %v4300 = vld [vmem:[#allocation9 + $0x5a8] sm:$0xff]
    %v4301 = vld [vmem:[#allocation9 + $0x5b0] sm:$0xff]
    %v4302 = vld [vmem:[#allocation9 + $0x5b8] sm:$0xff]
    %v4303 = vld [vmem:[#allocation9 + $0x5c0] sm:$0xff]
    %v4304 = vld [vmem:[#allocation9 + $0x5c8] sm:$0xff]
    %v4305 = vld [vmem:[#allocation9 + $0x5d0] sm:$0xff]
    %v4306 = vld [vmem:[#allocation9 + $0x5d8] sm:$0xff]
    %v4307 = vld [vmem:[#allocation9 + $0x5e0] sm:$0xff]
    %v4308 = vld [vmem:[#allocation9 + $0x5e8] sm:$0xff]
    %v4309 = vld [vmem:[#allocation9 + $0x5f0] sm:$0xff]
    %v4310 = vld [vmem:[#allocation9 + $0x5f8] sm:$0xff]
    %v4311 = vld [vmem:[#allocation9 + $0x600] sm:$0xff]
    %v4312 = vld [vmem:[#allocation9 + $0x608] sm:$0xff]
    %v4313 = vld [vmem:[#allocation9 + $0x610] sm:$0xff]
    %v4314 = vld [vmem:[#allocation9 + $0x618] sm:$0xff]
    %v4315 = vld [vmem:[#allocation9 + $0x620] sm:$0xff]
    %v4316 = vld [vmem:[#allocation9 + $0x628] sm:$0xff]
    %v4317 = vld [vmem:[#allocation9 + $0x630] sm:$0xff]
    %v4318 = vld [vmem:[#allocation9 + $0x638] sm:$0xff]
    %v4319 = vld [vmem:[#allocation25] sm:$0x1f]
    %v4321 = vlaneseq
    %v4322 = vshrl.u32 %v4321, 7
    %v4323 = vsub.s32 0, %v4322
    %v4324 = vrot.slane %v4319, %v4323
    %v4325 = vlaneseq
    %v4326 = vshrl.u32 %v4325, 7
    %v4327 = vsub.s32 1, %v4326
    %v4328 = vrot.slane %v4319, %v4327
    %v4329 = vlaneseq
    %v4330 = vshrl.u32 %v4329, 7
    %v4331 = vsub.s32 2, %v4330
    %v4332 = vrot.slane %v4319, %v4331
    %v4333 = vlaneseq
    %v4334 = vshrl.u32 %v4333, 7
    %v4335 = vsub.s32 3, %v4334
    %v4336 = vrot.slane %v4319, %v4335
    %v4337 = vlaneseq
    %v4338 = vshrl.u32 %v4337, 7
    %v4339 = vsub.s32 4, %v4338
    %v4340 = vrot.slane %v4319, %v4339
    %4346 = vmatprep.subr.bf16.mxu0 %v4120
    %4347 = vmatpush1.bf16.msra.mxu0 %v4119
    %4348 = vmatprep.subr.bf16.mxu0 %v4125
    %4349 = vmatpush1.bf16.msra.mxu0 %v4124
    %4350 = vmatprep.subr.bf16.mxu0 %v4130
    %4351 = vmatpush1.bf16.msra.mxu0 %v4129
    %4352 = vmatprep.subr.bf16.mxu0 %v4135
    %4353 = vmatpush1.bf16.msra.mxu0 %v4134
    %4354 = vmatprep.subr.bf16.mxu0 %v4140
    %4355 = vmatpush1.bf16.msra.mxu0 %v4139
    %4356 = vmatprep.subr.bf16.mxu0 %v4145
    %4357 = vmatpush1.bf16.msra.mxu0 %v4144
    %4358 = vmatprep.subr.bf16.mxu0 %v4150
    %4359 = vmatpush1.bf16.msra.mxu0 %v4149
    %4360 = vmatprep.subr.bf16.mxu0 %v4155
    %4361 = vmatpush1.bf16.msra.mxu0 %v4154
    %4362 = vmatprep.subr.bf16.mxu0 %v4160
    %4363 = vmatpush1.bf16.msra.mxu0 %v4159
    %4364 = vmatprep.subr.bf16.mxu0 %v4165
    %4365 = vmatpush1.bf16.msra.mxu0 %v4164
    %4366 = vmatprep.subr.bf16.mxu0 %v4170
    %4367 = vmatpush1.bf16.msra.mxu0 %v4169
    %4368 = vmatprep.subr.bf16.mxu0 %v4175
    %4369 = vmatpush1.bf16.msra.mxu0 %v4174
    %4370 = vmatprep.subr.bf16.mxu0 %v4180
    %4371 = vmatpush1.bf16.msra.mxu0 %v4179
    %4372 = vmatprep.subr.bf16.mxu0 %v4185
    %4373 = vmatpush1.bf16.msra.mxu0 %v4184
    %4374 = vmatprep.subr.bf16.mxu0 %v4190
    %4375 = vmatpush1.bf16.msra.mxu0 %v4189
    %4376 = vmatprep.subr.bf16.mxu0 %v4195
    %4377 = vmatpush1.bf16.msra.mxu0 %v4194
    %4378 = vmatprep.mubr.bf16.mxu0 %v4115
    %4379 = vmatmul.mubr.bf16.gmra.mrb[0].mxu0 %v4114
    %v4380 = vpop.f32.mrb[0].mxu0
    %v4381 = vadd.f32 %v4324, %v4380
    %v4382 = vpop.f32.mrb[0].mxu0
    %v4383 = vadd.f32 %v4328, %v4382
    %v4384 = vpop.f32.mrb[0].mxu0
    %v4385 = vpop.f32.mrb[0].mxu0
    %4386 = vdwg.mxu0
    %4387 = vmatprep.subr.bf16.mxu0 %v4200
    %4388 = vmatpush1.bf16.msra.mxu0 %v4199
    %4389 = vmatprep.subr.bf16.mxu0 %v4205
    %4390 = vmatpush1.bf16.msra.mxu0 %v4204
    %4391 = vmatprep.subr.bf16.mxu0 %v4210
    %4392 = vmatpush1.bf16.msra.mxu0 %v4209
    %4393 = vmatprep.subr.bf16.mxu0 %v4215
    %4394 = vmatpush1.bf16.msra.mxu0 %v4214
    %4395 = vmatprep.subr.bf16.mxu0 %v4220
    %4396 = vmatpush1.bf16.msra.mxu0 %v4219
    %4397 = vmatprep.subr.bf16.mxu0 %v4225
    %4398 = vmatpush1.bf16.msra.mxu0 %v4224
    %4399 = vmatprep.subr.bf16.mxu0 %v4230
    %4400 = vmatpush1.bf16.msra.mxu0 %v4229
    %4401 = vmatprep.subr.bf16.mxu0 %v4235
    %4402 = vmatpush1.bf16.msra.mxu0 %v4234
    %4403 = vmatprep.subr.bf16.mxu0 %v4240
    %4404 = vmatpush1.bf16.msra.mxu0 %v4239
    %4405 = vmatprep.subr.bf16.mxu0 %v4245
    %4406 = vmatpush1.bf16.msra.mxu0 %v4244
    %4407 = vmatprep.subr.bf16.mxu0 %v4250
    %4408 = vmatpush1.bf16.msra.mxu0 %v4249
    %4409 = vmatprep.subr.bf16.mxu0 %v4255
    %4410 = vmatpush1.bf16.msra.mxu0 %v4254
    %4411 = vmatprep.subr.bf16.mxu0 %v4260
    %4412 = vmatpush1.bf16.msra.mxu0 %v4259
    %4413 = vmatprep.subr.bf16.mxu0 %v4265
    %4414 = vmatpush1.bf16.msra.mxu0 %v4264
    %4415 = vmatprep.subr.bf16.mxu0 %v4270
    %4416 = vmatpush1.bf16.msra.mxu0 %v4269
    %4417 = vmatprep.subr.bf16.mxu0 %v4275
    %4418 = vmatpush1.bf16.msra.mxu0 %v4274
    %4419 = vmatprep.mubr.bf16.mxu0 %v4117
    %4420 = vmatmul.mubr.bf16.gmra.mrb[0].mxu0 %v4116
    %v4421 = vpop.f32.mrb[0].mxu0
    %v4422 = vadd.f32 %v4381, %v4421
    %v4423 = vpop.f32.mrb[0].mxu0
    %v4424 = vadd.f32 %v4383, %v4423
    %v4425 = vpop.f32.mrb[0].mxu0
    %v4426 = vpop.f32.mrb[0].mxu0
    %4427 = vdwg.mxu0
    %4428 = vmatprep.subr.bf16.mxu0 %v4280
    %4429 = vmatpush1.bf16.msra.mxu0 %v4279
    %4430 = vmatprep.subr.bf16.mxu0 %v4285
    %4431 = vmatpush1.bf16.msra.mxu0 %v4284
    %4432 = vmatprep.subr.bf16.mxu0 %v4290
    %4433 = vmatpush1.bf16.msra.mxu0 %v4289
    %4434 = vmatprep.subr.bf16.mxu0 %v4295
    %4435 = vmatpush1.bf16.msra.mxu0 %v4294
    %4436 = vmatprep.subr.bf16.mxu0 %v4300
    %4437 = vmatpush1.bf16.msra.mxu0 %v4299
    %4438 = vmatprep.subr.bf16.mxu0 %v4305
    %4439 = vmatpush1.bf16.msra.mxu0 %v4304
    %4440 = vmatprep.subr.bf16.mxu0 %v4310
    %4441 = vmatpush1.bf16.msra.mxu0 %v4309
    %4442 = vmatprep.subr.bf16.mxu0 %v4315
    %4443 = vmatpush1.bf16.msra.mxu0 %v4314
    %4444 = vmatprep.subr.bf16.mxu0 0
    %4445 = vmatpush1.bf16.msra.mxu0 0
    %4446 = vmatprep.subr.bf16.mxu0 0
    %4447 = vmatpush1.bf16.msra.mxu0 0
    %4448 = vmatprep.subr.bf16.mxu0 0
    %4449 = vmatpush1.bf16.msra.mxu0 0
    %4450 = vmatprep.subr.bf16.mxu0 0
    %4451 = vmatpush1.bf16.msra.mxu0 0
    %4452 = vmatprep.subr.bf16.mxu0 0
    %4453 = vmatpush1.bf16.msra.mxu0 0
    %4454 = vmatprep.subr.bf16.mxu0 0
    %4455 = vmatpush1.bf16.msra.mxu0 0
    %4456 = vmatprep.subr.bf16.mxu0 0
    %4457 = vmatpush1.bf16.msra.mxu0 0
    %4458 = vmatprep.subr.bf16.mxu0 0
    %4459 = vmatpush1.bf16.msra.mxu0 0
    %4460 = vmatprep.mubr.bf16.mxu0 0
    %4461 = vmatmul.mubr.bf16.gmra.mrb[0].mxu0 %v4118
    %v4462 = vpop.f32.mrb[0].mxu0
    %v4463 = vadd.f32 %v4422, %v4462
    %v4464 = vpop.f32.mrb[0].mxu0
    %v4465 = vadd.f32 %v4424, %v4464
    %v4466 = vpop.f32.mrb[0].mxu0
    %v4467 = vpop.f32.mrb[0].mxu0
    %4468 = vdwg.mxu0
    %4469 = vmatprep.subr.bf16.mxu0 %v4122
    %4470 = vmatpush1.bf16.msra.mxu0 %v4121
    %4471 = vmatprep.subr.bf16.mxu0 %v4127
    %4472 = vmatpush1.bf16.msra.mxu0 %v4126
    %4473 = vmatprep.subr.bf16.mxu0 %v4132
    %4474 = vmatpush1.bf16.msra.mxu0 %v4131
    %4475 = vmatprep.subr.bf16.mxu0 %v4137
    %4476 = vmatpush1.bf16.msra.mxu0 %v4136
    %4477 = vmatprep.subr.bf16.mxu0 %v4142
    %4478 = vmatpush1.bf16.msra.mxu0 %v4141
    %4479 = vmatprep.subr.bf16.mxu0 %v4147
    %4480 = vmatpush1.bf16.msra.mxu0 %v4146
    %4481 = vmatprep.subr.bf16.mxu0 %v4152
    %4482 = vmatpush1.bf16.msra.mxu0 %v4151
    %4483 = vmatprep.subr.bf16.mxu0 %v4157
    %4484 = vmatpush1.bf16.msra.mxu0 %v4156
    %4485 = vmatprep.subr.bf16.mxu0 %v4162
    %4486 = vmatpush1.bf16.msra.mxu0 %v4161
    %4487 = vmatprep.subr.bf16.mxu0 %v4167
    %4488 = vmatpush1.bf16.msra.mxu0 %v4166
    %4489 = vmatprep.subr.bf16.mxu0 %v4172
    %4490 = vmatpush1.bf16.msra.mxu0 %v4171
    %4491 = vmatprep.subr.bf16.mxu0 %v4177
    %4492 = vmatpush1.bf16.msra.mxu0 %v4176
    %4493 = vmatprep.subr.bf16.mxu0 %v4182
    %4494 = vmatpush1.bf16.msra.mxu0 %v4181
    %4495 = vmatprep.subr.bf16.mxu0 %v4187
    %4496 = vmatpush1.bf16.msra.mxu0 %v4186
    %4497 = vmatprep.subr.bf16.mxu0 %v4192
    %4498 = vmatpush1.bf16.msra.mxu0 %v4191
    %4499 = vmatprep.subr.bf16.mxu0 %v4197
    %4500 = vmatpush1.bf16.msra.mxu0 %v4196
    %4501 = vmatprep.mubr.bf16.mxu0 %v4115
    %4502 = vmatmul.mubr.bf16.gmra.mrb[0].mxu0 %v4114
    %v4503 = vpop.f32.mrb[0].mxu0
    %v4504 = vadd.f32 %v4332, %v4503
    %v4505 = vpop.f32.mrb[0].mxu0
    %v4506 = vadd.f32 %v4336, %v4505
    %v4507 = vpop.f32.mrb[0].mxu0
    %v4508 = vpop.f32.mrb[0].mxu0
    %4509 = vdwg.mxu0
    %4510 = vmatprep.subr.bf16.mxu0 %v4202
    %4511 = vmatpush1.bf16.msra.mxu0 %v4201
    %4512 = vmatprep.subr.bf16.mxu0 %v4207
    %4513 = vmatpush1.bf16.msra.mxu0 %v4206
    %4514 = vmatprep.subr.bf16.mxu0 %v4212
    %4515 = vmatpush1.bf16.msra.mxu0 %v4211
    %4516 = vmatprep.subr.bf16.mxu0 %v4217
    %4517 = vmatpush1.bf16.msra.mxu0 %v4216
    %4518 = vmatprep.subr.bf16.mxu0 %v4222
    %4519 = vmatpush1.bf16.msra.mxu0 %v4221
    %4520 = vmatprep.subr.bf16.mxu0 %v4227
    %4521 = vmatpush1.bf16.msra.mxu0 %v4226
    %4522 = vmatprep.subr.bf16.mxu0 %v4232
    %4523 = vmatpush1.bf16.msra.mxu0 %v4231
    %4524 = vmatprep.subr.bf16.mxu0 %v4237
    %4525 = vmatpush1.bf16.msra.mxu0 %v4236
    %4526 = vmatprep.subr.bf16.mxu0 %v4242
    %4527 = vmatpush1.bf16.msra.mxu0 %v4241
    %4528 = vmatprep.subr.bf16.mxu0 %v4247
    %4529 = vmatpush1.bf16.msra.mxu0 %v4246
    %4530 = vmatprep.subr.bf16.mxu0 %v4252
    %4531 = vmatpush1.bf16.msra.mxu0 %v4251
    %4532 = vmatprep.subr.bf16.mxu0 %v4257
    %4533 = vmatpush1.bf16.msra.mxu0 %v4256
    %4534 = vmatprep.subr.bf16.mxu0 %v4262
    %4535 = vmatpush1.bf16.msra.mxu0 %v4261
    %4536 = vmatprep.subr.bf16.mxu0 %v4267
    %4537 = vmatpush1.bf16.msra.mxu0 %v4266
    %4538 = vmatprep.subr.bf16.mxu0 %v4272
    %4539 = vmatpush1.bf16.msra.mxu0 %v4271
    %4540 = vmatprep.subr.bf16.mxu0 %v4277
    %4541 = vmatpush1.bf16.msra.mxu0 %v4276
    %4542 = vmatprep.mubr.bf16.mxu0 %v4117
    %4543 = vmatmul.mubr.bf16.gmra.mrb[0].mxu0 %v4116
    %v4544 = vpop.f32.mrb[0].mxu0
    %v4545 = vadd.f32 %v4504, %v4544
    %v4546 = vpop.f32.mrb[0].mxu0
    %v4547 = vadd.f32 %v4506, %v4546
    %v4548 = vpop.f32.mrb[0].mxu0
    %v4549 = vpop.f32.mrb[0].mxu0
    %4550 = vdwg.mxu0
    %4551 = vmatprep.subr.bf16.mxu0 %v4282
    %4552 = vmatpush1.bf16.msra.mxu0 %v4281
    %4553 = vmatprep.subr.bf16.mxu0 %v4287
    %4554 = vmatpush1.bf16.msra.mxu0 %v4286
    %4555 = vmatprep.subr.bf16.mxu0 %v4292
    %4556 = vmatpush1.bf16.msra.mxu0 %v4291
    %4557 = vmatprep.subr.bf16.mxu0 %v4297
    %4558 = vmatpush1.bf16.msra.mxu0 %v4296
    %4559 = vmatprep.subr.bf16.mxu0 %v4302
    %4560 = vmatpush1.bf16.msra.mxu0 %v4301
    %4561 = vmatprep.subr.bf16.mxu0 %v4307
    %4562 = vmatpush1.bf16.msra.mxu0 %v4306
    %4563 = vmatprep.subr.bf16.mxu0 %v4312
    %4564 = vmatpush1.bf16.msra.mxu0 %v4311
    %4565 = vmatprep.subr.bf16.mxu0 %v4317
    %4566 = vmatpush1.bf16.msra.mxu0 %v4316
    %4567 = vmatprep.subr.bf16.mxu0 0
    %4568 = vmatpush1.bf16.msra.mxu0 0
    %4569 = vmatprep.subr.bf16.mxu0 0
    %4570 = vmatpush1.bf16.msra.mxu0 0
    %4571 = vmatprep.subr.bf16.mxu0 0
    %4572 = vmatpush1.bf16.msra.mxu0 0
    %4573 = vmatprep.subr.bf16.mxu0 0
    %4574 = vmatpush1.bf16.msra.mxu0 0
    %4575 = vmatprep.subr.bf16.mxu0 0
    %4576 = vmatpush1.bf16.msra.mxu0 0
    %4577 = vmatprep.subr.bf16.mxu0 0
    %4578 = vmatpush1.bf16.msra.mxu0 0
    %4579 = vmatprep.subr.bf16.mxu0 0
    %4580 = vmatpush1.bf16.msra.mxu0 0
    %4581 = vmatprep.subr.bf16.mxu0 0
    %4582 = vmatpush1.bf16.msra.mxu0 0
    %4583 = vmatprep.mubr.bf16.mxu0 0
    %4584 = vmatmul.mubr.bf16.gmra.mrb[0].mxu0 %v4118
    %v4585 = vpop.f32.mrb[0].mxu0
    %v4586 = vadd.f32 %v4545, %v4585
    %v4587 = vpop.f32.mrb[0].mxu0
    %v4588 = vadd.f32 %v4547, %v4587
    %v4589 = vpop.f32.mrb[0].mxu0
    %v4590 = vpop.f32.mrb[0].mxu0
    %4591 = vdwg.mxu0
    %4592 = vmatprep.subr.bf16.mxu0 0
    %4593 = vmatpush1.bf16.msra.mxu0 %v4123
    %4594 = vmatprep.subr.bf16.mxu0 0
    %4595 = vmatpush1.bf16.msra.mxu0 %v4128
    %4596 = vmatprep.subr.bf16.mxu0 0
    %4597 = vmatpush1.bf16.msra.mxu0 %v4133
    %4598 = vmatprep.subr.bf16.mxu0 0
    %4599 = vmatpush1.bf16.msra.mxu0 %v4138
    %4600 = vmatprep.subr.bf16.mxu0 0
    %4601 = vmatpush1.bf16.msra.mxu0 %v4143
    %4602 = vmatprep.subr.bf16.mxu0 0
    %4603 = vmatpush1.bf16.msra.mxu0 %v4148
    %4604 = vmatprep.subr.bf16.mxu0 0
    %4605 = vmatpush1.bf16.msra.mxu0 %v4153
    %4606 = vmatprep.subr.bf16.mxu0 0
    %4607 = vmatpush1.bf16.msra.mxu0 %v4158
    %4608 = vmatprep.subr.bf16.mxu0 0
    %4609 = vmatpush1.bf16.msra.mxu0 %v4163
    %4610 = vmatprep.subr.bf16.mxu0 0
    %4611 = vmatpush1.bf16.msra.mxu0 %v4168
    %4612 = vmatprep.subr.bf16.mxu0 0
    %4613 = vmatpush1.bf16.msra.mxu0 %v4173
    %4614 = vmatprep.subr.bf16.mxu0 0
    %4615 = vmatpush1.bf16.msra.mxu0 %v4178
    %4616 = vmatprep.subr.bf16.mxu0 0
    %4617 = vmatpush1.bf16.msra.mxu0 %v4183
    %4618 = vmatprep.subr.bf16.mxu0 0
    %4619 = vmatpush1.bf16.msra.mxu0 %v4188
    %4620 = vmatprep.subr.bf16.mxu0 0
    %4621 = vmatpush1.bf16.msra.mxu0 %v4193
    %4622 = vmatprep.subr.bf16.mxu0 0
    %4623 = vmatpush1.bf16.msra.mxu0 %v4198
    %4624 = vmatprep.mubr.bf16.mxu0 %v4115
    %4625 = vmatmul.mubr.bf16.gmra.mrb[0].mxu0 %v4114
    %v4626 = vpop.f32.mrb[0].mxu0
    %v4627 = vadd.f32 %v4340, %v4626
    %v4628 = vpop.f32.mrb[0].mxu0
    %v4629 = vpop.f32.mrb[0].mxu0
    %v4630 = vpop.f32.mrb[0].mxu0
    %4631 = vdwg.mxu0
    %4632 = vmatprep.subr.bf16.mxu0 0
    %4633 = vmatpush1.bf16.msra.mxu0 %v4203
    %4634 = vmatprep.subr.bf16.mxu0 0
    %4635 = vmatpush1.bf16.msra.mxu0 %v4208
    %4636 = vmatprep.subr.bf16.mxu0 0
    %4637 = vmatpush1.bf16.msra.mxu0 %v4213
    %4638 = vmatprep.subr.bf16.mxu0 0
    %4639 = vmatpush1.bf16.msra.mxu0 %v4218
    %4640 = vmatprep.subr.bf16.mxu0 0
    %4641 = vmatpush1.bf16.msra.mxu0 %v4223
    %4642 = vmatprep.subr.bf16.mxu0 0
    %4643 = vmatpush1.bf16.msra.mxu0 %v4228
    %4644 = vmatprep.subr.bf16.mxu0 0
    %4645 = vmatpush1.bf16.msra.mxu0 %v4233
    %4646 = vmatprep.subr.bf16.mxu0 0
    %4647 = vmatpush1.bf16.msra.mxu0 %v4238
    %4648 = vmatprep.subr.bf16.mxu0 0
    %4649 = vmatpush1.bf16.msra.mxu0 %v4243
    %4650 = vmatprep.subr.bf16.mxu0 0
    %4651 = vmatpush1.bf16.msra.mxu0 %v4248
    %4652 = vmatprep.subr.bf16.mxu0 0
    %4653 = vmatpush1.bf16.msra.mxu0 %v4253
    %4654 = vmatprep.subr.bf16.mxu0 0
    %4655 = vmatpush1.bf16.msra.mxu0 %v4258
    %4656 = vmatprep.subr.bf16.mxu0 0
    %4657 = vmatpush1.bf16.msra.mxu0 %v4263
    %4658 = vmatprep.subr.bf16.mxu0 0
    %4659 = vmatpush1.bf16.msra.mxu0 %v4268
    %4660 = vmatprep.subr.bf16.mxu0 0
    %4661 = vmatpush1.bf16.msra.mxu0 %v4273
    %4662 = vmatprep.subr.bf16.mxu0 0
    %4663 = vmatpush1.bf16.msra.mxu0 %v4278
    %4664 = vmatprep.mubr.bf16.mxu0 %v4117
    %4665 = vmatmul.mubr.bf16.gmra.mrb[0].mxu0 %v4116
    %v4666 = vpop.f32.mrb[0].mxu0
    %v4667 = vadd.f32 %v4627, %v4666
    %v4668 = vpop.f32.mrb[0].mxu0
    %v4669 = vpop.f32.mrb[0].mxu0
    %v4670 = vpop.f32.mrb[0].mxu0
    %4671 = vdwg.mxu0
    %4672 = vmatprep.subr.bf16.mxu0 0
    %4673 = vmatpush1.bf16.msra.mxu0 %v4283
    %4674 = vmatprep.subr.bf16.mxu0 0
    %4675 = vmatpush1.bf16.msra.mxu0 %v4288
    %4676 = vmatprep.subr.bf16.mxu0 0
    %4677 = vmatpush1.bf16.msra.mxu0 %v4293
    %4678 = vmatprep.subr.bf16.mxu0 0
    %4679 = vmatpush1.bf16.msra.mxu0 %v4298
    %4680 = vmatprep.subr.bf16.mxu0 0
    %4681 = vmatpush1.bf16.msra.mxu0 %v4303
    %4682 = vmatprep.subr.bf16.mxu0 0
    %4683 = vmatpush1.bf16.msra.mxu0 %v4308
    %4684 = vmatprep.subr.bf16.mxu0 0
    %4685 = vmatpush1.bf16.msra.mxu0 %v4313
    %4686 = vmatprep.subr.bf16.mxu0 0
    %4687 = vmatpush1.bf16.msra.mxu0 %v4318
    %4688 = vmatprep.subr.bf16.mxu0 0
    %4689 = vmatpush1.bf16.msra.mxu0 0
    %4690 = vmatprep.subr.bf16.mxu0 0
    %4691 = vmatpush1.bf16.msra.mxu0 0
    %4692 = vmatprep.subr.bf16.mxu0 0
    %4693 = vmatpush1.bf16.msra.mxu0 0
    %4694 = vmatprep.subr.bf16.mxu0 0
    %4695 = vmatpush1.bf16.msra.mxu0 0
    %4696 = vmatprep.subr.bf16.mxu0 0
    %4697 = vmatpush1.bf16.msra.mxu0 0
    %4698 = vmatprep.subr.bf16.mxu0 0
    %4699 = vmatpush1.bf16.msra.mxu0 0
    %4700 = vmatprep.subr.bf16.mxu0 0
    %4701 = vmatpush1.bf16.msra.mxu0 0
    %4702 = vmatprep.subr.bf16.mxu0 0
    %4703 = vmatpush1.bf16.msra.mxu0 0
    %4704 = vmatprep.mubr.bf16.mxu0 0
    %4705 = vmatmul.mubr.bf16.gmra.mrb[0].mxu0 %v4118
    %v4706 = vpop.f32.mrb[0].mxu0
    %v4707 = vadd.f32 %v4667, %v4706
    %v4708 = vpop.f32.mrb[0].mxu0
    %v4709 = vpop.f32.mrb[0].mxu0
    %v4710 = vpop.f32.mrb[0].mxu0
    %4711 = vdwg.mxu0
    %v4712 = vmax.f32 %v4463, 0.0
    %v4713 = vmax.f32 %v4465, 0.0
    %v4714 = vmax.f32 %v4586, 0.0
    %v4715 = vmax.f32 %v4588, 0.0
    %v4716 = vmax.f32 %v4707, 0.0
    %s4717 = sshll.u32 %s4111, 4
    %4718 = dma.done %s234, %s4717
    %v4719 = vpack.c.bf16 %v4712, %v4712
    %v4720 = vpack.c.bf16 %v4713, %v4713
    %v4721 = vpack.c.bf16 %v4714, %v4714
    %v4722 = vpack.c.bf16 %v4715, %v4715
    %v4723 = vpack.c.bf16 %v4716, %v4716
    %v4724 = vld [vmem:[#allocation10] sm:$0xff]
    %v4725 = vld [vmem:[#allocation10 + $0x8] sm:$0xff]
    %v4726 = vld [vmem:[#allocation10 + $0x10] sm:$0xff]
    %v4727 = vld [vmem:[#allocation10 + $0x18] sm:$0xff]
    %v4728 = vld [vmem:[#allocation10 + $0x20] sm:$0xff]
    %v4729 = vld [vmem:[#allocation10 + $0x28] sm:$0xff]
    %v4730 = vld [vmem:[#allocation10 + $0x30] sm:$0xff]
    %v4731 = vld [vmem:[#allocation10 + $0x38] sm:$0xff]
    %v4732 = vld [vmem:[#allocation10 + $0x40] sm:$0xff]
    %v4733 = vld [vmem:[#allocation10 + $0x48] sm:$0xff]
    %v4734 = vld [vmem:[#allocation10 + $0x50] sm:$0xff]
    %v4735 = vld [vmem:[#allocation10 + $0x58] sm:$0xff]
    %v4736 = vld [vmem:[#allocation10 + $0x60] sm:$0xff]
    %v4737 = vld [vmem:[#allocation10 + $0x68] sm:$0xff]
    %v4738 = vld [vmem:[#allocation10 + $0x70] sm:$0xff]
    %v4739 = vld [vmem:[#allocation10 + $0x78] sm:$0xff]
    %v4740 = vld [vmem:[#allocation10 + $0x80] sm:$0xff]
    %v4741 = vld [vmem:[#allocation10 + $0x88] sm:$0xff]
    %v4742 = vld [vmem:[#allocation10 + $0x90] sm:$0xff]
    %v4743 = vld [vmem:[#allocation10 + $0x98] sm:$0xff]
    %v4744 = vld [vmem:[#allocation10 + $0xa0] sm:$0xff]
    %v4745 = vld [vmem:[#allocation10 + $0xa8] sm:$0xff]
    %v4746 = vld [vmem:[#allocation10 + $0xb0] sm:$0xff]
    %v4747 = vld [vmem:[#allocation10 + $0xb8] sm:$0xff]
    %v4748 = vld [vmem:[#allocation10 + $0xc0] sm:$0xff]
    %v4749 = vld [vmem:[#allocation10 + $0xc8] sm:$0xff]
    %v4750 = vld [vmem:[#allocation10 + $0xd0] sm:$0xff]
    %v4751 = vld [vmem:[#allocation10 + $0xd8] sm:$0xff]
    %v4752 = vld [vmem:[#allocation10 + $0xe0] sm:$0xff]
    %v4753 = vld [vmem:[#allocation10 + $0xe8] sm:$0xff]
    %v4754 = vld [vmem:[#allocation10 + $0xf0] sm:$0xff]
    %v4755 = vld [vmem:[#allocation10 + $0xf8] sm:$0xff]
    %v4756 = vld [vmem:[#allocation10 + $0x100] sm:$0xff]
    %v4757 = vld [vmem:[#allocation10 + $0x108] sm:$0xff]
    %v4758 = vld [vmem:[#allocation10 + $0x110] sm:$0xff]
    %v4759 = vld [vmem:[#allocation10 + $0x118] sm:$0xff]
    %v4760 = vld [vmem:[#allocation10 + $0x120] sm:$0xff]
    %v4761 = vld [vmem:[#allocation10 + $0x128] sm:$0xff]
    %v4762 = vld [vmem:[#allocation10 + $0x130] sm:$0xff]
    %v4763 = vld [vmem:[#allocation10 + $0x138] sm:$0xff]
    %v4764 = vld [vmem:[#allocation10 + $0x140] sm:$0xff]
    %v4765 = vld [vmem:[#allocation10 + $0x148] sm:$0xff]
    %v4766 = vld [vmem:[#allocation10 + $0x150] sm:$0xff]
    %v4767 = vld [vmem:[#allocation10 + $0x158] sm:$0xff]
    %v4768 = vld [vmem:[#allocation10 + $0x160] sm:$0xff]
    %v4769 = vld [vmem:[#allocation10 + $0x168] sm:$0xff]
    %v4770 = vld [vmem:[#allocation10 + $0x170] sm:$0xff]
    %v4771 = vld [vmem:[#allocation10 + $0x178] sm:$0xff]
    %v4772 = vld [vmem:[#allocation10 + $0x180] sm:$0xff]
    %v4773 = vld [vmem:[#allocation10 + $0x188] sm:$0xff]
    %v4774 = vld [vmem:[#allocation10 + $0x190] sm:$0xff]
    %v4775 = vld [vmem:[#allocation10 + $0x198] sm:$0xff]
    %v4776 = vld [vmem:[#allocation10 + $0x1a0] sm:$0xff]
    %v4777 = vld [vmem:[#allocation10 + $0x1a8] sm:$0xff]
    %v4778 = vld [vmem:[#allocation10 + $0x1b0] sm:$0xff]
    %v4779 = vld [vmem:[#allocation10 + $0x1b8] sm:$0xff]
    %v4780 = vld [vmem:[#allocation10 + $0x1c0] sm:$0xff]
    %v4781 = vld [vmem:[#allocation10 + $0x1c8] sm:$0xff]
    %v4782 = vld [vmem:[#allocation10 + $0x1d0] sm:$0xff]
    %v4783 = vld [vmem:[#allocation10 + $0x1d8] sm:$0xff]
    %v4784 = vld [vmem:[#allocation10 + $0x1e0] sm:$0xff]
    %v4785 = vld [vmem:[#allocation10 + $0x1e8] sm:$0xff]
    %v4786 = vld [vmem:[#allocation10 + $0x1f0] sm:$0xff]
    %v4787 = vld [vmem:[#allocation10 + $0x1f8] sm:$0xff]
    %v4788 = vld [vmem:[#allocation10 + $0x200] sm:$0xff]
    %v4789 = vld [vmem:[#allocation10 + $0x208] sm:$0xff]
    %v4790 = vld [vmem:[#allocation10 + $0x210] sm:$0xff]
    %v4791 = vld [vmem:[#allocation10 + $0x218] sm:$0xff]
    %v4792 = vld [vmem:[#allocation10 + $0x220] sm:$0xff]
    %v4793 = vld [vmem:[#allocation10 + $0x228] sm:$0xff]
    %v4794 = vld [vmem:[#allocation10 + $0x230] sm:$0xff]
    %v4795 = vld [vmem:[#allocation10 + $0x238] sm:$0xff]
    %v4796 = vld [vmem:[#allocation10 + $0x240] sm:$0xff]
    %v4797 = vld [vmem:[#allocation10 + $0x248] sm:$0xff]
    %v4798 = vld [vmem:[#allocation10 + $0x250] sm:$0xff]
    %v4799 = vld [vmem:[#allocation10 + $0x258] sm:$0xff]
    %v4800 = vld [vmem:[#allocation10 + $0x260] sm:$0xff]
    %v4801 = vld [vmem:[#allocation10 + $0x268] sm:$0xff]
    %v4802 = vld [vmem:[#allocation10 + $0x270] sm:$0xff]
    %v4803 = vld [vmem:[#allocation10 + $0x278] sm:$0xff]
    %v4804 = vld [vmem:[#allocation10 + $0x280] sm:$0xff]
    %v4805 = vld [vmem:[#allocation10 + $0x288] sm:$0xff]
    %v4806 = vld [vmem:[#allocation10 + $0x290] sm:$0xff]
    %v4807 = vld [vmem:[#allocation10 + $0x298] sm:$0xff]
    %v4808 = vld [vmem:[#allocation10 + $0x2a0] sm:$0xff]
    %v4809 = vld [vmem:[#allocation10 + $0x2a8] sm:$0xff]
    %v4810 = vld [vmem:[#allocation10 + $0x2b0] sm:$0xff]
    %v4811 = vld [vmem:[#allocation10 + $0x2b8] sm:$0xff]
    %v4812 = vld [vmem:[#allocation10 + $0x2c0] sm:$0xff]
    %v4813 = vld [vmem:[#allocation10 + $0x2c8] sm:$0xff]
    %v4814 = vld [vmem:[#allocation10 + $0x2d0] sm:$0xff]
    %v4815 = vld [vmem:[#allocation10 + $0x2d8] sm:$0xff]
    %v4816 = vld [vmem:[#allocation10 + $0x2e0] sm:$0xff]
    %v4817 = vld [vmem:[#allocation10 + $0x2e8] sm:$0xff]
    %v4818 = vld [vmem:[#allocation10 + $0x2f0] sm:$0xff]
    %v4819 = vld [vmem:[#allocation10 + $0x2f8] sm:$0xff]
    %v4820 = vld [vmem:[#allocation10 + $0x300] sm:$0xff]
    %v4821 = vld [vmem:[#allocation10 + $0x308] sm:$0xff]
    %v4822 = vld [vmem:[#allocation10 + $0x310] sm:$0xff]
    %v4823 = vld [vmem:[#allocation10 + $0x318] sm:$0xff]
    %v4824 = vld [vmem:[#allocation10 + $0x320] sm:$0xff]
    %v4825 = vld [vmem:[#allocation10 + $0x328] sm:$0xff]
    %v4826 = vld [vmem:[#allocation10 + $0x330] sm:$0xff]
    %v4827 = vld [vmem:[#allocation10 + $0x338] sm:$0xff]
    %v4828 = vld [vmem:[#allocation10 + $0x340] sm:$0xff]
    %v4829 = vld [vmem:[#allocation10 + $0x348] sm:$0xff]
    %v4830 = vld [vmem:[#allocation10 + $0x350] sm:$0xff]
    %v4831 = vld [vmem:[#allocation10 + $0x358] sm:$0xff]
    %v4832 = vld [vmem:[#allocation10 + $0x360] sm:$0xff]
    %v4833 = vld [vmem:[#allocation10 + $0x368] sm:$0xff]
    %v4834 = vld [vmem:[#allocation10 + $0x370] sm:$0xff]
    %v4835 = vld [vmem:[#allocation10 + $0x378] sm:$0xff]
    %v4836 = vld [vmem:[#allocation10 + $0x380] sm:$0xff]
    %v4837 = vld [vmem:[#allocation10 + $0x388] sm:$0xff]
    %v4838 = vld [vmem:[#allocation10 + $0x390] sm:$0xff]
    %v4839 = vld [vmem:[#allocation10 + $0x398] sm:$0xff]
    %v4840 = vld [vmem:[#allocation10 + $0x3a0] sm:$0xff]
    %v4841 = vld [vmem:[#allocation10 + $0x3a8] sm:$0xff]
    %v4842 = vld [vmem:[#allocation10 + $0x3b0] sm:$0xff]
    %v4843 = vld [vmem:[#allocation10 + $0x3b8] sm:$0xff]
    %v4844 = vld [vmem:[#allocation10 + $0x3c0] sm:$0xff]
    %v4845 = vld [vmem:[#allocation10 + $0x3c8] sm:$0xff]
    %v4846 = vld [vmem:[#allocation10 + $0x3d0] sm:$0xff]
    %v4847 = vld [vmem:[#allocation10 + $0x3d8] sm:$0xff]
    %v4848 = vld [vmem:[#allocation10 + $0x3e0] sm:$0xff]
    %v4849 = vld [vmem:[#allocation10 + $0x3e8] sm:$0xff]
    %v4850 = vld [vmem:[#allocation10 + $0x3f0] sm:$0xff]
    %v4851 = vld [vmem:[#allocation10 + $0x3f8] sm:$0xff]
    %v4852 = vld [vmem:[#allocation10 + $0x400] sm:$0xff]
    %v4853 = vld [vmem:[#allocation10 + $0x408] sm:$0xff]
    %v4854 = vld [vmem:[#allocation10 + $0x410] sm:$0xff]
    %v4855 = vld [vmem:[#allocation10 + $0x418] sm:$0xff]
    %v4856 = vld [vmem:[#allocation10 + $0x420] sm:$0xff]
    %v4857 = vld [vmem:[#allocation10 + $0x428] sm:$0xff]
    %v4858 = vld [vmem:[#allocation10 + $0x430] sm:$0xff]
    %v4859 = vld [vmem:[#allocation10 + $0x438] sm:$0xff]
    %v4860 = vld [vmem:[#allocation10 + $0x440] sm:$0xff]
    %v4861 = vld [vmem:[#allocation10 + $0x448] sm:$0xff]
    %v4862 = vld [vmem:[#allocation10 + $0x450] sm:$0xff]
    %v4863 = vld [vmem:[#allocation10 + $0x458] sm:$0xff]
    %v4864 = vld [vmem:[#allocation10 + $0x460] sm:$0xff]
    %v4865 = vld [vmem:[#allocation10 + $0x468] sm:$0xff]
    %v4866 = vld [vmem:[#allocation10 + $0x470] sm:$0xff]
    %v4867 = vld [vmem:[#allocation10 + $0x478] sm:$0xff]
    %v4868 = vld [vmem:[#allocation10 + $0x480] sm:$0xff]
    %v4869 = vld [vmem:[#allocation10 + $0x488] sm:$0xff]
    %v4870 = vld [vmem:[#allocation10 + $0x490] sm:$0xff]
    %v4871 = vld [vmem:[#allocation10 + $0x498] sm:$0xff]
    %v4872 = vld [vmem:[#allocation10 + $0x4a0] sm:$0xff]
    %v4873 = vld [vmem:[#allocation10 + $0x4a8] sm:$0xff]
    %v4874 = vld [vmem:[#allocation10 + $0x4b0] sm:$0xff]
    %v4875 = vld [vmem:[#allocation10 + $0x4b8] sm:$0xff]
    %v4876 = vld [vmem:[#allocation10 + $0x4c0] sm:$0xff]
    %v4877 = vld [vmem:[#allocation10 + $0x4c8] sm:$0xff]
    %v4878 = vld [vmem:[#allocation10 + $0x4d0] sm:$0xff]
    %v4879 = vld [vmem:[#allocation10 + $0x4d8] sm:$0xff]
    %v4880 = vld [vmem:[#allocation10 + $0x4e0] sm:$0xff]
    %v4881 = vld [vmem:[#allocation10 + $0x4e8] sm:$0xff]
    %v4882 = vld [vmem:[#allocation10 + $0x4f0] sm:$0xff]
    %v4883 = vld [vmem:[#allocation10 + $0x4f8] sm:$0xff]
    %v4884 = vld [vmem:[#allocation10 + $0x500] sm:$0xff]
    %v4885 = vld [vmem:[#allocation10 + $0x508] sm:$0xff]
    %v4886 = vld [vmem:[#allocation10 + $0x510] sm:$0xff]
    %v4887 = vld [vmem:[#allocation10 + $0x518] sm:$0xff]
    %v4888 = vld [vmem:[#allocation10 + $0x520] sm:$0xff]
    %v4889 = vld [vmem:[#allocation10 + $0x528] sm:$0xff]
    %v4890 = vld [vmem:[#allocation10 + $0x530] sm:$0xff]
    %v4891 = vld [vmem:[#allocation10 + $0x538] sm:$0xff]
    %v4892 = vld [vmem:[#allocation10 + $0x540] sm:$0xff]
    %v4893 = vld [vmem:[#allocation10 + $0x548] sm:$0xff]
    %v4894 = vld [vmem:[#allocation10 + $0x550] sm:$0xff]
    %v4895 = vld [vmem:[#allocation10 + $0x558] sm:$0xff]
    %v4896 = vld [vmem:[#allocation10 + $0x560] sm:$0xff]
    %v4897 = vld [vmem:[#allocation10 + $0x568] sm:$0xff]
    %v4898 = vld [vmem:[#allocation10 + $0x570] sm:$0xff]
    %v4899 = vld [vmem:[#allocation10 + $0x578] sm:$0xff]
    %v4900 = vld [vmem:[#allocation10 + $0x580] sm:$0xff]
    %v4901 = vld [vmem:[#allocation10 + $0x588] sm:$0xff]
    %v4902 = vld [vmem:[#allocation10 + $0x590] sm:$0xff]
    %v4903 = vld [vmem:[#allocation10 + $0x598] sm:$0xff]
    %v4904 = vld [vmem:[#allocation10 + $0x5a0] sm:$0xff]
    %v4905 = vld [vmem:[#allocation10 + $0x5a8] sm:$0xff]
    %v4906 = vld [vmem:[#allocation10 + $0x5b0] sm:$0xff]
    %v4907 = vld [vmem:[#allocation10 + $0x5b8] sm:$0xff]
    %v4908 = vld [vmem:[#allocation10 + $0x5c0] sm:$0xff]
    %v4909 = vld [vmem:[#allocation10 + $0x5c8] sm:$0xff]
    %v4910 = vld [vmem:[#allocation10 + $0x5d0] sm:$0xff]
    %v4911 = vld [vmem:[#allocation10 + $0x5d8] sm:$0xff]
    %v4912 = vld [vmem:[#allocation10 + $0x5e0] sm:$0xff]
    %v4913 = vld [vmem:[#allocation10 + $0x5e8] sm:$0xff]
    %v4914 = vld [vmem:[#allocation10 + $0x5f0] sm:$0xff]
    %v4915 = vld [vmem:[#allocation10 + $0x5f8] sm:$0xff]
    %v4916 = vld [vmem:[#allocation10 + $0x600] sm:$0xff]
    %v4917 = vld [vmem:[#allocation10 + $0x608] sm:$0xff]
    %v4918 = vld [vmem:[#allocation10 + $0x610] sm:$0xff]
    %v4919 = vld [vmem:[#allocation10 + $0x618] sm:$0xff]
    %v4920 = vld [vmem:[#allocation10 + $0x620] sm:$0xff]
    %v4921 = vld [vmem:[#allocation10 + $0x628] sm:$0xff]
    %v4922 = vld [vmem:[#allocation10 + $0x630] sm:$0xff]
    %v4923 = vld [vmem:[#allocation10 + $0x638] sm:$0xff]
    %v4924 = vld [vmem:[#allocation27] sm:$0x1f]
    %v4926 = vlaneseq
    %v4927 = vshrl.u32 %v4926, 7
    %v4928 = vsub.s32 0, %v4927
    %v4929 = vrot.slane %v4924, %v4928
    %v4930 = vlaneseq
    %v4931 = vshrl.u32 %v4930, 7
    %v4932 = vsub.s32 1, %v4931
    %v4933 = vrot.slane %v4924, %v4932
    %v4934 = vlaneseq
    %v4935 = vshrl.u32 %v4934, 7
    %v4936 = vsub.s32 2, %v4935
    %v4937 = vrot.slane %v4924, %v4936
    %v4938 = vlaneseq
    %v4939 = vshrl.u32 %v4938, 7
    %v4940 = vsub.s32 3, %v4939
    %v4941 = vrot.slane %v4924, %v4940
    %v4942 = vlaneseq
    %v4943 = vshrl.u32 %v4942, 7
    %v4944 = vsub.s32 4, %v4943
    %v4945 = vrot.slane %v4924, %v4944
    %4951 = vmatprep.subr.bf16.mxu0 %v4725
    %4952 = vmatpush1.bf16.msra.mxu0 %v4724
    %4953 = vmatprep.subr.bf16.mxu0 %v4730
    %4954 = vmatpush1.bf16.msra.mxu0 %v4729
    %4955 = vmatprep.subr.bf16.mxu0 %v4735
    %4956 = vmatpush1.bf16.msra.mxu0 %v4734
    %4957 = vmatprep.subr.bf16.mxu0 %v4740
    %4958 = vmatpush1.bf16.msra.mxu0 %v4739
    %4959 = vmatprep.subr.bf16.mxu0 %v4745
    %4960 = vmatpush1.bf16.msra.mxu0 %v4744
    %4961 = vmatprep.subr.bf16.mxu0 %v4750
    %4962 = vmatpush1.bf16.msra.mxu0 %v4749
    %4963 = vmatprep.subr.bf16.mxu0 %v4755
    %4964 = vmatpush1.bf16.msra.mxu0 %v4754
    %4965 = vmatprep.subr.bf16.mxu0 %v4760
    %4966 = vmatpush1.bf16.msra.mxu0 %v4759
    %4967 = vmatprep.subr.bf16.mxu0 %v4765
    %4968 = vmatpush1.bf16.msra.mxu0 %v4764
    %4969 = vmatprep.subr.bf16.mxu0 %v4770
    %4970 = vmatpush1.bf16.msra.mxu0 %v4769
    %4971 = vmatprep.subr.bf16.mxu0 %v4775
    %4972 = vmatpush1.bf16.msra.mxu0 %v4774
    %4973 = vmatprep.subr.bf16.mxu0 %v4780
    %4974 = vmatpush1.bf16.msra.mxu0 %v4779
    %4975 = vmatprep.subr.bf16.mxu0 %v4785
    %4976 = vmatpush1.bf16.msra.mxu0 %v4784
    %4977 = vmatprep.subr.bf16.mxu0 %v4790
    %4978 = vmatpush1.bf16.msra.mxu0 %v4789
    %4979 = vmatprep.subr.bf16.mxu0 %v4795
    %4980 = vmatpush1.bf16.msra.mxu0 %v4794
    %4981 = vmatprep.subr.bf16.mxu0 %v4800
    %4982 = vmatpush1.bf16.msra.mxu0 %v4799
    %4983 = vmatprep.mubr.bf16.mxu0 %v4720
    %4984 = vmatmul.mubr.bf16.gmra.mrb[0].mxu0 %v4719
    %v4985 = vpop.f32.mrb[0].mxu0
    %v4986 = vadd.f32 %v4929, %v4985
    %v4987 = vpop.f32.mrb[0].mxu0
    %v4988 = vadd.f32 %v4933, %v4987
    %v4989 = vpop.f32.mrb[0].mxu0
    %v4990 = vpop.f32.mrb[0].mxu0
    %4991 = vdwg.mxu0
    %4992 = vmatprep.subr.bf16.mxu0 %v4805
    %4993 = vmatpush1.bf16.msra.mxu0 %v4804
    %4994 = vmatprep.subr.bf16.mxu0 %v4810
    %4995 = vmatpush1.bf16.msra.mxu0 %v4809
    %4996 = vmatprep.subr.bf16.mxu0 %v4815
    %4997 = vmatpush1.bf16.msra.mxu0 %v4814
    %4998 = vmatprep.subr.bf16.mxu0 %v4820
    %4999 = vmatpush1.bf16.msra.mxu0 %v4819
    %5000 = vmatprep.subr.bf16.mxu0 %v4825
    %5001 = vmatpush1.bf16.msra.mxu0 %v4824
    %5002 = vmatprep.subr.bf16.mxu0 %v4830
    %5003 = vmatpush1.bf16.msra.mxu0 %v4829
    %5004 = vmatprep.subr.bf16.mxu0 %v4835
    %5005 = vmatpush1.bf16.msra.mxu0 %v4834
    %5006 = vmatprep.subr.bf16.mxu0 %v4840
    %5007 = vmatpush1.bf16.msra.mxu0 %v4839
    %5008 = vmatprep.subr.bf16.mxu0 %v4845
    %5009 = vmatpush1.bf16.msra.mxu0 %v4844
    %5010 = vmatprep.subr.bf16.mxu0 %v4850
    %5011 = vmatpush1.bf16.msra.mxu0 %v4849
    %5012 = vmatprep.subr.bf16.mxu0 %v4855
    %5013 = vmatpush1.bf16.msra.mxu0 %v4854
    %5014 = vmatprep.subr.bf16.mxu0 %v4860
    %5015 = vmatpush1.bf16.msra.mxu0 %v4859
    %5016 = vmatprep.subr.bf16.mxu0 %v4865
    %5017 = vmatpush1.bf16.msra.mxu0 %v4864
    %5018 = vmatprep.subr.bf16.mxu0 %v4870
    %5019 = vmatpush1.bf16.msra.mxu0 %v4869
    %5020 = vmatprep.subr.bf16.mxu0 %v4875
    %5021 = vmatpush1.bf16.msra.mxu0 %v4874
    %5022 = vmatprep.subr.bf16.mxu0 %v4880
    %5023 = vmatpush1.bf16.msra.mxu0 %v4879
    %5024 = vmatprep.mubr.bf16.mxu0 %v4722
    %5025 = vmatmul.mubr.bf16.gmra.mrb[0].mxu0 %v4721
    %v5026 = vpop.f32.mrb[0].mxu0
    %v5027 = vadd.f32 %v4986, %v5026
    %v5028 = vpop.f32.mrb[0].mxu0
    %v5029 = vadd.f32 %v4988, %v5028
    %v5030 = vpop.f32.mrb[0].mxu0
    %v5031 = vpop.f32.mrb[0].mxu0
    %5032 = vdwg.mxu0
    %5033 = vmatprep.subr.bf16.mxu0 %v4885
    %5034 = vmatpush1.bf16.msra.mxu0 %v4884
    %5035 = vmatprep.subr.bf16.mxu0 %v4890
    %5036 = vmatpush1.bf16.msra.mxu0 %v4889
    %5037 = vmatprep.subr.bf16.mxu0 %v4895
    %5038 = vmatpush1.bf16.msra.mxu0 %v4894
    %5039 = vmatprep.subr.bf16.mxu0 %v4900
    %5040 = vmatpush1.bf16.msra.mxu0 %v4899
    %5041 = vmatprep.subr.bf16.mxu0 %v4905
    %5042 = vmatpush1.bf16.msra.mxu0 %v4904
    %5043 = vmatprep.subr.bf16.mxu0 %v4910
    %5044 = vmatpush1.bf16.msra.mxu0 %v4909
    %5045 = vmatprep.subr.bf16.mxu0 %v4915
    %5046 = vmatpush1.bf16.msra.mxu0 %v4914
    %5047 = vmatprep.subr.bf16.mxu0 %v4920
    %5048 = vmatpush1.bf16.msra.mxu0 %v4919
    %5049 = vmatprep.subr.bf16.mxu0 0
    %5050 = vmatpush1.bf16.msra.mxu0 0
    %5051 = vmatprep.subr.bf16.mxu0 0
    %5052 = vmatpush1.bf16.msra.mxu0 0
    %5053 = vmatprep.subr.bf16.mxu0 0
    %5054 = vmatpush1.bf16.msra.mxu0 0
    %5055 = vmatprep.subr.bf16.mxu0 0
    %5056 = vmatpush1.bf16.msra.mxu0 0
    %5057 = vmatprep.subr.bf16.mxu0 0
    %5058 = vmatpush1.bf16.msra.mxu0 0
    %5059 = vmatprep.subr.bf16.mxu0 0
    %5060 = vmatpush1.bf16.msra.mxu0 0
    %5061 = vmatprep.subr.bf16.mxu0 0
    %5062 = vmatpush1.bf16.msra.mxu0 0
    %5063 = vmatprep.subr.bf16.mxu0 0
    %5064 = vmatpush1.bf16.msra.mxu0 0
    %5065 = vmatprep.mubr.bf16.mxu0 0
    %5066 = vmatmul.mubr.bf16.gmra.mrb[0].mxu0 %v4723
    %v5067 = vpop.f32.mrb[0].mxu0
    %v5068 = vadd.f32 %v5027, %v5067
    %v5069 = vpop.f32.mrb[0].mxu0
    %v5070 = vadd.f32 %v5029, %v5069
    %v5071 = vpop.f32.mrb[0].mxu0
    %v5072 = vpop.f32.mrb[0].mxu0
    %5073 = vdwg.mxu0
    %5074 = vmatprep.subr.bf16.mxu0 %v4727
    %5075 = vmatpush1.bf16.msra.mxu0 %v4726
    %5076 = vmatprep.subr.bf16.mxu0 %v4732
    %5077 = vmatpush1.bf16.msra.mxu0 %v4731
    %5078 = vmatprep.subr.bf16.mxu0 %v4737
    %5079 = vmatpush1.bf16.msra.mxu0 %v4736
    %5080 = vmatprep.subr.bf16.mxu0 %v4742
    %5081 = vmatpush1.bf16.msra.mxu0 %v4741
    %5082 = vmatprep.subr.bf16.mxu0 %v4747
    %5083 = vmatpush1.bf16.msra.mxu0 %v4746
    %5084 = vmatprep.subr.bf16.mxu0 %v4752
    %5085 = vmatpush1.bf16.msra.mxu0 %v4751
    %5086 = vmatprep.subr.bf16.mxu0 %v4757
    %5087 = vmatpush1.bf16.msra.mxu0 %v4756
    %5088 = vmatprep.subr.bf16.mxu0 %v4762
    %5089 = vmatpush1.bf16.msra.mxu0 %v4761
    %5090 = vmatprep.subr.bf16.mxu0 %v4767
    %5091 = vmatpush1.bf16.msra.mxu0 %v4766
    %5092 = vmatprep.subr.bf16.mxu0 %v4772
    %5093 = vmatpush1.bf16.msra.mxu0 %v4771
    %5094 = vmatprep.subr.bf16.mxu0 %v4777
    %5095 = vmatpush1.bf16.msra.mxu0 %v4776
    %5096 = vmatprep.subr.bf16.mxu0 %v4782
    %5097 = vmatpush1.bf16.msra.mxu0 %v4781
    %5098 = vmatprep.subr.bf16.mxu0 %v4787
    %5099 = vmatpush1.bf16.msra.mxu0 %v4786
    %5100 = vmatprep.subr.bf16.mxu0 %v4792
    %5101 = vmatpush1.bf16.msra.mxu0 %v4791
    %5102 = vmatprep.subr.bf16.mxu0 %v4797
    %5103 = vmatpush1.bf16.msra.mxu0 %v4796
    %5104 = vmatprep.subr.bf16.mxu0 %v4802
    %5105 = vmatpush1.bf16.msra.mxu0 %v4801
    %5106 = vmatprep.mubr.bf16.mxu0 %v4720
    %5107 = vmatmul.mubr.bf16.gmra.mrb[0].mxu0 %v4719
    %v5108 = vpop.f32.mrb[0].mxu0
    %v5109 = vadd.f32 %v4937, %v5108
    %v5110 = vpop.f32.mrb[0].mxu0
    %v5111 = vadd.f32 %v4941, %v5110
    %v5112 = vpop.f32.mrb[0].mxu0
    %v5113 = vpop.f32.mrb[0].mxu0
    %5114 = vdwg.mxu0
    %5115 = vmatprep.subr.bf16.mxu0 %v4807
    %5116 = vmatpush1.bf16.msra.mxu0 %v4806
    %5117 = vmatprep.subr.bf16.mxu0 %v4812
    %5118 = vmatpush1.bf16.msra.mxu0 %v4811
    %5119 = vmatprep.subr.bf16.mxu0 %v4817
    %5120 = vmatpush1.bf16.msra.mxu0 %v4816
    %5121 = vmatprep.subr.bf16.mxu0 %v4822
    %5122 = vmatpush1.bf16.msra.mxu0 %v4821
    %5123 = vmatprep.subr.bf16.mxu0 %v4827
    %5124 = vmatpush1.bf16.msra.mxu0 %v4826
    %5125 = vmatprep.subr.bf16.mxu0 %v4832
    %5126 = vmatpush1.bf16.msra.mxu0 %v4831
    %5127 = vmatprep.subr.bf16.mxu0 %v4837
    %5128 = vmatpush1.bf16.msra.mxu0 %v4836
    %5129 = vmatprep.subr.bf16.mxu0 %v4842
    %5130 = vmatpush1.bf16.msra.mxu0 %v4841
    %5131 = vmatprep.subr.bf16.mxu0 %v4847
    %5132 = vmatpush1.bf16.msra.mxu0 %v4846
    %5133 = vmatprep.subr.bf16.mxu0 %v4852
    %5134 = vmatpush1.bf16.msra.mxu0 %v4851
    %5135 = vmatprep.subr.bf16.mxu0 %v4857
    %5136 = vmatpush1.bf16.msra.mxu0 %v4856
    %5137 = vmatprep.subr.bf16.mxu0 %v4862
    %5138 = vmatpush1.bf16.msra.mxu0 %v4861
    %5139 = vmatprep.subr.bf16.mxu0 %v4867
    %5140 = vmatpush1.bf16.msra.mxu0 %v4866
    %5141 = vmatprep.subr.bf16.mxu0 %v4872
    %5142 = vmatpush1.bf16.msra.mxu0 %v4871
    %5143 = vmatprep.subr.bf16.mxu0 %v4877
    %5144 = vmatpush1.bf16.msra.mxu0 %v4876
    %5145 = vmatprep.subr.bf16.mxu0 %v4882
    %5146 = vmatpush1.bf16.msra.mxu0 %v4881
    %5147 = vmatprep.mubr.bf16.mxu0 %v4722
    %5148 = vmatmul.mubr.bf16.gmra.mrb[0].mxu0 %v4721
    %v5149 = vpop.f32.mrb[0].mxu0
    %v5150 = vadd.f32 %v5109, %v5149
    %v5151 = vpop.f32.mrb[0].mxu0
    %v5152 = vadd.f32 %v5111, %v5151
    %v5153 = vpop.f32.mrb[0].mxu0
    %v5154 = vpop.f32.mrb[0].mxu0
    %5155 = vdwg.mxu0
    %5156 = vmatprep.subr.bf16.mxu0 %v4887
    %5157 = vmatpush1.bf16.msra.mxu0 %v4886
    %5158 = vmatprep.subr.bf16.mxu0 %v4892
    %5159 = vmatpush1.bf16.msra.mxu0 %v4891
    %5160 = vmatprep.subr.bf16.mxu0 %v4897
    %5161 = vmatpush1.bf16.msra.mxu0 %v4896
    %5162 = vmatprep.subr.bf16.mxu0 %v4902
    %5163 = vmatpush1.bf16.msra.mxu0 %v4901
    %5164 = vmatprep.subr.bf16.mxu0 %v4907
    %5165 = vmatpush1.bf16.msra.mxu0 %v4906
    %5166 = vmatprep.subr.bf16.mxu0 %v4912
    %5167 = vmatpush1.bf16.msra.mxu0 %v4911
    %5168 = vmatprep.subr.bf16.mxu0 %v4917
    %5169 = vmatpush1.bf16.msra.mxu0 %v4916
    %5170 = vmatprep.subr.bf16.mxu0 %v4922
    %5171 = vmatpush1.bf16.msra.mxu0 %v4921
    %5172 = vmatprep.subr.bf16.mxu0 0
    %5173 = vmatpush1.bf16.msra.mxu0 0
    %5174 = vmatprep.subr.bf16.mxu0 0
    %5175 = vmatpush1.bf16.msra.mxu0 0
    %5176 = vmatprep.subr.bf16.mxu0 0
    %5177 = vmatpush1.bf16.msra.mxu0 0
    %5178 = vmatprep.subr.bf16.mxu0 0
    %5179 = vmatpush1.bf16.msra.mxu0 0
    %5180 = vmatprep.subr.bf16.mxu0 0
    %5181 = vmatpush1.bf16.msra.mxu0 0
    %5182 = vmatprep.subr.bf16.mxu0 0
    %5183 = vmatpush1.bf16.msra.mxu0 0
    %5184 = vmatprep.subr.bf16.mxu0 0
    %5185 = vmatpush1.bf16.msra.mxu0 0
    %5186 = vmatprep.subr.bf16.mxu0 0
    %5187 = vmatpush1.bf16.msra.mxu0 0
    %5188 = vmatprep.mubr.bf16.mxu0 0
    %5189 = vmatmul.mubr.bf16.gmra.mrb[0].mxu0 %v4723
    %v5190 = vpop.f32.mrb[0].mxu0
    %v5191 = vadd.f32 %v5150, %v5190
    %v5192 = vpop.f32.mrb[0].mxu0
    %v5193 = vadd.f32 %v5152, %v5192
    %v5194 = vpop.f32.mrb[0].mxu0
    %v5195 = vpop.f32.mrb[0].mxu0
    %5196 = vdwg.mxu0
    %5197 = vmatprep.subr.bf16.mxu0 0
    %5198 = vmatpush1.bf16.msra.mxu0 %v4728
    %5199 = vmatprep.subr.bf16.mxu0 0
    %5200 = vmatpush1.bf16.msra.mxu0 %v4733
    %5201 = vmatprep.subr.bf16.mxu0 0
    %5202 = vmatpush1.bf16.msra.mxu0 %v4738
    %5203 = vmatprep.subr.bf16.mxu0 0
    %5204 = vmatpush1.bf16.msra.mxu0 %v4743
    %5205 = vmatprep.subr.bf16.mxu0 0
    %5206 = vmatpush1.bf16.msra.mxu0 %v4748
    %5207 = vmatprep.subr.bf16.mxu0 0
    %5208 = vmatpush1.bf16.msra.mxu0 %v4753
    %5209 = vmatprep.subr.bf16.mxu0 0
    %5210 = vmatpush1.bf16.msra.mxu0 %v4758
    %5211 = vmatprep.subr.bf16.mxu0 0
    %5212 = vmatpush1.bf16.msra.mxu0 %v4763
    %5213 = vmatprep.subr.bf16.mxu0 0
    %5214 = vmatpush1.bf16.msra.mxu0 %v4768
    %5215 = vmatprep.subr.bf16.mxu0 0
    %5216 = vmatpush1.bf16.msra.mxu0 %v4773
    %5217 = vmatprep.subr.bf16.mxu0 0
    %5218 = vmatpush1.bf16.msra.mxu0 %v4778
    %5219 = vmatprep.subr.bf16.mxu0 0
    %5220 = vmatpush1.bf16.msra.mxu0 %v4783
    %5221 = vmatprep.subr.bf16.mxu0 0
    %5222 = vmatpush1.bf16.msra.mxu0 %v4788
    %5223 = vmatprep.subr.bf16.mxu0 0
    %5224 = vmatpush1.bf16.msra.mxu0 %v4793
    %5225 = vmatprep.subr.bf16.mxu0 0
    %5226 = vmatpush1.bf16.msra.mxu0 %v4798
    %5227 = vmatprep.subr.bf16.mxu0 0
    %5228 = vmatpush1.bf16.msra.mxu0 %v4803
    %5229 = vmatprep.mubr.bf16.mxu0 %v4720
    %5230 = vmatmul.mubr.bf16.gmra.mrb[0].mxu0 %v4719
    %v5231 = vpop.f32.mrb[0].mxu0
    %v5232 = vadd.f32 %v4945, %v5231
    %v5233 = vpop.f32.mrb[0].mxu0
    %v5234 = vpop.f32.mrb[0].mxu0
    %v5235 = vpop.f32.mrb[0].mxu0
    %5236 = vdwg.mxu0
    %5237 = vmatprep.subr.bf16.mxu0 0
    %5238 = vmatpush1.bf16.msra.mxu0 %v4808
    %5239 = vmatprep.subr.bf16.mxu0 0
    %5240 = vmatpush1.bf16.msra.mxu0 %v4813
    %5241 = vmatprep.subr.bf16.mxu0 0
    %5242 = vmatpush1.bf16.msra.mxu0 %v4818
    %5243 = vmatprep.subr.bf16.mxu0 0
    %5244 = vmatpush1.bf16.msra.mxu0 %v4823
    %5245 = vmatprep.subr.bf16.mxu0 0
    %5246 = vmatpush1.bf16.msra.mxu0 %v4828
    %5247 = vmatprep.subr.bf16.mxu0 0
    %5248 = vmatpush1.bf16.msra.mxu0 %v4833
    %5249 = vmatprep.subr.bf16.mxu0 0
    %5250 = vmatpush1.bf16.msra.mxu0 %v4838
    %5251 = vmatprep.subr.bf16.mxu0 0
    %5252 = vmatpush1.bf16.msra.mxu0 %v4843
    %5253 = vmatprep.subr.bf16.mxu0 0
    %5254 = vmatpush1.bf16.msra.mxu0 %v4848
    %5255 = vmatprep.subr.bf16.mxu0 0
    %5256 = vmatpush1.bf16.msra.mxu0 %v4853
    %5257 = vmatprep.subr.bf16.mxu0 0
    %5258 = vmatpush1.bf16.msra.mxu0 %v4858
    %5259 = vmatprep.subr.bf16.mxu0 0
    %5260 = vmatpush1.bf16.msra.mxu0 %v4863
    %5261 = vmatprep.subr.bf16.mxu0 0
    %5262 = vmatpush1.bf16.msra.mxu0 %v4868
    %5263 = vmatprep.subr.bf16.mxu0 0
    %5264 = vmatpush1.bf16.msra.mxu0 %v4873
    %5265 = vmatprep.subr.bf16.mxu0 0
    %5266 = vmatpush1.bf16.msra.mxu0 %v4878
    %5267 = vmatprep.subr.bf16.mxu0 0
    %5268 = vmatpush1.bf16.msra.mxu0 %v4883
    %5269 = vmatprep.mubr.bf16.mxu0 %v4722
    %5270 = vmatmul.mubr.bf16.gmra.mrb[0].mxu0 %v4721
    %v5271 = vpop.f32.mrb[0].mxu0
    %v5272 = vadd.f32 %v5232, %v5271
    %v5273 = vpop.f32.mrb[0].mxu0
    %v5274 = vpop.f32.mrb[0].mxu0
    %v5275 = vpop.f32.mrb[0].mxu0
    %5276 = vdwg.mxu0
    %5277 = vmatprep.subr.bf16.mxu0 0
    %5278 = vmatpush1.bf16.msra.mxu0 %v4888
    %5279 = vmatprep.subr.bf16.mxu0 0
    %5280 = vmatpush1.bf16.msra.mxu0 %v4893
    %5281 = vmatprep.subr.bf16.mxu0 0
    %5282 = vmatpush1.bf16.msra.mxu0 %v4898
    %5283 = vmatprep.subr.bf16.mxu0 0
    %5284 = vmatpush1.bf16.msra.mxu0 %v4903
    %5285 = vmatprep.subr.bf16.mxu0 0
    %5286 = vmatpush1.bf16.msra.mxu0 %v4908
    %5287 = vmatprep.subr.bf16.mxu0 0
    %5288 = vmatpush1.bf16.msra.mxu0 %v4913
    %5289 = vmatprep.subr.bf16.mxu0 0
    %5290 = vmatpush1.bf16.msra.mxu0 %v4918
    %5291 = vmatprep.subr.bf16.mxu0 0
    %5292 = vmatpush1.bf16.msra.mxu0 %v4923
    %5293 = vmatprep.subr.bf16.mxu0 0
    %5294 = vmatpush1.bf16.msra.mxu0 0
    %5295 = vmatprep.subr.bf16.mxu0 0
    %5296 = vmatpush1.bf16.msra.mxu0 0
    %5297 = vmatprep.subr.bf16.mxu0 0
    %5298 = vmatpush1.bf16.msra.mxu0 0
    %5299 = vmatprep.subr.bf16.mxu0 0
    %5300 = vmatpush1.bf16.msra.mxu0 0
    %5301 = vmatprep.subr.bf16.mxu0 0
    %5302 = vmatpush1.bf16.msra.mxu0 0
    %5303 = vmatprep.subr.bf16.mxu0 0
    %5304 = vmatpush1.bf16.msra.mxu0 0
    %5305 = vmatprep.subr.bf16.mxu0 0
    %5306 = vmatpush1.bf16.msra.mxu0 0
    %5307 = vmatprep.subr.bf16.mxu0 0
    %5308 = vmatpush1.bf16.msra.mxu0 0
    %5309 = vmatprep.mubr.bf16.mxu0 0
    %5310 = vmatmul.mubr.bf16.gmra.mrb[0].mxu0 %v4723
    %v5311 = vpop.f32.mrb[0].mxu0
    %v5312 = vadd.f32 %v5272, %v5311
    %v5313 = vpop.f32.mrb[0].mxu0
    %v5314 = vpop.f32.mrb[0].mxu0
    %v5315 = vpop.f32.mrb[0].mxu0
    %5316 = vdwg.mxu0
    %v5317 = vmax.f32 %v5068, 0.0
    %v5318 = vmax.f32 %v5070, 0.0
    %v5319 = vmax.f32 %v5191, 0.0
    %v5320 = vmax.f32 %v5193, 0.0
    %v5321 = vmax.f32 %v5312, 0.0
    %s5322 = smul.u32 %s4110, 1
    %s5323 = sshll.u32 %s5322, 4
    %5324 = dma.done %s269, %s5323
    %v5325 = vpack.c.bf16 %v5317, %v5317
    %v5326 = vpack.c.bf16 %v5318, %v5318
    %v5327 = vpack.c.bf16 %v5319, %v5319
    %v5328 = vpack.c.bf16 %v5320, %v5320
    %v5329 = vpack.c.bf16 %v5321, %v5321
    %v5330 = vld [vmem:[#allocation11] sm:$0xff]
    %v5331 = vld [vmem:[#allocation11 + $0x8] sm:$0xff]
    %v5332 = vld [vmem:[#allocation11 + $0x10] sm:$0xff]
    %v5333 = vld [vmem:[#allocation11 + $0x18] sm:$0xff]
    %v5334 = vld [vmem:[#allocation11 + $0x20] sm:$0xff]
    %v5335 = vld [vmem:[#allocation11 + $0x28] sm:$0xff]
    %v5336 = vld [vmem:[#allocation11 + $0x30] sm:$0xff]
    %v5337 = vld [vmem:[#allocation11 + $0x38] sm:$0xff]
    %v5338 = vld [vmem:[#allocation11 + $0x40] sm:$0xff]
    %v5339 = vld [vmem:[#allocation11 + $0x48] sm:$0xff]
    %v5340 = vld [vmem:[#allocation11 + $0x50] sm:$0xff]
    %v5341 = vld [vmem:[#allocation11 + $0x58] sm:$0xff]
    %v5342 = vld [vmem:[#allocation11 + $0x60] sm:$0xff]
    %v5343 = vld [vmem:[#allocation11 + $0x68] sm:$0xff]
    %v5344 = vld [vmem:[#allocation11 + $0x70] sm:$0xff]
    %v5345 = vld [vmem:[#allocation11 + $0x78] sm:$0xff]
    %v5346 = vld [vmem:[#allocation11 + $0x80] sm:$0xff]
    %v5347 = vld [vmem:[#allocation11 + $0x88] sm:$0xff]
    %v5348 = vld [vmem:[#allocation11 + $0x90] sm:$0xff]
    %v5349 = vld [vmem:[#allocation11 + $0x98] sm:$0xff]
    %v5350 = vld [vmem:[#allocation11 + $0xa0] sm:$0xff]
    %v5351 = vld [vmem:[#allocation11 + $0xa8] sm:$0xff]
    %v5352 = vld [vmem:[#allocation11 + $0xb0] sm:$0xff]
    %v5353 = vld [vmem:[#allocation11 + $0xb8] sm:$0xff]
    %v5354 = vld [vmem:[#allocation11 + $0xc0] sm:$0xff]
    %v5355 = vld [vmem:[#allocation11 + $0xc8] sm:$0xff]
    %v5356 = vld [vmem:[#allocation11 + $0xd0] sm:$0xff]
    %v5357 = vld [vmem:[#allocation11 + $0xd8] sm:$0xff]
    %v5358 = vld [vmem:[#allocation11 + $0xe0] sm:$0xff]
    %v5359 = vld [vmem:[#allocation11 + $0xe8] sm:$0xff]
    %v5360 = vld [vmem:[#allocation11 + $0xf0] sm:$0xff]
    %v5361 = vld [vmem:[#allocation11 + $0xf8] sm:$0xff]
    %v5362 = vld [vmem:[#allocation11 + $0x100] sm:$0xff]
    %v5363 = vld [vmem:[#allocation11 + $0x108] sm:$0xff]
    %v5364 = vld [vmem:[#allocation11 + $0x110] sm:$0xff]
    %v5365 = vld [vmem:[#allocation11 + $0x118] sm:$0xff]
    %v5366 = vld [vmem:[#allocation11 + $0x120] sm:$0xff]
    %v5367 = vld [vmem:[#allocation11 + $0x128] sm:$0xff]
    %v5368 = vld [vmem:[#allocation11 + $0x130] sm:$0xff]
    %v5369 = vld [vmem:[#allocation11 + $0x138] sm:$0xff]
    %v5370 = vld [vmem:[#allocation28] sm:$0x1]
    %v5372 = vlaneseq
    %v5373 = vshrl.u32 %v5372, 7
    %v5374 = vsub.s32 0, %v5373
    %v5375 = vrot.slane %v5370, %v5374
    %5377 = vmatprep.subr.bf16.mxu0 0
    %5378 = vmatpush1.bf16.msra.mxu0 %v5330
    %5379 = vmatprep.subr.bf16.mxu0 0
    %5380 = vmatpush1.bf16.msra.mxu0 %v5331
    %5381 = vmatprep.subr.bf16.mxu0 0
    %5382 = vmatpush1.bf16.msra.mxu0 %v5332
    %5383 = vmatprep.subr.bf16.mxu0 0
    %5384 = vmatpush1.bf16.msra.mxu0 %v5333
    %5385 = vmatprep.subr.bf16.mxu0 0
    %5386 = vmatpush1.bf16.msra.mxu0 %v5334
    %5387 = vmatprep.subr.bf16.mxu0 0
    %5388 = vmatpush1.bf16.msra.mxu0 %v5335
    %5389 = vmatprep.subr.bf16.mxu0 0
    %5390 = vmatpush1.bf16.msra.mxu0 %v5336
    %5391 = vmatprep.subr.bf16.mxu0 0
    %5392 = vmatpush1.bf16.msra.mxu0 %v5337
    %5393 = vmatprep.subr.bf16.mxu0 0
    %5394 = vmatpush1.bf16.msra.mxu0 %v5338
    %5395 = vmatprep.subr.bf16.mxu0 0
    %5396 = vmatpush1.bf16.msra.mxu0 %v5339
    %5397 = vmatprep.subr.bf16.mxu0 0
    %5398 = vmatpush1.bf16.msra.mxu0 %v5340
    %5399 = vmatprep.subr.bf16.mxu0 0
    %5400 = vmatpush1.bf16.msra.mxu0 %v5341
    %5401 = vmatprep.subr.bf16.mxu0 0
    %5402 = vmatpush1.bf16.msra.mxu0 %v5342
    %5403 = vmatprep.subr.bf16.mxu0 0
    %5404 = vmatpush1.bf16.msra.mxu0 %v5343
    %5405 = vmatprep.subr.bf16.mxu0 0
    %5406 = vmatpush1.bf16.msra.mxu0 %v5344
    %5407 = vmatprep.subr.bf16.mxu0 0
    %5408 = vmatpush1.bf16.msra.mxu0 %v5345
    %5409 = vmatprep.mubr.bf16.mxu0 %v5326
    %5410 = vmatmul.mubr.bf16.gmra.mrb[0].mxu0 %v5325
    %v5411 = vpop.f32.mrb[0].mxu0
    %v5412 = vadd.f32 %v5375, %v5411
    %v5413 = vpop.f32.mrb[0].mxu0
    %v5414 = vpop.f32.mrb[0].mxu0
    %v5415 = vpop.f32.mrb[0].mxu0
    %5416 = vdwg.mxu0
    %5417 = vmatprep.subr.bf16.mxu0 0
    %5418 = vmatpush1.bf16.msra.mxu0 %v5346
    %5419 = vmatprep.subr.bf16.mxu0 0
    %5420 = vmatpush1.bf16.msra.mxu0 %v5347
    %5421 = vmatprep.subr.bf16.mxu0 0
    %5422 = vmatpush1.bf16.msra.mxu0 %v5348
    %5423 = vmatprep.subr.bf16.mxu0 0
    %5424 = vmatpush1.bf16.msra.mxu0 %v5349
    %5425 = vmatprep.subr.bf16.mxu0 0
    %5426 = vmatpush1.bf16.msra.mxu0 %v5350
    %5427 = vmatprep.subr.bf16.mxu0 0
    %5428 = vmatpush1.bf16.msra.mxu0 %v5351
    %5429 = vmatprep.subr.bf16.mxu0 0
    %5430 = vmatpush1.bf16.msra.mxu0 %v5352
    %5431 = vmatprep.subr.bf16.mxu0 0
    %5432 = vmatpush1.bf16.msra.mxu0 %v5353
    %5433 = vmatprep.subr.bf16.mxu0 0
    %5434 = vmatpush1.bf16.msra.mxu0 %v5354
    %5435 = vmatprep.subr.bf16.mxu0 0
    %5436 = vmatpush1.bf16.msra.mxu0 %v5355
    %5437 = vmatprep.subr.bf16.mxu0 0
    %5438 = vmatpush1.bf16.msra.mxu0 %v5356
    %5439 = vmatprep.subr.bf16.mxu0 0
    %5440 = vmatpush1.bf16.msra.mxu0 %v5357
    %5441 = vmatprep.subr.bf16.mxu0 0
    %5442 = vmatpush1.bf16.msra.mxu0 %v5358
    %5443 = vmatprep.subr.bf16.mxu0 0
    %5444 = vmatpush1.bf16.msra.mxu0 %v5359
    %5445 = vmatprep.subr.bf16.mxu0 0
    %5446 = vmatpush1.bf16.msra.mxu0 %v5360
    %5447 = vmatprep.subr.bf16.mxu0 0
    %5448 = vmatpush1.bf16.msra.mxu0 %v5361
    %5449 = vmatprep.mubr.bf16.mxu0 %v5328
    %5450 = vmatmul.mubr.bf16.gmra.mrb[0].mxu0 %v5327
    %v5451 = vpop.f32.mrb[0].mxu0
    %v5452 = vadd.f32 %v5412, %v5451
    %v5453 = vpop.f32.mrb[0].mxu0
    %v5454 = vpop.f32.mrb[0].mxu0
    %v5455 = vpop.f32.mrb[0].mxu0
    %5456 = vdwg.mxu0
    %5457 = vmatprep.subr.bf16.mxu0 0
    %5458 = vmatpush1.bf16.msra.mxu0 %v5362
    %5459 = vmatprep.subr.bf16.mxu0 0
    %5460 = vmatpush1.bf16.msra.mxu0 %v5363
    %5461 = vmatprep.subr.bf16.mxu0 0
    %5462 = vmatpush1.bf16.msra.mxu0 %v5364
    %5463 = vmatprep.subr.bf16.mxu0 0
    %5464 = vmatpush1.bf16.msra.mxu0 %v5365
    %5465 = vmatprep.subr.bf16.mxu0 0
    %5466 = vmatpush1.bf16.msra.mxu0 %v5366
    %5467 = vmatprep.subr.bf16.mxu0 0
    %5468 = vmatpush1.bf16.msra.mxu0 %v5367
    %5469 = vmatprep.subr.bf16.mxu0 0
    %5470 = vmatpush1.bf16.msra.mxu0 %v5368
    %5471 = vmatprep.subr.bf16.mxu0 0
    %5472 = vmatpush1.bf16.msra.mxu0 %v5369
    %5473 = vmatprep.subr.bf16.mxu0 0
    %5474 = vmatpush1.bf16.msra.mxu0 0
    %5475 = vmatprep.subr.bf16.mxu0 0
    %5476 = vmatpush1.bf16.msra.mxu0 0
    %5477 = vmatprep.subr.bf16.mxu0 0
    %5478 = vmatpush1.bf16.msra.mxu0 0
    %5479 = vmatprep.subr.bf16.mxu0 0
    %5480 = vmatpush1.bf16.msra.mxu0 0
    %5481 = vmatprep.subr.bf16.mxu0 0
    %5482 = vmatpush1.bf16.msra.mxu0 0
    %5483 = vmatprep.subr.bf16.mxu0 0
    %5484 = vmatpush1.bf16.msra.mxu0 0
    %5485 = vmatprep.subr.bf16.mxu0 0
    %5486 = vmatpush1.bf16.msra.mxu0 0
    %5487 = vmatprep.subr.bf16.mxu0 0
    %5488 = vmatpush1.bf16.msra.mxu0 0
    %5489 = vmatprep.mubr.bf16.mxu0 0
    %5490 = vmatmul.mubr.bf16.gmra.mrb[0].mxu0 %v5329
    %v5491 = vpop.f32.mrb[0].mxu0
    %v5492 = vadd.f32 %v5452, %v5491
    %v5493 = vpop.f32.mrb[0].mxu0
    %v5494 = vpop.f32.mrb[0].mxu0
    %v5495 = vpop.f32.mrb[0].mxu0
    %5496 = vdwg.mxu0
    %vm5497 = vcmask 189440
    %5498 = vst.msk [vmem:[#allocation30] sm:$0x3] %vm5497, %v5492
    // Predicated region
    $region120: #{cnn_forward.1} parent=1 // pred_check
      _
    $region121: #{cnn_forward.1} parent=1 // pred_check_branch
      %5500 = sbr.rel (0) target = $region123
    $region122: #{cnn_forward.1} parent=1 // pred_region
      %s5502 = ssub.s32 32, 32
      %5503 = vsyncadd [#allocation15], %s5502
      %s5505 = sshll.u32 [#allocation30], 4
      %s5506 = int_to_ptr.vmem [resolvable:$true] %s5505
      %5508 = dma.vmem_to_hbm [thread:$0]  %s5506, 32, %s15, [#allocation15]
    $region123: #{cnn_forward.1} parent=1 // pred_fallthru
      _
    // Predicated region
    $region124: #{cnn_forward.1} parent=1 // pred_check
      _
    $region125: #{cnn_forward.1} parent=1 // pred_check_branch
      %5510 = sbr.rel (0) target = $region127
    $region126: #{cnn_forward.1} parent=1 // pred_region
      %5511 = dma.done [#allocation15], 32
    $region127: #{cnn_forward.1} parent=1 // pred_fallthru
      _
    %5512 = vsyncpa [#allocation14], 1
    %5513 = vsyncpa [#allocation17], 1
    %5514 = vsyncpa [#allocation20], 1
    %5515 = vsyncpa [#allocation23], 1
    %5516 = vsyncpa [#allocation26], 1
    %5517 = vsyncpa [#allocation29], 1
    %5518 = vsyncpa [#allocation15], 1
  %5519 = vsyncmov [#allocation12]
  %s5520 = vpop.sfrf %5519
  %p5521 = scmp.eq.s32.totalorder %s5520, 0
  %p5522 = pneg %p5521
  %5524 = shalt.err (%p5522)
  %s5525 = scalar_lea.sflag [#allocation12], 1
  %5526 = vsyncmov %s5525
  %s5527 = vpop.sfrf %5526
  %p5528 = scmp.eq.s32.totalorder %s5527, 0
  %p5529 = pneg %p5528
  %5531 = shalt.err (%p5529)
  %s5532 = scalar_lea.sflag [#allocation12], 2
  %5533 = vsyncmov %s5532
  %s5534 = vpop.sfrf %5533
  %p5535 = scmp.eq.s32.totalorder %s5534, 0
  %p5536 = pneg %p5535
  %5538 = shalt.err (%p5536)
  %s5539 = scalar_lea.sflag [#allocation12], 3
  %5540 = vsyncmov %s5539
  %s5541 = vpop.sfrf %5540
  %p5542 = scmp.eq.s32.totalorder %s5541, 0
  %p5543 = pneg %p5542
  %5545 = shalt.err (%p5543)

</llo_original>
